<compile_context>
chip_gen: v7x
topology: tpu7x:2x2x1
jax: 0.10.0
libtpu: 0.0.40
codegen_flags: <defaults>
</compile_context>

<pallas_src>
import math
import functools

import jax
import jax.numpy as jnp
from jax import lax
from jax.experimental import pallas as pl
from jax.experimental.pallas import tpu as pltpu


def _tpu_config():
    """Pick scoped-VMEM limit and row-tile target per TPU generation."""
    try:
        kind = jax.devices()[0].device_kind.lower()
    except Exception:
        kind = ""
    if "v5" in kind or "v6" in kind:
        return 96 * 1024 * 1024, 512     # 128 MiB physical VMEM: go bigger
    return 48 * 1024 * 1024, 256         # v7x (64 MiB) / unknown: conservative


_VMEM_LIMIT, _ROW_TILE_TARGET = _tpu_config()

_COMPILER_PARAMS = pltpu.CompilerParams(
    dimension_semantics=("parallel",),
    vmem_limit_bytes=_VMEM_LIMIT,
)


# -----------------------------------------------------------------------------
# Pallas kernels
# -----------------------------------------------------------------------------
def _inproj_pe_kernel(x_ref, w_ref, b_ref, pe_ref, o_ref, *, scale):
    # (x @ W + b) * sqrt(d_model) + positional_encoding ; row-tiled over B*T.
    x = x_ref[...].astype(jnp.bfloat16)
    acc = jnp.dot(x, w_ref[...], preferred_element_type=jnp.float32)
    acc = (acc + b_ref[...]) * scale + pe_ref[...]
    o_ref[...] = acc.astype(o_ref.dtype)


def _attn_block_kernel(h_ref, wqkv_ref, bqkv_ref, wout_ref, bout_ref,
                       g_ref, beta_ref, o_ref, *, bb, seq, nhead, sm_scale, eps):
    # Fused: QKV proj + per-head softmax attention + out proj + residual + LN.
    # One grid step handles `bb` full batch elements (bb*seq rows).
    h = h_ref[...].astype(jnp.float32)                       # (bb*T, D)
    rows, d_model = h.shape
    dh = d_model // nhead

    qkv = jnp.dot(h.astype(jnp.bfloat16), wqkv_ref[...],
                  preferred_element_type=jnp.float32) + bqkv_ref[...]   # (rows, 3D)

    acc = jnp.zeros((rows, d_model), jnp.float32)
    for hd in range(nhead):                                  # static unrolled
        q = qkv[:, hd * dh:(hd + 1) * dh].reshape(bb, seq, dh).astype(jnp.bfloat16)
        k = qkv[:, d_model + hd * dh:d_model + (hd + 1) * dh
                ].reshape(bb, seq, dh).astype(jnp.bfloat16)
        v = qkv[:, 2 * d_model + hd * dh:2 * d_model + (hd + 1) * dh
                ].reshape(bb, seq, dh).astype(jnp.bfloat16)
        s = jnp.einsum('bqd,bkd->bqk', q, k,
                       preferred_element_type=jnp.float32) * sm_scale
        m = jnp.max(s, axis=-1, keepdims=True)
        p = jnp.exp(s - m)
        inv = pl.reciprocal(jnp.sum(p, axis=-1, keepdims=True), approx=True)
        p = (p * inv).astype(jnp.bfloat16)
        ho = jnp.einsum('bqk,bkd->bqd', p, v,
                        preferred_element_type=jnp.float32)             # (bb,T,dh)
        # partial out-projection accumulate (no concat, no (D,D) dot)
        acc = acc + jnp.dot(ho.reshape(rows, dh).astype(jnp.bfloat16),
                            wout_ref[hd * dh:(hd + 1) * dh, :],
                            preferred_element_type=jnp.float32)
    proj = acc + bout_ref[...]

    # post-norm: LayerNorm(h + attn_out) with f32 statistics
    y = h + proj
    mean = jnp.mean(y, axis=-1, keepdims=True)
    c = y - mean
    var = jnp.mean(c * c, axis=-1, keepdims=True)
    o_ref[...] = (c * lax.rsqrt(var + eps) * g_ref[...] + beta_ref[...]
                  ).astype(o_ref.dtype)


def _ffn_block_kernel(h_ref, w1_ref, b1_ref, w2_ref, b2_ref,
                      g_ref, beta_ref, o_ref, *, eps):
    # Fused: FF1 + ReLU + FF2 + residual + LN, row-tiled over B*T.
    h = h_ref[...].astype(jnp.float32)                       # (TM, D)
    ff = jnp.dot(h.astype(jnp.bfloat16), w1_ref[...],
                 preferred_element_type=jnp.float32) + b1_ref[...]
    ff = jnp.maximum(ff, 0.0).astype(jnp.bfloat16)
    proj = jnp.dot(ff, w2_ref[...], preferred_element_type=jnp.float32) + b2_ref[...]

    y = h + proj
    mean = jnp.mean(y, axis=-1, keepdims=True)
    c = y - mean
    var = jnp.mean(c * c, axis=-1, keepdims=True)
    o_ref[...] = (c * lax.rsqrt(var + eps) * g_ref[...] + beta_ref[...]
                  ).astype(o_ref.dtype)


def _heads_kernel(x_ref,
                  aw1, ab1, aw2, ab2, aw3, ab3,      # angle head
                  bw1, bb1, bw2, bb2, bw3, bb3,      # beamforming head
                  sw1, sb1, sw2, sb2, sw3, sb3,      # subarray head
                  qw1, qb1, qw2, qb2, qw3, qb3,      # beam-quality head
                  angle_o, beam_o, sub_o, qual_o):
    # All four 3-layer MLP heads fused into one kernel sharing one DMA of x.
    x = x_ref[...].astype(jnp.bfloat16)

    def mlp(w1, b1, w2, b2, w3, b3):
        h1 = jnp.dot(x, w1[...], preferred_element_type=jnp.float32) + b1[...]
        h1 = jnp.maximum(h1, 0.0).astype(jnp.bfloat16)
        h2 = jnp.dot(h1, w2[...], preferred_element_type=jnp.float32) + b2[...]
        h2 = jnp.maximum(h2, 0.0).astype(jnp.bfloat16)
        return jnp.dot(h2, w3[...], preferred_element_type=jnp.float32) + b3[...]

    angle_o[...] = mlp(aw1, ab1, aw2, ab2, aw3, ab3).astype(angle_o.dtype)
    beam_o[...] = mlp(bw1, bb1, bw2, bb2, bw3, bb3).astype(beam_o.dtype)
    sub_o[...] = mlp(sw1, sb1, sw2, sb2, sw3, sb3).astype(sub_o.dtype)
    qual_o[...] = mlp(qw1, qb1, qw2, qb2, qw3, qb3).astype(qual_o.dtype)


# -----------------------------------------------------------------------------
# Pallas wrappers
# -----------------------------------------------------------------------------
def _row_tile(m):
    return m if m <= _ROW_TILE_TARGET else _ROW_TILE_TARGET


def pallas_input_proj(x2d, w, b, pe_tile, *, tm, scale):
    M, K = x2d.shape
    D = w.shape[1]
    return pl.pallas_call(
        functools.partial(_inproj_pe_kernel, scale=scale),
        out_shape=jax.ShapeDtypeStruct((M, D), jnp.bfloat16),
        grid=(pl.cdiv(M, tm),),
        in_specs=[
            pl.BlockSpec((tm, K), lambda i: (i, 0)),
            pl.BlockSpec((K, D), lambda i: (0, 0)),
            pl.BlockSpec((1, D), lambda i: (0, 0)),
            pl.BlockSpec((tm, D), lambda i: (0, 0)),
        ],
        out_specs=pl.BlockSpec((tm, D), lambda i: (i, 0)),
        compiler_params=_COMPILER_PARAMS,
    )(x2d, w, b.reshape(1, D), pe_tile)


def pallas_attn_block(h, p, *, B, T, nhead, bb, eps=1e-5):
    M, D = h.shape
    rows = bb * T
    sm_scale = 1.0 / math.sqrt(D // nhead)
    return pl.pallas_call(
        functools.partial(_attn_block_kernel, bb=bb, seq=T, nhead=nhead,
                          sm_scale=sm_scale, eps=eps),
        out_shape=jax.ShapeDtypeStruct((M, D), jnp.bfloat16),
        grid=(B // bb,),
        in_specs=[
            pl.BlockSpec((rows, D), lambda i: (i, 0)),
            pl.BlockSpec((D, 3 * D), lambda i: (0, 0)),
            pl.BlockSpec((1, 3 * D), lambda i: (0, 0)),
            pl.BlockSpec((D, D), lambda i: (0, 0)),
            pl.BlockSpec((1, D), lambda i: (0, 0)),
            pl.BlockSpec((1, D), lambda i: (0, 0)),
            pl.BlockSpec((1, D), lambda i: (0, 0)),
        ],
        out_specs=pl.BlockSpec((rows, D), lambda i: (i, 0)),
        compiler_params=_COMPILER_PARAMS,
    )(h,
      p['attn_in_w'], p['attn_in_b'].reshape(1, 3 * D),
      p['attn_out_w'], p['attn_out_b'].reshape(1, D),
      p['ln1_g'].reshape(1, D), p['ln1_b'].reshape(1, D))


def pallas_ffn_block(h, p, *, eps=1e-5):
    M, D = h.shape
    F = p['ff1_w'].shape[1]
    TM = _row_tile(M)
    return pl.pallas_call(
        functools.partial(_ffn_block_kernel, eps=eps),
        out_shape=jax.ShapeDtypeStruct((M, D), jnp.bfloat16),
        grid=(pl.cdiv(M, TM),),
        in_specs=[
            pl.BlockSpec((TM, D), lambda i: (i, 0)),
            pl.BlockSpec((D, F), lambda i: (0, 0)),
            pl.BlockSpec((1, F), lambda i: (0, 0)),
            pl.BlockSpec((F, D), lambda i: (0, 0)),
            pl.BlockSpec((1, D), lambda i: (0, 0)),
            pl.BlockSpec((1, D), lambda i: (0, 0)),
            pl.BlockSpec((1, D), lambda i: (0, 0)),
        ],
        out_specs=pl.BlockSpec((TM, D), lambda i: (i, 0)),
        compiler_params=_COMPILER_PARAMS,
    )(h,
      p['ff1_w'], p['ff1_b'].reshape(1, F),
      p['ff2_w'], p['ff2_b'].reshape(1, D),
      p['ln2_g'].reshape(1, D), p['ln2_b'].reshape(1, D))


def pallas_heads(x, angle, beam, sub, qual):
    # One pallas_call, four outputs, one DMA of x shared by all heads.
    M, D = x.shape
    TM = _row_tile(M)

    def flat(params):
        (w1, b1), (w2, b2), (w3, b3) = params
        return [w1, b1.reshape(1, -1), w2, b2.reshape(1, -1), w3, b3.reshape(1, -1)]

    args = [x] + flat(angle) + flat(beam) + flat(sub) + flat(qual)
    in_specs = ([pl.BlockSpec((TM, D), lambda i: (i, 0))] +
                [pl.BlockSpec(a.shape, lambda i: (0, 0)) for a in args[1:]])

    out_dims = (angle[2][0].shape[1], beam[2][0].shape[1],
                sub[2][0].shape[1], qual[2][0].shape[1])
    out_shape = tuple(jax.ShapeDtypeStruct((M, n), jnp.float32) for n in out_dims)
    out_specs = tuple(pl.BlockSpec((TM, n), lambda i: (i, 0)) for n in out_dims)

    return pl.pallas_call(
        _heads_kernel,
        out_shape=out_shape,
        grid=(pl.cdiv(M, TM),),
        in_specs=in_specs,
        out_specs=out_specs,
        compiler_params=_COMPILER_PARAMS,
    )(*args)


# -----------------------------------------------------------------------------
# Model glue (parameter construction, reshapes)
# -----------------------------------------------------------------------------
def positional_encoding(seq_len, d_model):
    position = jnp.arange(seq_len, dtype=jnp.float32)[:, None]
    div_term = jnp.exp(jnp.arange(0, d_model, 2, dtype=jnp.float32)
                       * (-math.log(10000.0) / d_model))
    ang = position * div_term
    pe = jnp.zeros((seq_len, d_model), jnp.float32)
    pe = pe.at[:, 0::2].set(jnp.sin(ang))
    pe = pe.at[:, 1::2].set(jnp.cos(ang))
    return pe


def init_params(key, *, input_dim, d_model, nhead, num_layers, num_subarrays, dff):
    keys = iter(jax.random.split(key, 1024))

    def w(shape, scale=0.02):
        # matmul weights stored bf16 (MXU-native; halves HBM/VMEM traffic)
        return (scale * jax.random.normal(next(keys), shape, jnp.float32)
                ).astype(jnp.bfloat16)

    def z(shape):
        return jnp.zeros(shape, jnp.float32)

    def mlp(dims):  # list of (w, b) pairs, stored (in, out)
        return [(w((a, b)), z((b,))) for a, b in zip(dims[:-1], dims[1:])]

    layers = []
    for _ in range(num_layers):
        layers.append(dict(
            attn_in_w=w((d_model, 3 * d_model)), attn_in_b=z((3 * d_model,)),
            attn_out_w=w((d_model, d_model)),    attn_out_b=z((d_model,)),
            ln1_g=jnp.ones((d_model,), jnp.float32), ln1_b=z((d_model,)),
            ff1_w=w((d_model, dff)), ff1_b=z((dff,)),
            ff2_w=w((dff, d_model)), ff2_b=z((d_model,)),
            ln2_g=jnp.ones((d_model,), jnp.float32), ln2_b=z((d_model,)),
        ))

    return dict(
        in_proj_w=w((input_dim, d_model)), in_proj_b=z((d_model,)),
        layers=layers,
        angle_head=mlp([d_model, 256, 64, 2]),
        beamforming_head=mlp([d_model, 512, 256, 256 * 2]),
        subarray_head=mlp([d_model, 512, 256, num_subarrays]),
        beam_quality_head=mlp([d_model, 256, 64, 3]),
    )


def forward(params, x, *, d_model, nhead):
    B, C, H, W, T = x.shape
    assert T % 8 == 0, "T must be a multiple of 8 (f32 sublane tiling)"
    assert d_model % nhead == 0

    # permute(0,4,1,2,3).reshape(B, T, -1) — same row-major flatten as PyTorch
    x2d = (jnp.transpose(x, (0, 4, 1, 2, 3))
              .reshape(B * T, C * H * W)
              .astype(jnp.float32))
    M = B * T

    # input-projection row tile: multiple of T (so PE repeats per block), <= M
    tm = min(M, max(T, (_ROW_TILE_TARGET // T) * T))
    pe_tile = jnp.tile(positional_encoding(T, d_model), (tm // T, 1))   # (tm, D)

    h = pallas_input_proj(x2d, params['in_proj_w'], params['in_proj_b'], pe_tile,
                          tm=tm, scale=math.sqrt(d_model))

    # batch elements per attention step (largest divisor of B with bb*T rows
    # near the row-tile target) — keeps QKV / out-proj matmuls MXU-shaped.
    bb = max(1, min(B, _ROW_TILE_TARGET // T))
    while B % bb:
        bb -= 1

    for layer in params['layers']:
        h = pallas_attn_block(h, layer, B=B, T=T, nhead=nhead, bb=bb)
        h = pallas_ffn_block(h, layer)

    last = h.reshape(B, T, d_model)[:, -1, :]                 # (B, D) bf16

    angles, beam, sub, qual = pallas_heads(
        last, params['angle_head'], params['beamforming_head'],
        params['subarray_head'], params['beam_quality_head'])

    return {
        'angles': angles,
        'beamforming_weights': beam,
        'subarray_assignment': sub,
        'beam_quality': qual,
    }


# -----------------------------------------------------------------------------
if __name__ == "__main__":
    # small config consistent with the module's forward
    # (lane-friendly d_model=128, dh=32; dff scaled down for the demo)
    B, C, H, W, T = 2, 2, 8, 8, 8
    d_model, nhead, num_layers = 128, 4, 2
    num_subarrays, dff = 16, 256

    key = jax.random.PRNGKey(0)
    k_x, k_p = jax.random.split(key)
    x = jax.random.normal(k_x, (B, C, H, W, T), jnp.float32)

    params = init_params(k_p, input_dim=C * H * W, d_model=d_model, nhead=nhead,
                         num_layers=num_layers, num_subarrays=num_subarrays, dff=dff)

    fwd = jax.jit(functools.partial(forward, d_model=d_model, nhead=nhead))
    out = fwd(params, x)
    jax.block_until_ready(out)

    assert out['angles'].shape == (B, 2)
    assert out['beamforming_weights'].shape == (B, 512)
    assert out['subarray_assignment'].shape == (B, num_subarrays)
    assert out['beam_quality'].shape == (B, 3)
    assert all(bool(jnp.all(jnp.isfinite(v))) for v in out.values())
    print("KERNEL_OK")
</pallas_src>

<mosaic_0001>
module attributes {stable_mosaic.version = 11 : i64} {
  func.func @_inproj_pe_kernel(%arg0: i32, %arg1: memref<16x128xf32, #tpu.memory_space<vmem>>, %arg2: memref<128x128xbf16, #tpu.memory_space<vmem>>, %arg3: memref<1x128xf32, #tpu.memory_space<vmem>>, %arg4: memref<16x128xf32, #tpu.memory_space<vmem>>, %arg5: memref<16x128xbf16, #tpu.memory_space<vmem>>) attributes {dimension_semantics = [#tpu.dimension_semantics<parallel>], iteration_bounds = array<i64: 1>, scalar_prefetch = 0 : i64, scratch_operands = 0 : i64, tpu.core_type = #tpu.core_type<tc>, window_params = [{transform_indices = @transform_0, window_bounds = array<i64: 16, 128>}, {pipeline_mode = #tpu.pipeline_mode<synchronous>, transform_indices = @transform_1, window_bounds = array<i64: 128, 128>}, {pipeline_mode = #tpu.pipeline_mode<synchronous>, transform_indices = @transform_2, window_bounds = array<i64: 1, 128>}, {pipeline_mode = #tpu.pipeline_mode<synchronous>, transform_indices = @transform_3, window_bounds = array<i64: 16, 128>}, {transform_indices = @transform_4, window_bounds = array<i64: 16, 128>}]} {
    %c0 = arith.constant 0 : index
    %c0_0 = arith.constant 0 : index
    %0 = vector.load %arg1[%c0, %c0_0] : memref<16x128xf32, #tpu.memory_space<vmem>>, vector<16x128xf32>
    %1 = arith.truncf %0 : vector<16x128xf32> to vector<16x128xbf16>
    %c0_1 = arith.constant 0 : index
    %c0_2 = arith.constant 0 : index
    %2 = vector.load %arg2[%c0_1, %c0_2] : memref<128x128xbf16, #tpu.memory_space<vmem>>, vector<128x128xbf16>
    %cst = arith.constant dense<0.000000e+00> : vector<16x128xf32>
    %3 = tpu.matmul %1, %2, %cst {dimension_numbers = #tpu.dot_dimension_numbers<[1], [0], [0], [1], [0, 0, 1, 1], [], []>} : vector<16x128xbf16>, vector<128x128xbf16>, vector<16x128xf32> -> vector<16x128xf32>
    %c0_3 = arith.constant 0 : index
    %c0_4 = arith.constant 0 : index
    %4 = vector.load %arg3[%c0_3, %c0_4] : memref<1x128xf32, #tpu.memory_space<vmem>>, vector<1x128xf32>
    %5 = vector.broadcast %4 : vector<1x128xf32> to vector<16x128xf32>
    %6 = arith.addf %3, %5 : vector<16x128xf32>
    %cst_5 = arith.constant 11.3137083 : f32
    %7 = vector.broadcast %cst_5 : f32 to vector<16x128xf32>
    %8 = arith.mulf %6, %7 : vector<16x128xf32>
    %c0_6 = arith.constant 0 : index
    %c0_7 = arith.constant 0 : index
    %9 = vector.load %arg4[%c0_6, %c0_7] : memref<16x128xf32, #tpu.memory_space<vmem>>, vector<16x128xf32>
    %10 = arith.addf %8, %9 : vector<16x128xf32>
    %11 = arith.truncf %10 : vector<16x128xf32> to vector<16x128xbf16>
    %c0_8 = arith.constant 0 : index
    %c0_9 = arith.constant 0 : index
    %12 = vector.load %arg5[%c0_8, %c0_9] : memref<16x128xbf16, #tpu.memory_space<vmem>>, vector<16x128xbf16>
    tpu.vector_store %arg5[%c0_8, %c0_9], %11 {strides = array<i32>} : memref<16x128xbf16, #tpu.memory_space<vmem>>, vector<16x128xbf16>,
    return
  }
  func.func @transform_0(%arg0: i32) -> (i32, i32) {
    %c0_i32 = arith.constant 0 : i32
    %c0_i32_0 = arith.constant 0 : i32
    return %arg0, %c0_i32 : i32, i32
  }
  func.func @transform_1(%arg0: i32) -> (i32, i32) {
    %c0_i32 = arith.constant 0 : i32
    %c0_i32_0 = arith.constant 0 : i32
    %c0_i32_1 = arith.constant 0 : i32
    return %c0_i32, %c0_i32_0 : i32, i32
  }
  func.func @transform_2(%arg0: i32) -> (i32, i32) {
    %c0_i32 = arith.constant 0 : i32
    %c0_i32_0 = arith.constant 0 : i32
    %c0_i32_1 = arith.constant 0 : i32
    return %c0_i32, %c0_i32_0 : i32, i32
  }
  func.func @transform_3(%arg0: i32) -> (i32, i32) {
    %c0_i32 = arith.constant 0 : i32
    %c0_i32_0 = arith.constant 0 : i32
    %c0_i32_1 = arith.constant 0 : i32
    return %c0_i32, %c0_i32_0 : i32, i32
  }
  func.func @transform_4(%arg0: i32) -> (i32, i32) {
    %c0_i32 = arith.constant 0 : i32
    %c0_i32_0 = arith.constant 0 : i32
    return %arg0, %c0_i32 : i32, i32
  }
}

module attributes {stable_mosaic.version = 11 : i64} {
  func.func @_ffn_block_kernel(%arg0: i32, %arg1: memref<16x128xbf16, #tpu.memory_space<vmem>>, %arg2: memref<128x256xbf16, #tpu.memory_space<vmem>>, %arg3: memref<1x256xf32, #tpu.memory_space<vmem>>, %arg4: memref<256x128xbf16, #tpu.memory_space<vmem>>, %arg5: memref<1x128xf32, #tpu.memory_space<vmem>>, %arg6: memref<1x128xf32, #tpu.memory_space<vmem>>, %arg7: memref<1x128xf32, #tpu.memory_space<vmem>>, %arg8: memref<16x128xbf16, #tpu.memory_space<vmem>>) attributes {dimension_semantics = [#tpu.dimension_semantics<parallel>], iteration_bounds = array<i64: 1>, scalar_prefetch = 0 : i64, scratch_operands = 0 : i64, tpu.core_type = #tpu.core_type<tc>, window_params = [{transform_indices = @transform_0, window_bounds = array<i64: 16, 128>}, {pipeline_mode = #tpu.pipeline_mode<synchronous>, transform_indices = @transform_1, window_bounds = array<i64: 128, 256>}, {pipeline_mode = #tpu.pipeline_mode<synchronous>, transform_indices = @transform_2, window_bounds = array<i64: 1, 256>}, {pipeline_mode = #tpu.pipeline_mode<synchronous>, transform_indices = @transform_3, window_bounds = array<i64: 256, 128>}, {pipeline_mode = #tpu.pipeline_mode<synchronous>, transform_indices = @transform_4, window_bounds = array<i64: 1, 128>}, {pipeline_mode = #tpu.pipeline_mode<synchronous>, transform_indices = @transform_5, window_bounds = array<i64: 1, 128>}, {pipeline_mode = #tpu.pipeline_mode<synchronous>, transform_indices = @transform_6, window_bounds = array<i64: 1, 128>}, {transform_indices = @transform_7, window_bounds = array<i64: 16, 128>}]} {
    %c0 = arith.constant 0 : index
    %c0_0 = arith.constant 0 : index
    %0 = vector.load %arg1[%c0, %c0_0] : memref<16x128xbf16, #tpu.memory_space<vmem>>, vector<16x128xbf16>
    %1 = arith.extf %0 : vector<16x128xbf16> to vector<16x128xf32>
    %2 = arith.truncf %1 : vector<16x128xf32> to vector<16x128xbf16>
    %c0_1 = arith.constant 0 : index
    %c0_2 = arith.constant 0 : index
    %3 = vector.load %arg2[%c0_1, %c0_2] : memref<128x256xbf16, #tpu.memory_space<vmem>>, vector<128x256xbf16>
    %cst = arith.constant dense<0.000000e+00> : vector<16x256xf32>
    %4 = tpu.matmul %2, %3, %cst {dimension_numbers = #tpu.dot_dimension_numbers<[1], [0], [0], [1], [0, 0, 1, 1], [], []>} : vector<16x128xbf16>, vector<128x256xbf16>, vector<16x256xf32> -> vector<16x256xf32>
    %c0_3 = arith.constant 0 : index
    %c0_4 = arith.constant 0 : index
    %5 = vector.load %arg3[%c0_3, %c0_4] : memref<1x256xf32, #tpu.memory_space<vmem>>, vector<1x256xf32>
    %6 = vector.broadcast %5 : vector<1x256xf32> to vector<16x256xf32>
    %7 = arith.addf %4, %6 : vector<16x256xf32>
    %cst_5 = arith.constant 0.000000e+00 : f32
    %8 = vector.broadcast %cst_5 : f32 to vector<16x256xf32>
    %9 = arith.maximumf %7, %8 : vector<16x256xf32>
    %10 = arith.truncf %9 : vector<16x256xf32> to vector<16x256xbf16>
    %c0_6 = arith.constant 0 : index
    %c0_7 = arith.constant 0 : index
    %11 = vector.load %arg4[%c0_6, %c0_7] : memref<256x128xbf16, #tpu.memory_space<vmem>>, vector<256x128xbf16>
    %cst_8 = arith.constant dense<0.000000e+00> : vector<16x128xf32>
    %12 = tpu.matmul %10, %11, %cst_8 {dimension_numbers = #tpu.dot_dimension_numbers<[1], [0], [0], [1], [0, 0, 1, 1], [], []>} : vector<16x256xbf16>, vector<256x128xbf16>, vector<16x128xf32> -> vector<16x128xf32>
    %c0_9 = arith.constant 0 : index
    %c0_10 = arith.constant 0 : index
    %13 = vector.load %arg5[%c0_9, %c0_10] : memref<1x128xf32, #tpu.memory_space<vmem>>, vector<1x128xf32>
    %14 = vector.broadcast %13 : vector<1x128xf32> to vector<16x128xf32>
    %15 = arith.addf %12, %14 : vector<16x128xf32>
    %16 = arith.addf %1, %15 : vector<16x128xf32>
    %cst_11 = arith.constant dense<0.000000e+00> : vector<16xf32>
    %17 = vector.multi_reduction <add>, %16, %cst_11 [1] : vector<16x128xf32> to vector<16xf32>
    %18 = vector.shape_cast %17 : vector<16xf32> to vector<16x1xf32>
    %cst_12 = arith.constant 1.280000e+02 : f32
    %19 = vector.broadcast %cst_12 : f32 to vector<16x1xf32>
    %20 = arith.divf %18, %19 : vector<16x1xf32>
    %21 = vector.broadcast %20 : vector<16x1xf32> to vector<16x128xf32>
    %22 = arith.subf %16, %21 : vector<16x128xf32>
    %23 = arith.mulf %22, %22 : vector<16x128xf32>
    %cst_13 = arith.constant dense<0.000000e+00> : vector<16xf32>
    %24 = vector.multi_reduction <add>, %23, %cst_13 [1] : vector<16x128xf32> to vector<16xf32>
    %25 = vector.shape_cast %24 : vector<16xf32> to vector<16x1xf32>
    %cst_14 = arith.constant 1.280000e+02 : f32
    %26 = vector.broadcast %cst_14 : f32 to vector<16x1xf32>
    %27 = arith.divf %25, %26 : vector<16x1xf32>
    %cst_15 = arith.constant 9.99999974E-6 : f32
    %28 = vector.broadcast %cst_15 : f32 to vector<16x1xf32>
    %29 = arith.addf %27, %28 : vector<16x1xf32>
    %30 = math.rsqrt %29 : vector<16x1xf32>
    %31 = vector.broadcast %30 : vector<16x1xf32> to vector<16x128xf32>
    %32 = arith.mulf %22, %31 : vector<16x128xf32>
    %c0_16 = arith.constant 0 : index
    %c0_17 = arith.constant 0 : index
    %33 = vector.load %arg6[%c0_16, %c0_17] : memref<1x128xf32, #tpu.memory_space<vmem>>, vector<1x128xf32>
    %34 = vector.broadcast %33 : vector<1x128xf32> to vector<16x128xf32>
    %35 = arith.mulf %32, %34 : vector<16x128xf32>
    %c0_18 = arith.constant 0 : index
    %c0_19 = arith.constant 0 : index
    %36 = vector.load %arg7[%c0_18, %c0_19] : memref<1x128xf32, #tpu.memory_space<vmem>>, vector<1x128xf32>
    %37 = vector.broadcast %36 : vector<1x128xf32> to vector<16x128xf32>
    %38 = arith.addf %35, %37 : vector<16x128xf32>
    %39 = arith.truncf %38 : vector<16x128xf32> to vector<16x128xbf16>
    %c0_20 = arith.constant 0 : index
    %c0_21 = arith.constant 0 : index
    %40 = vector.load %arg8[%c0_20, %c0_21] : memref<16x128xbf16, #tpu.memory_space<vmem>>, vector<16x128xbf16>
    tpu.vector_store %arg8[%c0_20, %c0_21], %39 {strides = array<i32>} : memref<16x128xbf16, #tpu.memory_space<vmem>>, vector<16x128xbf16>,
    return
  }
  func.func @transform_0(%arg0: i32) -> (i32, i32) {
    %c0_i32 = arith.constant 0 : i32
    %c0_i32_0 = arith.constant 0 : i32
    return %arg0, %c0_i32 : i32, i32
  }
  func.func @transform_1(%arg0: i32) -> (i32, i32) {
    %c0_i32 = arith.constant 0 : i32
    %c0_i32_0 = arith.constant 0 : i32
    %c0_i32_1 = arith.constant 0 : i32
    return %c0_i32, %c0_i32_0 : i32, i32
  }
  func.func @transform_2(%arg0: i32) -> (i32, i32) {
    %c0_i32 = arith.constant 0 : i32
    %c0_i32_0 = arith.constant 0 : i32
    %c0_i32_1 = arith.constant 0 : i32
    return %c0_i32, %c0_i32_0 : i32, i32
  }
  func.func @transform_3(%arg0: i32) -> (i32, i32) {
    %c0_i32 = arith.constant 0 : i32
    %c0_i32_0 = arith.constant 0 : i32
    %c0_i32_1 = arith.constant 0 : i32
    return %c0_i32, %c0_i32_0 : i32, i32
  }
  func.func @transform_4(%arg0: i32) -> (i32, i32) {
    %c0_i32 = arith.constant 0 : i32
    %c0_i32_0 = arith.constant 0 : i32
    %c0_i32_1 = arith.constant 0 : i32
    return %c0_i32, %c0_i32_0 : i32, i32
  }
  func.func @transform_5(%arg0: i32) -> (i32, i32) {
    %c0_i32 = arith.constant 0 : i32
    %c0_i32_0 = arith.constant 0 : i32
    %c0_i32_1 = arith.constant 0 : i32
    return %c0_i32, %c0_i32_0 : i32, i32
  }
  func.func @transform_6(%arg0: i32) -> (i32, i32) {
    %c0_i32 = arith.constant 0 : i32
    %c0_i32_0 = arith.constant 0 : i32
    %c0_i32_1 = arith.constant 0 : i32
    return %c0_i32, %c0_i32_0 : i32, i32
  }
  func.func @transform_7(%arg0: i32) -> (i32, i32) {
    %c0_i32 = arith.constant 0 : i32
    %c0_i32_0 = arith.constant 0 : i32
    return %arg0, %c0_i32 : i32, i32
  }
}

module attributes {stable_mosaic.version = 11 : i64} {
  func.func @_attn_block_kernel(%arg0: i32, %arg1: memref<16x128xbf16, #tpu.memory_space<vmem>>, %arg2: memref<128x384xbf16, #tpu.memory_space<vmem>>, %arg3: memref<1x384xf32, #tpu.memory_space<vmem>>, %arg4: memref<128x128xbf16, #tpu.memory_space<vmem>>, %arg5: memref<1x128xf32, #tpu.memory_space<vmem>>, %arg6: memref<1x128xf32, #tpu.memory_space<vmem>>, %arg7: memref<1x128xf32, #tpu.memory_space<vmem>>, %arg8: memref<16x128xbf16, #tpu.memory_space<vmem>>) attributes {dimension_semantics = [#tpu.dimension_semantics<parallel>], iteration_bounds = array<i64: 1>, scalar_prefetch = 0 : i64, scratch_operands = 0 : i64, tpu.core_type = #tpu.core_type<tc>, window_params = [{transform_indices = @transform_0, window_bounds = array<i64: 16, 128>}, {pipeline_mode = #tpu.pipeline_mode<synchronous>, transform_indices = @transform_1, window_bounds = array<i64: 128, 384>}, {pipeline_mode = #tpu.pipeline_mode<synchronous>, transform_indices = @transform_2, window_bounds = array<i64: 1, 384>}, {pipeline_mode = #tpu.pipeline_mode<synchronous>, transform_indices = @transform_3, window_bounds = array<i64: 128, 128>}, {pipeline_mode = #tpu.pipeline_mode<synchronous>, transform_indices = @transform_4, window_bounds = array<i64: 1, 128>}, {pipeline_mode = #tpu.pipeline_mode<synchronous>, transform_indices = @transform_5, window_bounds = array<i64: 1, 128>}, {pipeline_mode = #tpu.pipeline_mode<synchronous>, transform_indices = @transform_6, window_bounds = array<i64: 1, 128>}, {transform_indices = @transform_7, window_bounds = array<i64: 16, 128>}]} {
    %c0 = arith.constant 0 : index
    %c0_0 = arith.constant 0 : index
    %0 = vector.load %arg1[%c0, %c0_0] : memref<16x128xbf16, #tpu.memory_space<vmem>>, vector<16x128xbf16>
    %1 = arith.extf %0 : vector<16x128xbf16> to vector<16x128xf32>
    %2 = arith.truncf %1 : vector<16x128xf32> to vector<16x128xbf16>
    %c0_1 = arith.constant 0 : index
    %c0_2 = arith.constant 0 : index
    %3 = vector.load %arg2[%c0_1, %c0_2] : memref<128x384xbf16, #tpu.memory_space<vmem>>, vector<128x384xbf16>
    %cst = arith.constant dense<0.000000e+00> : vector<16x384xf32>
    %4 = tpu.matmul %2, %3, %cst {dimension_numbers = #tpu.dot_dimension_numbers<[1], [0], [0], [1], [0, 0, 1, 1], [], []>} : vector<16x128xbf16>, vector<128x384xbf16>, vector<16x384xf32> -> vector<16x384xf32>
    %c0_3 = arith.constant 0 : index
    %c0_4 = arith.constant 0 : index
    %5 = vector.load %arg3[%c0_3, %c0_4] : memref<1x384xf32, #tpu.memory_space<vmem>>, vector<1x384xf32>
    %6 = vector.broadcast %5 : vector<1x384xf32> to vector<16x384xf32>
    %7 = arith.addf %4, %6 : vector<16x384xf32>
    %cst_5 = arith.constant 0.000000e+00 : f32
    %8 = vector.broadcast %cst_5 : f32 to vector<16x128xf32>
    %9 = vector.extract_strided_slice %7 {offsets = [0, 0], sizes = [16, 32], strides = [1, 1]} : vector<16x384xf32> to vector<16x32xf32>
    %10 = vector.shape_cast %9 : vector<16x32xf32> to vector<2x8x32xf32>
    %11 = arith.truncf %10 : vector<2x8x32xf32> to vector<2x8x32xbf16>
    %12 = vector.extract_strided_slice %7 {offsets = [0, 128], sizes = [16, 32], strides = [1, 1]} : vector<16x384xf32> to vector<16x32xf32>
    %13 = vector.shape_cast %12 : vector<16x32xf32> to vector<2x8x32xf32>
    %14 = arith.truncf %13 : vector<2x8x32xf32> to vector<2x8x32xbf16>
    %15 = vector.extract_strided_slice %7 {offsets = [0, 256], sizes = [16, 32], strides = [1, 1]} : vector<16x384xf32> to vector<16x32xf32>
    %16 = vector.shape_cast %15 : vector<16x32xf32> to vector<2x8x32xf32>
    %17 = arith.truncf %16 : vector<2x8x32xf32> to vector<2x8x32xbf16>
    "tpu.trace_start"() <{level = 10 : i32, message = "bqd,bkd->bqk"}> : () -> ()
    %cst_6 = arith.constant dense<0.000000e+00> : vector<2x8x8xf32>
    %18 = tpu.matmul %11, %14, %cst_6 {dimension_numbers = #tpu.dot_dimension_numbers<[2], [2], [1], [1], [0, 0, 0, 1, 1, 1], [0], [0]>} : vector<2x8x32xbf16>, vector<2x8x32xbf16>, vector<2x8x8xf32> -> vector<2x8x8xf32>
    "tpu.trace_stop"() : () -> ()
    %cst_7 = arith.constant 0.176776692 : f32
    %19 = vector.broadcast %cst_7 : f32 to vector<2x8x8xf32>
    %20 = arith.mulf %18, %19 : vector<2x8x8xf32>
    %cst_8 = arith.constant dense<0xFF800000> : vector<2x8xf32>
    %21 = vector.multi_reduction <maximumf>, %20, %cst_8 [2] : vector<2x8x8xf32> to vector<2x8xf32>
    %22 = vector.shape_cast %21 : vector<2x8xf32> to vector<2x8x1xf32>
    %23 = vector.broadcast %22 : vector<2x8x1xf32> to vector<2x8x8xf32>
    %24 = arith.subf %20, %23 : vector<2x8x8xf32>
    %25 = math.exp %24 : vector<2x8x8xf32>
    %cst_9 = arith.constant dense<0.000000e+00> : vector<2x8xf32>
    %26 = vector.multi_reduction <add>, %25, %cst_9 [2] : vector<2x8x8xf32> to vector<2x8xf32>
    %27 = vector.shape_cast %26 : vector<2x8xf32> to vector<2x8x1xf32>
    %28 = tpu.reciprocal %27 {approx = true} : vector<2x8x1xf32> -> vector<2x8x1xf32>
    %29 = vector.broadcast %28 : vector<2x8x1xf32> to vector<2x8x8xf32>
    %30 = arith.mulf %25, %29 : vector<2x8x8xf32>
    %31 = arith.truncf %30 : vector<2x8x8xf32> to vector<2x8x8xbf16>
    "tpu.trace_start"() <{level = 10 : i32, message = "bqk,bkd->bqd"}> : () -> ()
    %cst_10 = arith.constant dense<0.000000e+00> : vector<2x8x32xf32>
    %32 = tpu.matmul %31, %17, %cst_10 {dimension_numbers = #tpu.dot_dimension_numbers<[2], [1], [1], [2], [0, 0, 0, 1, 1, 2], [0], [0]>} : vector<2x8x8xbf16>, vector<2x8x32xbf16>, vector<2x8x32xf32> -> vector<2x8x32xf32>
    "tpu.trace_stop"() : () -> ()
    %33 = vector.shape_cast %32 : vector<2x8x32xf32> to vector<16x32xf32>
    %34 = arith.truncf %33 : vector<16x32xf32> to vector<16x32xbf16>
    %c0_11 = arith.constant 0 : index
    %c0_12 = arith.constant 0 : index
    %35 = vector.load %arg4[%c0_11, %c0_12] : memref<128x128xbf16, #tpu.memory_space<vmem>>, vector<32x128xbf16>
    %cst_13 = arith.constant dense<0.000000e+00> : vector<16x128xf32>
    %36 = tpu.matmul %34, %35, %cst_13 {dimension_numbers = #tpu.dot_dimension_numbers<[1], [0], [0], [1], [0, 0, 1, 1], [], []>} : vector<16x32xbf16>, vector<32x128xbf16>, vector<16x128xf32> -> vector<16x128xf32>
    %37 = arith.addf %8, %36 : vector<16x128xf32>
    %38 = vector.extract_strided_slice %7 {offsets = [0, 32], sizes = [16, 32], strides = [1, 1]} : vector<16x384xf32> to vector<16x32xf32>
    %39 = vector.shape_cast %38 : vector<16x32xf32> to vector<2x8x32xf32>
    %40 = arith.truncf %39 : vector<2x8x32xf32> to vector<2x8x32xbf16>
    %41 = vector.extract_strided_slice %7 {offsets = [0, 160], sizes = [16, 32], strides = [1, 1]} : vector<16x384xf32> to vector<16x32xf32>
    %42 = vector.shape_cast %41 : vector<16x32xf32> to vector<2x8x32xf32>
    %43 = arith.truncf %42 : vector<2x8x32xf32> to vector<2x8x32xbf16>
    %44 = vector.extract_strided_slice %7 {offsets = [0, 288], sizes = [16, 32], strides = [1, 1]} : vector<16x384xf32> to vector<16x32xf32>
    %45 = vector.shape_cast %44 : vector<16x32xf32> to vector<2x8x32xf32>
    %46 = arith.truncf %45 : vector<2x8x32xf32> to vector<2x8x32xbf16>
    "tpu.trace_start"() <{level = 10 : i32, message = "bqd,bkd->bqk"}> : () -> ()
    %cst_14 = arith.constant dense<0.000000e+00> : vector<2x8x8xf32>
    %47 = tpu.matmul %40, %43, %cst_14 {dimension_numbers = #tpu.dot_dimension_numbers<[2], [2], [1], [1], [0, 0, 0, 1, 1, 1], [0], [0]>} : vector<2x8x32xbf16>, vector<2x8x32xbf16>, vector<2x8x8xf32> -> vector<2x8x8xf32>
    "tpu.trace_stop"() : () -> ()
    %cst_15 = arith.constant 0.176776692 : f32
    %48 = vector.broadcast %cst_15 : f32 to vector<2x8x8xf32>
    %49 = arith.mulf %47, %48 : vector<2x8x8xf32>
    %cst_16 = arith.constant dense<0xFF800000> : vector<2x8xf32>
    %50 = vector.multi_reduction <maximumf>, %49, %cst_16 [2] : vector<2x8x8xf32> to vector<2x8xf32>
    %51 = vector.shape_cast %50 : vector<2x8xf32> to vector<2x8x1xf32>
    %52 = vector.broadcast %51 : vector<2x8x1xf32> to vector<2x8x8xf32>
    %53 = arith.subf %49, %52 : vector<2x8x8xf32>
    %54 = math.exp %53 : vector<2x8x8xf32>
    %cst_17 = arith.constant dense<0.000000e+00> : vector<2x8xf32>
    %55 = vector.multi_reduction <add>, %54, %cst_17 [2] : vector<2x8x8xf32> to vector<2x8xf32>
    %56 = vector.shape_cast %55 : vector<2x8xf32> to vector<2x8x1xf32>
    %57 = tpu.reciprocal %56 {approx = true} : vector<2x8x1xf32> -> vector<2x8x1xf32>
    %58 = vector.broadcast %57 : vector<2x8x1xf32> to vector<2x8x8xf32>
    %59 = arith.mulf %54, %58 : vector<2x8x8xf32>
    %60 = arith.truncf %59 : vector<2x8x8xf32> to vector<2x8x8xbf16>
    "tpu.trace_start"() <{level = 10 : i32, message = "bqk,bkd->bqd"}> : () -> ()
    %cst_18 = arith.constant dense<0.000000e+00> : vector<2x8x32xf32>
    %61 = tpu.matmul %60, %46, %cst_18 {dimension_numbers = #tpu.dot_dimension_numbers<[2], [1], [1], [2], [0, 0, 0, 1, 1, 2], [0], [0]>} : vector<2x8x8xbf16>, vector<2x8x32xbf16>, vector<2x8x32xf32> -> vector<2x8x32xf32>
    "tpu.trace_stop"() : () -> ()
    %62 = vector.shape_cast %61 : vector<2x8x32xf32> to vector<16x32xf32>
    %63 = arith.truncf %62 : vector<16x32xf32> to vector<16x32xbf16>
    %c32 = arith.constant 32 : index
    %c0_19 = arith.constant 0 : index
    %64 = vector.load %arg4[%c32, %c0_19] : memref<128x128xbf16, #tpu.memory_space<vmem>>, vector<32x128xbf16>
    %cst_20 = arith.constant dense<0.000000e+00> : vector<16x128xf32>
    %65 = tpu.matmul %63, %64, %cst_20 {dimension_numbers = #tpu.dot_dimension_numbers<[1], [0], [0], [1], [0, 0, 1, 1], [], []>} : vector<16x32xbf16>, vector<32x128xbf16>, vector<16x128xf32> -> vector<16x128xf32>
    %66 = arith.addf %37, %65 : vector<16x128xf32>
    %67 = vector.extract_strided_slice %7 {offsets = [0, 64], sizes = [16, 32], strides = [1, 1]} : vector<16x384xf32> to vector<16x32xf32>
    %68 = vector.shape_cast %67 : vector<16x32xf32> to vector<2x8x32xf32>
    %69 = arith.truncf %68 : vector<2x8x32xf32> to vector<2x8x32xbf16>
    %70 = vector.extract_strided_slice %7 {offsets = [0, 192], sizes = [16, 32], strides = [1, 1]} : vector<16x384xf32> to vector<16x32xf32>
    %71 = vector.shape_cast %70 : vector<16x32xf32> to vector<2x8x32xf32>
    %72 = arith.truncf %71 : vector<2x8x32xf32> to vector<2x8x32xbf16>
    %73 = vector.extract_strided_slice %7 {offsets = [0, 320], sizes = [16, 32], strides = [1, 1]} : vector<16x384xf32> to vector<16x32xf32>
    %74 = vector.shape_cast %73 : vector<16x32xf32> to vector<2x8x32xf32>
    %75 = arith.truncf %74 : vector<2x8x32xf32> to vector<2x8x32xbf16>
    "tpu.trace_start"() <{level = 10 : i32, message = "bqd,bkd->bqk"}> : () -> ()
    %cst_21 = arith.constant dense<0.000000e+00> : vector<2x8x8xf32>
    %76 = tpu.matmul %69, %72, %cst_21 {dimension_numbers = #tpu.dot_dimension_numbers<[2], [2], [1], [1], [0, 0, 0, 1, 1, 1], [0], [0]>} : vector<2x8x32xbf16>, vector<2x8x32xbf16>, vector<2x8x8xf32> -> vector<2x8x8xf32>
    "tpu.trace_stop"() : () -> ()
    %cst_22 = arith.constant 0.176776692 : f32
    %77 = vector.broadcast %cst_22 : f32 to vector<2x8x8xf32>
    %78 = arith.mulf %76, %77 : vector<2x8x8xf32>
    %cst_23 = arith.constant dense<0xFF800000> : vector<2x8xf32>
    %79 = vector.multi_reduction <maximumf>, %78, %cst_23 [2] : vector<2x8x8xf32> to vector<2x8xf32>
    %80 = vector.shape_cast %79 : vector<2x8xf32> to vector<2x8x1xf32>
    %81 = vector.broadcast %80 : vector<2x8x1xf32> to vector<2x8x8xf32>
    %82 = arith.subf %78, %81 : vector<2x8x8xf32>
    %83 = math.exp %82 : vector<2x8x8xf32>
    %cst_24 = arith.constant dense<0.000000e+00> : vector<2x8xf32>
    %84 = vector.multi_reduction <add>, %83, %cst_24 [2] : vector<2x8x8xf32> to vector<2x8xf32>
    %85 = vector.shape_cast %84 : vector<2x8xf32> to vector<2x8x1xf32>
    %86 = tpu.reciprocal %85 {approx = true} : vector<2x8x1xf32> -> vector<2x8x1xf32>
    %87 = vector.broadcast %86 : vector<2x8x1xf32> to vector<2x8x8xf32>
    %88 = arith.mulf %83, %87 : vector<2x8x8xf32>
    %89 = arith.truncf %88 : vector<2x8x8xf32> to vector<2x8x8xbf16>
    "tpu.trace_start"() <{level = 10 : i32, message = "bqk,bkd->bqd"}> : () -> ()
    %cst_25 = arith.constant dense<0.000000e+00> : vector<2x8x32xf32>
    %90 = tpu.matmul %89, %75, %cst_25 {dimension_numbers = #tpu.dot_dimension_numbers<[2], [1], [1], [2], [0, 0, 0, 1, 1, 2], [0], [0]>} : vector<2x8x8xbf16>, vector<2x8x32xbf16>, vector<2x8x32xf32> -> vector<2x8x32xf32>
    "tpu.trace_stop"() : () -> ()
    %91 = vector.shape_cast %90 : vector<2x8x32xf32> to vector<16x32xf32>
    %92 = arith.truncf %91 : vector<16x32xf32> to vector<16x32xbf16>
    %c64 = arith.constant 64 : index
    %c0_26 = arith.constant 0 : index
    %93 = vector.load %arg4[%c64, %c0_26] : memref<128x128xbf16, #tpu.memory_space<vmem>>, vector<32x128xbf16>
    %cst_27 = arith.constant dense<0.000000e+00> : vector<16x128xf32>
    %94 = tpu.matmul %92, %93, %cst_27 {dimension_numbers = #tpu.dot_dimension_numbers<[1], [0], [0], [1], [0, 0, 1, 1], [], []>} : vector<16x32xbf16>, vector<32x128xbf16>, vector<16x128xf32> -> vector<16x128xf32>
    %95 = arith.addf %66, %94 : vector<16x128xf32>
    %96 = vector.extract_strided_slice %7 {offsets = [0, 96], sizes = [16, 32], strides = [1, 1]} : vector<16x384xf32> to vector<16x32xf32>
    %97 = vector.shape_cast %96 : vector<16x32xf32> to vector<2x8x32xf32>
    %98 = arith.truncf %97 : vector<2x8x32xf32> to vector<2x8x32xbf16>
    %99 = vector.extract_strided_slice %7 {offsets = [0, 224], sizes = [16, 32], strides = [1, 1]} : vector<16x384xf32> to vector<16x32xf32>
    %100 = vector.shape_cast %99 : vector<16x32xf32> to vector<2x8x32xf32>
    %101 = arith.truncf %100 : vector<2x8x32xf32> to vector<2x8x32xbf16>
    %102 = vector.extract_strided_slice %7 {offsets = [0, 352], sizes = [16, 32], strides = [1, 1]} : vector<16x384xf32> to vector<16x32xf32>
    %103 = vector.shape_cast %102 : vector<16x32xf32> to vector<2x8x32xf32>
    %104 = arith.truncf %103 : vector<2x8x32xf32> to vector<2x8x32xbf16>
    "tpu.trace_start"() <{level = 10 : i32, message = "bqd,bkd->bqk"}> : () -> ()
    %cst_28 = arith.constant dense<0.000000e+00> : vector<2x8x8xf32>
    %105 = tpu.matmul %98, %101, %cst_28 {dimension_numbers = #tpu.dot_dimension_numbers<[2], [2], [1], [1], [0, 0, 0, 1, 1, 1], [0], [0]>} : vector<2x8x32xbf16>, vector<2x8x32xbf16>, vector<2x8x8xf32> -> vector<2x8x8xf32>
    "tpu.trace_stop"() : () -> ()
    %cst_29 = arith.constant 0.176776692 : f32
    %106 = vector.broadcast %cst_29 : f32 to vector<2x8x8xf32>
    %107 = arith.mulf %105, %106 : vector<2x8x8xf32>
    %cst_30 = arith.constant dense<0xFF800000> : vector<2x8xf32>
    %108 = vector.multi_reduction <maximumf>, %107, %cst_30 [2] : vector<2x8x8xf32> to vector<2x8xf32>
    %109 = vector.shape_cast %108 : vector<2x8xf32> to vector<2x8x1xf32>
    %110 = vector.broadcast %109 : vector<2x8x1xf32> to vector<2x8x8xf32>
    %111 = arith.subf %107, %110 : vector<2x8x8xf32>
    %112 = math.exp %111 : vector<2x8x8xf32>
    %cst_31 = arith.constant dense<0.000000e+00> : vector<2x8xf32>
    %113 = vector.multi_reduction <add>, %112, %cst_31 [2] : vector<2x8x8xf32> to vector<2x8xf32>
    %114 = vector.shape_cast %113 : vector<2x8xf32> to vector<2x8x1xf32>
    %115 = tpu.reciprocal %114 {approx = true} : vector<2x8x1xf32> -> vector<2x8x1xf32>
    %116 = vector.broadcast %115 : vector<2x8x1xf32> to vector<2x8x8xf32>
    %117 = arith.mulf %112, %116 : vector<2x8x8xf32>
    %118 = arith.truncf %117 : vector<2x8x8xf32> to vector<2x8x8xbf16>
    "tpu.trace_start"() <{level = 10 : i32, message = "bqk,bkd->bqd"}> : () -> ()
    %cst_32 = arith.constant dense<0.000000e+00> : vector<2x8x32xf32>
    %119 = tpu.matmul %118, %104, %cst_32 {dimension_numbers = #tpu.dot_dimension_numbers<[2], [1], [1], [2], [0, 0, 0, 1, 1, 2], [0], [0]>} : vector<2x8x8xbf16>, vector<2x8x32xbf16>, vector<2x8x32xf32> -> vector<2x8x32xf32>
    "tpu.trace_stop"() : () -> ()
    %120 = vector.shape_cast %119 : vector<2x8x32xf32> to vector<16x32xf32>
    %121 = arith.truncf %120 : vector<16x32xf32> to vector<16x32xbf16>
    %c96 = arith.constant 96 : index
    %c0_33 = arith.constant 0 : index
    %122 = vector.load %arg4[%c96, %c0_33] : memref<128x128xbf16, #tpu.memory_space<vmem>>, vector<32x128xbf16>
    %cst_34 = arith.constant dense<0.000000e+00> : vector<16x128xf32>
    %123 = tpu.matmul %121, %122, %cst_34 {dimension_numbers = #tpu.dot_dimension_numbers<[1], [0], [0], [1], [0, 0, 1, 1], [], []>} : vector<16x32xbf16>, vector<32x128xbf16>, vector<16x128xf32> -> vector<16x128xf32>
    %124 = arith.addf %95, %123 : vector<16x128xf32>
    %c0_35 = arith.constant 0 : index
    %c0_36 = arith.constant 0 : index
    %125 = vector.load %arg5[%c0_35, %c0_36] : memref<1x128xf32, #tpu.memory_space<vmem>>, vector<1x128xf32>
    %126 = vector.broadcast %125 : vector<1x128xf32> to vector<16x128xf32>
    %127 = arith.addf %124, %126 : vector<16x128xf32>
    %128 = arith.addf %1, %127 : vector<16x128xf32>
    %cst_37 = arith.constant dense<0.000000e+00> : vector<16xf32>
    %129 = vector.multi_reduction <add>, %128, %cst_37 [1] : vector<16x128xf32> to vector<16xf32>
    %130 = vector.shape_cast %129 : vector<16xf32> to vector<16x1xf32>
    %cst_38 = arith.constant 1.280000e+02 : f32
    %131 = vector.broadcast %cst_38 : f32 to vector<16x1xf32>
    %132 = arith.divf %130, %131 : vector<16x1xf32>
    %133 = vector.broadcast %132 : vector<16x1xf32> to vector<16x128xf32>
    %134 = arith.subf %128, %133 : vector<16x128xf32>
    %135 = arith.mulf %134, %134 : vector<16x128xf32>
    %cst_39 = arith.constant dense<0.000000e+00> : vector<16xf32>
    %136 = vector.multi_reduction <add>, %135, %cst_39 [1] : vector<16x128xf32> to vector<16xf32>
    %137 = vector.shape_cast %136 : vector<16xf32> to vector<16x1xf32>
    %cst_40 = arith.constant 1.280000e+02 : f32
    %138 = vector.broadcast %cst_40 : f32 to vector<16x1xf32>
    %139 = arith.divf %137, %138 : vector<16x1xf32>
    %cst_41 = arith.constant 9.99999974E-6 : f32
    %140 = vector.broadcast %cst_41 : f32 to vector<16x1xf32>
    %141 = arith.addf %139, %140 : vector<16x1xf32>
    %142 = math.rsqrt %141 : vector<16x1xf32>
    %143 = vector.broadcast %142 : vector<16x1xf32> to vector<16x128xf32>
    %144 = arith.mulf %134, %143 : vector<16x128xf32>
    %c0_42 = arith.constant 0 : index
    %c0_43 = arith.constant 0 : index
    %145 = vector.load %arg6[%c0_42, %c0_43] : memref<1x128xf32, #tpu.memory_space<vmem>>, vector<1x128xf32>
    %146 = vector.broadcast %145 : vector<1x128xf32> to vector<16x128xf32>
    %147 = arith.mulf %144, %146 : vector<16x128xf32>
    %c0_44 = arith.constant 0 : index
    %c0_45 = arith.constant 0 : index
    %148 = vector.load %arg7[%c0_44, %c0_45] : memref<1x128xf32, #tpu.memory_space<vmem>>, vector<1x128xf32>
    %149 = vector.broadcast %148 : vector<1x128xf32> to vector<16x128xf32>
    %150 = arith.addf %147, %149 : vector<16x128xf32>
    %151 = arith.truncf %150 : vector<16x128xf32> to vector<16x128xbf16>
    %c0_46 = arith.constant 0 : index
    %c0_47 = arith.constant 0 : index
    %152 = vector.load %arg8[%c0_46, %c0_47] : memref<16x128xbf16, #tpu.memory_space<vmem>>, vector<16x128xbf16>
    tpu.vector_store %arg8[%c0_46, %c0_47], %151 {strides = array<i32>} : memref<16x128xbf16, #tpu.memory_space<vmem>>, vector<16x128xbf16>,
    return
  }
  func.func @transform_0(%arg0: i32) -> (i32, i32) {
    %c0_i32 = arith.constant 0 : i32
    %c0_i32_0 = arith.constant 0 : i32
    return %arg0, %c0_i32 : i32, i32
  }
  func.func @transform_1(%arg0: i32) -> (i32, i32) {
    %c0_i32 = arith.constant 0 : i32
    %c0_i32_0 = arith.constant 0 : i32
    %c0_i32_1 = arith.constant 0 : i32
    return %c0_i32, %c0_i32_0 : i32, i32
  }
  func.func @transform_2(%arg0: i32) -> (i32, i32) {
    %c0_i32 = arith.constant 0 : i32
    %c0_i32_0 = arith.constant 0 : i32
    %c0_i32_1 = arith.constant 0 : i32
    return %c0_i32, %c0_i32_0 : i32, i32
  }
  func.func @transform_3(%arg0: i32) -> (i32, i32) {
    %c0_i32 = arith.constant 0 : i32
    %c0_i32_0 = arith.constant 0 : i32
    %c0_i32_1 = arith.constant 0 : i32
    return %c0_i32, %c0_i32_0 : i32, i32
  }
  func.func @transform_4(%arg0: i32) -> (i32, i32) {
    %c0_i32 = arith.constant 0 : i32
    %c0_i32_0 = arith.constant 0 : i32
    %c0_i32_1 = arith.constant 0 : i32
    return %c0_i32, %c0_i32_0 : i32, i32
  }
  func.func @transform_5(%arg0: i32) -> (i32, i32) {
    %c0_i32 = arith.constant 0 : i32
    %c0_i32_0 = arith.constant 0 : i32
    %c0_i32_1 = arith.constant 0 : i32
    return %c0_i32, %c0_i32_0 : i32, i32
  }
  func.func @transform_6(%arg0: i32) -> (i32, i32) {
    %c0_i32 = arith.constant 0 : i32
    %c0_i32_0 = arith.constant 0 : i32
    %c0_i32_1 = arith.constant 0 : i32
    return %c0_i32, %c0_i32_0 : i32, i32
  }
  func.func @transform_7(%arg0: i32) -> (i32, i32) {
    %c0_i32 = arith.constant 0 : i32
    %c0_i32_0 = arith.constant 0 : i32
    return %arg0, %c0_i32 : i32, i32
  }
}

module attributes {stable_mosaic.version = 11 : i64} {
  func.func @_attn_block_kernel(%arg0: i32, %arg1: memref<16x128xbf16, #tpu.memory_space<vmem>>, %arg2: memref<128x384xbf16, #tpu.memory_space<vmem>>, %arg3: memref<1x384xf32, #tpu.memory_space<vmem>>, %arg4: memref<128x128xbf16, #tpu.memory_space<vmem>>, %arg5: memref<1x128xf32, #tpu.memory_space<vmem>>, %arg6: memref<1x128xf32, #tpu.memory_space<vmem>>, %arg7: memref<1x128xf32, #tpu.memory_space<vmem>>, %arg8: memref<16x128xbf16, #tpu.memory_space<vmem>>) attributes {dimension_semantics = [#tpu.dimension_semantics<parallel>], iteration_bounds = array<i64: 1>, scalar_prefetch = 0 : i64, scratch_operands = 0 : i64, tpu.core_type = #tpu.core_type<tc>, window_params = [{transform_indices = @transform_0, window_bounds = array<i64: 16, 128>}, {pipeline_mode = #tpu.pipeline_mode<synchronous>, transform_indices = @transform_1, window_bounds = array<i64: 128, 384>}, {pipeline_mode = #tpu.pipeline_mode<synchronous>, transform_indices = @transform_2, window_bounds = array<i64: 1, 384>}, {pipeline_mode = #tpu.pipeline_mode<synchronous>, transform_indices = @transform_3, window_bounds = array<i64: 128, 128>}, {pipeline_mode = #tpu.pipeline_mode<synchronous>, transform_indices = @transform_4, window_bounds = array<i64: 1, 128>}, {pipeline_mode = #tpu.pipeline_mode<synchronous>, transform_indices = @transform_5, window_bounds = array<i64: 1, 128>}, {pipeline_mode = #tpu.pipeline_mode<synchronous>, transform_indices = @transform_6, window_bounds = array<i64: 1, 128>}, {transform_indices = @transform_7, window_bounds = array<i64: 16, 128>}]} {
    %c0 = arith.constant 0 : index
    %c0_0 = arith.constant 0 : index
    %0 = vector.load %arg1[%c0, %c0_0] : memref<16x128xbf16, #tpu.memory_space<vmem>>, vector<16x128xbf16>
    %1 = arith.extf %0 : vector<16x128xbf16> to vector<16x128xf32>
    %2 = arith.truncf %1 : vector<16x128xf32> to vector<16x128xbf16>
    %c0_1 = arith.constant 0 : index
    %c0_2 = arith.constant 0 : index
    %3 = vector.load %arg2[%c0_1, %c0_2] : memref<128x384xbf16, #tpu.memory_space<vmem>>, vector<128x384xbf16>
    %cst = arith.constant dense<0.000000e+00> : vector<16x384xf32>
    %4 = tpu.matmul %2, %3, %cst {dimension_numbers = #tpu.dot_dimension_numbers<[1], [0], [0], [1], [0, 0, 1, 1], [], []>} : vector<16x128xbf16>, vector<128x384xbf16>, vector<16x384xf32> -> vector<16x384xf32>
    %c0_3 = arith.constant 0 : index
    %c0_4 = arith.constant 0 : index
    %5 = vector.load %arg3[%c0_3, %c0_4] : memref<1x384xf32, #tpu.memory_space<vmem>>, vector<1x384xf32>
    %6 = vector.broadcast %5 : vector<1x384xf32> to vector<16x384xf32>
    %7 = arith.addf %4, %6 : vector<16x384xf32>
    %cst_5 = arith.constant 0.000000e+00 : f32
    %8 = vector.broadcast %cst_5 : f32 to vector<16x128xf32>
    %9 = vector.extract_strided_slice %7 {offsets = [0, 0], sizes = [16, 32], strides = [1, 1]} : vector<16x384xf32> to vector<16x32xf32>
    %10 = vector.shape_cast %9 : vector<16x32xf32> to vector<2x8x32xf32>
    %11 = arith.truncf %10 : vector<2x8x32xf32> to vector<2x8x32xbf16>
    %12 = vector.extract_strided_slice %7 {offsets = [0, 128], sizes = [16, 32], strides = [1, 1]} : vector<16x384xf32> to vector<16x32xf32>
    %13 = vector.shape_cast %12 : vector<16x32xf32> to vector<2x8x32xf32>
    %14 = arith.truncf %13 : vector<2x8x32xf32> to vector<2x8x32xbf16>
    %15 = vector.extract_strided_slice %7 {offsets = [0, 256], sizes = [16, 32], strides = [1, 1]} : vector<16x384xf32> to vector<16x32xf32>
    %16 = vector.shape_cast %15 : vector<16x32xf32> to vector<2x8x32xf32>
    %17 = arith.truncf %16 : vector<2x8x32xf32> to vector<2x8x32xbf16>
    "tpu.trace_start"() <{level = 10 : i32, message = "bqd,bkd->bqk"}> : () -> ()
    %cst_6 = arith.constant dense<0.000000e+00> : vector<2x8x8xf32>
    %18 = tpu.matmul %11, %14, %cst_6 {dimension_numbers = #tpu.dot_dimension_numbers<[2], [2], [1], [1], [0, 0, 0, 1, 1, 1], [0], [0]>} : vector<2x8x32xbf16>, vector<2x8x32xbf16>, vector<2x8x8xf32> -> vector<2x8x8xf32>
    "tpu.trace_stop"() : () -> ()
    %cst_7 = arith.constant 0.176776692 : f32
    %19 = vector.broadcast %cst_7 : f32 to vector<2x8x8xf32>
    %20 = arith.mulf %18, %19 : vector<2x8x8xf32>
    %cst_8 = arith.constant dense<0xFF800000> : vector<2x8xf32>
    %21 = vector.multi_reduction <maximumf>, %20, %cst_8 [2] : vector<2x8x8xf32> to vector<2x8xf32>
    %22 = vector.shape_cast %21 : vector<2x8xf32> to vector<2x8x1xf32>
    %23 = vector.broadcast %22 : vector<2x8x1xf32> to vector<2x8x8xf32>
    %24 = arith.subf %20, %23 : vector<2x8x8xf32>
    %25 = math.exp %24 : vector<2x8x8xf32>
    %cst_9 = arith.constant dense<0.000000e+00> : vector<2x8xf32>
    %26 = vector.multi_reduction <add>, %25, %cst_9 [2] : vector<2x8x8xf32> to vector<2x8xf32>
    %27 = vector.shape_cast %26 : vector<2x8xf32> to vector<2x8x1xf32>
    %28 = tpu.reciprocal %27 {approx = true} : vector<2x8x1xf32> -> vector<2x8x1xf32>
    %29 = vector.broadcast %28 : vector<2x8x1xf32> to vector<2x8x8xf32>
    %30 = arith.mulf %25, %29 : vector<2x8x8xf32>
    %31 = arith.truncf %30 : vector<2x8x8xf32> to vector<2x8x8xbf16>
    "tpu.trace_start"() <{level = 10 : i32, message = "bqk,bkd->bqd"}> : () -> ()
    %cst_10 = arith.constant dense<0.000000e+00> : vector<2x8x32xf32>
    %32 = tpu.matmul %31, %17, %cst_10 {dimension_numbers = #tpu.dot_dimension_numbers<[2], [1], [1], [2], [0, 0, 0, 1, 1, 2], [0], [0]>} : vector<2x8x8xbf16>, vector<2x8x32xbf16>, vector<2x8x32xf32> -> vector<2x8x32xf32>
    "tpu.trace_stop"() : () -> ()
    %33 = vector.shape_cast %32 : vector<2x8x32xf32> to vector<16x32xf32>
    %34 = arith.truncf %33 : vector<16x32xf32> to vector<16x32xbf16>
    %c0_11 = arith.constant 0 : index
    %c0_12 = arith.constant 0 : index
    %35 = vector.load %arg4[%c0_11, %c0_12] : memref<128x128xbf16, #tpu.memory_space<vmem>>, vector<32x128xbf16>
    %cst_13 = arith.constant dense<0.000000e+00> : vector<16x128xf32>
    %36 = tpu.matmul %34, %35, %cst_13 {dimension_numbers = #tpu.dot_dimension_numbers<[1], [0], [0], [1], [0, 0, 1, 1], [], []>} : vector<16x32xbf16>, vector<32x128xbf16>, vector<16x128xf32> -> vector<16x128xf32>
    %37 = arith.addf %8, %36 : vector<16x128xf32>
    %38 = vector.extract_strided_slice %7 {offsets = [0, 32], sizes = [16, 32], strides = [1, 1]} : vector<16x384xf32> to vector<16x32xf32>
    %39 = vector.shape_cast %38 : vector<16x32xf32> to vector<2x8x32xf32>
    %40 = arith.truncf %39 : vector<2x8x32xf32> to vector<2x8x32xbf16>
    %41 = vector.extract_strided_slice %7 {offsets = [0, 160], sizes = [16, 32], strides = [1, 1]} : vector<16x384xf32> to vector<16x32xf32>
    %42 = vector.shape_cast %41 : vector<16x32xf32> to vector<2x8x32xf32>
    %43 = arith.truncf %42 : vector<2x8x32xf32> to vector<2x8x32xbf16>
    %44 = vector.extract_strided_slice %7 {offsets = [0, 288], sizes = [16, 32], strides = [1, 1]} : vector<16x384xf32> to vector<16x32xf32>
    %45 = vector.shape_cast %44 : vector<16x32xf32> to vector<2x8x32xf32>
    %46 = arith.truncf %45 : vector<2x8x32xf32> to vector<2x8x32xbf16>
    "tpu.trace_start"() <{level = 10 : i32, message = "bqd,bkd->bqk"}> : () -> ()
    %cst_14 = arith.constant dense<0.000000e+00> : vector<2x8x8xf32>
    %47 = tpu.matmul %40, %43, %cst_14 {dimension_numbers = #tpu.dot_dimension_numbers<[2], [2], [1], [1], [0, 0, 0, 1, 1, 1], [0], [0]>} : vector<2x8x32xbf16>, vector<2x8x32xbf16>, vector<2x8x8xf32> -> vector<2x8x8xf32>
    "tpu.trace_stop"() : () -> ()
    %cst_15 = arith.constant 0.176776692 : f32
    %48 = vector.broadcast %cst_15 : f32 to vector<2x8x8xf32>
    %49 = arith.mulf %47, %48 : vector<2x8x8xf32>
    %cst_16 = arith.constant dense<0xFF800000> : vector<2x8xf32>
    %50 = vector.multi_reduction <maximumf>, %49, %cst_16 [2] : vector<2x8x8xf32> to vector<2x8xf32>
    %51 = vector.shape_cast %50 : vector<2x8xf32> to vector<2x8x1xf32>
    %52 = vector.broadcast %51 : vector<2x8x1xf32> to vector<2x8x8xf32>
    %53 = arith.subf %49, %52 : vector<2x8x8xf32>
    %54 = math.exp %53 : vector<2x8x8xf32>
    %cst_17 = arith.constant dense<0.000000e+00> : vector<2x8xf32>
    %55 = vector.multi_reduction <add>, %54, %cst_17 [2] : vector<2x8x8xf32> to vector<2x8xf32>
    %56 = vector.shape_cast %55 : vector<2x8xf32> to vector<2x8x1xf32>
    %57 = tpu.reciprocal %56 {approx = true} : vector<2x8x1xf32> -> vector<2x8x1xf32>
    %58 = vector.broadcast %57 : vector<2x8x1xf32> to vector<2x8x8xf32>
    %59 = arith.mulf %54, %58 : vector<2x8x8xf32>
    %60 = arith.truncf %59 : vector<2x8x8xf32> to vector<2x8x8xbf16>
    "tpu.trace_start"() <{level = 10 : i32, message = "bqk,bkd->bqd"}> : () -> ()
    %cst_18 = arith.constant dense<0.000000e+00> : vector<2x8x32xf32>
    %61 = tpu.matmul %60, %46, %cst_18 {dimension_numbers = #tpu.dot_dimension_numbers<[2], [1], [1], [2], [0, 0, 0, 1, 1, 2], [0], [0]>} : vector<2x8x8xbf16>, vector<2x8x32xbf16>, vector<2x8x32xf32> -> vector<2x8x32xf32>
    "tpu.trace_stop"() : () -> ()
    %62 = vector.shape_cast %61 : vector<2x8x32xf32> to vector<16x32xf32>
    %63 = arith.truncf %62 : vector<16x32xf32> to vector<16x32xbf16>
    %c32 = arith.constant 32 : index
    %c0_19 = arith.constant 0 : index
    %64 = vector.load %arg4[%c32, %c0_19] : memref<128x128xbf16, #tpu.memory_space<vmem>>, vector<32x128xbf16>
    %cst_20 = arith.constant dense<0.000000e+00> : vector<16x128xf32>
    %65 = tpu.matmul %63, %64, %cst_20 {dimension_numbers = #tpu.dot_dimension_numbers<[1], [0], [0], [1], [0, 0, 1, 1], [], []>} : vector<16x32xbf16>, vector<32x128xbf16>, vector<16x128xf32> -> vector<16x128xf32>
    %66 = arith.addf %37, %65 : vector<16x128xf32>
    %67 = vector.extract_strided_slice %7 {offsets = [0, 64], sizes = [16, 32], strides = [1, 1]} : vector<16x384xf32> to vector<16x32xf32>
    %68 = vector.shape_cast %67 : vector<16x32xf32> to vector<2x8x32xf32>
    %69 = arith.truncf %68 : vector<2x8x32xf32> to vector<2x8x32xbf16>
    %70 = vector.extract_strided_slice %7 {offsets = [0, 192], sizes = [16, 32], strides = [1, 1]} : vector<16x384xf32> to vector<16x32xf32>
    %71 = vector.shape_cast %70 : vector<16x32xf32> to vector<2x8x32xf32>
    %72 = arith.truncf %71 : vector<2x8x32xf32> to vector<2x8x32xbf16>
    %73 = vector.extract_strided_slice %7 {offsets = [0, 320], sizes = [16, 32], strides = [1, 1]} : vector<16x384xf32> to vector<16x32xf32>
    %74 = vector.shape_cast %73 : vector<16x32xf32> to vector<2x8x32xf32>
    %75 = arith.truncf %74 : vector<2x8x32xf32> to vector<2x8x32xbf16>
    "tpu.trace_start"() <{level = 10 : i32, message = "bqd,bkd->bqk"}> : () -> ()
    %cst_21 = arith.constant dense<0.000000e+00> : vector<2x8x8xf32>
    %76 = tpu.matmul %69, %72, %cst_21 {dimension_numbers = #tpu.dot_dimension_numbers<[2], [2], [1], [1], [0, 0, 0, 1, 1, 1], [0], [0]>} : vector<2x8x32xbf16>, vector<2x8x32xbf16>, vector<2x8x8xf32> -> vector<2x8x8xf32>
    "tpu.trace_stop"() : () -> ()
    %cst_22 = arith.constant 0.176776692 : f32
    %77 = vector.broadcast %cst_22 : f32 to vector<2x8x8xf32>
    %78 = arith.mulf %76, %77 : vector<2x8x8xf32>
    %cst_23 = arith.constant dense<0xFF800000> : vector<2x8xf32>
    %79 = vector.multi_reduction <maximumf>, %78, %cst_23 [2] : vector<2x8x8xf32> to vector<2x8xf32>
    %80 = vector.shape_cast %79 : vector<2x8xf32> to vector<2x8x1xf32>
    %81 = vector.broadcast %80 : vector<2x8x1xf32> to vector<2x8x8xf32>
    %82 = arith.subf %78, %81 : vector<2x8x8xf32>
    %83 = math.exp %82 : vector<2x8x8xf32>
    %cst_24 = arith.constant dense<0.000000e+00> : vector<2x8xf32>
    %84 = vector.multi_reduction <add>, %83, %cst_24 [2] : vector<2x8x8xf32> to vector<2x8xf32>
    %85 = vector.shape_cast %84 : vector<2x8xf32> to vector<2x8x1xf32>
    %86 = tpu.reciprocal %85 {approx = true} : vector<2x8x1xf32> -> vector<2x8x1xf32>
    %87 = vector.broadcast %86 : vector<2x8x1xf32> to vector<2x8x8xf32>
    %88 = arith.mulf %83, %87 : vector<2x8x8xf32>
    %89 = arith.truncf %88 : vector<2x8x8xf32> to vector<2x8x8xbf16>
    "tpu.trace_start"() <{level = 10 : i32, message = "bqk,bkd->bqd"}> : () -> ()
    %cst_25 = arith.constant dense<0.000000e+00> : vector<2x8x32xf32>
    %90 = tpu.matmul %89, %75, %cst_25 {dimension_numbers = #tpu.dot_dimension_numbers<[2], [1], [1], [2], [0, 0, 0, 1, 1, 2], [0], [0]>} : vector<2x8x8xbf16>, vector<2x8x32xbf16>, vector<2x8x32xf32> -> vector<2x8x32xf32>
    "tpu.trace_stop"() : () -> ()
    %91 = vector.shape_cast %90 : vector<2x8x32xf32> to vector<16x32xf32>
    %92 = arith.truncf %91 : vector<16x32xf32> to vector<16x32xbf16>
    %c64 = arith.constant 64 : index
    %c0_26 = arith.constant 0 : index
    %93 = vector.load %arg4[%c64, %c0_26] : memref<128x128xbf16, #tpu.memory_space<vmem>>, vector<32x128xbf16>
    %cst_27 = arith.constant dense<0.000000e+00> : vector<16x128xf32>
    %94 = tpu.matmul %92, %93, %cst_27 {dimension_numbers = #tpu.dot_dimension_numbers<[1], [0], [0], [1], [0, 0, 1, 1], [], []>} : vector<16x32xbf16>, vector<32x128xbf16>, vector<16x128xf32> -> vector<16x128xf32>
    %95 = arith.addf %66, %94 : vector<16x128xf32>
    %96 = vector.extract_strided_slice %7 {offsets = [0, 96], sizes = [16, 32], strides = [1, 1]} : vector<16x384xf32> to vector<16x32xf32>
    %97 = vector.shape_cast %96 : vector<16x32xf32> to vector<2x8x32xf32>
    %98 = arith.truncf %97 : vector<2x8x32xf32> to vector<2x8x32xbf16>
    %99 = vector.extract_strided_slice %7 {offsets = [0, 224], sizes = [16, 32], strides = [1, 1]} : vector<16x384xf32> to vector<16x32xf32>
    %100 = vector.shape_cast %99 : vector<16x32xf32> to vector<2x8x32xf32>
    %101 = arith.truncf %100 : vector<2x8x32xf32> to vector<2x8x32xbf16>
    %102 = vector.extract_strided_slice %7 {offsets = [0, 352], sizes = [16, 32], strides = [1, 1]} : vector<16x384xf32> to vector<16x32xf32>
    %103 = vector.shape_cast %102 : vector<16x32xf32> to vector<2x8x32xf32>
    %104 = arith.truncf %103 : vector<2x8x32xf32> to vector<2x8x32xbf16>
    "tpu.trace_start"() <{level = 10 : i32, message = "bqd,bkd->bqk"}> : () -> ()
    %cst_28 = arith.constant dense<0.000000e+00> : vector<2x8x8xf32>
    %105 = tpu.matmul %98, %101, %cst_28 {dimension_numbers = #tpu.dot_dimension_numbers<[2], [2], [1], [1], [0, 0, 0, 1, 1, 1], [0], [0]>} : vector<2x8x32xbf16>, vector<2x8x32xbf16>, vector<2x8x8xf32> -> vector<2x8x8xf32>
    "tpu.trace_stop"() : () -> ()
    %cst_29 = arith.constant 0.176776692 : f32
    %106 = vector.broadcast %cst_29 : f32 to vector<2x8x8xf32>
    %107 = arith.mulf %105, %106 : vector<2x8x8xf32>
    %cst_30 = arith.constant dense<0xFF800000> : vector<2x8xf32>
    %108 = vector.multi_reduction <maximumf>, %107, %cst_30 [2] : vector<2x8x8xf32> to vector<2x8xf32>
    %109 = vector.shape_cast %108 : vector<2x8xf32> to vector<2x8x1xf32>
    %110 = vector.broadcast %109 : vector<2x8x1xf32> to vector<2x8x8xf32>
    %111 = arith.subf %107, %110 : vector<2x8x8xf32>
    %112 = math.exp %111 : vector<2x8x8xf32>
    %cst_31 = arith.constant dense<0.000000e+00> : vector<2x8xf32>
    %113 = vector.multi_reduction <add>, %112, %cst_31 [2] : vector<2x8x8xf32> to vector<2x8xf32>
    %114 = vector.shape_cast %113 : vector<2x8xf32> to vector<2x8x1xf32>
    %115 = tpu.reciprocal %114 {approx = true} : vector<2x8x1xf32> -> vector<2x8x1xf32>
    %116 = vector.broadcast %115 : vector<2x8x1xf32> to vector<2x8x8xf32>
    %117 = arith.mulf %112, %116 : vector<2x8x8xf32>
    %118 = arith.truncf %117 : vector<2x8x8xf32> to vector<2x8x8xbf16>
    "tpu.trace_start"() <{level = 10 : i32, message = "bqk,bkd->bqd"}> : () -> ()
    %cst_32 = arith.constant dense<0.000000e+00> : vector<2x8x32xf32>
    %119 = tpu.matmul %118, %104, %cst_32 {dimension_numbers = #tpu.dot_dimension_numbers<[2], [1], [1], [2], [0, 0, 0, 1, 1, 2], [0], [0]>} : vector<2x8x8xbf16>, vector<2x8x32xbf16>, vector<2x8x32xf32> -> vector<2x8x32xf32>
    "tpu.trace_stop"() : () -> ()
    %120 = vector.shape_cast %119 : vector<2x8x32xf32> to vector<16x32xf32>
    %121 = arith.truncf %120 : vector<16x32xf32> to vector<16x32xbf16>
    %c96 = arith.constant 96 : index
    %c0_33 = arith.constant 0 : index
    %122 = vector.load %arg4[%c96, %c0_33] : memref<128x128xbf16, #tpu.memory_space<vmem>>, vector<32x128xbf16>
    %cst_34 = arith.constant dense<0.000000e+00> : vector<16x128xf32>
    %123 = tpu.matmul %121, %122, %cst_34 {dimension_numbers = #tpu.dot_dimension_numbers<[1], [0], [0], [1], [0, 0, 1, 1], [], []>} : vector<16x32xbf16>, vector<32x128xbf16>, vector<16x128xf32> -> vector<16x128xf32>
    %124 = arith.addf %95, %123 : vector<16x128xf32>
    %c0_35 = arith.constant 0 : index
    %c0_36 = arith.constant 0 : index
    %125 = vector.load %arg5[%c0_35, %c0_36] : memref<1x128xf32, #tpu.memory_space<vmem>>, vector<1x128xf32>
    %126 = vector.broadcast %125 : vector<1x128xf32> to vector<16x128xf32>
    %127 = arith.addf %124, %126 : vector<16x128xf32>
    %128 = arith.addf %1, %127 : vector<16x128xf32>
    %cst_37 = arith.constant dense<0.000000e+00> : vector<16xf32>
    %129 = vector.multi_reduction <add>, %128, %cst_37 [1] : vector<16x128xf32> to vector<16xf32>
    %130 = vector.shape_cast %129 : vector<16xf32> to vector<16x1xf32>
    %cst_38 = arith.constant 1.280000e+02 : f32
    %131 = vector.broadcast %cst_38 : f32 to vector<16x1xf32>
    %132 = arith.divf %130, %131 : vector<16x1xf32>
    %133 = vector.broadcast %132 : vector<16x1xf32> to vector<16x128xf32>
    %134 = arith.subf %128, %133 : vector<16x128xf32>
    %135 = arith.mulf %134, %134 : vector<16x128xf32>
    %cst_39 = arith.constant dense<0.000000e+00> : vector<16xf32>
    %136 = vector.multi_reduction <add>, %135, %cst_39 [1] : vector<16x128xf32> to vector<16xf32>
    %137 = vector.shape_cast %136 : vector<16xf32> to vector<16x1xf32>
    %cst_40 = arith.constant 1.280000e+02 : f32
    %138 = vector.broadcast %cst_40 : f32 to vector<16x1xf32>
    %139 = arith.divf %137, %138 : vector<16x1xf32>
    %cst_41 = arith.constant 9.99999974E-6 : f32
    %140 = vector.broadcast %cst_41 : f32 to vector<16x1xf32>
    %141 = arith.addf %139, %140 : vector<16x1xf32>
    %142 = math.rsqrt %141 : vector<16x1xf32>
    %143 = vector.broadcast %142 : vector<16x1xf32> to vector<16x128xf32>
    %144 = arith.mulf %134, %143 : vector<16x128xf32>
    %c0_42 = arith.constant 0 : index
    %c0_43 = arith.constant 0 : index
    %145 = vector.load %arg6[%c0_42, %c0_43] : memref<1x128xf32, #tpu.memory_space<vmem>>, vector<1x128xf32>
    %146 = vector.broadcast %145 : vector<1x128xf32> to vector<16x128xf32>
    %147 = arith.mulf %144, %146 : vector<16x128xf32>
    %c0_44 = arith.constant 0 : index
    %c0_45 = arith.constant 0 : index
    %148 = vector.load %arg7[%c0_44, %c0_45] : memref<1x128xf32, #tpu.memory_space<vmem>>, vector<1x128xf32>
    %149 = vector.broadcast %148 : vector<1x128xf32> to vector<16x128xf32>
    %150 = arith.addf %147, %149 : vector<16x128xf32>
    %151 = arith.truncf %150 : vector<16x128xf32> to vector<16x128xbf16>
    %c0_46 = arith.constant 0 : index
    %c0_47 = arith.constant 0 : index
    %152 = vector.load %arg8[%c0_46, %c0_47] : memref<16x128xbf16, #tpu.memory_space<vmem>>, vector<16x128xbf16>
    tpu.vector_store %arg8[%c0_46, %c0_47], %151 {strides = array<i32>} : memref<16x128xbf16, #tpu.memory_space<vmem>>, vector<16x128xbf16>,
    return
  }
  func.func @transform_0(%arg0: i32) -> (i32, i32) {
    %c0_i32 = arith.constant 0 : i32
    %c0_i32_0 = arith.constant 0 : i32
    return %arg0, %c0_i32 : i32, i32
  }
  func.func @transform_1(%arg0: i32) -> (i32, i32) {
    %c0_i32 = arith.constant 0 : i32
    %c0_i32_0 = arith.constant 0 : i32
    %c0_i32_1 = arith.constant 0 : i32
    return %c0_i32, %c0_i32_0 : i32, i32
  }
  func.func @transform_2(%arg0: i32) -> (i32, i32) {
    %c0_i32 = arith.constant 0 : i32
    %c0_i32_0 = arith.constant 0 : i32
    %c0_i32_1 = arith.constant 0 : i32
    return %c0_i32, %c0_i32_0 : i32, i32
  }
  func.func @transform_3(%arg0: i32) -> (i32, i32) {
    %c0_i32 = arith.constant 0 : i32
    %c0_i32_0 = arith.constant 0 : i32
    %c0_i32_1 = arith.constant 0 : i32
    return %c0_i32, %c0_i32_0 : i32, i32
  }
  func.func @transform_4(%arg0: i32) -> (i32, i32) {
    %c0_i32 = arith.constant 0 : i32
    %c0_i32_0 = arith.constant 0 : i32
    %c0_i32_1 = arith.constant 0 : i32
    return %c0_i32, %c0_i32_0 : i32, i32
  }
  func.func @transform_5(%arg0: i32) -> (i32, i32) {
    %c0_i32 = arith.constant 0 : i32
    %c0_i32_0 = arith.constant 0 : i32
    %c0_i32_1 = arith.constant 0 : i32
    return %c0_i32, %c0_i32_0 : i32, i32
  }
  func.func @transform_6(%arg0: i32) -> (i32, i32) {
    %c0_i32 = arith.constant 0 : i32
    %c0_i32_0 = arith.constant 0 : i32
    %c0_i32_1 = arith.constant 0 : i32
    return %c0_i32, %c0_i32_0 : i32, i32
  }
  func.func @transform_7(%arg0: i32) -> (i32, i32) {
    %c0_i32 = arith.constant 0 : i32
    %c0_i32_0 = arith.constant 0 : i32
    return %arg0, %c0_i32 : i32, i32
  }
}

module attributes {stable_mosaic.version = 11 : i64} {
  func.func @_ffn_block_kernel(%arg0: i32, %arg1: memref<16x128xbf16, #tpu.memory_space<vmem>>, %arg2: memref<128x256xbf16, #tpu.memory_space<vmem>>, %arg3: memref<1x256xf32, #tpu.memory_space<vmem>>, %arg4: memref<256x128xbf16, #tpu.memory_space<vmem>>, %arg5: memref<1x128xf32, #tpu.memory_space<vmem>>, %arg6: memref<1x128xf32, #tpu.memory_space<vmem>>, %arg7: memref<1x128xf32, #tpu.memory_space<vmem>>, %arg8: memref<16x128xbf16, #tpu.memory_space<vmem>>) attributes {dimension_semantics = [#tpu.dimension_semantics<parallel>], iteration_bounds = array<i64: 1>, scalar_prefetch = 0 : i64, scratch_operands = 0 : i64, tpu.core_type = #tpu.core_type<tc>, window_params = [{transform_indices = @transform_0, window_bounds = array<i64: 16, 128>}, {pipeline_mode = #tpu.pipeline_mode<synchronous>, transform_indices = @transform_1, window_bounds = array<i64: 128, 256>}, {pipeline_mode = #tpu.pipeline_mode<synchronous>, transform_indices = @transform_2, window_bounds = array<i64: 1, 256>}, {pipeline_mode = #tpu.pipeline_mode<synchronous>, transform_indices = @transform_3, window_bounds = array<i64: 256, 128>}, {pipeline_mode = #tpu.pipeline_mode<synchronous>, transform_indices = @transform_4, window_bounds = array<i64: 1, 128>}, {pipeline_mode = #tpu.pipeline_mode<synchronous>, transform_indices = @transform_5, window_bounds = array<i64: 1, 128>}, {pipeline_mode = #tpu.pipeline_mode<synchronous>, transform_indices = @transform_6, window_bounds = array<i64: 1, 128>}, {transform_indices = @transform_7, window_bounds = array<i64: 16, 128>}]} {
    %c0 = arith.constant 0 : index
    %c0_0 = arith.constant 0 : index
    %0 = vector.load %arg1[%c0, %c0_0] : memref<16x128xbf16, #tpu.memory_space<vmem>>, vector<16x128xbf16>
    %1 = arith.extf %0 : vector<16x128xbf16> to vector<16x128xf32>
    %2 = arith.truncf %1 : vector<16x128xf32> to vector<16x128xbf16>
    %c0_1 = arith.constant 0 : index
    %c0_2 = arith.constant 0 : index
    %3 = vector.load %arg2[%c0_1, %c0_2] : memref<128x256xbf16, #tpu.memory_space<vmem>>, vector<128x256xbf16>
    %cst = arith.constant dense<0.000000e+00> : vector<16x256xf32>
    %4 = tpu.matmul %2, %3, %cst {dimension_numbers = #tpu.dot_dimension_numbers<[1], [0], [0], [1], [0, 0, 1, 1], [], []>} : vector<16x128xbf16>, vector<128x256xbf16>, vector<16x256xf32> -> vector<16x256xf32>
    %c0_3 = arith.constant 0 : index
    %c0_4 = arith.constant 0 : index
    %5 = vector.load %arg3[%c0_3, %c0_4] : memref<1x256xf32, #tpu.memory_space<vmem>>, vector<1x256xf32>
    %6 = vector.broadcast %5 : vector<1x256xf32> to vector<16x256xf32>
    %7 = arith.addf %4, %6 : vector<16x256xf32>
    %cst_5 = arith.constant 0.000000e+00 : f32
    %8 = vector.broadcast %cst_5 : f32 to vector<16x256xf32>
    %9 = arith.maximumf %7, %8 : vector<16x256xf32>
    %10 = arith.truncf %9 : vector<16x256xf32> to vector<16x256xbf16>
    %c0_6 = arith.constant 0 : index
    %c0_7 = arith.constant 0 : index
    %11 = vector.load %arg4[%c0_6, %c0_7] : memref<256x128xbf16, #tpu.memory_space<vmem>>, vector<256x128xbf16>
    %cst_8 = arith.constant dense<0.000000e+00> : vector<16x128xf32>
    %12 = tpu.matmul %10, %11, %cst_8 {dimension_numbers = #tpu.dot_dimension_numbers<[1], [0], [0], [1], [0, 0, 1, 1], [], []>} : vector<16x256xbf16>, vector<256x128xbf16>, vector<16x128xf32> -> vector<16x128xf32>
    %c0_9 = arith.constant 0 : index
    %c0_10 = arith.constant 0 : index
    %13 = vector.load %arg5[%c0_9, %c0_10] : memref<1x128xf32, #tpu.memory_space<vmem>>, vector<1x128xf32>
    %14 = vector.broadcast %13 : vector<1x128xf32> to vector<16x128xf32>
    %15 = arith.addf %12, %14 : vector<16x128xf32>
    %16 = arith.addf %1, %15 : vector<16x128xf32>
    %cst_11 = arith.constant dense<0.000000e+00> : vector<16xf32>
    %17 = vector.multi_reduction <add>, %16, %cst_11 [1] : vector<16x128xf32> to vector<16xf32>
    %18 = vector.shape_cast %17 : vector<16xf32> to vector<16x1xf32>
    %cst_12 = arith.constant 1.280000e+02 : f32
    %19 = vector.broadcast %cst_12 : f32 to vector<16x1xf32>
    %20 = arith.divf %18, %19 : vector<16x1xf32>
    %21 = vector.broadcast %20 : vector<16x1xf32> to vector<16x128xf32>
    %22 = arith.subf %16, %21 : vector<16x128xf32>
    %23 = arith.mulf %22, %22 : vector<16x128xf32>
    %cst_13 = arith.constant dense<0.000000e+00> : vector<16xf32>
    %24 = vector.multi_reduction <add>, %23, %cst_13 [1] : vector<16x128xf32> to vector<16xf32>
    %25 = vector.shape_cast %24 : vector<16xf32> to vector<16x1xf32>
    %cst_14 = arith.constant 1.280000e+02 : f32
    %26 = vector.broadcast %cst_14 : f32 to vector<16x1xf32>
    %27 = arith.divf %25, %26 : vector<16x1xf32>
    %cst_15 = arith.constant 9.99999974E-6 : f32
    %28 = vector.broadcast %cst_15 : f32 to vector<16x1xf32>
    %29 = arith.addf %27, %28 : vector<16x1xf32>
    %30 = math.rsqrt %29 : vector<16x1xf32>
    %31 = vector.broadcast %30 : vector<16x1xf32> to vector<16x128xf32>
    %32 = arith.mulf %22, %31 : vector<16x128xf32>
    %c0_16 = arith.constant 0 : index
    %c0_17 = arith.constant 0 : index
    %33 = vector.load %arg6[%c0_16, %c0_17] : memref<1x128xf32, #tpu.memory_space<vmem>>, vector<1x128xf32>
    %34 = vector.broadcast %33 : vector<1x128xf32> to vector<16x128xf32>
    %35 = arith.mulf %32, %34 : vector<16x128xf32>
    %c0_18 = arith.constant 0 : index
    %c0_19 = arith.constant 0 : index
    %36 = vector.load %arg7[%c0_18, %c0_19] : memref<1x128xf32, #tpu.memory_space<vmem>>, vector<1x128xf32>
    %37 = vector.broadcast %36 : vector<1x128xf32> to vector<16x128xf32>
    %38 = arith.addf %35, %37 : vector<16x128xf32>
    %39 = arith.truncf %38 : vector<16x128xf32> to vector<16x128xbf16>
    %c0_20 = arith.constant 0 : index
    %c0_21 = arith.constant 0 : index
    %40 = vector.load %arg8[%c0_20, %c0_21] : memref<16x128xbf16, #tpu.memory_space<vmem>>, vector<16x128xbf16>
    tpu.vector_store %arg8[%c0_20, %c0_21], %39 {strides = array<i32>} : memref<16x128xbf16, #tpu.memory_space<vmem>>, vector<16x128xbf16>,
    return
  }
  func.func @transform_0(%arg0: i32) -> (i32, i32) {
    %c0_i32 = arith.constant 0 : i32
    %c0_i32_0 = arith.constant 0 : i32
    return %arg0, %c0_i32 : i32, i32
  }
  func.func @transform_1(%arg0: i32) -> (i32, i32) {
    %c0_i32 = arith.constant 0 : i32
    %c0_i32_0 = arith.constant 0 : i32
    %c0_i32_1 = arith.constant 0 : i32
    return %c0_i32, %c0_i32_0 : i32, i32
  }
  func.func @transform_2(%arg0: i32) -> (i32, i32) {
    %c0_i32 = arith.constant 0 : i32
    %c0_i32_0 = arith.constant 0 : i32
    %c0_i32_1 = arith.constant 0 : i32
    return %c0_i32, %c0_i32_0 : i32, i32
  }
  func.func @transform_3(%arg0: i32) -> (i32, i32) {
    %c0_i32 = arith.constant 0 : i32
    %c0_i32_0 = arith.constant 0 : i32
    %c0_i32_1 = arith.constant 0 : i32
    return %c0_i32, %c0_i32_0 : i32, i32
  }
  func.func @transform_4(%arg0: i32) -> (i32, i32) {
    %c0_i32 = arith.constant 0 : i32
    %c0_i32_0 = arith.constant 0 : i32
    %c0_i32_1 = arith.constant 0 : i32
    return %c0_i32, %c0_i32_0 : i32, i32
  }
  func.func @transform_5(%arg0: i32) -> (i32, i32) {
    %c0_i32 = arith.constant 0 : i32
    %c0_i32_0 = arith.constant 0 : i32
    %c0_i32_1 = arith.constant 0 : i32
    return %c0_i32, %c0_i32_0 : i32, i32
  }
  func.func @transform_6(%arg0: i32) -> (i32, i32) {
    %c0_i32 = arith.constant 0 : i32
    %c0_i32_0 = arith.constant 0 : i32
    %c0_i32_1 = arith.constant 0 : i32
    return %c0_i32, %c0_i32_0 : i32, i32
  }
  func.func @transform_7(%arg0: i32) -> (i32, i32) {
    %c0_i32 = arith.constant 0 : i32
    %c0_i32_0 = arith.constant 0 : i32
    return %arg0, %c0_i32 : i32, i32
  }
}

module attributes {stable_mosaic.version = 11 : i64} {
  func.func @_heads_kernel(%arg0: i32, %arg1: memref<2x128xbf16, #tpu.memory_space<vmem>>, %arg2: memref<128x256xbf16, #tpu.memory_space<vmem>>, %arg3: memref<1x256xf32, #tpu.memory_space<vmem>>, %arg4: memref<256x64xbf16, #tpu.memory_space<vmem>>, %arg5: memref<1x64xf32, #tpu.memory_space<vmem>>, %arg6: memref<64x2xbf16, #tpu.memory_space<vmem>>, %arg7: memref<1x2xf32, #tpu.memory_space<vmem>>, %arg8: memref<128x512xbf16, #tpu.memory_space<vmem>>, %arg9: memref<1x512xf32, #tpu.memory_space<vmem>>, %arg10: memref<512x256xbf16, #tpu.memory_space<vmem>>, %arg11: memref<1x256xf32, #tpu.memory_space<vmem>>, %arg12: memref<256x512xbf16, #tpu.memory_space<vmem>>, %arg13: memref<1x512xf32, #tpu.memory_space<vmem>>, %arg14: memref<128x512xbf16, #tpu.memory_space<vmem>>, %arg15: memref<1x512xf32, #tpu.memory_space<vmem>>, %arg16: memref<512x256xbf16, #tpu.memory_space<vmem>>, %arg17: memref<1x256xf32, #tpu.memory_space<vmem>>, %arg18: memref<256x16xbf16, #tpu.memory_space<vmem>>, %arg19: memref<1x16xf32, #tpu.memory_space<vmem>>, %arg20: memref<128x256xbf16, #tpu.memory_space<vmem>>, %arg21: memref<1x256xf32, #tpu.memory_space<vmem>>, %arg22: memref<256x64xbf16, #tpu.memory_space<vmem>>, %arg23: memref<1x64xf32, #tpu.memory_space<vmem>>, %arg24: memref<64x3xbf16, #tpu.memory_space<vmem>>, %arg25: memref<1x3xf32, #tpu.memory_space<vmem>>, %arg26: memref<2x2xf32, #tpu.memory_space<vmem>>, %arg27: memref<2x512xf32, #tpu.memory_space<vmem>>, %arg28: memref<2x16xf32, #tpu.memory_space<vmem>>, %arg29: memref<2x3xf32, #tpu.memory_space<vmem>>) attributes {dimension_semantics = [#tpu.dimension_semantics<parallel>], iteration_bounds = array<i64: 1>, scalar_prefetch = 0 : i64, scratch_operands = 0 : i64, tpu.core_type = #tpu.core_type<tc>, window_params = [{transform_indices = @transform_0, window_bounds = array<i64: 2, 128>}, {pipeline_mode = #tpu.pipeline_mode<synchronous>, transform_indices = @transform_1, window_bounds = array<i64: 128, 256>}, {pipeline_mode = #tpu.pipeline_mode<synchronous>, transform_indices = @transform_2, window_bounds = array<i64: 1, 256>}, {pipeline_mode = #tpu.pipeline_mode<synchronous>, transform_indices = @transform_3, window_bounds = array<i64: 256, 64>}, {pipeline_mode = #tpu.pipeline_mode<synchronous>, transform_indices = @transform_4, window_bounds = array<i64: 1, 64>}, {pipeline_mode = #tpu.pipeline_mode<synchronous>, transform_indices = @transform_5, window_bounds = array<i64: 64, 2>}, {pipeline_mode = #tpu.pipeline_mode<synchronous>, transform_indices = @transform_6, window_bounds = array<i64: 1, 2>}, {pipeline_mode = #tpu.pipeline_mode<synchronous>, transform_indices = @transform_7, window_bounds = array<i64: 128, 512>}, {pipeline_mode = #tpu.pipeline_mode<synchronous>, transform_indices = @transform_8, window_bounds = array<i64: 1, 512>}, {pipeline_mode = #tpu.pipeline_mode<synchronous>, transform_indices = @transform_9, window_bounds = array<i64: 512, 256>}, {pipeline_mode = #tpu.pipeline_mode<synchronous>, transform_indices = @transform_10, window_bounds = array<i64: 1, 256>}, {pipeline_mode = #tpu.pipeline_mode<synchronous>, transform_indices = @transform_11, window_bounds = array<i64: 256, 512>}, {pipeline_mode = #tpu.pipeline_mode<synchronous>, transform_indices = @transform_12, window_bounds = array<i64: 1, 512>}, {pipeline_mode = #tpu.pipeline_mode<synchronous>, transform_indices = @transform_13, window_bounds = array<i64: 128, 512>}, {pipeline_mode = #tpu.pipeline_mode<synchronous>, transform_indices = @transform_14, window_bounds = array<i64: 1, 512>}, {pipeline_mode = #tpu.pipeline_mode<synchronous>, transform_indices = @transform_15, window_bounds = array<i64: 512, 256>}, {pipeline_mode = #tpu.pipeline_mode<synchronous>, transform_indices = @transform_16, window_bounds = array<i64: 1, 256>}, {pipeline_mode = #tpu.pipeline_mode<synchronous>, transform_indices = @transform_17, window_bounds = array<i64: 256, 16>}, {pipeline_mode = #tpu.pipeline_mode<synchronous>, transform_indices = @transform_18, window_bounds = array<i64: 1, 16>}, {pipeline_mode = #tpu.pipeline_mode<synchronous>, transform_indices = @transform_19, window_bounds = array<i64: 128, 256>}, {pipeline_mode = #tpu.pipeline_mode<synchronous>, transform_indices = @transform_20, window_bounds = array<i64: 1, 256>}, {pipeline_mode = #tpu.pipeline_mode<synchronous>, transform_indices = @transform_21, window_bounds = array<i64: 256, 64>}, {pipeline_mode = #tpu.pipeline_mode<synchronous>, transform_indices = @transform_22, window_bounds = array<i64: 1, 64>}, {pipeline_mode = #tpu.pipeline_mode<synchronous>, transform_indices = @transform_23, window_bounds = array<i64: 64, 3>}, {pipeline_mode = #tpu.pipeline_mode<synchronous>, transform_indices = @transform_24, window_bounds = array<i64: 1, 3>}, {transform_indices = @transform_25, window_bounds = array<i64: 2, 2>}, {transform_indices = @transform_26, window_bounds = array<i64: 2, 512>}, {transform_indices = @transform_27, window_bounds = array<i64: 2, 16>}, {transform_indices = @transform_28, window_bounds = array<i64: 2, 3>}]} {
    %c0 = arith.constant 0 : index
    %c0_0 = arith.constant 0 : index
    %0 = vector.load %arg1[%c0, %c0_0] : memref<2x128xbf16, #tpu.memory_space<vmem>>, vector<2x128xbf16>
    %c0_1 = arith.constant 0 : index
    %c0_2 = arith.constant 0 : index
    %1 = vector.load %arg2[%c0_1, %c0_2] : memref<128x256xbf16, #tpu.memory_space<vmem>>, vector<128x256xbf16>
    %cst = arith.constant dense<0.000000e+00> : vector<2x256xf32>
    %2 = tpu.matmul %0, %1, %cst {dimension_numbers = #tpu.dot_dimension_numbers<[1], [0], [0], [1], [0, 0, 1, 1], [], []>} : vector<2x128xbf16>, vector<128x256xbf16>, vector<2x256xf32> -> vector<2x256xf32>
    %c0_3 = arith.constant 0 : index
    %c0_4 = arith.constant 0 : index
    %3 = vector.load %arg3[%c0_3, %c0_4] : memref<1x256xf32, #tpu.memory_space<vmem>>, vector<1x256xf32>
    %4 = vector.broadcast %3 : vector<1x256xf32> to vector<2x256xf32>
    %5 = arith.addf %2, %4 : vector<2x256xf32>
    %cst_5 = arith.constant 0.000000e+00 : f32
    %6 = vector.broadcast %cst_5 : f32 to vector<2x256xf32>
    %7 = arith.maximumf %5, %6 : vector<2x256xf32>
    %8 = arith.truncf %7 : vector<2x256xf32> to vector<2x256xbf16>
    %c0_6 = arith.constant 0 : index
    %c0_7 = arith.constant 0 : index
    %9 = vector.load %arg4[%c0_6, %c0_7] : memref<256x64xbf16, #tpu.memory_space<vmem>>, vector<256x64xbf16>
    %cst_8 = arith.constant dense<0.000000e+00> : vector<2x64xf32>
    %10 = tpu.matmul %8, %9, %cst_8 {dimension_numbers = #tpu.dot_dimension_numbers<[1], [0], [0], [1], [0, 0, 1, 1], [], []>} : vector<2x256xbf16>, vector<256x64xbf16>, vector<2x64xf32> -> vector<2x64xf32>
    %c0_9 = arith.constant 0 : index
    %c0_10 = arith.constant 0 : index
    %11 = vector.load %arg5[%c0_9, %c0_10] : memref<1x64xf32, #tpu.memory_space<vmem>>, vector<1x64xf32>
    %12 = vector.broadcast %11 : vector<1x64xf32> to vector<2x64xf32>
    %13 = arith.addf %10, %12 : vector<2x64xf32>
    %cst_11 = arith.constant 0.000000e+00 : f32
    %14 = vector.broadcast %cst_11 : f32 to vector<2x64xf32>
    %15 = arith.maximumf %13, %14 : vector<2x64xf32>
    %16 = arith.truncf %15 : vector<2x64xf32> to vector<2x64xbf16>
    %c0_12 = arith.constant 0 : index
    %c0_13 = arith.constant 0 : index
    %17 = vector.load %arg6[%c0_12, %c0_13] : memref<64x2xbf16, #tpu.memory_space<vmem>>, vector<64x2xbf16>
    %cst_14 = arith.constant dense<0.000000e+00> : vector<2x2xf32>
    %18 = tpu.matmul %16, %17, %cst_14 {dimension_numbers = #tpu.dot_dimension_numbers<[1], [0], [0], [1], [0, 0, 1, 1], [], []>} : vector<2x64xbf16>, vector<64x2xbf16>, vector<2x2xf32> -> vector<2x2xf32>
    %c0_15 = arith.constant 0 : index
    %c0_16 = arith.constant 0 : index
    %19 = vector.load %arg7[%c0_15, %c0_16] : memref<1x2xf32, #tpu.memory_space<vmem>>, vector<1x2xf32>
    %20 = vector.broadcast %19 : vector<1x2xf32> to vector<2x2xf32>
    %21 = arith.addf %18, %20 : vector<2x2xf32>
    %c0_17 = arith.constant 0 : index
    %c0_18 = arith.constant 0 : index
    %22 = vector.load %arg26[%c0_17, %c0_18] : memref<2x2xf32, #tpu.memory_space<vmem>>, vector<2x2xf32>
    tpu.vector_store %arg26[%c0_17, %c0_18], %21 {strides = array<i32>} : memref<2x2xf32, #tpu.memory_space<vmem>>, vector<2x2xf32>,
    %c0_19 = arith.constant 0 : index
    %c0_20 = arith.constant 0 : index
    %23 = vector.load %arg8[%c0_19, %c0_20] : memref<128x512xbf16, #tpu.memory_space<vmem>>, vector<128x512xbf16>
    %cst_21 = arith.constant dense<0.000000e+00> : vector<2x512xf32>
    %24 = tpu.matmul %0, %23, %cst_21 {dimension_numbers = #tpu.dot_dimension_numbers<[1], [0], [0], [1], [0, 0, 1, 1], [], []>} : vector<2x128xbf16>, vector<128x512xbf16>, vector<2x512xf32> -> vector<2x512xf32>
    %c0_22 = arith.constant 0 : index
    %c0_23 = arith.constant 0 : index
    %25 = vector.load %arg9[%c0_22, %c0_23] : memref<1x512xf32, #tpu.memory_space<vmem>>, vector<1x512xf32>
    %26 = vector.broadcast %25 : vector<1x512xf32> to vector<2x512xf32>
    %27 = arith.addf %24, %26 : vector<2x512xf32>
    %cst_24 = arith.constant 0.000000e+00 : f32
    %28 = vector.broadcast %cst_24 : f32 to vector<2x512xf32>
    %29 = arith.maximumf %27, %28 : vector<2x512xf32>
    %30 = arith.truncf %29 : vector<2x512xf32> to vector<2x512xbf16>
    %c0_25 = arith.constant 0 : index
    %c0_26 = arith.constant 0 : index
    %31 = vector.load %arg10[%c0_25, %c0_26] : memref<512x256xbf16, #tpu.memory_space<vmem>>, vector<512x256xbf16>
    %cst_27 = arith.constant dense<0.000000e+00> : vector<2x256xf32>
    %32 = tpu.matmul %30, %31, %cst_27 {dimension_numbers = #tpu.dot_dimension_numbers<[1], [0], [0], [1], [0, 0, 1, 1], [], []>} : vector<2x512xbf16>, vector<512x256xbf16>, vector<2x256xf32> -> vector<2x256xf32>
    %c0_28 = arith.constant 0 : index
    %c0_29 = arith.constant 0 : index
    %33 = vector.load %arg11[%c0_28, %c0_29] : memref<1x256xf32, #tpu.memory_space<vmem>>, vector<1x256xf32>
    %34 = vector.broadcast %33 : vector<1x256xf32> to vector<2x256xf32>
    %35 = arith.addf %32, %34 : vector<2x256xf32>
    %cst_30 = arith.constant 0.000000e+00 : f32
    %36 = vector.broadcast %cst_30 : f32 to vector<2x256xf32>
    %37 = arith.maximumf %35, %36 : vector<2x256xf32>
    %38 = arith.truncf %37 : vector<2x256xf32> to vector<2x256xbf16>
    %c0_31 = arith.constant 0 : index
    %c0_32 = arith.constant 0 : index
    %39 = vector.load %arg12[%c0_31, %c0_32] : memref<256x512xbf16, #tpu.memory_space<vmem>>, vector<256x512xbf16>
    %cst_33 = arith.constant dense<0.000000e+00> : vector<2x512xf32>
    %40 = tpu.matmul %38, %39, %cst_33 {dimension_numbers = #tpu.dot_dimension_numbers<[1], [0], [0], [1], [0, 0, 1, 1], [], []>} : vector<2x256xbf16>, vector<256x512xbf16>, vector<2x512xf32> -> vector<2x512xf32>
    %c0_34 = arith.constant 0 : index
    %c0_35 = arith.constant 0 : index
    %41 = vector.load %arg13[%c0_34, %c0_35] : memref<1x512xf32, #tpu.memory_space<vmem>>, vector<1x512xf32>
    %42 = vector.broadcast %41 : vector<1x512xf32> to vector<2x512xf32>
    %43 = arith.addf %40, %42 : vector<2x512xf32>
    %c0_36 = arith.constant 0 : index
    %c0_37 = arith.constant 0 : index
    %44 = vector.load %arg27[%c0_36, %c0_37] : memref<2x512xf32, #tpu.memory_space<vmem>>, vector<2x512xf32>
    tpu.vector_store %arg27[%c0_36, %c0_37], %43 {strides = array<i32>} : memref<2x512xf32, #tpu.memory_space<vmem>>, vector<2x512xf32>,
    %c0_38 = arith.constant 0 : index
    %c0_39 = arith.constant 0 : index
    %45 = vector.load %arg14[%c0_38, %c0_39] : memref<128x512xbf16, #tpu.memory_space<vmem>>, vector<128x512xbf16>
    %cst_40 = arith.constant dense<0.000000e+00> : vector<2x512xf32>
    %46 = tpu.matmul %0, %45, %cst_40 {dimension_numbers = #tpu.dot_dimension_numbers<[1], [0], [0], [1], [0, 0, 1, 1], [], []>} : vector<2x128xbf16>, vector<128x512xbf16>, vector<2x512xf32> -> vector<2x512xf32>
    %c0_41 = arith.constant 0 : index
    %c0_42 = arith.constant 0 : index
    %47 = vector.load %arg15[%c0_41, %c0_42] : memref<1x512xf32, #tpu.memory_space<vmem>>, vector<1x512xf32>
    %48 = vector.broadcast %47 : vector<1x512xf32> to vector<2x512xf32>
    %49 = arith.addf %46, %48 : vector<2x512xf32>
    %cst_43 = arith.constant 0.000000e+00 : f32
    %50 = vector.broadcast %cst_43 : f32 to vector<2x512xf32>
    %51 = arith.maximumf %49, %50 : vector<2x512xf32>
    %52 = arith.truncf %51 : vector<2x512xf32> to vector<2x512xbf16>
    %c0_44 = arith.constant 0 : index
    %c0_45 = arith.constant 0 : index
    %53 = vector.load %arg16[%c0_44, %c0_45] : memref<512x256xbf16, #tpu.memory_space<vmem>>, vector<512x256xbf16>
    %cst_46 = arith.constant dense<0.000000e+00> : vector<2x256xf32>
    %54 = tpu.matmul %52, %53, %cst_46 {dimension_numbers = #tpu.dot_dimension_numbers<[1], [0], [0], [1], [0, 0, 1, 1], [], []>} : vector<2x512xbf16>, vector<512x256xbf16>, vector<2x256xf32> -> vector<2x256xf32>
    %c0_47 = arith.constant 0 : index
    %c0_48 = arith.constant 0 : index
    %55 = vector.load %arg17[%c0_47, %c0_48] : memref<1x256xf32, #tpu.memory_space<vmem>>, vector<1x256xf32>
    %56 = vector.broadcast %55 : vector<1x256xf32> to vector<2x256xf32>
    %57 = arith.addf %54, %56 : vector<2x256xf32>
    %cst_49 = arith.constant 0.000000e+00 : f32
    %58 = vector.broadcast %cst_49 : f32 to vector<2x256xf32>
    %59 = arith.maximumf %57, %58 : vector<2x256xf32>
    %60 = arith.truncf %59 : vector<2x256xf32> to vector<2x256xbf16>
    %c0_50 = arith.constant 0 : index
    %c0_51 = arith.constant 0 : index
    %61 = vector.load %arg18[%c0_50, %c0_51] : memref<256x16xbf16, #tpu.memory_space<vmem>>, vector<256x16xbf16>
    %cst_52 = arith.constant dense<0.000000e+00> : vector<2x16xf32>
    %62 = tpu.matmul %60, %61, %cst_52 {dimension_numbers = #tpu.dot_dimension_numbers<[1], [0], [0], [1], [0, 0, 1, 1], [], []>} : vector<2x256xbf16>, vector<256x16xbf16>, vector<2x16xf32> -> vector<2x16xf32>
    %c0_53 = arith.constant 0 : index
    %c0_54 = arith.constant 0 : index
    %63 = vector.load %arg19[%c0_53, %c0_54] : memref<1x16xf32, #tpu.memory_space<vmem>>, vector<1x16xf32>
    %64 = vector.broadcast %63 : vector<1x16xf32> to vector<2x16xf32>
    %65 = arith.addf %62, %64 : vector<2x16xf32>
    %c0_55 = arith.constant 0 : index
    %c0_56 = arith.constant 0 : index
    %66 = vector.load %arg28[%c0_55, %c0_56] : memref<2x16xf32, #tpu.memory_space<vmem>>, vector<2x16xf32>
    tpu.vector_store %arg28[%c0_55, %c0_56], %65 {strides = array<i32>} : memref<2x16xf32, #tpu.memory_space<vmem>>, vector<2x16xf32>,
    %c0_57 = arith.constant 0 : index
    %c0_58 = arith.constant 0 : index
    %67 = vector.load %arg20[%c0_57, %c0_58] : memref<128x256xbf16, #tpu.memory_space<vmem>>, vector<128x256xbf16>
    %cst_59 = arith.constant dense<0.000000e+00> : vector<2x256xf32>
    %68 = tpu.matmul %0, %67, %cst_59 {dimension_numbers = #tpu.dot_dimension_numbers<[1], [0], [0], [1], [0, 0, 1, 1], [], []>} : vector<2x128xbf16>, vector<128x256xbf16>, vector<2x256xf32> -> vector<2x256xf32>
    %c0_60 = arith.constant 0 : index
    %c0_61 = arith.constant 0 : index
    %69 = vector.load %arg21[%c0_60, %c0_61] : memref<1x256xf32, #tpu.memory_space<vmem>>, vector<1x256xf32>
    %70 = vector.broadcast %69 : vector<1x256xf32> to vector<2x256xf32>
    %71 = arith.addf %68, %70 : vector<2x256xf32>
    %cst_62 = arith.constant 0.000000e+00 : f32
    %72 = vector.broadcast %cst_62 : f32 to vector<2x256xf32>
    %73 = arith.maximumf %71, %72 : vector<2x256xf32>
    %74 = arith.truncf %73 : vector<2x256xf32> to vector<2x256xbf16>
    %c0_63 = arith.constant 0 : index
    %c0_64 = arith.constant 0 : index
    %75 = vector.load %arg22[%c0_63, %c0_64] : memref<256x64xbf16, #tpu.memory_space<vmem>>, vector<256x64xbf16>
    %cst_65 = arith.constant dense<0.000000e+00> : vector<2x64xf32>
    %76 = tpu.matmul %74, %75, %cst_65 {dimension_numbers = #tpu.dot_dimension_numbers<[1], [0], [0], [1], [0, 0, 1, 1], [], []>} : vector<2x256xbf16>, vector<256x64xbf16>, vector<2x64xf32> -> vector<2x64xf32>
    %c0_66 = arith.constant 0 : index
    %c0_67 = arith.constant 0 : index
    %77 = vector.load %arg23[%c0_66, %c0_67] : memref<1x64xf32, #tpu.memory_space<vmem>>, vector<1x64xf32>
    %78 = vector.broadcast %77 : vector<1x64xf32> to vector<2x64xf32>
    %79 = arith.addf %76, %78 : vector<2x64xf32>
    %cst_68 = arith.constant 0.000000e+00 : f32
    %80 = vector.broadcast %cst_68 : f32 to vector<2x64xf32>
    %81 = arith.maximumf %79, %80 : vector<2x64xf32>
    %82 = arith.truncf %81 : vector<2x64xf32> to vector<2x64xbf16>
    %c0_69 = arith.constant 0 : index
    %c0_70 = arith.constant 0 : index
    %83 = vector.load %arg24[%c0_69, %c0_70] : memref<64x3xbf16, #tpu.memory_space<vmem>>, vector<64x3xbf16>
    %cst_71 = arith.constant dense<0.000000e+00> : vector<2x3xf32>
    %84 = tpu.matmul %82, %83, %cst_71 {dimension_numbers = #tpu.dot_dimension_numbers<[1], [0], [0], [1], [0, 0, 1, 1], [], []>} : vector<2x64xbf16>, vector<64x3xbf16>, vector<2x3xf32> -> vector<2x3xf32>
    %c0_72 = arith.constant 0 : index
    %c0_73 = arith.constant 0 : index
    %85 = vector.load %arg25[%c0_72, %c0_73] : memref<1x3xf32, #tpu.memory_space<vmem>>, vector<1x3xf32>
    %86 = vector.broadcast %85 : vector<1x3xf32> to vector<2x3xf32>
    %87 = arith.addf %84, %86 : vector<2x3xf32>
    %c0_74 = arith.constant 0 : index
    %c0_75 = arith.constant 0 : index
    %88 = vector.load %arg29[%c0_74, %c0_75] : memref<2x3xf32, #tpu.memory_space<vmem>>, vector<2x3xf32>
    tpu.vector_store %arg29[%c0_74, %c0_75], %87 {strides = array<i32>} : memref<2x3xf32, #tpu.memory_space<vmem>>, vector<2x3xf32>,
    return
  }
  func.func @transform_0(%arg0: i32) -> (i32, i32) {
    %c0_i32 = arith.constant 0 : i32
    %c0_i32_0 = arith.constant 0 : i32
    return %arg0, %c0_i32 : i32, i32
  }
  func.func @transform_1(%arg0: i32) -> (i32, i32) {
    %c0_i32 = arith.constant 0 : i32
    %c0_i32_0 = arith.constant 0 : i32
    %c0_i32_1 = arith.constant 0 : i32
    return %c0_i32, %c0_i32_0 : i32, i32
  }
  func.func @transform_2(%arg0: i32) -> (i32, i32) {
    %c0_i32 = arith.constant 0 : i32
    %c0_i32_0 = arith.constant 0 : i32
    %c0_i32_1 = arith.constant 0 : i32
    return %c0_i32, %c0_i32_0 : i32, i32
  }
  func.func @transform_3(%arg0: i32) -> (i32, i32) {
    %c0_i32 = arith.constant 0 : i32
    %c0_i32_0 = arith.constant 0 : i32
    %c0_i32_1 = arith.constant 0 : i32
    return %c0_i32, %c0_i32_0 : i32, i32
  }
  func.func @transform_4(%arg0: i32) -> (i32, i32) {
    %c0_i32 = arith.constant 0 : i32
    %c0_i32_0 = arith.constant 0 : i32
    %c0_i32_1 = arith.constant 0 : i32
    return %c0_i32, %c0_i32_0 : i32, i32
  }
  func.func @transform_5(%arg0: i32) -> (i32, i32) {
    %c0_i32 = arith.constant 0 : i32
    %c0_i32_0 = arith.constant 0 : i32
    %c0_i32_1 = arith.constant 0 : i32
    return %c0_i32, %c0_i32_0 : i32, i32
  }
  func.func @transform_6(%arg0: i32) -> (i32, i32) {
    %c0_i32 = arith.constant 0 : i32
    %c0_i32_0 = arith.constant 0 : i32
    %c0_i32_1 = arith.constant 0 : i32
    return %c0_i32, %c0_i32_0 : i32, i32
  }
  func.func @transform_7(%arg0: i32) -> (i32, i32) {
    %c0_i32 = arith.constant 0 : i32
    %c0_i32_0 = arith.constant 0 : i32
    %c0_i32_1 = arith.constant 0 : i32
    return %c0_i32, %c0_i32_0 : i32, i32
  }
  func.func @transform_8(%arg0: i32) -> (i32, i32) {
    %c0_i32 = arith.constant 0 : i32
    %c0_i32_0 = arith.constant 0 : i32
    %c0_i32_1 = arith.constant 0 : i32
    return %c0_i32, %c0_i32_0 : i32, i32
  }
  func.func @transform_9(%arg0: i32) -> (i32, i32) {
    %c0_i32 = arith.constant 0 : i32
    %c0_i32_0 = arith.constant 0 : i32
    %c0_i32_1 = arith.constant 0 : i32
    return %c0_i32, %c0_i32_0 : i32, i32
  }
  func.func @transform_10(%arg0: i32) -> (i32, i32) {
    %c0_i32 = arith.constant 0 : i32
    %c0_i32_0 = arith.constant 0 : i32
    %c0_i32_1 = arith.constant 0 : i32
    return %c0_i32, %c0_i32_0 : i32, i32
  }
  func.func @transform_11(%arg0: i32) -> (i32, i32) {
    %c0_i32 = arith.constant 0 : i32
    %c0_i32_0 = arith.constant 0 : i32
    %c0_i32_1 = arith.constant 0 : i32
    return %c0_i32, %c0_i32_0 : i32, i32
  }
  func.func @transform_12(%arg0: i32) -> (i32, i32) {
    %c0_i32 = arith.constant 0 : i32
    %c0_i32_0 = arith.constant 0 : i32
    %c0_i32_1 = arith.constant 0 : i32
    return %c0_i32, %c0_i32_0 : i32, i32
  }
  func.func @transform_13(%arg0: i32) -> (i32, i32) {
    %c0_i32 = arith.constant 0 : i32
    %c0_i32_0 = arith.constant 0 : i32
    %c0_i32_1 = arith.constant 0 : i32
    return %c0_i32, %c0_i32_0 : i32, i32
  }
  func.func @transform_14(%arg0: i32) -> (i32, i32) {
    %c0_i32 = arith.constant 0 : i32
    %c0_i32_0 = arith.constant 0 : i32
    %c0_i32_1 = arith.constant 0 : i32
    return %c0_i32, %c0_i32_0 : i32, i32
  }
  func.func @transform_15(%arg0: i32) -> (i32, i32) {
    %c0_i32 = arith.constant 0 : i32
    %c0_i32_0 = arith.constant 0 : i32
    %c0_i32_1 = arith.constant 0 : i32
    return %c0_i32, %c0_i32_0 : i32, i32
  }
  func.func @transform_16(%arg0: i32) -> (i32, i32) {
    %c0_i32 = arith.constant 0 : i32
    %c0_i32_0 = arith.constant 0 : i32
    %c0_i32_1 = arith.constant 0 : i32
    return %c0_i32, %c0_i32_0 : i32, i32
  }
  func.func @transform_17(%arg0: i32) -> (i32, i32) {
    %c0_i32 = arith.constant 0 : i32
    %c0_i32_0 = arith.constant 0 : i32
    %c0_i32_1 = arith.constant 0 : i32
    return %c0_i32, %c0_i32_0 : i32, i32
  }
  func.func @transform_18(%arg0: i32) -> (i32, i32) {
    %c0_i32 = arith.constant 0 : i32
    %c0_i32_0 = arith.constant 0 : i32
    %c0_i32_1 = arith.constant 0 : i32
    return %c0_i32, %c0_i32_0 : i32, i32
  }
  func.func @transform_19(%arg0: i32) -> (i32, i32) {
    %c0_i32 = arith.constant 0 : i32
    %c0_i32_0 = arith.constant 0 : i32
    %c0_i32_1 = arith.constant 0 : i32
    return %c0_i32, %c0_i32_0 : i32, i32
  }
  func.func @transform_20(%arg0: i32) -> (i32, i32) {
    %c0_i32 = arith.constant 0 : i32
    %c0_i32_0 = arith.constant 0 : i32
    %c0_i32_1 = arith.constant 0 : i32
    return %c0_i32, %c0_i32_0 : i32, i32
  }
  func.func @transform_21(%arg0: i32) -> (i32, i32) {
    %c0_i32 = arith.constant 0 : i32
    %c0_i32_0 = arith.constant 0 : i32
    %c0_i32_1 = arith.constant 0 : i32
    return %c0_i32, %c0_i32_0 : i32, i32
  }
  func.func @transform_22(%arg0: i32) -> (i32, i32) {
    %c0_i32 = arith.constant 0 : i32
    %c0_i32_0 = arith.constant 0 : i32
    %c0_i32_1 = arith.constant 0 : i32
    return %c0_i32, %c0_i32_0 : i32, i32
  }
  func.func @transform_23(%arg0: i32) -> (i32, i32) {
    %c0_i32 = arith.constant 0 : i32
    %c0_i32_0 = arith.constant 0 : i32
    %c0_i32_1 = arith.constant 0 : i32
    return %c0_i32, %c0_i32_0 : i32, i32
  }
  func.func @transform_24(%arg0: i32) -> (i32, i32) {
    %c0_i32 = arith.constant 0 : i32
    %c0_i32_0 = arith.constant 0 : i32
    %c0_i32_1 = arith.constant 0 : i32
    return %c0_i32, %c0_i32_0 : i32, i32
  }
  func.func @transform_25(%arg0: i32) -> (i32, i32) {
    %c0_i32 = arith.constant 0 : i32
    %c0_i32_0 = arith.constant 0 : i32
    return %arg0, %c0_i32 : i32, i32
  }
  func.func @transform_26(%arg0: i32) -> (i32, i32) {
    %c0_i32 = arith.constant 0 : i32
    %c0_i32_0 = arith.constant 0 : i32
    return %arg0, %c0_i32 : i32, i32
  }
  func.func @transform_27(%arg0: i32) -> (i32, i32) {
    %c0_i32 = arith.constant 0 : i32
    %c0_i32_0 = arith.constant 0 : i32
    return %arg0, %c0_i32 : i32, i32
  }
  func.func @transform_28(%arg0: i32) -> (i32, i32) {
    %c0_i32 = arith.constant 0 : i32
    %c0_i32_0 = arith.constant 0 : i32
    return %arg0, %c0_i32 : i32, i32
  }
}

</mosaic_0001>

<llo_original>
// kernel: forward.8
$region0: #{forward.8}
  #allocation0 [shape = 'u32[]', space=smem, size = 0x4, offset = 0x4, fixed_abs, tag = 'smem constant byte address 0x4 - core index']
  #allocation1 [shape = 'u32[144,128]{1,0:T(1,128)}', space=vmem, size = 0x12000, scoped, tag = 'internal scratch']
  %s0 = inlined_call_operand.vmem [shape: bf16[16,128], index: 0, kind: input, shape index: {}]
  %s1 = inlined_call_operand.vmem [shape: bf16[128,256], index: 1, kind: input, shape index: {}]
  %s2 = inlined_call_operand.hbm [shape: f32[1,256], index: 2, kind: input, shape index: {}]
  %s3 = inlined_call_operand.vmem [shape: bf16[256,128], index: 3, kind: input, shape index: {}]
  %s4 = inlined_call_operand.hbm [shape: f32[1,128], index: 4, kind: input, shape index: {}]
  %s5 = inlined_call_operand.hbm [shape: f32[1,128], index: 5, kind: input, shape index: {}]
  %s6 = inlined_call_operand.hbm [shape: f32[1,128], index: 6, kind: input, shape index: {}]
  %s7 = inlined_call_operand.vmem [shape: bf16[16,128], index: 7, kind: output, shape index: {}]
  %s8 = sld [smem:[#allocation0]]
  $region54: #{forward.8} parent=0
    _
  %s10 = ssub.s32 1, %s8
  %s11 = scalar_select 0, %s10, %s8
  $region1: #{forward.8} parent=0
    #allocation2 [shape = 'u8[1024]{0}', space=vmem, size = 0x400, scoped, tag = 'input window, operand 2, single buffered']
    #allocation3 [shape = 's32[1]{0}', space=sflag, size = 0x4, scoped, tag = 'scoped memory for forward.8']
    #allocation4 [shape = 'u8[512]{0}', space=vmem, size = 0x400, scoped, tag = 'input window, operand 4, single buffered']
    #allocation5 [shape = 's32[1]{0}', space=sflag, size = 0x4, scoped, tag = 'scoped memory for forward.8']
    #allocation6 [shape = 'u8[512]{0}', space=vmem, size = 0x400, scoped, tag = 'input window, operand 5, single buffered']
    #allocation7 [shape = 'u8[512]{0}', space=vmem, size = 0x400, scoped, tag = 'input window, operand 6, single buffered']
    #allocation8 [shape = 's32[1]{0}', space=sflag, size = 0x4, scoped, tag = 'scoped memory for forward.8']
    %12 = vsyncpa [#allocation3], 0
    %13 = vsyncpa [#allocation5], 0
    %14 = vsyncpa [#allocation8], 0
    // Predicated region
    $region2: #{forward.8} parent=1 // pred_check
      _
    $region3: #{forward.8} parent=1 // pred_check_branch
      %16 = sbr.rel (0) target = $region5
    $region4: #{forward.8} parent=1 // pred_region
      _
    $region5: #{forward.8} parent=1 // pred_fallthru
      _
    // Predicated region
    $region6: #{forward.8} parent=1 // pred_check
      _
    $region7: #{forward.8} parent=1 // pred_check_branch
      %18 = sbr.rel (0) target = $region9
    $region8: #{forward.8} parent=1 // pred_region
      _
    $region9: #{forward.8} parent=1 // pred_fallthru
      _
    // Predicated region
    $region10: #{forward.8} parent=1 // pred_check
      _
    $region11: #{forward.8} parent=1 // pred_check_branch
      %20 = sbr.rel (0) target = $region13
    $region12: #{forward.8} parent=1 // pred_region
      %s22 = ssub.s32 32, 32
      %23 = vsyncadd [#allocation3], %s22
      %s25 = sshll.u32 [#allocation2], 4
      %s26 = int_to_ptr.vmem [resolvable:$true] %s25
      %28 = dma.hbm_to_vmem [thread:$0]  %s2, 32, %s26, [#allocation3]
    $region13: #{forward.8} parent=1 // pred_fallthru
      _
    // Predicated region
    $region14: #{forward.8} parent=1 // pred_check
      _
    $region15: #{forward.8} parent=1 // pred_check_branch
      %30 = sbr.rel (0) target = $region17
    $region16: #{forward.8} parent=1 // pred_region
      _
    $region17: #{forward.8} parent=1 // pred_fallthru
      _
    // Predicated region
    $region18: #{forward.8} parent=1 // pred_check
      _
    $region19: #{forward.8} parent=1 // pred_check_branch
      %32 = sbr.rel (0) target = $region21
    $region20: #{forward.8} parent=1 // pred_region
      %s34 = ssub.s32 16, 16
      %35 = vsyncadd [#allocation5], %s34
      %s37 = sshll.u32 [#allocation4], 4
      %s38 = int_to_ptr.vmem [resolvable:$true] %s37
      %40 = dma.hbm_to_vmem [thread:$0]  %s4, 16, %s38, [#allocation5]
    $region21: #{forward.8} parent=1 // pred_fallthru
      _
    // Predicated region
    $region22: #{forward.8} parent=1 // pred_check
      _
    $region23: #{forward.8} parent=1 // pred_check_branch
      %42 = sbr.rel (0) target = $region25
    $region24: #{forward.8} parent=1 // pred_region
      %s44 = ssub.s32 16, 16
      %45 = vsyncadd [#allocation5], %s44
      %s47 = sshll.u32 [#allocation6], 4
      %s48 = int_to_ptr.vmem [resolvable:$true] %s47
      %50 = dma.hbm_to_vmem [thread:$0]  %s5, 16, %s48, [#allocation5]
    $region25: #{forward.8} parent=1 // pred_fallthru
      _
    // Predicated region
    $region26: #{forward.8} parent=1 // pred_check
      _
    $region27: #{forward.8} parent=1 // pred_check_branch
      %52 = sbr.rel (0) target = $region29
    $region28: #{forward.8} parent=1 // pred_region
      %s54 = ssub.s32 16, 16
      %55 = vsyncadd [#allocation8], %s54
      %s57 = sshll.u32 [#allocation7], 4
      %s58 = int_to_ptr.vmem [resolvable:$true] %s57
      %60 = dma.hbm_to_vmem [thread:$0]  %s6, 16, %s58, [#allocation8]
    $region29: #{forward.8} parent=1 // pred_fallthru
      _
    // Predicated region
    $region30: #{forward.8} parent=1 // pred_check
      _
    $region31: #{forward.8} parent=1 // pred_check_branch
      %62 = sbr.rel (0) target = $region33
    $region32: #{forward.8} parent=1 // pred_region
      %63 = dma.done [#allocation3], 32
    $region33: #{forward.8} parent=1 // pred_fallthru
      _
    // Predicated region
    $region34: #{forward.8} parent=1 // pred_check
      _
    $region35: #{forward.8} parent=1 // pred_check_branch
      %65 = sbr.rel (0) target = $region37
    $region36: #{forward.8} parent=1 // pred_region
      %66 = dma.done [#allocation5], 16
    $region37: #{forward.8} parent=1 // pred_fallthru
      _
    // Predicated region
    $region38: #{forward.8} parent=1 // pred_check
      _
    $region39: #{forward.8} parent=1 // pred_check_branch
      %68 = sbr.rel (0) target = $region41
    $region40: #{forward.8} parent=1 // pred_region
      %69 = dma.done [#allocation5], 16
    $region41: #{forward.8} parent=1 // pred_fallthru
      _
    // Predicated region
    $region42: #{forward.8} parent=1 // pred_check
      _
    $region43: #{forward.8} parent=1 // pred_check_branch
      %71 = sbr.rel (0) target = $region45
    $region44: #{forward.8} parent=1 // pred_region
      %72 = dma.done [#allocation8], 16
    $region45: #{forward.8} parent=1 // pred_fallthru
      _
    %v74 = vld [vmem:[%s0] sm:$0xf]
    %v75 = vld [vmem:[%s0 + $0x4] sm:$0xf]
    %v76 = vunpack.c.l.bf16 %v74
    %v77 = vunpack.c.l.bf16 %v75
    %v78 = vld [vmem:[%s1] sm:$0xff]
    %v79 = vld [vmem:[%s1 + $0x8] sm:$0xff]
    %v80 = vld [vmem:[%s1 + $0x10] sm:$0xff]
    %v81 = vld [vmem:[%s1 + $0x18] sm:$0xff]
    %v82 = vld [vmem:[%s1 + $0x20] sm:$0xff]
    %v83 = vld [vmem:[%s1 + $0x28] sm:$0xff]
    %v84 = vld [vmem:[%s1 + $0x30] sm:$0xff]
    %v85 = vld [vmem:[%s1 + $0x38] sm:$0xff]
    %v86 = vld [vmem:[%s1 + $0x40] sm:$0xff]
    %v87 = vld [vmem:[%s1 + $0x48] sm:$0xff]
    %v88 = vld [vmem:[%s1 + $0x50] sm:$0xff]
    %v89 = vld [vmem:[%s1 + $0x58] sm:$0xff]
    %v90 = vld [vmem:[%s1 + $0x60] sm:$0xff]
    %v91 = vld [vmem:[%s1 + $0x68] sm:$0xff]
    %v92 = vld [vmem:[%s1 + $0x70] sm:$0xff]
    %v93 = vld [vmem:[%s1 + $0x78] sm:$0xff]
    %v94 = vld [vmem:[#allocation2] sm:$0x3]
    %v96 = vlaneseq
    %v97 = vshrl.u32 %v96, 7
    %v98 = vsub.s32 0, %v97
    %v99 = vrot.slane %v94, %v98
    %v100 = vlaneseq
    %v101 = vshrl.u32 %v100, 7
    %v102 = vsub.s32 1, %v101
    %v103 = vrot.slane %v94, %v102
    %v108 = vunpack.c.l.b16 %v74
    %v109 = vunpack.c.l.b16 %v75
    %v110 = vpack.c.b16 %v109, %v108
    %v128 = vunpack.c.l.b16 %v78
    %v129 = vunpack.c.h.b16 %v78
    %v130 = vunpack.c.l.b16 %v79
    %v131 = vunpack.c.h.b16 %v79
    %v132 = vunpack.c.l.b16 %v80
    %v133 = vunpack.c.h.b16 %v80
    %v134 = vunpack.c.l.b16 %v81
    %v135 = vunpack.c.h.b16 %v81
    %v136 = vunpack.c.l.b16 %v82
    %v137 = vunpack.c.h.b16 %v82
    %v138 = vunpack.c.l.b16 %v83
    %v139 = vunpack.c.h.b16 %v83
    %v140 = vunpack.c.l.b16 %v84
    %v141 = vunpack.c.h.b16 %v84
    %v142 = vunpack.c.l.b16 %v85
    %v143 = vunpack.c.h.b16 %v85
    %v144 = vunpack.c.l.b16 %v86
    %v145 = vunpack.c.h.b16 %v86
    %v146 = vunpack.c.l.b16 %v87
    %v147 = vunpack.c.h.b16 %v87
    %v148 = vunpack.c.l.b16 %v88
    %v149 = vunpack.c.h.b16 %v88
    %v150 = vunpack.c.l.b16 %v89
    %v151 = vunpack.c.h.b16 %v89
    %v152 = vunpack.c.l.b16 %v90
    %v153 = vunpack.c.h.b16 %v90
    %v154 = vunpack.c.l.b16 %v91
    %v155 = vunpack.c.h.b16 %v91
    %v156 = vunpack.c.l.b16 %v92
    %v157 = vunpack.c.h.b16 %v92
    %v158 = vunpack.c.l.b16 %v93
    %v159 = vunpack.c.h.b16 %v93
    %v160 = vpack.c.b16 %v130, %v128
    %v161 = vpack.c.b16 %v131, %v129
    %v162 = vpack.c.b16 %v134, %v132
    %v163 = vpack.c.b16 %v135, %v133
    %v164 = vpack.c.b16 %v138, %v136
    %v165 = vpack.c.b16 %v139, %v137
    %v166 = vpack.c.b16 %v142, %v140
    %v167 = vpack.c.b16 %v143, %v141
    %v168 = vpack.c.b16 %v146, %v144
    %v169 = vpack.c.b16 %v147, %v145
    %v170 = vpack.c.b16 %v150, %v148
    %v171 = vpack.c.b16 %v151, %v149
    %v172 = vpack.c.b16 %v154, %v152
    %v173 = vpack.c.b16 %v155, %v153
    %v174 = vpack.c.b16 %v158, %v156
    %v175 = vpack.c.b16 %v159, %v157
    %192 = vmatprep.subr.bf16.mxu0 %v161
    %193 = vmatpush1.bf16.msra.mxu0 %v160
    %194 = vmatprep.subr.bf16.mxu0 %v163
    %195 = vmatpush1.bf16.msra.mxu0 %v162
    %196 = vmatprep.subr.bf16.mxu0 %v165
    %197 = vmatpush1.bf16.msra.mxu0 %v164
    %198 = vmatprep.subr.bf16.mxu0 %v167
    %199 = vmatpush1.bf16.msra.mxu0 %v166
    %200 = vmatprep.subr.bf16.mxu0 %v169
    %201 = vmatpush1.bf16.msra.mxu0 %v168
    %202 = vmatprep.subr.bf16.mxu0 %v171
    %203 = vmatpush1.bf16.msra.mxu0 %v170
    %204 = vmatprep.subr.bf16.mxu0 %v173
    %205 = vmatpush1.bf16.msra.mxu0 %v172
    %206 = vmatprep.subr.bf16.mxu0 %v175
    %207 = vmatpush1.bf16.msra.mxu0 %v174
    %208 = vmatprep.subr.bf16.mxu0 0
    %209 = vmatpush1.bf16.msra.mxu0 0
    %210 = vmatprep.subr.bf16.mxu0 0
    %211 = vmatpush1.bf16.msra.mxu0 0
    %212 = vmatprep.subr.bf16.mxu0 0
    %213 = vmatpush1.bf16.msra.mxu0 0
    %214 = vmatprep.subr.bf16.mxu0 0
    %215 = vmatpush1.bf16.msra.mxu0 0
    %216 = vmatprep.subr.bf16.mxu0 0
    %217 = vmatpush1.bf16.msra.mxu0 0
    %218 = vmatprep.subr.bf16.mxu0 0
    %219 = vmatpush1.bf16.msra.mxu0 0
    %220 = vmatprep.subr.bf16.mxu0 0
    %221 = vmatpush1.bf16.msra.mxu0 0
    %222 = vmatprep.subr.bf16.mxu0 0
    %223 = vmatpush1.bf16.msra.mxu0 0
    %224 = vmatprep.mubr.bf16.mxu0 0
    %225 = vmatmul.mubr.bf16.gmra.mrb[0].mxu0 %v110
    %v226 = vpop.f32.mrb[0].mxu0
    %v227 = vadd.f32 %v99, %v226
    %v228 = vpop.f32.mrb[0].mxu0
    %v229 = vadd.f32 %v103, %v228
    %v230 = vpop.f32.mrb[0].mxu0
    %v231 = vadd.f32 %v99, %v230
    %v232 = vpop.f32.mrb[0].mxu0
    %v233 = vadd.f32 %v103, %v232
    %234 = vdwg.mxu0
    %v235 = vmax.f32 %v227, 0.0
    %v236 = vmax.f32 %v229, 0.0
    %v237 = vmax.f32 %v231, 0.0
    %v238 = vmax.f32 %v233, 0.0
    %v239 = vpack.c.bf16 %v237, %v235
    %v240 = vpack.c.bf16 %v238, %v236
    %v241 = vld [vmem:[%s3] sm:$0xf]
    %v242 = vld [vmem:[%s3 + $0x4] sm:$0xf]
    %v243 = vld [vmem:[%s3 + $0x8] sm:$0xf]
    %v244 = vld [vmem:[%s3 + $0xc] sm:$0xf]
    %v245 = vld [vmem:[%s3 + $0x10] sm:$0xf]
    %v246 = vld [vmem:[%s3 + $0x14] sm:$0xf]
    %v247 = vld [vmem:[%s3 + $0x18] sm:$0xf]
    %v248 = vld [vmem:[%s3 + $0x1c] sm:$0xf]
    %v249 = vld [vmem:[%s3 + $0x20] sm:$0xf]
    %v250 = vld [vmem:[%s3 + $0x24] sm:$0xf]
    %v251 = vld [vmem:[%s3 + $0x28] sm:$0xf]
    %v252 = vld [vmem:[%s3 + $0x2c] sm:$0xf]
    %v253 = vld [vmem:[%s3 + $0x30] sm:$0xf]
    %v254 = vld [vmem:[%s3 + $0x34] sm:$0xf]
    %v255 = vld [vmem:[%s3 + $0x38] sm:$0xf]
    %v256 = vld [vmem:[%s3 + $0x3c] sm:$0xf]
    %v257 = vld [vmem:[%s3 + $0x40] sm:$0xf]
    %v258 = vld [vmem:[%s3 + $0x44] sm:$0xf]
    %v259 = vld [vmem:[%s3 + $0x48] sm:$0xf]
    %v260 = vld [vmem:[%s3 + $0x4c] sm:$0xf]
    %v261 = vld [vmem:[%s3 + $0x50] sm:$0xf]
    %v262 = vld [vmem:[%s3 + $0x54] sm:$0xf]
    %v263 = vld [vmem:[%s3 + $0x58] sm:$0xf]
    %v264 = vld [vmem:[%s3 + $0x5c] sm:$0xf]
    %v265 = vld [vmem:[%s3 + $0x60] sm:$0xf]
    %v266 = vld [vmem:[%s3 + $0x64] sm:$0xf]
    %v267 = vld [vmem:[%s3 + $0x68] sm:$0xf]
    %v268 = vld [vmem:[%s3 + $0x6c] sm:$0xf]
    %v269 = vld [vmem:[%s3 + $0x70] sm:$0xf]
    %v270 = vld [vmem:[%s3 + $0x74] sm:$0xf]
    %v271 = vld [vmem:[%s3 + $0x78] sm:$0xf]
    %v272 = vld [vmem:[%s3 + $0x7c] sm:$0xf]
    %v273 = vld [vmem:[#allocation4] sm:$0x1]
    %v275 = vlaneseq
    %v276 = vshrl.u32 %v275, 7
    %v277 = vsub.s32 0, %v276
    %v278 = vrot.slane %v273, %v277
    %v312 = vunpack.c.l.b16 %v241
    %v313 = vunpack.c.l.b16 %v242
    %v314 = vunpack.c.l.b16 %v243
    %v315 = vunpack.c.l.b16 %v244
    %v316 = vunpack.c.l.b16 %v245
    %v317 = vunpack.c.l.b16 %v246
    %v318 = vunpack.c.l.b16 %v247
    %v319 = vunpack.c.l.b16 %v248
    %v320 = vunpack.c.l.b16 %v249
    %v321 = vunpack.c.l.b16 %v250
    %v322 = vunpack.c.l.b16 %v251
    %v323 = vunpack.c.l.b16 %v252
    %v324 = vunpack.c.l.b16 %v253
    %v325 = vunpack.c.l.b16 %v254
    %v326 = vunpack.c.l.b16 %v255
    %v327 = vunpack.c.l.b16 %v256
    %v328 = vunpack.c.l.b16 %v257
    %v329 = vunpack.c.l.b16 %v258
    %v330 = vunpack.c.l.b16 %v259
    %v331 = vunpack.c.l.b16 %v260
    %v332 = vunpack.c.l.b16 %v261
    %v333 = vunpack.c.l.b16 %v262
    %v334 = vunpack.c.l.b16 %v263
    %v335 = vunpack.c.l.b16 %v264
    %v336 = vunpack.c.l.b16 %v265
    %v337 = vunpack.c.l.b16 %v266
    %v338 = vunpack.c.l.b16 %v267
    %v339 = vunpack.c.l.b16 %v268
    %v340 = vunpack.c.l.b16 %v269
    %v341 = vunpack.c.l.b16 %v270
    %v342 = vunpack.c.l.b16 %v271
    %v343 = vunpack.c.l.b16 %v272
    %v344 = vpack.c.b16 %v313, %v312
    %v345 = vpack.c.b16 %v315, %v314
    %v346 = vpack.c.b16 %v317, %v316
    %v347 = vpack.c.b16 %v319, %v318
    %v348 = vpack.c.b16 %v321, %v320
    %v349 = vpack.c.b16 %v323, %v322
    %v350 = vpack.c.b16 %v325, %v324
    %v351 = vpack.c.b16 %v327, %v326
    %v352 = vpack.c.b16 %v329, %v328
    %v353 = vpack.c.b16 %v331, %v330
    %v354 = vpack.c.b16 %v333, %v332
    %v355 = vpack.c.b16 %v335, %v334
    %v356 = vpack.c.b16 %v337, %v336
    %v357 = vpack.c.b16 %v339, %v338
    %v358 = vpack.c.b16 %v341, %v340
    %v359 = vpack.c.b16 %v343, %v342
    %376 = vmatprep.subr.bf16.mxu0 0
    %377 = vmatpush1.bf16.msra.mxu0 %v344
    %378 = vmatprep.subr.bf16.mxu0 0
    %379 = vmatpush1.bf16.msra.mxu0 %v345
    %380 = vmatprep.subr.bf16.mxu0 0
    %381 = vmatpush1.bf16.msra.mxu0 %v346
    %382 = vmatprep.subr.bf16.mxu0 0
    %383 = vmatpush1.bf16.msra.mxu0 %v347
    %384 = vmatprep.subr.bf16.mxu0 0
    %385 = vmatpush1.bf16.msra.mxu0 %v348
    %386 = vmatprep.subr.bf16.mxu0 0
    %387 = vmatpush1.bf16.msra.mxu0 %v349
    %388 = vmatprep.subr.bf16.mxu0 0
    %389 = vmatpush1.bf16.msra.mxu0 %v350
    %390 = vmatprep.subr.bf16.mxu0 0
    %391 = vmatpush1.bf16.msra.mxu0 %v351
    %392 = vmatprep.subr.bf16.mxu0 0
    %393 = vmatpush1.bf16.msra.mxu0 %v352
    %394 = vmatprep.subr.bf16.mxu0 0
    %395 = vmatpush1.bf16.msra.mxu0 %v353
    %396 = vmatprep.subr.bf16.mxu0 0
    %397 = vmatpush1.bf16.msra.mxu0 %v354
    %398 = vmatprep.subr.bf16.mxu0 0
    %399 = vmatpush1.bf16.msra.mxu0 %v355
    %400 = vmatprep.subr.bf16.mxu0 0
    %401 = vmatpush1.bf16.msra.mxu0 %v356
    %402 = vmatprep.subr.bf16.mxu0 0
    %403 = vmatpush1.bf16.msra.mxu0 %v357
    %404 = vmatprep.subr.bf16.mxu0 0
    %405 = vmatpush1.bf16.msra.mxu0 %v358
    %406 = vmatprep.subr.bf16.mxu0 0
    %407 = vmatpush1.bf16.msra.mxu0 %v359
    %408 = vmatprep.mubr.bf16.mxu0 %v240
    %409 = vmatmul.mubr.bf16.gmra.mrb[0].mxu0 %v239
    %v410 = vpop.f32.mrb[0].mxu0
    %v411 = vadd.f32 %v278, %v410
    %v412 = vpop.f32.mrb[0].mxu0
    %v413 = vpop.f32.mrb[0].mxu0
    %v414 = vadd.f32 %v278, %v413
    %v415 = vpop.f32.mrb[0].mxu0
    %416 = vdwg.mxu0
    %v417 = vadd.f32 %v76, %v411
    %v418 = vadd.f32 %v77, %v414
    %419 = vadd.xlane.f32.xlu0 %v417
    %v420 = vpop.xlane.xlu0 %419
    %421 = vadd.xlane.f32.xlu0 %v418
    %v422 = vpop.xlane.xlu0 %421
    %v423 = vrcp.pop 128.0
    %v424 = vmul.f32 %v420, %v423
    %v425 = vmul.f32 %v422, %v423
    %v426 = vsub.f32 %v417, %v424
    %v427 = vsub.f32 %v418, %v425
    %v428 = vmul.f32 %v426, %v426
    %v429 = vmul.f32 %v427, %v427
    %430 = vadd.xlane.f32.xlu0 %v428
    %v431 = vpop.xlane.xlu0 %430
    %432 = vadd.xlane.f32.xlu0 %v429
    %v433 = vpop.xlane.xlu0 %432
    %v434 = vmul.f32 %v431, %v423
    %v435 = vmul.f32 %v433, %v423
    %v436 = vadd.f32 %v434, 1e-05
    %v437 = vadd.f32 %v435, 1e-05
    %v438 = vrsqrt.pop %v436
    %v439 = vrsqrt.pop %v437
    %v440 = vmul.f32 %v426, %v438
    %v441 = vmul.f32 %v427, %v439
    %v442 = vld [vmem:[#allocation6] sm:$0x1]
    %v444 = vlaneseq
    %v445 = vshrl.u32 %v444, 7
    %v446 = vsub.s32 0, %v445
    %v447 = vrot.slane %v442, %v446
    %v449 = vmul.f32 %v440, %v447
    %v450 = vmul.f32 %v441, %v447
    %v451 = vld [vmem:[#allocation7] sm:$0x1]
    %v453 = vlaneseq
    %v454 = vshrl.u32 %v453, 7
    %v455 = vsub.s32 0, %v454
    %v456 = vrot.slane %v451, %v455
    %v458 = vadd.f32 %v449, %v456
    %v459 = vadd.f32 %v450, %v456
    %v460 = vpack.c.bf16 %v459, %v458
    %v462 = vunpack.c.l.b16 %v460
    %v463 = vunpack.c.h.b16 %v460
    %v464 = vpack.c.b16 %v462, %v462
    %v465 = vpack.c.b16 %v463, %v463
    %468 = vst [vmem:[%s7] sm:$0xf] %v464
    %469 = vst [vmem:[%s7 + $0x4] sm:$0xf] %v465
    // Predicated region
    $region46: #{forward.8} parent=1 // pred_check
      _
    $region47: #{forward.8} parent=1 // pred_check_branch
      %471 = sbr.rel (0) target = $region49
    $region48: #{forward.8} parent=1 // pred_region
      _
    $region49: #{forward.8} parent=1 // pred_fallthru
      _
    // Predicated region
    $region50: #{forward.8} parent=1 // pred_check
      _
    $region51: #{forward.8} parent=1 // pred_check_branch
      %473 = sbr.rel (0) target = $region53
    $region52: #{forward.8} parent=1 // pred_region
      _
    $region53: #{forward.8} parent=1 // pred_fallthru
      _
    %474 = vsyncpa [#allocation3], 1
    %475 = vsyncpa [#allocation5], 1
    %476 = vsyncpa [#allocation8], 1

// kernel: forward.6
$region0: #{forward.6}
  #allocation0 [shape = 'u32[]', space=smem, size = 0x4, offset = 0x4, fixed_abs, tag = 'smem constant byte address 0x4 - core index']
  #allocation1 [shape = 'u32[144,128]{1,0:T(1,128)}', space=vmem, size = 0x12000, scoped, tag = 'internal scratch']
  %s0 = inlined_call_operand.vmem [shape: f32[16,128], index: 0, kind: input, shape index: {}]
  %s1 = inlined_call_operand.vmem [shape: bf16[128,128], index: 1, kind: input, shape index: {}]
  %s2 = inlined_call_operand.hbm [shape: f32[1,128], index: 2, kind: input, shape index: {}]
  %s3 = inlined_call_operand.vmem [shape: f32[16,128], index: 3, kind: input, shape index: {}]
  %s4 = inlined_call_operand.vmem [shape: bf16[16,128], index: 4, kind: output, shape index: {}]
  %s5 = sld [smem:[#allocation0]]
  $region30: #{forward.6} parent=0
    _
  %s7 = ssub.s32 1, %s5
  %s8 = scalar_select 0, %s7, %s5
  $region1: #{forward.6} parent=0
    #allocation2 [shape = 'u8[512]{0}', space=vmem, size = 0x400, scoped, tag = 'input window, operand 2, single buffered']
    #allocation3 [shape = 's32[1]{0}', space=sflag, size = 0x4, scoped, tag = 'scoped memory for forward.6']
    %9 = vsyncpa [#allocation3], 0
    // Predicated region
    $region2: #{forward.6} parent=1 // pred_check
      _
    $region3: #{forward.6} parent=1 // pred_check_branch
      %11 = sbr.rel (0) target = $region5
    $region4: #{forward.6} parent=1 // pred_region
      _
    $region5: #{forward.6} parent=1 // pred_fallthru
      _
    // Predicated region
    $region6: #{forward.6} parent=1 // pred_check
      _
    $region7: #{forward.6} parent=1 // pred_check_branch
      %13 = sbr.rel (0) target = $region9
    $region8: #{forward.6} parent=1 // pred_region
      _
    $region9: #{forward.6} parent=1 // pred_fallthru
      _
    // Predicated region
    $region10: #{forward.6} parent=1 // pred_check
      _
    $region11: #{forward.6} parent=1 // pred_check_branch
      %15 = sbr.rel (0) target = $region13
    $region12: #{forward.6} parent=1 // pred_region
      %s17 = ssub.s32 16, 16
      %18 = vsyncadd [#allocation3], %s17
      %s20 = sshll.u32 [#allocation2], 4
      %s21 = int_to_ptr.vmem [resolvable:$true] %s20
      %23 = dma.hbm_to_vmem [thread:$0]  %s2, 16, %s21, [#allocation3]
    $region13: #{forward.6} parent=1 // pred_fallthru
      _
    // Predicated region
    $region14: #{forward.6} parent=1 // pred_check
      _
    $region15: #{forward.6} parent=1 // pred_check_branch
      %25 = sbr.rel (0) target = $region17
    $region16: #{forward.6} parent=1 // pred_region
      _
    $region17: #{forward.6} parent=1 // pred_fallthru
      _
    // Predicated region
    $region18: #{forward.6} parent=1 // pred_check
      _
    $region19: #{forward.6} parent=1 // pred_check_branch
      %27 = sbr.rel (0) target = $region21
    $region20: #{forward.6} parent=1 // pred_region
      %28 = dma.done [#allocation3], 16
    $region21: #{forward.6} parent=1 // pred_fallthru
      _
    %v30 = vld [vmem:[%s0] sm:$0xff]
    %v31 = vld [vmem:[%s0 + $0x8] sm:$0xff]
    %v32 = vpack.c.bf16 %v31, %v30
    %v33 = vld [vmem:[%s1] sm:$0xf]
    %v34 = vld [vmem:[%s1 + $0x4] sm:$0xf]
    %v35 = vld [vmem:[%s1 + $0x8] sm:$0xf]
    %v36 = vld [vmem:[%s1 + $0xc] sm:$0xf]
    %v37 = vld [vmem:[%s1 + $0x10] sm:$0xf]
    %v38 = vld [vmem:[%s1 + $0x14] sm:$0xf]
    %v39 = vld [vmem:[%s1 + $0x18] sm:$0xf]
    %v40 = vld [vmem:[%s1 + $0x1c] sm:$0xf]
    %v41 = vld [vmem:[%s1 + $0x20] sm:$0xf]
    %v42 = vld [vmem:[%s1 + $0x24] sm:$0xf]
    %v43 = vld [vmem:[%s1 + $0x28] sm:$0xf]
    %v44 = vld [vmem:[%s1 + $0x2c] sm:$0xf]
    %v45 = vld [vmem:[%s1 + $0x30] sm:$0xf]
    %v46 = vld [vmem:[%s1 + $0x34] sm:$0xf]
    %v47 = vld [vmem:[%s1 + $0x38] sm:$0xf]
    %v48 = vld [vmem:[%s1 + $0x3c] sm:$0xf]
    %v49 = vld [vmem:[#allocation2] sm:$0x1]
    %v51 = vlaneseq
    %v52 = vshrl.u32 %v51, 7
    %v53 = vsub.s32 0, %v52
    %v54 = vrot.slane %v49, %v53
    %v72 = vunpack.c.l.b16 %v33
    %v73 = vunpack.c.l.b16 %v34
    %v74 = vunpack.c.l.b16 %v35
    %v75 = vunpack.c.l.b16 %v36
    %v76 = vunpack.c.l.b16 %v37
    %v77 = vunpack.c.l.b16 %v38
    %v78 = vunpack.c.l.b16 %v39
    %v79 = vunpack.c.l.b16 %v40
    %v80 = vunpack.c.l.b16 %v41
    %v81 = vunpack.c.l.b16 %v42
    %v82 = vunpack.c.l.b16 %v43
    %v83 = vunpack.c.l.b16 %v44
    %v84 = vunpack.c.l.b16 %v45
    %v85 = vunpack.c.l.b16 %v46
    %v86 = vunpack.c.l.b16 %v47
    %v87 = vunpack.c.l.b16 %v48
    %v88 = vpack.c.b16 %v73, %v72
    %v89 = vpack.c.b16 %v75, %v74
    %v90 = vpack.c.b16 %v77, %v76
    %v91 = vpack.c.b16 %v79, %v78
    %v92 = vpack.c.b16 %v81, %v80
    %v93 = vpack.c.b16 %v83, %v82
    %v94 = vpack.c.b16 %v85, %v84
    %v95 = vpack.c.b16 %v87, %v86
    %104 = vmatprep.subr.bf16.mxu0 0
    %105 = vmatpush1.bf16.msra.mxu0 %v88
    %106 = vmatprep.subr.bf16.mxu0 0
    %107 = vmatpush1.bf16.msra.mxu0 %v89
    %108 = vmatprep.subr.bf16.mxu0 0
    %109 = vmatpush1.bf16.msra.mxu0 %v90
    %110 = vmatprep.subr.bf16.mxu0 0
    %111 = vmatpush1.bf16.msra.mxu0 %v91
    %112 = vmatprep.subr.bf16.mxu0 0
    %113 = vmatpush1.bf16.msra.mxu0 %v92
    %114 = vmatprep.subr.bf16.mxu0 0
    %115 = vmatpush1.bf16.msra.mxu0 %v93
    %116 = vmatprep.subr.bf16.mxu0 0
    %117 = vmatpush1.bf16.msra.mxu0 %v94
    %118 = vmatprep.subr.bf16.mxu0 0
    %119 = vmatpush1.bf16.msra.mxu0 %v95
    %120 = vmatprep.subr.bf16.mxu0 0
    %121 = vmatpush1.bf16.msra.mxu0 0
    %122 = vmatprep.subr.bf16.mxu0 0
    %123 = vmatpush1.bf16.msra.mxu0 0
    %124 = vmatprep.subr.bf16.mxu0 0
    %125 = vmatpush1.bf16.msra.mxu0 0
    %126 = vmatprep.subr.bf16.mxu0 0
    %127 = vmatpush1.bf16.msra.mxu0 0
    %128 = vmatprep.subr.bf16.mxu0 0
    %129 = vmatpush1.bf16.msra.mxu0 0
    %130 = vmatprep.subr.bf16.mxu0 0
    %131 = vmatpush1.bf16.msra.mxu0 0
    %132 = vmatprep.subr.bf16.mxu0 0
    %133 = vmatpush1.bf16.msra.mxu0 0
    %134 = vmatprep.subr.bf16.mxu0 0
    %135 = vmatpush1.bf16.msra.mxu0 0
    %136 = vmatprep.mubr.bf16.mxu0 0
    %137 = vmatmul.mubr.bf16.gmra.mrb[0].mxu0 %v32
    %v138 = vpop.f32.mrb[0].mxu0
    %v139 = vadd.f32 %v54, %v138
    %v140 = vpop.f32.mrb[0].mxu0
    %v141 = vpop.f32.mrb[0].mxu0
    %v142 = vadd.f32 %v54, %v141
    %v143 = vpop.f32.mrb[0].mxu0
    %144 = vdwg.mxu0
    %v145 = vmul.f32 %v139, 11.313708
    %v146 = vmul.f32 %v142, 11.313708
    %v147 = vld [vmem:[%s3] sm:$0xff]
    %v148 = vld [vmem:[%s3 + $0x8] sm:$0xff]
    %v149 = vadd.f32 %v145, %v147
    %v150 = vadd.f32 %v146, %v148
    %v151 = vpack.c.bf16 %v150, %v149
    %v153 = vunpack.c.l.b16 %v151
    %v154 = vunpack.c.h.b16 %v151
    %v155 = vpack.c.b16 %v153, %v153
    %v156 = vpack.c.b16 %v154, %v154
    %159 = vst [vmem:[%s4] sm:$0xf] %v155
    %160 = vst [vmem:[%s4 + $0x4] sm:$0xf] %v156
    // Predicated region
    $region22: #{forward.6} parent=1 // pred_check
      _
    $region23: #{forward.6} parent=1 // pred_check_branch
      %162 = sbr.rel (0) target = $region25
    $region24: #{forward.6} parent=1 // pred_region
      _
    $region25: #{forward.6} parent=1 // pred_fallthru
      _
    // Predicated region
    $region26: #{forward.6} parent=1 // pred_check
      _
    $region27: #{forward.6} parent=1 // pred_check_branch
      %164 = sbr.rel (0) target = $region29
    $region28: #{forward.6} parent=1 // pred_region
      _
    $region29: #{forward.6} parent=1 // pred_fallthru
      _
    %165 = vsyncpa [#allocation3], 1

// kernel: forward.7
$region0: #{forward.7}
  #allocation0 [shape = 'u32[]', space=smem, size = 0x4, offset = 0x4, fixed_abs, tag = 'smem constant byte address 0x4 - core index']
  #allocation1 [shape = 'u32[144,128]{1,0:T(1,128)}', space=vmem, size = 0x12000, scoped, tag = 'internal scratch']
  %s0 = inlined_call_operand.vmem [shape: bf16[16,128], index: 0, kind: input, shape index: {}]
  %s1 = inlined_call_operand.vmem [shape: bf16[128,384], index: 1, kind: input, shape index: {}]
  %s2 = inlined_call_operand.vmem [shape: f32[1,384], index: 2, kind: input, shape index: {}]
  %s3 = inlined_call_operand.vmem [shape: bf16[128,128], index: 3, kind: input, shape index: {}]
  %s4 = inlined_call_operand.hbm [shape: f32[1,128], index: 4, kind: input, shape index: {}]
  %s5 = inlined_call_operand.hbm [shape: f32[1,128], index: 5, kind: input, shape index: {}]
  %s6 = inlined_call_operand.hbm [shape: f32[1,128], index: 6, kind: input, shape index: {}]
  %s7 = inlined_call_operand.vmem [shape: bf16[16,128], index: 7, kind: output, shape index: {}]
  %s8 = sld [smem:[#allocation0]]
  $region50: #{forward.7} parent=0
    _
  %s10 = ssub.s32 1, %s8
  %s11 = scalar_select 0, %s10, %s8
  $region1: #{forward.7} parent=0
    #allocation2 [shape = 'u8[512]{0}', space=vmem, size = 0x400, scoped, tag = 'input window, operand 4, single buffered']
    #allocation3 [shape = 's32[1]{0}', space=sflag, size = 0x4, scoped, tag = 'scoped memory for forward.7']
    #allocation4 [shape = 'u8[512]{0}', space=vmem, size = 0x400, scoped, tag = 'input window, operand 5, single buffered']
    #allocation5 [shape = 's32[1]{0}', space=sflag, size = 0x4, scoped, tag = 'scoped memory for forward.7']
    #allocation6 [shape = 'u8[512]{0}', space=vmem, size = 0x400, scoped, tag = 'input window, operand 6, single buffered']
    %12 = vsyncpa [#allocation3], 0
    %13 = vsyncpa [#allocation5], 0
    // Predicated region
    $region2: #{forward.7} parent=1 // pred_check
      _
    $region3: #{forward.7} parent=1 // pred_check_branch
      %15 = sbr.rel (0) target = $region5
    $region4: #{forward.7} parent=1 // pred_region
      _
    $region5: #{forward.7} parent=1 // pred_fallthru
      _
    // Predicated region
    $region6: #{forward.7} parent=1 // pred_check
      _
    $region7: #{forward.7} parent=1 // pred_check_branch
      %17 = sbr.rel (0) target = $region9
    $region8: #{forward.7} parent=1 // pred_region
      _
    $region9: #{forward.7} parent=1 // pred_fallthru
      _
    // Predicated region
    $region10: #{forward.7} parent=1 // pred_check
      _
    $region11: #{forward.7} parent=1 // pred_check_branch
      %19 = sbr.rel (0) target = $region13
    $region12: #{forward.7} parent=1 // pred_region
      _
    $region13: #{forward.7} parent=1 // pred_fallthru
      _
    // Predicated region
    $region14: #{forward.7} parent=1 // pred_check
      _
    $region15: #{forward.7} parent=1 // pred_check_branch
      %21 = sbr.rel (0) target = $region17
    $region16: #{forward.7} parent=1 // pred_region
      _
    $region17: #{forward.7} parent=1 // pred_fallthru
      _
    // Predicated region
    $region18: #{forward.7} parent=1 // pred_check
      _
    $region19: #{forward.7} parent=1 // pred_check_branch
      %23 = sbr.rel (0) target = $region21
    $region20: #{forward.7} parent=1 // pred_region
      %s25 = ssub.s32 16, 16
      %26 = vsyncadd [#allocation3], %s25
      %s28 = sshll.u32 [#allocation2], 4
      %s29 = int_to_ptr.vmem [resolvable:$true] %s28
      %31 = dma.hbm_to_vmem [thread:$0]  %s4, 16, %s29, [#allocation3]
    $region21: #{forward.7} parent=1 // pred_fallthru
      _
    // Predicated region
    $region22: #{forward.7} parent=1 // pred_check
      _
    $region23: #{forward.7} parent=1 // pred_check_branch
      %33 = sbr.rel (0) target = $region25
    $region24: #{forward.7} parent=1 // pred_region
      %s35 = ssub.s32 16, 16
      %36 = vsyncadd [#allocation5], %s35
      %s38 = sshll.u32 [#allocation4], 4
      %s39 = int_to_ptr.vmem [resolvable:$true] %s38
      %41 = dma.hbm_to_vmem [thread:$0]  %s5, 16, %s39, [#allocation5]
    $region25: #{forward.7} parent=1 // pred_fallthru
      _
    // Predicated region
    $region26: #{forward.7} parent=1 // pred_check
      _
    $region27: #{forward.7} parent=1 // pred_check_branch
      %43 = sbr.rel (0) target = $region29
    $region28: #{forward.7} parent=1 // pred_region
      %s45 = ssub.s32 16, 16
      %46 = vsyncadd [#allocation5], %s45
      %s48 = sshll.u32 [#allocation6], 4
      %s49 = int_to_ptr.vmem [resolvable:$true] %s48
      %51 = dma.hbm_to_vmem [thread:$0]  %s6, 16, %s49, [#allocation5]
    $region29: #{forward.7} parent=1 // pred_fallthru
      _
    // Predicated region
    $region30: #{forward.7} parent=1 // pred_check
      _
    $region31: #{forward.7} parent=1 // pred_check_branch
      %53 = sbr.rel (0) target = $region33
    $region32: #{forward.7} parent=1 // pred_region
      %54 = dma.done [#allocation3], 16
    $region33: #{forward.7} parent=1 // pred_fallthru
      _
    // Predicated region
    $region34: #{forward.7} parent=1 // pred_check
      _
    $region35: #{forward.7} parent=1 // pred_check_branch
      %56 = sbr.rel (0) target = $region37
    $region36: #{forward.7} parent=1 // pred_region
      %57 = dma.done [#allocation5], 16
    $region37: #{forward.7} parent=1 // pred_fallthru
      _
    // Predicated region
    $region38: #{forward.7} parent=1 // pred_check
      _
    $region39: #{forward.7} parent=1 // pred_check_branch
      %59 = sbr.rel (0) target = $region41
    $region40: #{forward.7} parent=1 // pred_region
      %60 = dma.done [#allocation5], 16
    $region41: #{forward.7} parent=1 // pred_fallthru
      _
    %v62 = vld [vmem:[%s0] sm:$0xf]
    %v63 = vld [vmem:[%s0 + $0x4] sm:$0xf]
    %v64 = vunpack.c.l.bf16 %v62
    %v65 = vunpack.c.l.bf16 %v63
    %v66 = vld [vmem:[%s1] sm:$0xff]
    %v67 = vld [vmem:[%s1 + $0x8] sm:$0xf]
    %v68 = vld [vmem:[%s1 + $0xc] sm:$0xff]
    %v69 = vld [vmem:[%s1 + $0x14] sm:$0xf]
    %v70 = vld [vmem:[%s1 + $0x18] sm:$0xff]
    %v71 = vld [vmem:[%s1 + $0x20] sm:$0xf]
    %v72 = vld [vmem:[%s1 + $0x24] sm:$0xff]
    %v73 = vld [vmem:[%s1 + $0x2c] sm:$0xf]
    %v74 = vld [vmem:[%s1 + $0x30] sm:$0xff]
    %v75 = vld [vmem:[%s1 + $0x38] sm:$0xf]
    %v76 = vld [vmem:[%s1 + $0x3c] sm:$0xff]
    %v77 = vld [vmem:[%s1 + $0x44] sm:$0xf]
    %v78 = vld [vmem:[%s1 + $0x48] sm:$0xff]
    %v79 = vld [vmem:[%s1 + $0x50] sm:$0xf]
    %v80 = vld [vmem:[%s1 + $0x54] sm:$0xff]
    %v81 = vld [vmem:[%s1 + $0x5c] sm:$0xf]
    %v82 = vld [vmem:[%s1 + $0x60] sm:$0xff]
    %v83 = vld [vmem:[%s1 + $0x68] sm:$0xf]
    %v84 = vld [vmem:[%s1 + $0x6c] sm:$0xff]
    %v85 = vld [vmem:[%s1 + $0x74] sm:$0xf]
    %v86 = vld [vmem:[%s1 + $0x78] sm:$0xff]
    %v87 = vld [vmem:[%s1 + $0x80] sm:$0xf]
    %v88 = vld [vmem:[%s1 + $0x84] sm:$0xff]
    %v89 = vld [vmem:[%s1 + $0x8c] sm:$0xf]
    %v90 = vld [vmem:[%s1 + $0x90] sm:$0xff]
    %v91 = vld [vmem:[%s1 + $0x98] sm:$0xf]
    %v92 = vld [vmem:[%s1 + $0x9c] sm:$0xff]
    %v93 = vld [vmem:[%s1 + $0xa4] sm:$0xf]
    %v94 = vld [vmem:[%s1 + $0xa8] sm:$0xff]
    %v95 = vld [vmem:[%s1 + $0xb0] sm:$0xf]
    %v96 = vld [vmem:[%s1 + $0xb4] sm:$0xff]
    %v97 = vld [vmem:[%s1 + $0xbc] sm:$0xf]
    %v98 = vld [vmem:[%s2] sm:$0x7]
    %v100 = vlaneseq
    %v101 = vshrl.u32 %v100, 7
    %v102 = vsub.s32 0, %v101
    %v103 = vrot.slane %v98, %v102
    %v104 = vlaneseq
    %v105 = vshrl.u32 %v104, 7
    %v106 = vsub.s32 1, %v105
    %v107 = vrot.slane %v98, %v106
    %v108 = vlaneseq
    %v109 = vshrl.u32 %v108, 7
    %v110 = vsub.s32 2, %v109
    %v111 = vrot.slane %v98, %v110
    %v117 = vunpack.c.l.b16 %v62
    %v118 = vunpack.c.l.b16 %v63
    %v119 = vpack.c.b16 %v118, %v117
    %v153 = vunpack.c.l.b16 %v66
    %v154 = vunpack.c.h.b16 %v66
    %v155 = vunpack.c.l.b16 %v67
    %v156 = vunpack.c.l.b16 %v68
    %v157 = vunpack.c.h.b16 %v68
    %v158 = vunpack.c.l.b16 %v69
    %v159 = vunpack.c.l.b16 %v70
    %v160 = vunpack.c.h.b16 %v70
    %v161 = vunpack.c.l.b16 %v71
    %v162 = vunpack.c.l.b16 %v72
    %v163 = vunpack.c.h.b16 %v72
    %v164 = vunpack.c.l.b16 %v73
    %v165 = vunpack.c.l.b16 %v74
    %v166 = vunpack.c.h.b16 %v74
    %v167 = vunpack.c.l.b16 %v75
    %v168 = vunpack.c.l.b16 %v76
    %v169 = vunpack.c.h.b16 %v76
    %v170 = vunpack.c.l.b16 %v77
    %v171 = vunpack.c.l.b16 %v78
    %v172 = vunpack.c.h.b16 %v78
    %v173 = vunpack.c.l.b16 %v79
    %v174 = vunpack.c.l.b16 %v80
    %v175 = vunpack.c.h.b16 %v80
    %v176 = vunpack.c.l.b16 %v81
    %v177 = vunpack.c.l.b16 %v82
    %v178 = vunpack.c.h.b16 %v82
    %v179 = vunpack.c.l.b16 %v83
    %v180 = vunpack.c.l.b16 %v84
    %v181 = vunpack.c.h.b16 %v84
    %v182 = vunpack.c.l.b16 %v85
    %v183 = vunpack.c.l.b16 %v86
    %v184 = vunpack.c.h.b16 %v86
    %v185 = vunpack.c.l.b16 %v87
    %v186 = vunpack.c.l.b16 %v88
    %v187 = vunpack.c.h.b16 %v88
    %v188 = vunpack.c.l.b16 %v89
    %v189 = vunpack.c.l.b16 %v90
    %v190 = vunpack.c.h.b16 %v90
    %v191 = vunpack.c.l.b16 %v91
    %v192 = vunpack.c.l.b16 %v92
    %v193 = vunpack.c.h.b16 %v92
    %v194 = vunpack.c.l.b16 %v93
    %v195 = vunpack.c.l.b16 %v94
    %v196 = vunpack.c.h.b16 %v94
    %v197 = vunpack.c.l.b16 %v95
    %v198 = vunpack.c.l.b16 %v96
    %v199 = vunpack.c.h.b16 %v96
    %v200 = vunpack.c.l.b16 %v97
    %v201 = vpack.c.b16 %v156, %v153
    %v202 = vpack.c.b16 %v157, %v154
    %v203 = vpack.c.b16 %v158, %v155
    %v204 = vpack.c.b16 %v162, %v159
    %v205 = vpack.c.b16 %v163, %v160
    %v206 = vpack.c.b16 %v164, %v161
    %v207 = vpack.c.b16 %v168, %v165
    %v208 = vpack.c.b16 %v169, %v166
    %v209 = vpack.c.b16 %v170, %v167
    %v210 = vpack.c.b16 %v174, %v171
    %v211 = vpack.c.b16 %v175, %v172
    %v212 = vpack.c.b16 %v176, %v173
    %v213 = vpack.c.b16 %v180, %v177
    %v214 = vpack.c.b16 %v181, %v178
    %v215 = vpack.c.b16 %v182, %v179
    %v216 = vpack.c.b16 %v186, %v183
    %v217 = vpack.c.b16 %v187, %v184
    %v218 = vpack.c.b16 %v188, %v185
    %v219 = vpack.c.b16 %v192, %v189
    %v220 = vpack.c.b16 %v193, %v190
    %v221 = vpack.c.b16 %v194, %v191
    %v222 = vpack.c.b16 %v198, %v195
    %v223 = vpack.c.b16 %v199, %v196
    %v224 = vpack.c.b16 %v200, %v197
    %249 = vmatprep.subr.bf16.mxu0 %v202
    %250 = vmatpush1.bf16.msra.mxu0 %v201
    %251 = vmatprep.subr.bf16.mxu0 %v205
    %252 = vmatpush1.bf16.msra.mxu0 %v204
    %253 = vmatprep.subr.bf16.mxu0 %v208
    %254 = vmatpush1.bf16.msra.mxu0 %v207
    %255 = vmatprep.subr.bf16.mxu0 %v211
    %256 = vmatpush1.bf16.msra.mxu0 %v210
    %257 = vmatprep.subr.bf16.mxu0 %v214
    %258 = vmatpush1.bf16.msra.mxu0 %v213
    %259 = vmatprep.subr.bf16.mxu0 %v217
    %260 = vmatpush1.bf16.msra.mxu0 %v216
    %261 = vmatprep.subr.bf16.mxu0 %v220
    %262 = vmatpush1.bf16.msra.mxu0 %v219
    %263 = vmatprep.subr.bf16.mxu0 %v223
    %264 = vmatpush1.bf16.msra.mxu0 %v222
    %265 = vmatprep.subr.bf16.mxu0 0
    %266 = vmatpush1.bf16.msra.mxu0 0
    %267 = vmatprep.subr.bf16.mxu0 0
    %268 = vmatpush1.bf16.msra.mxu0 0
    %269 = vmatprep.subr.bf16.mxu0 0
    %270 = vmatpush1.bf16.msra.mxu0 0
    %271 = vmatprep.subr.bf16.mxu0 0
    %272 = vmatpush1.bf16.msra.mxu0 0
    %273 = vmatprep.subr.bf16.mxu0 0
    %274 = vmatpush1.bf16.msra.mxu0 0
    %275 = vmatprep.subr.bf16.mxu0 0
    %276 = vmatpush1.bf16.msra.mxu0 0
    %277 = vmatprep.subr.bf16.mxu0 0
    %278 = vmatpush1.bf16.msra.mxu0 0
    %279 = vmatprep.subr.bf16.mxu0 0
    %280 = vmatpush1.bf16.msra.mxu0 0
    %281 = vmatprep.mubr.bf16.mxu0 0
    %282 = vmatmul.mubr.bf16.gmra.mrb[0].mxu0 %v119
    %v283 = vpop.f32.mrb[0].mxu0
    %v284 = vadd.f32 %v103, %v283
    %v285 = vpop.f32.mrb[0].mxu0
    %v286 = vadd.f32 %v107, %v285
    %v287 = vpop.f32.mrb[0].mxu0
    %v288 = vadd.f32 %v103, %v287
    %v289 = vpop.f32.mrb[0].mxu0
    %v290 = vadd.f32 %v107, %v289
    %291 = vdwg.mxu0
    %292 = vmatprep.subr.bf16.mxu0 0
    %293 = vmatpush1.bf16.msra.mxu0 %v203
    %294 = vmatprep.subr.bf16.mxu0 0
    %295 = vmatpush1.bf16.msra.mxu0 %v206
    %296 = vmatprep.subr.bf16.mxu0 0
    %297 = vmatpush1.bf16.msra.mxu0 %v209
    %298 = vmatprep.subr.bf16.mxu0 0
    %299 = vmatpush1.bf16.msra.mxu0 %v212
    %300 = vmatprep.subr.bf16.mxu0 0
    %301 = vmatpush1.bf16.msra.mxu0 %v215
    %302 = vmatprep.subr.bf16.mxu0 0
    %303 = vmatpush1.bf16.msra.mxu0 %v218
    %304 = vmatprep.subr.bf16.mxu0 0
    %305 = vmatpush1.bf16.msra.mxu0 %v221
    %306 = vmatprep.subr.bf16.mxu0 0
    %307 = vmatpush1.bf16.msra.mxu0 %v224
    %308 = vmatprep.subr.bf16.mxu0 0
    %309 = vmatpush1.bf16.msra.mxu0 0
    %310 = vmatprep.subr.bf16.mxu0 0
    %311 = vmatpush1.bf16.msra.mxu0 0
    %312 = vmatprep.subr.bf16.mxu0 0
    %313 = vmatpush1.bf16.msra.mxu0 0
    %314 = vmatprep.subr.bf16.mxu0 0
    %315 = vmatpush1.bf16.msra.mxu0 0
    %316 = vmatprep.subr.bf16.mxu0 0
    %317 = vmatpush1.bf16.msra.mxu0 0
    %318 = vmatprep.subr.bf16.mxu0 0
    %319 = vmatpush1.bf16.msra.mxu0 0
    %320 = vmatprep.subr.bf16.mxu0 0
    %321 = vmatpush1.bf16.msra.mxu0 0
    %322 = vmatprep.subr.bf16.mxu0 0
    %323 = vmatpush1.bf16.msra.mxu0 0
    %324 = vmatprep.mubr.bf16.mxu0 0
    %325 = vmatmul.mubr.bf16.gmra.mrb[0].mxu0 %v119
    %v326 = vpop.f32.mrb[0].mxu0
    %v327 = vadd.f32 %v111, %v326
    %v328 = vpop.f32.mrb[0].mxu0
    %v329 = vpop.f32.mrb[0].mxu0
    %v330 = vadd.f32 %v111, %v329
    %v331 = vpop.f32.mrb[0].mxu0
    %332 = vdwg.mxu0
    %v333 = vpack.c.bf16 %v284, %v284
    %v334 = vpack.c.bf16 %v288, %v288
    %v335 = vpack.c.bf16 %v286, %v286
    %v336 = vpack.c.bf16 %v290, %v290
    %v337 = vpack.c.bf16 %v327, %v327
    %v338 = vpack.c.bf16 %v330, %v330
    %vm339 = vcmask 261120
    %v341 = vsel %vm339, %v333, 0
    %v344 = vsel %vm339, %v335, 0
    %346 = vmatprep.subr.bf16.mxu0 0
    %347 = vmatpush1.bf16.xpose.msra.mxu0 %v344
    %348 = vmatprep.subr.bf16.mxu0 0
    %349 = vmatpush1.bf16.xpose.msra.mxu0 0
    %350 = vmatprep.subr.bf16.mxu0 0
    %351 = vmatpush1.bf16.xpose.msra.mxu0 0
    %352 = vmatprep.subr.bf16.mxu0 0
    %353 = vmatpush1.bf16.xpose.msra.mxu0 0
    %354 = vmatprep.subr.bf16.mxu0 0
    %355 = vmatpush1.bf16.xpose.msra.mxu0 0
    %356 = vmatprep.subr.bf16.mxu0 0
    %357 = vmatpush1.bf16.xpose.msra.mxu0 0
    %358 = vmatprep.subr.bf16.mxu0 0
    %359 = vmatpush1.bf16.xpose.msra.mxu0 0
    %360 = vmatprep.subr.bf16.mxu0 0
    %361 = vmatpush1.bf16.xpose.msra.mxu0 0
    %362 = vmatprep.subr.bf16.mxu0 0
    %363 = vmatpush1.bf16.xpose.msra.mxu0 0
    %364 = vmatprep.subr.bf16.mxu0 0
    %365 = vmatpush1.bf16.xpose.msra.mxu0 0
    %366 = vmatprep.subr.bf16.mxu0 0
    %367 = vmatpush1.bf16.xpose.msra.mxu0 0
    %368 = vmatprep.subr.bf16.mxu0 0
    %369 = vmatpush1.bf16.xpose.msra.mxu0 0
    %370 = vmatprep.subr.bf16.mxu0 0
    %371 = vmatpush1.bf16.xpose.msra.mxu0 0
    %372 = vmatprep.subr.bf16.mxu0 0
    %373 = vmatpush1.bf16.xpose.msra.mxu0 0
    %374 = vmatprep.subr.bf16.mxu0 0
    %375 = vmatpush1.bf16.xpose.msra.mxu0 0
    %376 = vmatprep.subr.bf16.mxu0 0
    %377 = vmatpush1.bf16.xpose.msra.mxu0 0
    %378 = vmatprep.mubr.bf16.mxu0 0
    %379 = vmatmul.mubr.bf16.gmra.mrb[0].mxu0 %v341
    %v380 = vpop.f32.mrb[0].mxu0
    %v381 = vadd.f32 0.0, %v380
    %v382 = vpop.f32.mrb[0].mxu0
    %v383 = vpop.f32.mrb[0].mxu0
    %v384 = vpop.f32.mrb[0].mxu0
    %385 = vdwg.mxu0
    %v387 = vsel %vm339, %v334, 0
    %v390 = vsel %vm339, %v336, 0
    %392 = vmatprep.subr.bf16.mxu0 0
    %393 = vmatpush1.bf16.xpose.msra.mxu0 %v390
    %394 = vmatprep.subr.bf16.mxu0 0
    %395 = vmatpush1.bf16.xpose.msra.mxu0 0
    %396 = vmatprep.subr.bf16.mxu0 0
    %397 = vmatpush1.bf16.xpose.msra.mxu0 0
    %398 = vmatprep.subr.bf16.mxu0 0
    %399 = vmatpush1.bf16.xpose.msra.mxu0 0
    %400 = vmatprep.subr.bf16.mxu0 0
    %401 = vmatpush1.bf16.xpose.msra.mxu0 0
    %402 = vmatprep.subr.bf16.mxu0 0
    %403 = vmatpush1.bf16.xpose.msra.mxu0 0
    %404 = vmatprep.subr.bf16.mxu0 0
    %405 = vmatpush1.bf16.xpose.msra.mxu0 0
    %406 = vmatprep.subr.bf16.mxu0 0
    %407 = vmatpush1.bf16.xpose.msra.mxu0 0
    %408 = vmatprep.subr.bf16.mxu0 0
    %409 = vmatpush1.bf16.xpose.msra.mxu0 0
    %410 = vmatprep.subr.bf16.mxu0 0
    %411 = vmatpush1.bf16.xpose.msra.mxu0 0
    %412 = vmatprep.subr.bf16.mxu0 0
    %413 = vmatpush1.bf16.xpose.msra.mxu0 0
    %414 = vmatprep.subr.bf16.mxu0 0
    %415 = vmatpush1.bf16.xpose.msra.mxu0 0
    %416 = vmatprep.subr.bf16.mxu0 0
    %417 = vmatpush1.bf16.xpose.msra.mxu0 0
    %418 = vmatprep.subr.bf16.mxu0 0
    %419 = vmatpush1.bf16.xpose.msra.mxu0 0
    %420 = vmatprep.subr.bf16.mxu0 0
    %421 = vmatpush1.bf16.xpose.msra.mxu0 0
    %422 = vmatprep.subr.bf16.mxu0 0
    %423 = vmatpush1.bf16.xpose.msra.mxu0 0
    %424 = vmatprep.mubr.bf16.mxu0 0
    %425 = vmatmul.mubr.bf16.gmra.mrb[0].mxu0 %v387
    %v426 = vpop.f32.mrb[0].mxu0
    %v427 = vadd.f32 0.0, %v426
    %v428 = vpop.f32.mrb[0].mxu0
    %v429 = vpop.f32.mrb[0].mxu0
    %v430 = vpop.f32.mrb[0].mxu0
    %431 = vdwg.mxu0
    %v432 = vmul.f32 %v381, 0.17677669
    %v433 = vmul.f32 %v427, 0.17677669
    %vm434 = vcmask 64512
    %v435 = vsel %vm434, %v432, -inf
    %436 = vmax.xlane.f32.xlu0 %v435
    %v437 = vpop.xlane.xlu0 %436
    %v438 = vsel %vm434, %v433, -inf
    %439 = vmax.xlane.f32.xlu0 %v438
    %v440 = vpop.xlane.xlu0 %439
    %v441 = vsub.f32 %v432, %v437
    %v442 = vsub.f32 %v433, %v440
    %v443 = vmul.f32 %v441, 1.442695
    %v444 = vpow.pop %v443
    %v445 = vmul.f32 %v442, 1.442695
    %v446 = vpow.pop %v445
    %v447 = vsel %vm434, %v444, 0.0
    %448 = vadd.xlane.f32.xlu0 %v447
    %v449 = vpop.xlane.xlu0 %448
    %v450 = vsel %vm434, %v446, 0.0
    %451 = vadd.xlane.f32.xlu0 %v450
    %v452 = vpop.xlane.xlu0 %451
    %v453 = vrcp.pop %v449
    %v454 = vrcp.pop %v452
    %v455 = vmul.f32 %v444, %v453
    %v456 = vmul.f32 %v446, %v454
    %v457 = vpack.c.bf16 %v455, %v455
    %v458 = vpack.c.bf16 %v456, %v456
    %v460 = vsel %vm434, %v457, 0
    %vm462 = vcmask 1043456
    %v464 = vsel %vm462, %v337, 0
    %466 = vmatprep.subr.bf16.mxu0 0
    %467 = vmatpush1.bf16.msra.mxu0 %v464
    %468 = vmatprep.subr.bf16.mxu0 0
    %469 = vmatpush1.bf16.msra.mxu0 0
    %470 = vmatprep.subr.bf16.mxu0 0
    %471 = vmatpush1.bf16.msra.mxu0 0
    %472 = vmatprep.subr.bf16.mxu0 0
    %473 = vmatpush1.bf16.msra.mxu0 0
    %474 = vmatprep.subr.bf16.mxu0 0
    %475 = vmatpush1.bf16.msra.mxu0 0
    %476 = vmatprep.subr.bf16.mxu0 0
    %477 = vmatpush1.bf16.msra.mxu0 0
    %478 = vmatprep.subr.bf16.mxu0 0
    %479 = vmatpush1.bf16.msra.mxu0 0
    %480 = vmatprep.subr.bf16.mxu0 0
    %481 = vmatpush1.bf16.msra.mxu0 0
    %482 = vmatprep.subr.bf16.mxu0 0
    %483 = vmatpush1.bf16.msra.mxu0 0
    %484 = vmatprep.subr.bf16.mxu0 0
    %485 = vmatpush1.bf16.msra.mxu0 0
    %486 = vmatprep.subr.bf16.mxu0 0
    %487 = vmatpush1.bf16.msra.mxu0 0
    %488 = vmatprep.subr.bf16.mxu0 0
    %489 = vmatpush1.bf16.msra.mxu0 0
    %490 = vmatprep.subr.bf16.mxu0 0
    %491 = vmatpush1.bf16.msra.mxu0 0
    %492 = vmatprep.subr.bf16.mxu0 0
    %493 = vmatpush1.bf16.msra.mxu0 0
    %494 = vmatprep.subr.bf16.mxu0 0
    %495 = vmatpush1.bf16.msra.mxu0 0
    %496 = vmatprep.subr.bf16.mxu0 0
    %497 = vmatpush1.bf16.msra.mxu0 0
    %498 = vmatprep.mubr.bf16.mxu0 0
    %499 = vmatmul.mubr.bf16.gmra.mrb[0].mxu0 %v460
    %v500 = vpop.f32.mrb[0].mxu0
    %v501 = vadd.f32 0.0, %v500
    %v502 = vpop.f32.mrb[0].mxu0
    %v503 = vpop.f32.mrb[0].mxu0
    %v504 = vpop.f32.mrb[0].mxu0
    %505 = vdwg.mxu0
    %v507 = vsel %vm434, %v458, 0
    %v510 = vsel %vm462, %v338, 0
    %512 = vmatprep.subr.bf16.mxu0 0
    %513 = vmatpush1.bf16.msra.mxu0 %v510
    %514 = vmatprep.subr.bf16.mxu0 0
    %515 = vmatpush1.bf16.msra.mxu0 0
    %516 = vmatprep.subr.bf16.mxu0 0
    %517 = vmatpush1.bf16.msra.mxu0 0
    %518 = vmatprep.subr.bf16.mxu0 0
    %519 = vmatpush1.bf16.msra.mxu0 0
    %520 = vmatprep.subr.bf16.mxu0 0
    %521 = vmatpush1.bf16.msra.mxu0 0
    %522 = vmatprep.subr.bf16.mxu0 0
    %523 = vmatpush1.bf16.msra.mxu0 0
    %524 = vmatprep.subr.bf16.mxu0 0
    %525 = vmatpush1.bf16.msra.mxu0 0
    %526 = vmatprep.subr.bf16.mxu0 0
    %527 = vmatpush1.bf16.msra.mxu0 0
    %528 = vmatprep.subr.bf16.mxu0 0
    %529 = vmatpush1.bf16.msra.mxu0 0
    %530 = vmatprep.subr.bf16.mxu0 0
    %531 = vmatpush1.bf16.msra.mxu0 0
    %532 = vmatprep.subr.bf16.mxu0 0
    %533 = vmatpush1.bf16.msra.mxu0 0
    %534 = vmatprep.subr.bf16.mxu0 0
    %535 = vmatpush1.bf16.msra.mxu0 0
    %536 = vmatprep.subr.bf16.mxu0 0
    %537 = vmatpush1.bf16.msra.mxu0 0
    %538 = vmatprep.subr.bf16.mxu0 0
    %539 = vmatpush1.bf16.msra.mxu0 0
    %540 = vmatprep.subr.bf16.mxu0 0
    %541 = vmatpush1.bf16.msra.mxu0 0
    %542 = vmatprep.subr.bf16.mxu0 0
    %543 = vmatpush1.bf16.msra.mxu0 0
    %544 = vmatprep.mubr.bf16.mxu0 0
    %545 = vmatmul.mubr.bf16.gmra.mrb[0].mxu0 %v507
    %v546 = vpop.f32.mrb[0].mxu0
    %v547 = vadd.f32 0.0, %v546
    %v548 = vpop.f32.mrb[0].mxu0
    %v549 = vpop.f32.mrb[0].mxu0
    %v550 = vpop.f32.mrb[0].mxu0
    %551 = vdwg.mxu0
    %v552 = vpack.c.bf16 %v547, %v501
    %v553 = vld [vmem:[%s3] sm:$0xf]
    %v554 = vld [vmem:[%s3 + $0x4] sm:$0xf]
    %v555 = vld [vmem:[%s3 + $0x8] sm:$0xf]
    %v556 = vld [vmem:[%s3 + $0xc] sm:$0xf]
    %558 = vrot.lane.b32.xlu0 %v333, 96
    %v559 = vpop.permute.xlu0 %558
    %561 = vrot.lane.b32.xlu0 %v335, 96
    %v562 = vpop.permute.xlu0 %561
    %v564 = vsel %vm339, %v559, 0
    %v567 = vsel %vm339, %v562, 0
    %569 = vmatprep.subr.bf16.mxu0 0
    %570 = vmatpush1.bf16.xpose.msra.mxu0 %v567
    %571 = vmatprep.subr.bf16.mxu0 0
    %572 = vmatpush1.bf16.xpose.msra.mxu0 0
    %573 = vmatprep.subr.bf16.mxu0 0
    %574 = vmatpush1.bf16.xpose.msra.mxu0 0
    %575 = vmatprep.subr.bf16.mxu0 0
    %576 = vmatpush1.bf16.xpose.msra.mxu0 0
    %577 = vmatprep.subr.bf16.mxu0 0
    %578 = vmatpush1.bf16.xpose.msra.mxu0 0
    %579 = vmatprep.subr.bf16.mxu0 0
    %580 = vmatpush1.bf16.xpose.msra.mxu0 0
    %581 = vmatprep.subr.bf16.mxu0 0
    %582 = vmatpush1.bf16.xpose.msra.mxu0 0
    %583 = vmatprep.subr.bf16.mxu0 0
    %584 = vmatpush1.bf16.xpose.msra.mxu0 0
    %585 = vmatprep.subr.bf16.mxu0 0
    %586 = vmatpush1.bf16.xpose.msra.mxu0 0
    %587 = vmatprep.subr.bf16.mxu0 0
    %588 = vmatpush1.bf16.xpose.msra.mxu0 0
    %589 = vmatprep.subr.bf16.mxu0 0
    %590 = vmatpush1.bf16.xpose.msra.mxu0 0
    %591 = vmatprep.subr.bf16.mxu0 0
    %592 = vmatpush1.bf16.xpose.msra.mxu0 0
    %593 = vmatprep.subr.bf16.mxu0 0
    %594 = vmatpush1.bf16.xpose.msra.mxu0 0
    %595 = vmatprep.subr.bf16.mxu0 0
    %596 = vmatpush1.bf16.xpose.msra.mxu0 0
    %597 = vmatprep.subr.bf16.mxu0 0
    %598 = vmatpush1.bf16.xpose.msra.mxu0 0
    %599 = vmatprep.subr.bf16.mxu0 0
    %600 = vmatpush1.bf16.xpose.msra.mxu0 0
    %601 = vmatprep.mubr.bf16.mxu0 0
    %602 = vmatmul.mubr.bf16.gmra.mrb[0].mxu0 %v564
    %v603 = vpop.f32.mrb[0].mxu0
    %v604 = vadd.f32 0.0, %v603
    %v605 = vpop.f32.mrb[0].mxu0
    %v606 = vpop.f32.mrb[0].mxu0
    %v607 = vpop.f32.mrb[0].mxu0
    %608 = vdwg.mxu0
    %610 = vrot.lane.b32.xlu0 %v334, 96
    %v611 = vpop.permute.xlu0 %610
    %613 = vrot.lane.b32.xlu0 %v336, 96
    %v614 = vpop.permute.xlu0 %613
    %v616 = vsel %vm339, %v611, 0
    %v619 = vsel %vm339, %v614, 0
    %621 = vmatprep.subr.bf16.mxu0 0
    %622 = vmatpush1.bf16.xpose.msra.mxu0 %v619
    %623 = vmatprep.subr.bf16.mxu0 0
    %624 = vmatpush1.bf16.xpose.msra.mxu0 0
    %625 = vmatprep.subr.bf16.mxu0 0
    %626 = vmatpush1.bf16.xpose.msra.mxu0 0
    %627 = vmatprep.subr.bf16.mxu0 0
    %628 = vmatpush1.bf16.xpose.msra.mxu0 0
    %629 = vmatprep.subr.bf16.mxu0 0
    %630 = vmatpush1.bf16.xpose.msra.mxu0 0
    %631 = vmatprep.subr.bf16.mxu0 0
    %632 = vmatpush1.bf16.xpose.msra.mxu0 0
    %633 = vmatprep.subr.bf16.mxu0 0
    %634 = vmatpush1.bf16.xpose.msra.mxu0 0
    %635 = vmatprep.subr.bf16.mxu0 0
    %636 = vmatpush1.bf16.xpose.msra.mxu0 0
    %637 = vmatprep.subr.bf16.mxu0 0
    %638 = vmatpush1.bf16.xpose.msra.mxu0 0
    %639 = vmatprep.subr.bf16.mxu0 0
    %640 = vmatpush1.bf16.xpose.msra.mxu0 0
    %641 = vmatprep.subr.bf16.mxu0 0
    %642 = vmatpush1.bf16.xpose.msra.mxu0 0
    %643 = vmatprep.subr.bf16.mxu0 0
    %644 = vmatpush1.bf16.xpose.msra.mxu0 0
    %645 = vmatprep.subr.bf16.mxu0 0
    %646 = vmatpush1.bf16.xpose.msra.mxu0 0
    %647 = vmatprep.subr.bf16.mxu0 0
    %648 = vmatpush1.bf16.xpose.msra.mxu0 0
    %649 = vmatprep.subr.bf16.mxu0 0
    %650 = vmatpush1.bf16.xpose.msra.mxu0 0
    %651 = vmatprep.subr.bf16.mxu0 0
    %652 = vmatpush1.bf16.xpose.msra.mxu0 0
    %653 = vmatprep.mubr.bf16.mxu0 0
    %654 = vmatmul.mubr.bf16.gmra.mrb[0].mxu0 %v616
    %v655 = vpop.f32.mrb[0].mxu0
    %v656 = vadd.f32 0.0, %v655
    %v657 = vpop.f32.mrb[0].mxu0
    %v658 = vpop.f32.mrb[0].mxu0
    %v659 = vpop.f32.mrb[0].mxu0
    %660 = vdwg.mxu0
    %v661 = vmul.f32 %v604, 0.17677669
    %v662 = vmul.f32 %v656, 0.17677669
    %v663 = vsel %vm434, %v661, -inf
    %664 = vmax.xlane.f32.xlu0 %v663
    %v665 = vpop.xlane.xlu0 %664
    %v666 = vsel %vm434, %v662, -inf
    %667 = vmax.xlane.f32.xlu0 %v666
    %v668 = vpop.xlane.xlu0 %667
    %v669 = vsub.f32 %v661, %v665
    %v670 = vsub.f32 %v662, %v668
    %v671 = vmul.f32 %v669, 1.442695
    %v672 = vpow.pop %v671
    %v673 = vmul.f32 %v670, 1.442695
    %v674 = vpow.pop %v673
    %v675 = vsel %vm434, %v672, 0.0
    %676 = vadd.xlane.f32.xlu0 %v675
    %v677 = vpop.xlane.xlu0 %676
    %v678 = vsel %vm434, %v674, 0.0
    %679 = vadd.xlane.f32.xlu0 %v678
    %v680 = vpop.xlane.xlu0 %679
    %v681 = vrcp.pop %v677
    %v682 = vrcp.pop %v680
    %v683 = vmul.f32 %v672, %v681
    %v684 = vmul.f32 %v674, %v682
    %v685 = vpack.c.bf16 %v683, %v683
    %v686 = vpack.c.bf16 %v684, %v684
    %688 = vrot.lane.b32.xlu0 %v337, 96
    %v689 = vpop.permute.xlu0 %688
    %v691 = vsel %vm434, %v685, 0
    %v694 = vsel %vm462, %v689, 0
    %696 = vmatprep.subr.bf16.mxu0 0
    %697 = vmatpush1.bf16.msra.mxu0 %v694
    %698 = vmatprep.subr.bf16.mxu0 0
    %699 = vmatpush1.bf16.msra.mxu0 0
    %700 = vmatprep.subr.bf16.mxu0 0
    %701 = vmatpush1.bf16.msra.mxu0 0
    %702 = vmatprep.subr.bf16.mxu0 0
    %703 = vmatpush1.bf16.msra.mxu0 0
    %704 = vmatprep.subr.bf16.mxu0 0
    %705 = vmatpush1.bf16.msra.mxu0 0
    %706 = vmatprep.subr.bf16.mxu0 0
    %707 = vmatpush1.bf16.msra.mxu0 0
    %708 = vmatprep.subr.bf16.mxu0 0
    %709 = vmatpush1.bf16.msra.mxu0 0
    %710 = vmatprep.subr.bf16.mxu0 0
    %711 = vmatpush1.bf16.msra.mxu0 0
    %712 = vmatprep.subr.bf16.mxu0 0
    %713 = vmatpush1.bf16.msra.mxu0 0
    %714 = vmatprep.subr.bf16.mxu0 0
    %715 = vmatpush1.bf16.msra.mxu0 0
    %716 = vmatprep.subr.bf16.mxu0 0
    %717 = vmatpush1.bf16.msra.mxu0 0
    %718 = vmatprep.subr.bf16.mxu0 0
    %719 = vmatpush1.bf16.msra.mxu0 0
    %720 = vmatprep.subr.bf16.mxu0 0
    %721 = vmatpush1.bf16.msra.mxu0 0
    %722 = vmatprep.subr.bf16.mxu0 0
    %723 = vmatpush1.bf16.msra.mxu0 0
    %724 = vmatprep.subr.bf16.mxu0 0
    %725 = vmatpush1.bf16.msra.mxu0 0
    %726 = vmatprep.subr.bf16.mxu0 0
    %727 = vmatpush1.bf16.msra.mxu0 0
    %728 = vmatprep.mubr.bf16.mxu0 0
    %729 = vmatmul.mubr.bf16.gmra.mrb[0].mxu0 %v691
    %v730 = vpop.f32.mrb[0].mxu0
    %v731 = vadd.f32 0.0, %v730
    %v732 = vpop.f32.mrb[0].mxu0
    %v733 = vpop.f32.mrb[0].mxu0
    %v734 = vpop.f32.mrb[0].mxu0
    %735 = vdwg.mxu0
    %737 = vrot.lane.b32.xlu0 %v338, 96
    %v738 = vpop.permute.xlu0 %737
    %v740 = vsel %vm434, %v686, 0
    %v743 = vsel %vm462, %v738, 0
    %745 = vmatprep.subr.bf16.mxu0 0
    %746 = vmatpush1.bf16.msra.mxu0 %v743
    %747 = vmatprep.subr.bf16.mxu0 0
    %748 = vmatpush1.bf16.msra.mxu0 0
    %749 = vmatprep.subr.bf16.mxu0 0
    %750 = vmatpush1.bf16.msra.mxu0 0
    %751 = vmatprep.subr.bf16.mxu0 0
    %752 = vmatpush1.bf16.msra.mxu0 0
    %753 = vmatprep.subr.bf16.mxu0 0
    %754 = vmatpush1.bf16.msra.mxu0 0
    %755 = vmatprep.subr.bf16.mxu0 0
    %756 = vmatpush1.bf16.msra.mxu0 0
    %757 = vmatprep.subr.bf16.mxu0 0
    %758 = vmatpush1.bf16.msra.mxu0 0
    %759 = vmatprep.subr.bf16.mxu0 0
    %760 = vmatpush1.bf16.msra.mxu0 0
    %761 = vmatprep.subr.bf16.mxu0 0
    %762 = vmatpush1.bf16.msra.mxu0 0
    %763 = vmatprep.subr.bf16.mxu0 0
    %764 = vmatpush1.bf16.msra.mxu0 0
    %765 = vmatprep.subr.bf16.mxu0 0
    %766 = vmatpush1.bf16.msra.mxu0 0
    %767 = vmatprep.subr.bf16.mxu0 0
    %768 = vmatpush1.bf16.msra.mxu0 0
    %769 = vmatprep.subr.bf16.mxu0 0
    %770 = vmatpush1.bf16.msra.mxu0 0
    %771 = vmatprep.subr.bf16.mxu0 0
    %772 = vmatpush1.bf16.msra.mxu0 0
    %773 = vmatprep.subr.bf16.mxu0 0
    %774 = vmatpush1.bf16.msra.mxu0 0
    %775 = vmatprep.subr.bf16.mxu0 0
    %776 = vmatpush1.bf16.msra.mxu0 0
    %777 = vmatprep.mubr.bf16.mxu0 0
    %778 = vmatmul.mubr.bf16.gmra.mrb[0].mxu0 %v740
    %v779 = vpop.f32.mrb[0].mxu0
    %v780 = vadd.f32 0.0, %v779
    %v781 = vpop.f32.mrb[0].mxu0
    %v782 = vpop.f32.mrb[0].mxu0
    %v783 = vpop.f32.mrb[0].mxu0
    %784 = vdwg.mxu0
    %v785 = vpack.c.bf16 %v780, %v731
    %v786 = vld [vmem:[%s3 + $0x10] sm:$0xf]
    %v787 = vld [vmem:[%s3 + $0x14] sm:$0xf]
    %v788 = vld [vmem:[%s3 + $0x18] sm:$0xf]
    %v789 = vld [vmem:[%s3 + $0x1c] sm:$0xf]
    %v794 = vunpack.c.l.b16 %v786
    %v795 = vunpack.c.l.b16 %v787
    %v796 = vunpack.c.l.b16 %v788
    %v797 = vunpack.c.l.b16 %v789
    %v798 = vpack.c.b16 %v795, %v794
    %v799 = vpack.c.b16 %v797, %v796
    %v803 = vsel %vm339, %v785, 0
    %805 = vmatprep.subr.bf16.mxu0 0
    %806 = vmatpush1.bf16.msra.mxu0 %v798
    %807 = vmatprep.subr.bf16.mxu0 0
    %808 = vmatpush1.bf16.msra.mxu0 %v799
    %809 = vmatprep.subr.bf16.mxu0 0
    %810 = vmatpush1.bf16.msra.mxu0 0
    %811 = vmatprep.subr.bf16.mxu0 0
    %812 = vmatpush1.bf16.msra.mxu0 0
    %813 = vmatprep.subr.bf16.mxu0 0
    %814 = vmatpush1.bf16.msra.mxu0 0
    %815 = vmatprep.subr.bf16.mxu0 0
    %816 = vmatpush1.bf16.msra.mxu0 0
    %817 = vmatprep.subr.bf16.mxu0 0
    %818 = vmatpush1.bf16.msra.mxu0 0
    %819 = vmatprep.subr.bf16.mxu0 0
    %820 = vmatpush1.bf16.msra.mxu0 0
    %821 = vmatprep.subr.bf16.mxu0 0
    %822 = vmatpush1.bf16.msra.mxu0 0
    %823 = vmatprep.subr.bf16.mxu0 0
    %824 = vmatpush1.bf16.msra.mxu0 0
    %825 = vmatprep.subr.bf16.mxu0 0
    %826 = vmatpush1.bf16.msra.mxu0 0
    %827 = vmatprep.subr.bf16.mxu0 0
    %828 = vmatpush1.bf16.msra.mxu0 0
    %829 = vmatprep.subr.bf16.mxu0 0
    %830 = vmatpush1.bf16.msra.mxu0 0
    %831 = vmatprep.subr.bf16.mxu0 0
    %832 = vmatpush1.bf16.msra.mxu0 0
    %833 = vmatprep.subr.bf16.mxu0 0
    %834 = vmatpush1.bf16.msra.mxu0 0
    %835 = vmatprep.subr.bf16.mxu0 0
    %836 = vmatpush1.bf16.msra.mxu0 0
    %837 = vmatprep.mubr.bf16.mxu0 0
    %838 = vmatmul.mubr.bf16.gmra.mrb[0].mxu0 %v803
    %v839 = vpop.f32.mrb[0].mxu0
    %v840 = vadd.f32 0.0, %v839
    %v841 = vpop.f32.mrb[0].mxu0
    %v842 = vpop.f32.mrb[0].mxu0
    %v843 = vadd.f32 0.0, %v842
    %v844 = vpop.f32.mrb[0].mxu0
    %845 = vdwg.mxu0
    %v850 = vunpack.c.l.b16 %v553
    %v851 = vunpack.c.l.b16 %v554
    %v852 = vunpack.c.l.b16 %v555
    %v853 = vunpack.c.l.b16 %v556
    %v854 = vpack.c.b16 %v851, %v850
    %v855 = vpack.c.b16 %v853, %v852
    %v859 = vsel %vm339, %v552, 0
    %861 = vmatprep.subr.bf16.mxu0 0
    %862 = vmatpush1.bf16.msra.mxu0 %v854
    %863 = vmatprep.subr.bf16.mxu0 0
    %864 = vmatpush1.bf16.msra.mxu0 %v855
    %865 = vmatprep.subr.bf16.mxu0 0
    %866 = vmatpush1.bf16.msra.mxu0 0
    %867 = vmatprep.subr.bf16.mxu0 0
    %868 = vmatpush1.bf16.msra.mxu0 0
    %869 = vmatprep.subr.bf16.mxu0 0
    %870 = vmatpush1.bf16.msra.mxu0 0
    %871 = vmatprep.subr.bf16.mxu0 0
    %872 = vmatpush1.bf16.msra.mxu0 0
    %873 = vmatprep.subr.bf16.mxu0 0
    %874 = vmatpush1.bf16.msra.mxu0 0
    %875 = vmatprep.subr.bf16.mxu0 0
    %876 = vmatpush1.bf16.msra.mxu0 0
    %877 = vmatprep.subr.bf16.mxu0 0
    %878 = vmatpush1.bf16.msra.mxu0 0
    %879 = vmatprep.subr.bf16.mxu0 0
    %880 = vmatpush1.bf16.msra.mxu0 0
    %881 = vmatprep.subr.bf16.mxu0 0
    %882 = vmatpush1.bf16.msra.mxu0 0
    %883 = vmatprep.subr.bf16.mxu0 0
    %884 = vmatpush1.bf16.msra.mxu0 0
    %885 = vmatprep.subr.bf16.mxu0 0
    %886 = vmatpush1.bf16.msra.mxu0 0
    %887 = vmatprep.subr.bf16.mxu0 0
    %888 = vmatpush1.bf16.msra.mxu0 0
    %889 = vmatprep.subr.bf16.mxu0 0
    %890 = vmatpush1.bf16.msra.mxu0 0
    %891 = vmatprep.subr.bf16.mxu0 0
    %892 = vmatpush1.bf16.msra.mxu0 0
    %893 = vmatprep.mubr.bf16.mxu0 0
    %894 = vmatmul.mubr.bf16.gmra.mrb[0].mxu0 %v859
    %v895 = vpop.f32.mrb[0].mxu0
    %v896 = vadd.f32 %v840, %v895
    %v897 = vpop.f32.mrb[0].mxu0
    %v898 = vpop.f32.mrb[0].mxu0
    %v899 = vadd.f32 %v843, %v898
    %v900 = vpop.f32.mrb[0].mxu0
    %901 = vdwg.mxu0
    %902 = vrot.lane.b32.xlu0 %v333, 64
    %v903 = vpop.permute.xlu0 %902
    %904 = vrot.lane.b32.xlu0 %v335, 64
    %v905 = vpop.permute.xlu0 %904
    %v907 = vsel %vm339, %v903, 0
    %v910 = vsel %vm339, %v905, 0
    %912 = vmatprep.subr.bf16.mxu0 0
    %913 = vmatpush1.bf16.xpose.msra.mxu0 %v910
    %914 = vmatprep.subr.bf16.mxu0 0
    %915 = vmatpush1.bf16.xpose.msra.mxu0 0
    %916 = vmatprep.subr.bf16.mxu0 0
    %917 = vmatpush1.bf16.xpose.msra.mxu0 0
    %918 = vmatprep.subr.bf16.mxu0 0
    %919 = vmatpush1.bf16.xpose.msra.mxu0 0
    %920 = vmatprep.subr.bf16.mxu0 0
    %921 = vmatpush1.bf16.xpose.msra.mxu0 0
    %922 = vmatprep.subr.bf16.mxu0 0
    %923 = vmatpush1.bf16.xpose.msra.mxu0 0
    %924 = vmatprep.subr.bf16.mxu0 0
    %925 = vmatpush1.bf16.xpose.msra.mxu0 0
    %926 = vmatprep.subr.bf16.mxu0 0
    %927 = vmatpush1.bf16.xpose.msra.mxu0 0
    %928 = vmatprep.subr.bf16.mxu0 0
    %929 = vmatpush1.bf16.xpose.msra.mxu0 0
    %930 = vmatprep.subr.bf16.mxu0 0
    %931 = vmatpush1.bf16.xpose.msra.mxu0 0
    %932 = vmatprep.subr.bf16.mxu0 0
    %933 = vmatpush1.bf16.xpose.msra.mxu0 0
    %934 = vmatprep.subr.bf16.mxu0 0
    %935 = vmatpush1.bf16.xpose.msra.mxu0 0
    %936 = vmatprep.subr.bf16.mxu0 0
    %937 = vmatpush1.bf16.xpose.msra.mxu0 0
    %938 = vmatprep.subr.bf16.mxu0 0
    %939 = vmatpush1.bf16.xpose.msra.mxu0 0
    %940 = vmatprep.subr.bf16.mxu0 0
    %941 = vmatpush1.bf16.xpose.msra.mxu0 0
    %942 = vmatprep.subr.bf16.mxu0 0
    %943 = vmatpush1.bf16.xpose.msra.mxu0 0
    %944 = vmatprep.mubr.bf16.mxu0 0
    %945 = vmatmul.mubr.bf16.gmra.mrb[0].mxu0 %v907
    %v946 = vpop.f32.mrb[0].mxu0
    %v947 = vadd.f32 0.0, %v946
    %v948 = vpop.f32.mrb[0].mxu0
    %v949 = vpop.f32.mrb[0].mxu0
    %v950 = vpop.f32.mrb[0].mxu0
    %951 = vdwg.mxu0
    %952 = vrot.lane.b32.xlu0 %v334, 64
    %v953 = vpop.permute.xlu0 %952
    %954 = vrot.lane.b32.xlu0 %v336, 64
    %v955 = vpop.permute.xlu0 %954
    %v957 = vsel %vm339, %v953, 0
    %v960 = vsel %vm339, %v955, 0
    %962 = vmatprep.subr.bf16.mxu0 0
    %963 = vmatpush1.bf16.xpose.msra.mxu0 %v960
    %964 = vmatprep.subr.bf16.mxu0 0
    %965 = vmatpush1.bf16.xpose.msra.mxu0 0
    %966 = vmatprep.subr.bf16.mxu0 0
    %967 = vmatpush1.bf16.xpose.msra.mxu0 0
    %968 = vmatprep.subr.bf16.mxu0 0
    %969 = vmatpush1.bf16.xpose.msra.mxu0 0
    %970 = vmatprep.subr.bf16.mxu0 0
    %971 = vmatpush1.bf16.xpose.msra.mxu0 0
    %972 = vmatprep.subr.bf16.mxu0 0
    %973 = vmatpush1.bf16.xpose.msra.mxu0 0
    %974 = vmatprep.subr.bf16.mxu0 0
    %975 = vmatpush1.bf16.xpose.msra.mxu0 0
    %976 = vmatprep.subr.bf16.mxu0 0
    %977 = vmatpush1.bf16.xpose.msra.mxu0 0
    %978 = vmatprep.subr.bf16.mxu0 0
    %979 = vmatpush1.bf16.xpose.msra.mxu0 0
    %980 = vmatprep.subr.bf16.mxu0 0
    %981 = vmatpush1.bf16.xpose.msra.mxu0 0
    %982 = vmatprep.subr.bf16.mxu0 0
    %983 = vmatpush1.bf16.xpose.msra.mxu0 0
    %984 = vmatprep.subr.bf16.mxu0 0
    %985 = vmatpush1.bf16.xpose.msra.mxu0 0
    %986 = vmatprep.subr.bf16.mxu0 0
    %987 = vmatpush1.bf16.xpose.msra.mxu0 0
    %988 = vmatprep.subr.bf16.mxu0 0
    %989 = vmatpush1.bf16.xpose.msra.mxu0 0
    %990 = vmatprep.subr.bf16.mxu0 0
    %991 = vmatpush1.bf16.xpose.msra.mxu0 0
    %992 = vmatprep.subr.bf16.mxu0 0
    %993 = vmatpush1.bf16.xpose.msra.mxu0 0
    %994 = vmatprep.mubr.bf16.mxu0 0
    %995 = vmatmul.mubr.bf16.gmra.mrb[0].mxu0 %v957
    %v996 = vpop.f32.mrb[0].mxu0
    %v997 = vadd.f32 0.0, %v996
    %v998 = vpop.f32.mrb[0].mxu0
    %v999 = vpop.f32.mrb[0].mxu0
    %v1000 = vpop.f32.mrb[0].mxu0
    %1001 = vdwg.mxu0
    %v1002 = vmul.f32 %v947, 0.17677669
    %v1003 = vmul.f32 %v997, 0.17677669
    %v1004 = vsel %vm434, %v1002, -inf
    %1005 = vmax.xlane.f32.xlu0 %v1004
    %v1006 = vpop.xlane.xlu0 %1005
    %v1007 = vsel %vm434, %v1003, -inf
    %1008 = vmax.xlane.f32.xlu0 %v1007
    %v1009 = vpop.xlane.xlu0 %1008
    %v1010 = vsub.f32 %v1002, %v1006
    %v1011 = vsub.f32 %v1003, %v1009
    %v1012 = vmul.f32 %v1010, 1.442695
    %v1013 = vpow.pop %v1012
    %v1014 = vmul.f32 %v1011, 1.442695
    %v1015 = vpow.pop %v1014
    %v1016 = vsel %vm434, %v1013, 0.0
    %1017 = vadd.xlane.f32.xlu0 %v1016
    %v1018 = vpop.xlane.xlu0 %1017
    %v1019 = vsel %vm434, %v1015, 0.0
    %1020 = vadd.xlane.f32.xlu0 %v1019
    %v1021 = vpop.xlane.xlu0 %1020
    %v1022 = vrcp.pop %v1018
    %v1023 = vrcp.pop %v1021
    %v1024 = vmul.f32 %v1013, %v1022
    %v1025 = vmul.f32 %v1015, %v1023
    %v1026 = vpack.c.bf16 %v1024, %v1024
    %v1027 = vpack.c.bf16 %v1025, %v1025
    %1028 = vrot.lane.b32.xlu0 %v337, 64
    %v1029 = vpop.permute.xlu0 %1028
    %v1031 = vsel %vm434, %v1026, 0
    %v1034 = vsel %vm462, %v1029, 0
    %1036 = vmatprep.subr.bf16.mxu0 0
    %1037 = vmatpush1.bf16.msra.mxu0 %v1034
    %1038 = vmatprep.subr.bf16.mxu0 0
    %1039 = vmatpush1.bf16.msra.mxu0 0
    %1040 = vmatprep.subr.bf16.mxu0 0
    %1041 = vmatpush1.bf16.msra.mxu0 0
    %1042 = vmatprep.subr.bf16.mxu0 0
    %1043 = vmatpush1.bf16.msra.mxu0 0
    %1044 = vmatprep.subr.bf16.mxu0 0
    %1045 = vmatpush1.bf16.msra.mxu0 0
    %1046 = vmatprep.subr.bf16.mxu0 0
    %1047 = vmatpush1.bf16.msra.mxu0 0
    %1048 = vmatprep.subr.bf16.mxu0 0
    %1049 = vmatpush1.bf16.msra.mxu0 0
    %1050 = vmatprep.subr.bf16.mxu0 0
    %1051 = vmatpush1.bf16.msra.mxu0 0
    %1052 = vmatprep.subr.bf16.mxu0 0
    %1053 = vmatpush1.bf16.msra.mxu0 0
    %1054 = vmatprep.subr.bf16.mxu0 0
    %1055 = vmatpush1.bf16.msra.mxu0 0
    %1056 = vmatprep.subr.bf16.mxu0 0
    %1057 = vmatpush1.bf16.msra.mxu0 0
    %1058 = vmatprep.subr.bf16.mxu0 0
    %1059 = vmatpush1.bf16.msra.mxu0 0
    %1060 = vmatprep.subr.bf16.mxu0 0
    %1061 = vmatpush1.bf16.msra.mxu0 0
    %1062 = vmatprep.subr.bf16.mxu0 0
    %1063 = vmatpush1.bf16.msra.mxu0 0
    %1064 = vmatprep.subr.bf16.mxu0 0
    %1065 = vmatpush1.bf16.msra.mxu0 0
    %1066 = vmatprep.subr.bf16.mxu0 0
    %1067 = vmatpush1.bf16.msra.mxu0 0
    %1068 = vmatprep.mubr.bf16.mxu0 0
    %1069 = vmatmul.mubr.bf16.gmra.mrb[0].mxu0 %v1031
    %v1070 = vpop.f32.mrb[0].mxu0
    %v1071 = vadd.f32 0.0, %v1070
    %v1072 = vpop.f32.mrb[0].mxu0
    %v1073 = vpop.f32.mrb[0].mxu0
    %v1074 = vpop.f32.mrb[0].mxu0
    %1075 = vdwg.mxu0
    %1076 = vrot.lane.b32.xlu0 %v338, 64
    %v1077 = vpop.permute.xlu0 %1076
    %v1079 = vsel %vm434, %v1027, 0
    %v1082 = vsel %vm462, %v1077, 0
    %1084 = vmatprep.subr.bf16.mxu0 0
    %1085 = vmatpush1.bf16.msra.mxu0 %v1082
    %1086 = vmatprep.subr.bf16.mxu0 0
    %1087 = vmatpush1.bf16.msra.mxu0 0
    %1088 = vmatprep.subr.bf16.mxu0 0
    %1089 = vmatpush1.bf16.msra.mxu0 0
    %1090 = vmatprep.subr.bf16.mxu0 0
    %1091 = vmatpush1.bf16.msra.mxu0 0
    %1092 = vmatprep.subr.bf16.mxu0 0
    %1093 = vmatpush1.bf16.msra.mxu0 0
    %1094 = vmatprep.subr.bf16.mxu0 0
    %1095 = vmatpush1.bf16.msra.mxu0 0
    %1096 = vmatprep.subr.bf16.mxu0 0
    %1097 = vmatpush1.bf16.msra.mxu0 0
    %1098 = vmatprep.subr.bf16.mxu0 0
    %1099 = vmatpush1.bf16.msra.mxu0 0
    %1100 = vmatprep.subr.bf16.mxu0 0
    %1101 = vmatpush1.bf16.msra.mxu0 0
    %1102 = vmatprep.subr.bf16.mxu0 0
    %1103 = vmatpush1.bf16.msra.mxu0 0
    %1104 = vmatprep.subr.bf16.mxu0 0
    %1105 = vmatpush1.bf16.msra.mxu0 0
    %1106 = vmatprep.subr.bf16.mxu0 0
    %1107 = vmatpush1.bf16.msra.mxu0 0
    %1108 = vmatprep.subr.bf16.mxu0 0
    %1109 = vmatpush1.bf16.msra.mxu0 0
    %1110 = vmatprep.subr.bf16.mxu0 0
    %1111 = vmatpush1.bf16.msra.mxu0 0
    %1112 = vmatprep.subr.bf16.mxu0 0
    %1113 = vmatpush1.bf16.msra.mxu0 0
    %1114 = vmatprep.subr.bf16.mxu0 0
    %1115 = vmatpush1.bf16.msra.mxu0 0
    %1116 = vmatprep.mubr.bf16.mxu0 0
    %1117 = vmatmul.mubr.bf16.gmra.mrb[0].mxu0 %v1079
    %v1118 = vpop.f32.mrb[0].mxu0
    %v1119 = vadd.f32 0.0, %v1118
    %v1120 = vpop.f32.mrb[0].mxu0
    %v1121 = vpop.f32.mrb[0].mxu0
    %v1122 = vpop.f32.mrb[0].mxu0
    %1123 = vdwg.mxu0
    %v1124 = vpack.c.bf16 %v1119, %v1071
    %v1125 = vld [vmem:[%s3 + $0x20] sm:$0xf]
    %v1126 = vld [vmem:[%s3 + $0x24] sm:$0xf]
    %v1127 = vld [vmem:[%s3 + $0x28] sm:$0xf]
    %v1128 = vld [vmem:[%s3 + $0x2c] sm:$0xf]
    %v1133 = vunpack.c.l.b16 %v1125
    %v1134 = vunpack.c.l.b16 %v1126
    %v1135 = vunpack.c.l.b16 %v1127
    %v1136 = vunpack.c.l.b16 %v1128
    %v1137 = vpack.c.b16 %v1134, %v1133
    %v1138 = vpack.c.b16 %v1136, %v1135
    %v1142 = vsel %vm339, %v1124, 0
    %1144 = vmatprep.subr.bf16.mxu0 0
    %1145 = vmatpush1.bf16.msra.mxu0 %v1137
    %1146 = vmatprep.subr.bf16.mxu0 0
    %1147 = vmatpush1.bf16.msra.mxu0 %v1138
    %1148 = vmatprep.subr.bf16.mxu0 0
    %1149 = vmatpush1.bf16.msra.mxu0 0
    %1150 = vmatprep.subr.bf16.mxu0 0
    %1151 = vmatpush1.bf16.msra.mxu0 0
    %1152 = vmatprep.subr.bf16.mxu0 0
    %1153 = vmatpush1.bf16.msra.mxu0 0
    %1154 = vmatprep.subr.bf16.mxu0 0
    %1155 = vmatpush1.bf16.msra.mxu0 0
    %1156 = vmatprep.subr.bf16.mxu0 0
    %1157 = vmatpush1.bf16.msra.mxu0 0
    %1158 = vmatprep.subr.bf16.mxu0 0
    %1159 = vmatpush1.bf16.msra.mxu0 0
    %1160 = vmatprep.subr.bf16.mxu0 0
    %1161 = vmatpush1.bf16.msra.mxu0 0
    %1162 = vmatprep.subr.bf16.mxu0 0
    %1163 = vmatpush1.bf16.msra.mxu0 0
    %1164 = vmatprep.subr.bf16.mxu0 0
    %1165 = vmatpush1.bf16.msra.mxu0 0
    %1166 = vmatprep.subr.bf16.mxu0 0
    %1167 = vmatpush1.bf16.msra.mxu0 0
    %1168 = vmatprep.subr.bf16.mxu0 0
    %1169 = vmatpush1.bf16.msra.mxu0 0
    %1170 = vmatprep.subr.bf16.mxu0 0
    %1171 = vmatpush1.bf16.msra.mxu0 0
    %1172 = vmatprep.subr.bf16.mxu0 0
    %1173 = vmatpush1.bf16.msra.mxu0 0
    %1174 = vmatprep.subr.bf16.mxu0 0
    %1175 = vmatpush1.bf16.msra.mxu0 0
    %1176 = vmatprep.mubr.bf16.mxu0 0
    %1177 = vmatmul.mubr.bf16.gmra.mrb[0].mxu0 %v1142
    %v1178 = vpop.f32.mrb[0].mxu0
    %v1179 = vadd.f32 0.0, %v1178
    %v1180 = vpop.f32.mrb[0].mxu0
    %v1181 = vpop.f32.mrb[0].mxu0
    %v1182 = vadd.f32 0.0, %v1181
    %v1183 = vpop.f32.mrb[0].mxu0
    %1184 = vdwg.mxu0
    %v1185 = vadd.f32 %v896, %v1179
    %v1186 = vadd.f32 %v899, %v1182
    %1187 = vrot.lane.b32.xlu0 %v333, 32
    %v1188 = vpop.permute.xlu0 %1187
    %1189 = vrot.lane.b32.xlu0 %v335, 32
    %v1190 = vpop.permute.xlu0 %1189
    %v1192 = vsel %vm339, %v1188, 0
    %v1195 = vsel %vm339, %v1190, 0
    %1197 = vmatprep.subr.bf16.mxu0 0
    %1198 = vmatpush1.bf16.xpose.msra.mxu0 %v1195
    %1199 = vmatprep.subr.bf16.mxu0 0
    %1200 = vmatpush1.bf16.xpose.msra.mxu0 0
    %1201 = vmatprep.subr.bf16.mxu0 0
    %1202 = vmatpush1.bf16.xpose.msra.mxu0 0
    %1203 = vmatprep.subr.bf16.mxu0 0
    %1204 = vmatpush1.bf16.xpose.msra.mxu0 0
    %1205 = vmatprep.subr.bf16.mxu0 0
    %1206 = vmatpush1.bf16.xpose.msra.mxu0 0
    %1207 = vmatprep.subr.bf16.mxu0 0
    %1208 = vmatpush1.bf16.xpose.msra.mxu0 0
    %1209 = vmatprep.subr.bf16.mxu0 0
    %1210 = vmatpush1.bf16.xpose.msra.mxu0 0
    %1211 = vmatprep.subr.bf16.mxu0 0
    %1212 = vmatpush1.bf16.xpose.msra.mxu0 0
    %1213 = vmatprep.subr.bf16.mxu0 0
    %1214 = vmatpush1.bf16.xpose.msra.mxu0 0
    %1215 = vmatprep.subr.bf16.mxu0 0
    %1216 = vmatpush1.bf16.xpose.msra.mxu0 0
    %1217 = vmatprep.subr.bf16.mxu0 0
    %1218 = vmatpush1.bf16.xpose.msra.mxu0 0
    %1219 = vmatprep.subr.bf16.mxu0 0
    %1220 = vmatpush1.bf16.xpose.msra.mxu0 0
    %1221 = vmatprep.subr.bf16.mxu0 0
    %1222 = vmatpush1.bf16.xpose.msra.mxu0 0
    %1223 = vmatprep.subr.bf16.mxu0 0
    %1224 = vmatpush1.bf16.xpose.msra.mxu0 0
    %1225 = vmatprep.subr.bf16.mxu0 0
    %1226 = vmatpush1.bf16.xpose.msra.mxu0 0
    %1227 = vmatprep.subr.bf16.mxu0 0
    %1228 = vmatpush1.bf16.xpose.msra.mxu0 0
    %1229 = vmatprep.mubr.bf16.mxu0 0
    %1230 = vmatmul.mubr.bf16.gmra.mrb[0].mxu0 %v1192
    %v1231 = vpop.f32.mrb[0].mxu0
    %v1232 = vadd.f32 0.0, %v1231
    %v1233 = vpop.f32.mrb[0].mxu0
    %v1234 = vpop.f32.mrb[0].mxu0
    %v1235 = vpop.f32.mrb[0].mxu0
    %1236 = vdwg.mxu0
    %1237 = vrot.lane.b32.xlu0 %v334, 32
    %v1238 = vpop.permute.xlu0 %1237
    %1239 = vrot.lane.b32.xlu0 %v336, 32
    %v1240 = vpop.permute.xlu0 %1239
    %v1242 = vsel %vm339, %v1238, 0
    %v1245 = vsel %vm339, %v1240, 0
    %1247 = vmatprep.subr.bf16.mxu0 0
    %1248 = vmatpush1.bf16.xpose.msra.mxu0 %v1245
    %1249 = vmatprep.subr.bf16.mxu0 0
    %1250 = vmatpush1.bf16.xpose.msra.mxu0 0
    %1251 = vmatprep.subr.bf16.mxu0 0
    %1252 = vmatpush1.bf16.xpose.msra.mxu0 0
    %1253 = vmatprep.subr.bf16.mxu0 0
    %1254 = vmatpush1.bf16.xpose.msra.mxu0 0
    %1255 = vmatprep.subr.bf16.mxu0 0
    %1256 = vmatpush1.bf16.xpose.msra.mxu0 0
    %1257 = vmatprep.subr.bf16.mxu0 0
    %1258 = vmatpush1.bf16.xpose.msra.mxu0 0
    %1259 = vmatprep.subr.bf16.mxu0 0
    %1260 = vmatpush1.bf16.xpose.msra.mxu0 0
    %1261 = vmatprep.subr.bf16.mxu0 0
    %1262 = vmatpush1.bf16.xpose.msra.mxu0 0
    %1263 = vmatprep.subr.bf16.mxu0 0
    %1264 = vmatpush1.bf16.xpose.msra.mxu0 0
    %1265 = vmatprep.subr.bf16.mxu0 0
    %1266 = vmatpush1.bf16.xpose.msra.mxu0 0
    %1267 = vmatprep.subr.bf16.mxu0 0
    %1268 = vmatpush1.bf16.xpose.msra.mxu0 0
    %1269 = vmatprep.subr.bf16.mxu0 0
    %1270 = vmatpush1.bf16.xpose.msra.mxu0 0
    %1271 = vmatprep.subr.bf16.mxu0 0
    %1272 = vmatpush1.bf16.xpose.msra.mxu0 0
    %1273 = vmatprep.subr.bf16.mxu0 0
    %1274 = vmatpush1.bf16.xpose.msra.mxu0 0
    %1275 = vmatprep.subr.bf16.mxu0 0
    %1276 = vmatpush1.bf16.xpose.msra.mxu0 0
    %1277 = vmatprep.subr.bf16.mxu0 0
    %1278 = vmatpush1.bf16.xpose.msra.mxu0 0
    %1279 = vmatprep.mubr.bf16.mxu0 0
    %1280 = vmatmul.mubr.bf16.gmra.mrb[0].mxu0 %v1242
    %v1281 = vpop.f32.mrb[0].mxu0
    %v1282 = vadd.f32 0.0, %v1281
    %v1283 = vpop.f32.mrb[0].mxu0
    %v1284 = vpop.f32.mrb[0].mxu0
    %v1285 = vpop.f32.mrb[0].mxu0
    %1286 = vdwg.mxu0
    %v1287 = vmul.f32 %v1232, 0.17677669
    %v1288 = vmul.f32 %v1282, 0.17677669
    %v1289 = vsel %vm434, %v1287, -inf
    %1290 = vmax.xlane.f32.xlu0 %v1289
    %v1291 = vpop.xlane.xlu0 %1290
    %v1292 = vsel %vm434, %v1288, -inf
    %1293 = vmax.xlane.f32.xlu0 %v1292
    %v1294 = vpop.xlane.xlu0 %1293
    %v1295 = vsub.f32 %v1287, %v1291
    %v1296 = vsub.f32 %v1288, %v1294
    %v1297 = vmul.f32 %v1295, 1.442695
    %v1298 = vpow.pop %v1297
    %v1299 = vmul.f32 %v1296, 1.442695
    %v1300 = vpow.pop %v1299
    %v1301 = vsel %vm434, %v1298, 0.0
    %1302 = vadd.xlane.f32.xlu0 %v1301
    %v1303 = vpop.xlane.xlu0 %1302
    %v1304 = vsel %vm434, %v1300, 0.0
    %1305 = vadd.xlane.f32.xlu0 %v1304
    %v1306 = vpop.xlane.xlu0 %1305
    %v1307 = vrcp.pop %v1303
    %v1308 = vrcp.pop %v1306
    %v1309 = vmul.f32 %v1298, %v1307
    %v1310 = vmul.f32 %v1300, %v1308
    %v1311 = vpack.c.bf16 %v1309, %v1309
    %v1312 = vpack.c.bf16 %v1310, %v1310
    %1313 = vrot.lane.b32.xlu0 %v337, 32
    %v1314 = vpop.permute.xlu0 %1313
    %v1316 = vsel %vm434, %v1311, 0
    %v1319 = vsel %vm462, %v1314, 0
    %1321 = vmatprep.subr.bf16.mxu0 0
    %1322 = vmatpush1.bf16.msra.mxu0 %v1319
    %1323 = vmatprep.subr.bf16.mxu0 0
    %1324 = vmatpush1.bf16.msra.mxu0 0
    %1325 = vmatprep.subr.bf16.mxu0 0
    %1326 = vmatpush1.bf16.msra.mxu0 0
    %1327 = vmatprep.subr.bf16.mxu0 0
    %1328 = vmatpush1.bf16.msra.mxu0 0
    %1329 = vmatprep.subr.bf16.mxu0 0
    %1330 = vmatpush1.bf16.msra.mxu0 0
    %1331 = vmatprep.subr.bf16.mxu0 0
    %1332 = vmatpush1.bf16.msra.mxu0 0
    %1333 = vmatprep.subr.bf16.mxu0 0
    %1334 = vmatpush1.bf16.msra.mxu0 0
    %1335 = vmatprep.subr.bf16.mxu0 0
    %1336 = vmatpush1.bf16.msra.mxu0 0
    %1337 = vmatprep.subr.bf16.mxu0 0
    %1338 = vmatpush1.bf16.msra.mxu0 0
    %1339 = vmatprep.subr.bf16.mxu0 0
    %1340 = vmatpush1.bf16.msra.mxu0 0
    %1341 = vmatprep.subr.bf16.mxu0 0
    %1342 = vmatpush1.bf16.msra.mxu0 0
    %1343 = vmatprep.subr.bf16.mxu0 0
    %1344 = vmatpush1.bf16.msra.mxu0 0
    %1345 = vmatprep.subr.bf16.mxu0 0
    %1346 = vmatpush1.bf16.msra.mxu0 0
    %1347 = vmatprep.subr.bf16.mxu0 0
    %1348 = vmatpush1.bf16.msra.mxu0 0
    %1349 = vmatprep.subr.bf16.mxu0 0
    %1350 = vmatpush1.bf16.msra.mxu0 0
    %1351 = vmatprep.subr.bf16.mxu0 0
    %1352 = vmatpush1.bf16.msra.mxu0 0
    %1353 = vmatprep.mubr.bf16.mxu0 0
    %1354 = vmatmul.mubr.bf16.gmra.mrb[0].mxu0 %v1316
    %v1355 = vpop.f32.mrb[0].mxu0
    %v1356 = vadd.f32 0.0, %v1355
    %v1357 = vpop.f32.mrb[0].mxu0
    %v1358 = vpop.f32.mrb[0].mxu0
    %v1359 = vpop.f32.mrb[0].mxu0
    %1360 = vdwg.mxu0
    %1361 = vrot.lane.b32.xlu0 %v338, 32
    %v1362 = vpop.permute.xlu0 %1361
    %v1364 = vsel %vm434, %v1312, 0
    %v1367 = vsel %vm462, %v1362, 0
    %1369 = vmatprep.subr.bf16.mxu0 0
    %1370 = vmatpush1.bf16.msra.mxu0 %v1367
    %1371 = vmatprep.subr.bf16.mxu0 0
    %1372 = vmatpush1.bf16.msra.mxu0 0
    %1373 = vmatprep.subr.bf16.mxu0 0
    %1374 = vmatpush1.bf16.msra.mxu0 0
    %1375 = vmatprep.subr.bf16.mxu0 0
    %1376 = vmatpush1.bf16.msra.mxu0 0
    %1377 = vmatprep.subr.bf16.mxu0 0
    %1378 = vmatpush1.bf16.msra.mxu0 0
    %1379 = vmatprep.subr.bf16.mxu0 0
    %1380 = vmatpush1.bf16.msra.mxu0 0
    %1381 = vmatprep.subr.bf16.mxu0 0
    %1382 = vmatpush1.bf16.msra.mxu0 0
    %1383 = vmatprep.subr.bf16.mxu0 0
    %1384 = vmatpush1.bf16.msra.mxu0 0
    %1385 = vmatprep.subr.bf16.mxu0 0
    %1386 = vmatpush1.bf16.msra.mxu0 0
    %1387 = vmatprep.subr.bf16.mxu0 0
    %1388 = vmatpush1.bf16.msra.mxu0 0
    %1389 = vmatprep.subr.bf16.mxu0 0
    %1390 = vmatpush1.bf16.msra.mxu0 0
    %1391 = vmatprep.subr.bf16.mxu0 0
    %1392 = vmatpush1.bf16.msra.mxu0 0
    %1393 = vmatprep.subr.bf16.mxu0 0
    %1394 = vmatpush1.bf16.msra.mxu0 0
    %1395 = vmatprep.subr.bf16.mxu0 0
    %1396 = vmatpush1.bf16.msra.mxu0 0
    %1397 = vmatprep.subr.bf16.mxu0 0
    %1398 = vmatpush1.bf16.msra.mxu0 0
    %1399 = vmatprep.subr.bf16.mxu0 0
    %1400 = vmatpush1.bf16.msra.mxu0 0
    %1401 = vmatprep.mubr.bf16.mxu0 0
    %1402 = vmatmul.mubr.bf16.gmra.mrb[0].mxu0 %v1364
    %v1403 = vpop.f32.mrb[0].mxu0
    %v1404 = vadd.f32 0.0, %v1403
    %v1405 = vpop.f32.mrb[0].mxu0
    %v1406 = vpop.f32.mrb[0].mxu0
    %v1407 = vpop.f32.mrb[0].mxu0
    %1408 = vdwg.mxu0
    %v1409 = vpack.c.bf16 %v1404, %v1356
    %v1410 = vld [vmem:[%s3 + $0x30] sm:$0xf]
    %v1411 = vld [vmem:[%s3 + $0x34] sm:$0xf]
    %v1412 = vld [vmem:[%s3 + $0x38] sm:$0xf]
    %v1413 = vld [vmem:[%s3 + $0x3c] sm:$0xf]
    %v1418 = vunpack.c.l.b16 %v1410
    %v1419 = vunpack.c.l.b16 %v1411
    %v1420 = vunpack.c.l.b16 %v1412
    %v1421 = vunpack.c.l.b16 %v1413
    %v1422 = vpack.c.b16 %v1419, %v1418
    %v1423 = vpack.c.b16 %v1421, %v1420
    %v1427 = vsel %vm339, %v1409, 0
    %1429 = vmatprep.subr.bf16.mxu0 0
    %1430 = vmatpush1.bf16.msra.mxu0 %v1422
    %1431 = vmatprep.subr.bf16.mxu0 0
    %1432 = vmatpush1.bf16.msra.mxu0 %v1423
    %1433 = vmatprep.subr.bf16.mxu0 0
    %1434 = vmatpush1.bf16.msra.mxu0 0
    %1435 = vmatprep.subr.bf16.mxu0 0
    %1436 = vmatpush1.bf16.msra.mxu0 0
    %1437 = vmatprep.subr.bf16.mxu0 0
    %1438 = vmatpush1.bf16.msra.mxu0 0
    %1439 = vmatprep.subr.bf16.mxu0 0
    %1440 = vmatpush1.bf16.msra.mxu0 0
    %1441 = vmatprep.subr.bf16.mxu0 0
    %1442 = vmatpush1.bf16.msra.mxu0 0
    %1443 = vmatprep.subr.bf16.mxu0 0
    %1444 = vmatpush1.bf16.msra.mxu0 0
    %1445 = vmatprep.subr.bf16.mxu0 0
    %1446 = vmatpush1.bf16.msra.mxu0 0
    %1447 = vmatprep.subr.bf16.mxu0 0
    %1448 = vmatpush1.bf16.msra.mxu0 0
    %1449 = vmatprep.subr.bf16.mxu0 0
    %1450 = vmatpush1.bf16.msra.mxu0 0
    %1451 = vmatprep.subr.bf16.mxu0 0
    %1452 = vmatpush1.bf16.msra.mxu0 0
    %1453 = vmatprep.subr.bf16.mxu0 0
    %1454 = vmatpush1.bf16.msra.mxu0 0
    %1455 = vmatprep.subr.bf16.mxu0 0
    %1456 = vmatpush1.bf16.msra.mxu0 0
    %1457 = vmatprep.subr.bf16.mxu0 0
    %1458 = vmatpush1.bf16.msra.mxu0 0
    %1459 = vmatprep.subr.bf16.mxu0 0
    %1460 = vmatpush1.bf16.msra.mxu0 0
    %1461 = vmatprep.mubr.bf16.mxu0 0
    %1462 = vmatmul.mubr.bf16.gmra.mrb[0].mxu0 %v1427
    %v1463 = vpop.f32.mrb[0].mxu0
    %v1464 = vadd.f32 0.0, %v1463
    %v1465 = vpop.f32.mrb[0].mxu0
    %v1466 = vpop.f32.mrb[0].mxu0
    %v1467 = vadd.f32 0.0, %v1466
    %v1468 = vpop.f32.mrb[0].mxu0
    %1469 = vdwg.mxu0
    %v1470 = vadd.f32 %v1185, %v1464
    %v1471 = vadd.f32 %v1186, %v1467
    %v1472 = vld [vmem:[#allocation2] sm:$0x1]
    %v1474 = vlaneseq
    %v1475 = vshrl.u32 %v1474, 7
    %v1476 = vsub.s32 0, %v1475
    %v1477 = vrot.slane %v1472, %v1476
    %v1479 = vadd.f32 %v1470, %v1477
    %v1480 = vadd.f32 %v1471, %v1477
    %v1481 = vadd.f32 %v64, %v1479
    %v1482 = vadd.f32 %v65, %v1480
    %1483 = vadd.xlane.f32.xlu0 %v1481
    %v1484 = vpop.xlane.xlu0 %1483
    %1485 = vadd.xlane.f32.xlu0 %v1482
    %v1486 = vpop.xlane.xlu0 %1485
    %v1487 = vrcp.pop 128.0
    %v1488 = vmul.f32 %v1484, %v1487
    %v1489 = vmul.f32 %v1486, %v1487
    %v1490 = vsub.f32 %v1481, %v1488
    %v1491 = vsub.f32 %v1482, %v1489
    %v1492 = vmul.f32 %v1490, %v1490
    %v1493 = vmul.f32 %v1491, %v1491
    %1494 = vadd.xlane.f32.xlu0 %v1492
    %v1495 = vpop.xlane.xlu0 %1494
    %1496 = vadd.xlane.f32.xlu0 %v1493
    %v1497 = vpop.xlane.xlu0 %1496
    %v1498 = vmul.f32 %v1495, %v1487
    %v1499 = vmul.f32 %v1497, %v1487
    %v1500 = vadd.f32 %v1498, 1e-05
    %v1501 = vadd.f32 %v1499, 1e-05
    %v1502 = vrsqrt.pop %v1500
    %v1503 = vrsqrt.pop %v1501
    %v1504 = vmul.f32 %v1490, %v1502
    %v1505 = vmul.f32 %v1491, %v1503
    %v1506 = vld [vmem:[#allocation4] sm:$0x1]
    %v1508 = vlaneseq
    %v1509 = vshrl.u32 %v1508, 7
    %v1510 = vsub.s32 0, %v1509
    %v1511 = vrot.slane %v1506, %v1510
    %v1513 = vmul.f32 %v1504, %v1511
    %v1514 = vmul.f32 %v1505, %v1511
    %v1515 = vld [vmem:[#allocation6] sm:$0x1]
    %v1517 = vlaneseq
    %v1518 = vshrl.u32 %v1517, 7
    %v1519 = vsub.s32 0, %v1518
    %v1520 = vrot.slane %v1515, %v1519
    %v1522 = vadd.f32 %v1513, %v1520
    %v1523 = vadd.f32 %v1514, %v1520
    %v1524 = vpack.c.bf16 %v1523, %v1522
    %v1526 = vunpack.c.l.b16 %v1524
    %v1527 = vunpack.c.h.b16 %v1524
    %v1528 = vpack.c.b16 %v1526, %v1526
    %v1529 = vpack.c.b16 %v1527, %v1527
    %1532 = vst [vmem:[%s7] sm:$0xf] %v1528
    %1533 = vst [vmem:[%s7 + $0x4] sm:$0xf] %v1529
    // Predicated region
    $region42: #{forward.7} parent=1 // pred_check
      _
    $region43: #{forward.7} parent=1 // pred_check_branch
      %1535 = sbr.rel (0) target = $region45
    $region44: #{forward.7} parent=1 // pred_region
      _
    $region45: #{forward.7} parent=1 // pred_fallthru
      _
    // Predicated region
    $region46: #{forward.7} parent=1 // pred_check
      _
    $region47: #{forward.7} parent=1 // pred_check_branch
      %1537 = sbr.rel (0) target = $region49
    $region48: #{forward.7} parent=1 // pred_region
      _
    $region49: #{forward.7} parent=1 // pred_fallthru
      _
    %1538 = vsyncpa [#allocation3], 1
    %1539 = vsyncpa [#allocation5], 1

// kernel: forward.9
$region0: #{forward.9}
  #allocation0 [shape = 'u32[]', space=smem, size = 0x4, offset = 0x4, fixed_abs, tag = 'smem constant byte address 0x4 - core index']
  #allocation1 [shape = 'u32[144,128]{1,0:T(1,128)}', space=vmem, size = 0x12000, scoped, tag = 'internal scratch']
  %s0 = inlined_call_operand.vmem [shape: bf16[16,128], index: 0, kind: input, shape index: {}]
  %s1 = inlined_call_operand.vmem [shape: bf16[128,384], index: 1, kind: input, shape index: {}]
  %s2 = inlined_call_operand.vmem [shape: f32[1,384], index: 2, kind: input, shape index: {}]
  %s3 = inlined_call_operand.hbm [shape: bf16[128,128], index: 3, kind: input, shape index: {}]
  %s4 = inlined_call_operand.hbm [shape: f32[1,128], index: 4, kind: input, shape index: {}]
  %s5 = inlined_call_operand.hbm [shape: f32[1,128], index: 5, kind: input, shape index: {}]
  %s6 = inlined_call_operand.hbm [shape: f32[1,128], index: 6, kind: input, shape index: {}]
  %s7 = inlined_call_operand.vmem [shape: bf16[16,128], index: 7, kind: output, shape index: {}]
  %s8 = sld [smem:[#allocation0]]
  $region54: #{forward.9} parent=0
    _
  %s10 = ssub.s32 1, %s8
  %s11 = scalar_select 0, %s10, %s8
  $region1: #{forward.9} parent=0
    #allocation2 [shape = 'u8[32768]{0}', space=vmem, size = 0x8000, scoped, tag = 'input window, operand 3, single buffered']
    #allocation3 [shape = 's32[1]{0}', space=sflag, size = 0x4, scoped, tag = 'scoped memory for forward.9']
    #allocation4 [shape = 'u8[512]{0}', space=vmem, size = 0x400, scoped, tag = 'input window, operand 4, single buffered']
    #allocation5 [shape = 's32[1]{0}', space=sflag, size = 0x4, scoped, tag = 'scoped memory for forward.9']
    #allocation6 [shape = 'u8[512]{0}', space=vmem, size = 0x400, scoped, tag = 'input window, operand 5, single buffered']
    #allocation7 [shape = 'u8[512]{0}', space=vmem, size = 0x400, scoped, tag = 'input window, operand 6, single buffered']
    #allocation8 [shape = 's32[1]{0}', space=sflag, size = 0x4, scoped, tag = 'scoped memory for forward.9']
    %12 = vsyncpa [#allocation3], 0
    %13 = vsyncpa [#allocation5], 0
    %14 = vsyncpa [#allocation8], 0
    // Predicated region
    $region2: #{forward.9} parent=1 // pred_check
      _
    $region3: #{forward.9} parent=1 // pred_check_branch
      %16 = sbr.rel (0) target = $region5
    $region4: #{forward.9} parent=1 // pred_region
      _
    $region5: #{forward.9} parent=1 // pred_fallthru
      _
    // Predicated region
    $region6: #{forward.9} parent=1 // pred_check
      _
    $region7: #{forward.9} parent=1 // pred_check_branch
      %18 = sbr.rel (0) target = $region9
    $region8: #{forward.9} parent=1 // pred_region
      _
    $region9: #{forward.9} parent=1 // pred_fallthru
      _
    // Predicated region
    $region10: #{forward.9} parent=1 // pred_check
      _
    $region11: #{forward.9} parent=1 // pred_check_branch
      %20 = sbr.rel (0) target = $region13
    $region12: #{forward.9} parent=1 // pred_region
      _
    $region13: #{forward.9} parent=1 // pred_fallthru
      _
    // Predicated region
    $region14: #{forward.9} parent=1 // pred_check
      _
    $region15: #{forward.9} parent=1 // pred_check_branch
      %22 = sbr.rel (0) target = $region17
    $region16: #{forward.9} parent=1 // pred_region
      %s24 = ssub.s32 1024, 1024
      %25 = vsyncadd [#allocation3], %s24
      %s26 = sshll.u32 [#allocation2], 4
      %s27 = int_to_ptr.vmem [resolvable:$true] %s26
      %32 = dma.hbm_to_vmem [thread:$0]  %s3, 1024, %s27, [#allocation3], 64, 64, 4
    $region17: #{forward.9} parent=1 // pred_fallthru
      _
    // Predicated region
    $region18: #{forward.9} parent=1 // pred_check
      _
    $region19: #{forward.9} parent=1 // pred_check_branch
      %34 = sbr.rel (0) target = $region21
    $region20: #{forward.9} parent=1 // pred_region
      %s36 = ssub.s32 16, 16
      %37 = vsyncadd [#allocation5], %s36
      %s39 = sshll.u32 [#allocation4], 4
      %s40 = int_to_ptr.vmem [resolvable:$true] %s39
      %42 = dma.hbm_to_vmem [thread:$0]  %s4, 16, %s40, [#allocation5]
    $region21: #{forward.9} parent=1 // pred_fallthru
      _
    // Predicated region
    $region22: #{forward.9} parent=1 // pred_check
      _
    $region23: #{forward.9} parent=1 // pred_check_branch
      %44 = sbr.rel (0) target = $region25
    $region24: #{forward.9} parent=1 // pred_region
      %s46 = ssub.s32 16, 16
      %47 = vsyncadd [#allocation5], %s46
      %s49 = sshll.u32 [#allocation6], 4
      %s50 = int_to_ptr.vmem [resolvable:$true] %s49
      %52 = dma.hbm_to_vmem [thread:$0]  %s5, 16, %s50, [#allocation5]
    $region25: #{forward.9} parent=1 // pred_fallthru
      _
    // Predicated region
    $region26: #{forward.9} parent=1 // pred_check
      _
    $region27: #{forward.9} parent=1 // pred_check_branch
      %54 = sbr.rel (0) target = $region29
    $region28: #{forward.9} parent=1 // pred_region
      %s56 = ssub.s32 16, 16
      %57 = vsyncadd [#allocation8], %s56
      %s59 = sshll.u32 [#allocation7], 4
      %s60 = int_to_ptr.vmem [resolvable:$true] %s59
      %62 = dma.hbm_to_vmem [thread:$0]  %s6, 16, %s60, [#allocation8]
    $region29: #{forward.9} parent=1 // pred_fallthru
      _
    // Predicated region
    $region30: #{forward.9} parent=1 // pred_check
      _
    $region31: #{forward.9} parent=1 // pred_check_branch
      %64 = sbr.rel (0) target = $region33
    $region32: #{forward.9} parent=1 // pred_region
      %65 = dma.done [#allocation3], 1024
    $region33: #{forward.9} parent=1 // pred_fallthru
      _
    // Predicated region
    $region34: #{forward.9} parent=1 // pred_check
      _
    $region35: #{forward.9} parent=1 // pred_check_branch
      %67 = sbr.rel (0) target = $region37
    $region36: #{forward.9} parent=1 // pred_region
      %68 = dma.done [#allocation5], 16
    $region37: #{forward.9} parent=1 // pred_fallthru
      _
    // Predicated region
    $region38: #{forward.9} parent=1 // pred_check
      _
    $region39: #{forward.9} parent=1 // pred_check_branch
      %70 = sbr.rel (0) target = $region41
    $region40: #{forward.9} parent=1 // pred_region
      %71 = dma.done [#allocation5], 16
    $region41: #{forward.9} parent=1 // pred_fallthru
      _
    // Predicated region
    $region42: #{forward.9} parent=1 // pred_check
      _
    $region43: #{forward.9} parent=1 // pred_check_branch
      %73 = sbr.rel (0) target = $region45
    $region44: #{forward.9} parent=1 // pred_region
      %74 = dma.done [#allocation8], 16
    $region45: #{forward.9} parent=1 // pred_fallthru
      _
    %v76 = vld [vmem:[%s0] sm:$0xf]
    %v77 = vld [vmem:[%s0 + $0x4] sm:$0xf]
    %v78 = vunpack.c.l.bf16 %v76
    %v79 = vunpack.c.l.bf16 %v77
    %v80 = vld [vmem:[%s1] sm:$0xff]
    %v81 = vld [vmem:[%s1 + $0x8] sm:$0xf]
    %v82 = vld [vmem:[%s1 + $0xc] sm:$0xff]
    %v83 = vld [vmem:[%s1 + $0x14] sm:$0xf]
    %v84 = vld [vmem:[%s1 + $0x18] sm:$0xff]
    %v85 = vld [vmem:[%s1 + $0x20] sm:$0xf]
    %v86 = vld [vmem:[%s1 + $0x24] sm:$0xff]
    %v87 = vld [vmem:[%s1 + $0x2c] sm:$0xf]
    %v88 = vld [vmem:[%s1 + $0x30] sm:$0xff]
    %v89 = vld [vmem:[%s1 + $0x38] sm:$0xf]
    %v90 = vld [vmem:[%s1 + $0x3c] sm:$0xff]
    %v91 = vld [vmem:[%s1 + $0x44] sm:$0xf]
    %v92 = vld [vmem:[%s1 + $0x48] sm:$0xff]
    %v93 = vld [vmem:[%s1 + $0x50] sm:$0xf]
    %v94 = vld [vmem:[%s1 + $0x54] sm:$0xff]
    %v95 = vld [vmem:[%s1 + $0x5c] sm:$0xf]
    %v96 = vld [vmem:[%s1 + $0x60] sm:$0xff]
    %v97 = vld [vmem:[%s1 + $0x68] sm:$0xf]
    %v98 = vld [vmem:[%s1 + $0x6c] sm:$0xff]
    %v99 = vld [vmem:[%s1 + $0x74] sm:$0xf]
    %v100 = vld [vmem:[%s1 + $0x78] sm:$0xff]
    %v101 = vld [vmem:[%s1 + $0x80] sm:$0xf]
    %v102 = vld [vmem:[%s1 + $0x84] sm:$0xff]
    %v103 = vld [vmem:[%s1 + $0x8c] sm:$0xf]
    %v104 = vld [vmem:[%s1 + $0x90] sm:$0xff]
    %v105 = vld [vmem:[%s1 + $0x98] sm:$0xf]
    %v106 = vld [vmem:[%s1 + $0x9c] sm:$0xff]
    %v107 = vld [vmem:[%s1 + $0xa4] sm:$0xf]
    %v108 = vld [vmem:[%s1 + $0xa8] sm:$0xff]
    %v109 = vld [vmem:[%s1 + $0xb0] sm:$0xf]
    %v110 = vld [vmem:[%s1 + $0xb4] sm:$0xff]
    %v111 = vld [vmem:[%s1 + $0xbc] sm:$0xf]
    %v112 = vld [vmem:[%s2] sm:$0x7]
    %v114 = vlaneseq
    %v115 = vshrl.u32 %v114, 7
    %v116 = vsub.s32 0, %v115
    %v117 = vrot.slane %v112, %v116
    %v118 = vlaneseq
    %v119 = vshrl.u32 %v118, 7
    %v120 = vsub.s32 1, %v119
    %v121 = vrot.slane %v112, %v120
    %v122 = vlaneseq
    %v123 = vshrl.u32 %v122, 7
    %v124 = vsub.s32 2, %v123
    %v125 = vrot.slane %v112, %v124
    %v131 = vunpack.c.l.b16 %v76
    %v132 = vunpack.c.l.b16 %v77
    %v133 = vpack.c.b16 %v132, %v131
    %v167 = vunpack.c.l.b16 %v80
    %v168 = vunpack.c.h.b16 %v80
    %v169 = vunpack.c.l.b16 %v81
    %v170 = vunpack.c.l.b16 %v82
    %v171 = vunpack.c.h.b16 %v82
    %v172 = vunpack.c.l.b16 %v83
    %v173 = vunpack.c.l.b16 %v84
    %v174 = vunpack.c.h.b16 %v84
    %v175 = vunpack.c.l.b16 %v85
    %v176 = vunpack.c.l.b16 %v86
    %v177 = vunpack.c.h.b16 %v86
    %v178 = vunpack.c.l.b16 %v87
    %v179 = vunpack.c.l.b16 %v88
    %v180 = vunpack.c.h.b16 %v88
    %v181 = vunpack.c.l.b16 %v89
    %v182 = vunpack.c.l.b16 %v90
    %v183 = vunpack.c.h.b16 %v90
    %v184 = vunpack.c.l.b16 %v91
    %v185 = vunpack.c.l.b16 %v92
    %v186 = vunpack.c.h.b16 %v92
    %v187 = vunpack.c.l.b16 %v93
    %v188 = vunpack.c.l.b16 %v94
    %v189 = vunpack.c.h.b16 %v94
    %v190 = vunpack.c.l.b16 %v95
    %v191 = vunpack.c.l.b16 %v96
    %v192 = vunpack.c.h.b16 %v96
    %v193 = vunpack.c.l.b16 %v97
    %v194 = vunpack.c.l.b16 %v98
    %v195 = vunpack.c.h.b16 %v98
    %v196 = vunpack.c.l.b16 %v99
    %v197 = vunpack.c.l.b16 %v100
    %v198 = vunpack.c.h.b16 %v100
    %v199 = vunpack.c.l.b16 %v101
    %v200 = vunpack.c.l.b16 %v102
    %v201 = vunpack.c.h.b16 %v102
    %v202 = vunpack.c.l.b16 %v103
    %v203 = vunpack.c.l.b16 %v104
    %v204 = vunpack.c.h.b16 %v104
    %v205 = vunpack.c.l.b16 %v105
    %v206 = vunpack.c.l.b16 %v106
    %v207 = vunpack.c.h.b16 %v106
    %v208 = vunpack.c.l.b16 %v107
    %v209 = vunpack.c.l.b16 %v108
    %v210 = vunpack.c.h.b16 %v108
    %v211 = vunpack.c.l.b16 %v109
    %v212 = vunpack.c.l.b16 %v110
    %v213 = vunpack.c.h.b16 %v110
    %v214 = vunpack.c.l.b16 %v111
    %v215 = vpack.c.b16 %v170, %v167
    %v216 = vpack.c.b16 %v171, %v168
    %v217 = vpack.c.b16 %v172, %v169
    %v218 = vpack.c.b16 %v176, %v173
    %v219 = vpack.c.b16 %v177, %v174
    %v220 = vpack.c.b16 %v178, %v175
    %v221 = vpack.c.b16 %v182, %v179
    %v222 = vpack.c.b16 %v183, %v180
    %v223 = vpack.c.b16 %v184, %v181
    %v224 = vpack.c.b16 %v188, %v185
    %v225 = vpack.c.b16 %v189, %v186
    %v226 = vpack.c.b16 %v190, %v187
    %v227 = vpack.c.b16 %v194, %v191
    %v228 = vpack.c.b16 %v195, %v192
    %v229 = vpack.c.b16 %v196, %v193
    %v230 = vpack.c.b16 %v200, %v197
    %v231 = vpack.c.b16 %v201, %v198
    %v232 = vpack.c.b16 %v202, %v199
    %v233 = vpack.c.b16 %v206, %v203
    %v234 = vpack.c.b16 %v207, %v204
    %v235 = vpack.c.b16 %v208, %v205
    %v236 = vpack.c.b16 %v212, %v209
    %v237 = vpack.c.b16 %v213, %v210
    %v238 = vpack.c.b16 %v214, %v211
    %263 = vmatprep.subr.bf16.mxu0 %v216
    %264 = vmatpush1.bf16.msra.mxu0 %v215
    %265 = vmatprep.subr.bf16.mxu0 %v219
    %266 = vmatpush1.bf16.msra.mxu0 %v218
    %267 = vmatprep.subr.bf16.mxu0 %v222
    %268 = vmatpush1.bf16.msra.mxu0 %v221
    %269 = vmatprep.subr.bf16.mxu0 %v225
    %270 = vmatpush1.bf16.msra.mxu0 %v224
    %271 = vmatprep.subr.bf16.mxu0 %v228
    %272 = vmatpush1.bf16.msra.mxu0 %v227
    %273 = vmatprep.subr.bf16.mxu0 %v231
    %274 = vmatpush1.bf16.msra.mxu0 %v230
    %275 = vmatprep.subr.bf16.mxu0 %v234
    %276 = vmatpush1.bf16.msra.mxu0 %v233
    %277 = vmatprep.subr.bf16.mxu0 %v237
    %278 = vmatpush1.bf16.msra.mxu0 %v236
    %279 = vmatprep.subr.bf16.mxu0 0
    %280 = vmatpush1.bf16.msra.mxu0 0
    %281 = vmatprep.subr.bf16.mxu0 0
    %282 = vmatpush1.bf16.msra.mxu0 0
    %283 = vmatprep.subr.bf16.mxu0 0
    %284 = vmatpush1.bf16.msra.mxu0 0
    %285 = vmatprep.subr.bf16.mxu0 0
    %286 = vmatpush1.bf16.msra.mxu0 0
    %287 = vmatprep.subr.bf16.mxu0 0
    %288 = vmatpush1.bf16.msra.mxu0 0
    %289 = vmatprep.subr.bf16.mxu0 0
    %290 = vmatpush1.bf16.msra.mxu0 0
    %291 = vmatprep.subr.bf16.mxu0 0
    %292 = vmatpush1.bf16.msra.mxu0 0
    %293 = vmatprep.subr.bf16.mxu0 0
    %294 = vmatpush1.bf16.msra.mxu0 0
    %295 = vmatprep.mubr.bf16.mxu0 0
    %296 = vmatmul.mubr.bf16.gmra.mrb[0].mxu0 %v133
    %v297 = vpop.f32.mrb[0].mxu0
    %v298 = vadd.f32 %v117, %v297
    %v299 = vpop.f32.mrb[0].mxu0
    %v300 = vadd.f32 %v121, %v299
    %v301 = vpop.f32.mrb[0].mxu0
    %v302 = vadd.f32 %v117, %v301
    %v303 = vpop.f32.mrb[0].mxu0
    %v304 = vadd.f32 %v121, %v303
    %305 = vdwg.mxu0
    %306 = vmatprep.subr.bf16.mxu0 0
    %307 = vmatpush1.bf16.msra.mxu0 %v217
    %308 = vmatprep.subr.bf16.mxu0 0
    %309 = vmatpush1.bf16.msra.mxu0 %v220
    %310 = vmatprep.subr.bf16.mxu0 0
    %311 = vmatpush1.bf16.msra.mxu0 %v223
    %312 = vmatprep.subr.bf16.mxu0 0
    %313 = vmatpush1.bf16.msra.mxu0 %v226
    %314 = vmatprep.subr.bf16.mxu0 0
    %315 = vmatpush1.bf16.msra.mxu0 %v229
    %316 = vmatprep.subr.bf16.mxu0 0
    %317 = vmatpush1.bf16.msra.mxu0 %v232
    %318 = vmatprep.subr.bf16.mxu0 0
    %319 = vmatpush1.bf16.msra.mxu0 %v235
    %320 = vmatprep.subr.bf16.mxu0 0
    %321 = vmatpush1.bf16.msra.mxu0 %v238
    %322 = vmatprep.subr.bf16.mxu0 0
    %323 = vmatpush1.bf16.msra.mxu0 0
    %324 = vmatprep.subr.bf16.mxu0 0
    %325 = vmatpush1.bf16.msra.mxu0 0
    %326 = vmatprep.subr.bf16.mxu0 0
    %327 = vmatpush1.bf16.msra.mxu0 0
    %328 = vmatprep.subr.bf16.mxu0 0
    %329 = vmatpush1.bf16.msra.mxu0 0
    %330 = vmatprep.subr.bf16.mxu0 0
    %331 = vmatpush1.bf16.msra.mxu0 0
    %332 = vmatprep.subr.bf16.mxu0 0
    %333 = vmatpush1.bf16.msra.mxu0 0
    %334 = vmatprep.subr.bf16.mxu0 0
    %335 = vmatpush1.bf16.msra.mxu0 0
    %336 = vmatprep.subr.bf16.mxu0 0
    %337 = vmatpush1.bf16.msra.mxu0 0
    %338 = vmatprep.mubr.bf16.mxu0 0
    %339 = vmatmul.mubr.bf16.gmra.mrb[0].mxu0 %v133
    %v340 = vpop.f32.mrb[0].mxu0
    %v341 = vadd.f32 %v125, %v340
    %v342 = vpop.f32.mrb[0].mxu0
    %v343 = vpop.f32.mrb[0].mxu0
    %v344 = vadd.f32 %v125, %v343
    %v345 = vpop.f32.mrb[0].mxu0
    %346 = vdwg.mxu0
    %v347 = vpack.c.bf16 %v298, %v298
    %v348 = vpack.c.bf16 %v302, %v302
    %v349 = vpack.c.bf16 %v300, %v300
    %v350 = vpack.c.bf16 %v304, %v304
    %v351 = vpack.c.bf16 %v341, %v341
    %v352 = vpack.c.bf16 %v344, %v344
    %vm353 = vcmask 261120
    %v355 = vsel %vm353, %v347, 0
    %v358 = vsel %vm353, %v349, 0
    %360 = vmatprep.subr.bf16.mxu0 0
    %361 = vmatpush1.bf16.xpose.msra.mxu0 %v358
    %362 = vmatprep.subr.bf16.mxu0 0
    %363 = vmatpush1.bf16.xpose.msra.mxu0 0
    %364 = vmatprep.subr.bf16.mxu0 0
    %365 = vmatpush1.bf16.xpose.msra.mxu0 0
    %366 = vmatprep.subr.bf16.mxu0 0
    %367 = vmatpush1.bf16.xpose.msra.mxu0 0
    %368 = vmatprep.subr.bf16.mxu0 0
    %369 = vmatpush1.bf16.xpose.msra.mxu0 0
    %370 = vmatprep.subr.bf16.mxu0 0
    %371 = vmatpush1.bf16.xpose.msra.mxu0 0
    %372 = vmatprep.subr.bf16.mxu0 0
    %373 = vmatpush1.bf16.xpose.msra.mxu0 0
    %374 = vmatprep.subr.bf16.mxu0 0
    %375 = vmatpush1.bf16.xpose.msra.mxu0 0
    %376 = vmatprep.subr.bf16.mxu0 0
    %377 = vmatpush1.bf16.xpose.msra.mxu0 0
    %378 = vmatprep.subr.bf16.mxu0 0
    %379 = vmatpush1.bf16.xpose.msra.mxu0 0
    %380 = vmatprep.subr.bf16.mxu0 0
    %381 = vmatpush1.bf16.xpose.msra.mxu0 0
    %382 = vmatprep.subr.bf16.mxu0 0
    %383 = vmatpush1.bf16.xpose.msra.mxu0 0
    %384 = vmatprep.subr.bf16.mxu0 0
    %385 = vmatpush1.bf16.xpose.msra.mxu0 0
    %386 = vmatprep.subr.bf16.mxu0 0
    %387 = vmatpush1.bf16.xpose.msra.mxu0 0
    %388 = vmatprep.subr.bf16.mxu0 0
    %389 = vmatpush1.bf16.xpose.msra.mxu0 0
    %390 = vmatprep.subr.bf16.mxu0 0
    %391 = vmatpush1.bf16.xpose.msra.mxu0 0
    %392 = vmatprep.mubr.bf16.mxu0 0
    %393 = vmatmul.mubr.bf16.gmra.mrb[0].mxu0 %v355
    %v394 = vpop.f32.mrb[0].mxu0
    %v395 = vadd.f32 0.0, %v394
    %v396 = vpop.f32.mrb[0].mxu0
    %v397 = vpop.f32.mrb[0].mxu0
    %v398 = vpop.f32.mrb[0].mxu0
    %399 = vdwg.mxu0
    %v401 = vsel %vm353, %v348, 0
    %v404 = vsel %vm353, %v350, 0
    %406 = vmatprep.subr.bf16.mxu0 0
    %407 = vmatpush1.bf16.xpose.msra.mxu0 %v404
    %408 = vmatprep.subr.bf16.mxu0 0
    %409 = vmatpush1.bf16.xpose.msra.mxu0 0
    %410 = vmatprep.subr.bf16.mxu0 0
    %411 = vmatpush1.bf16.xpose.msra.mxu0 0
    %412 = vmatprep.subr.bf16.mxu0 0
    %413 = vmatpush1.bf16.xpose.msra.mxu0 0
    %414 = vmatprep.subr.bf16.mxu0 0
    %415 = vmatpush1.bf16.xpose.msra.mxu0 0
    %416 = vmatprep.subr.bf16.mxu0 0
    %417 = vmatpush1.bf16.xpose.msra.mxu0 0
    %418 = vmatprep.subr.bf16.mxu0 0
    %419 = vmatpush1.bf16.xpose.msra.mxu0 0
    %420 = vmatprep.subr.bf16.mxu0 0
    %421 = vmatpush1.bf16.xpose.msra.mxu0 0
    %422 = vmatprep.subr.bf16.mxu0 0
    %423 = vmatpush1.bf16.xpose.msra.mxu0 0
    %424 = vmatprep.subr.bf16.mxu0 0
    %425 = vmatpush1.bf16.xpose.msra.mxu0 0
    %426 = vmatprep.subr.bf16.mxu0 0
    %427 = vmatpush1.bf16.xpose.msra.mxu0 0
    %428 = vmatprep.subr.bf16.mxu0 0
    %429 = vmatpush1.bf16.xpose.msra.mxu0 0
    %430 = vmatprep.subr.bf16.mxu0 0
    %431 = vmatpush1.bf16.xpose.msra.mxu0 0
    %432 = vmatprep.subr.bf16.mxu0 0
    %433 = vmatpush1.bf16.xpose.msra.mxu0 0
    %434 = vmatprep.subr.bf16.mxu0 0
    %435 = vmatpush1.bf16.xpose.msra.mxu0 0
    %436 = vmatprep.subr.bf16.mxu0 0
    %437 = vmatpush1.bf16.xpose.msra.mxu0 0
    %438 = vmatprep.mubr.bf16.mxu0 0
    %439 = vmatmul.mubr.bf16.gmra.mrb[0].mxu0 %v401
    %v440 = vpop.f32.mrb[0].mxu0
    %v441 = vadd.f32 0.0, %v440
    %v442 = vpop.f32.mrb[0].mxu0
    %v443 = vpop.f32.mrb[0].mxu0
    %v444 = vpop.f32.mrb[0].mxu0
    %445 = vdwg.mxu0
    %v446 = vmul.f32 %v395, 0.17677669
    %v447 = vmul.f32 %v441, 0.17677669
    %vm448 = vcmask 64512
    %v449 = vsel %vm448, %v446, -inf
    %450 = vmax.xlane.f32.xlu0 %v449
    %v451 = vpop.xlane.xlu0 %450
    %v452 = vsel %vm448, %v447, -inf
    %453 = vmax.xlane.f32.xlu0 %v452
    %v454 = vpop.xlane.xlu0 %453
    %v455 = vsub.f32 %v446, %v451
    %v456 = vsub.f32 %v447, %v454
    %v457 = vmul.f32 %v455, 1.442695
    %v458 = vpow.pop %v457
    %v459 = vmul.f32 %v456, 1.442695
    %v460 = vpow.pop %v459
    %v461 = vsel %vm448, %v458, 0.0
    %462 = vadd.xlane.f32.xlu0 %v461
    %v463 = vpop.xlane.xlu0 %462
    %v464 = vsel %vm448, %v460, 0.0
    %465 = vadd.xlane.f32.xlu0 %v464
    %v466 = vpop.xlane.xlu0 %465
    %v467 = vrcp.pop %v463
    %v468 = vrcp.pop %v466
    %v469 = vmul.f32 %v458, %v467
    %v470 = vmul.f32 %v460, %v468
    %v471 = vpack.c.bf16 %v469, %v469
    %v472 = vpack.c.bf16 %v470, %v470
    %v474 = vsel %vm448, %v471, 0
    %vm476 = vcmask 1043456
    %v478 = vsel %vm476, %v351, 0
    %480 = vmatprep.subr.bf16.mxu0 0
    %481 = vmatpush1.bf16.msra.mxu0 %v478
    %482 = vmatprep.subr.bf16.mxu0 0
    %483 = vmatpush1.bf16.msra.mxu0 0
    %484 = vmatprep.subr.bf16.mxu0 0
    %485 = vmatpush1.bf16.msra.mxu0 0
    %486 = vmatprep.subr.bf16.mxu0 0
    %487 = vmatpush1.bf16.msra.mxu0 0
    %488 = vmatprep.subr.bf16.mxu0 0
    %489 = vmatpush1.bf16.msra.mxu0 0
    %490 = vmatprep.subr.bf16.mxu0 0
    %491 = vmatpush1.bf16.msra.mxu0 0
    %492 = vmatprep.subr.bf16.mxu0 0
    %493 = vmatpush1.bf16.msra.mxu0 0
    %494 = vmatprep.subr.bf16.mxu0 0
    %495 = vmatpush1.bf16.msra.mxu0 0
    %496 = vmatprep.subr.bf16.mxu0 0
    %497 = vmatpush1.bf16.msra.mxu0 0
    %498 = vmatprep.subr.bf16.mxu0 0
    %499 = vmatpush1.bf16.msra.mxu0 0
    %500 = vmatprep.subr.bf16.mxu0 0
    %501 = vmatpush1.bf16.msra.mxu0 0
    %502 = vmatprep.subr.bf16.mxu0 0
    %503 = vmatpush1.bf16.msra.mxu0 0
    %504 = vmatprep.subr.bf16.mxu0 0
    %505 = vmatpush1.bf16.msra.mxu0 0
    %506 = vmatprep.subr.bf16.mxu0 0
    %507 = vmatpush1.bf16.msra.mxu0 0
    %508 = vmatprep.subr.bf16.mxu0 0
    %509 = vmatpush1.bf16.msra.mxu0 0
    %510 = vmatprep.subr.bf16.mxu0 0
    %511 = vmatpush1.bf16.msra.mxu0 0
    %512 = vmatprep.mubr.bf16.mxu0 0
    %513 = vmatmul.mubr.bf16.gmra.mrb[0].mxu0 %v474
    %v514 = vpop.f32.mrb[0].mxu0
    %v515 = vadd.f32 0.0, %v514
    %v516 = vpop.f32.mrb[0].mxu0
    %v517 = vpop.f32.mrb[0].mxu0
    %v518 = vpop.f32.mrb[0].mxu0
    %519 = vdwg.mxu0
    %v521 = vsel %vm448, %v472, 0
    %v524 = vsel %vm476, %v352, 0
    %526 = vmatprep.subr.bf16.mxu0 0
    %527 = vmatpush1.bf16.msra.mxu0 %v524
    %528 = vmatprep.subr.bf16.mxu0 0
    %529 = vmatpush1.bf16.msra.mxu0 0
    %530 = vmatprep.subr.bf16.mxu0 0
    %531 = vmatpush1.bf16.msra.mxu0 0
    %532 = vmatprep.subr.bf16.mxu0 0
    %533 = vmatpush1.bf16.msra.mxu0 0
    %534 = vmatprep.subr.bf16.mxu0 0
    %535 = vmatpush1.bf16.msra.mxu0 0
    %536 = vmatprep.subr.bf16.mxu0 0
    %537 = vmatpush1.bf16.msra.mxu0 0
    %538 = vmatprep.subr.bf16.mxu0 0
    %539 = vmatpush1.bf16.msra.mxu0 0
    %540 = vmatprep.subr.bf16.mxu0 0
    %541 = vmatpush1.bf16.msra.mxu0 0
    %542 = vmatprep.subr.bf16.mxu0 0
    %543 = vmatpush1.bf16.msra.mxu0 0
    %544 = vmatprep.subr.bf16.mxu0 0
    %545 = vmatpush1.bf16.msra.mxu0 0
    %546 = vmatprep.subr.bf16.mxu0 0
    %547 = vmatpush1.bf16.msra.mxu0 0
    %548 = vmatprep.subr.bf16.mxu0 0
    %549 = vmatpush1.bf16.msra.mxu0 0
    %550 = vmatprep.subr.bf16.mxu0 0
    %551 = vmatpush1.bf16.msra.mxu0 0
    %552 = vmatprep.subr.bf16.mxu0 0
    %553 = vmatpush1.bf16.msra.mxu0 0
    %554 = vmatprep.subr.bf16.mxu0 0
    %555 = vmatpush1.bf16.msra.mxu0 0
    %556 = vmatprep.subr.bf16.mxu0 0
    %557 = vmatpush1.bf16.msra.mxu0 0
    %558 = vmatprep.mubr.bf16.mxu0 0
    %559 = vmatmul.mubr.bf16.gmra.mrb[0].mxu0 %v521
    %v560 = vpop.f32.mrb[0].mxu0
    %v561 = vadd.f32 0.0, %v560
    %v562 = vpop.f32.mrb[0].mxu0
    %v563 = vpop.f32.mrb[0].mxu0
    %v564 = vpop.f32.mrb[0].mxu0
    %565 = vdwg.mxu0
    %v566 = vpack.c.bf16 %v561, %v515
    %v567 = vld [vmem:[#allocation2] sm:$0xf]
    %v568 = vld [vmem:[#allocation2 + $0x4] sm:$0xf]
    %v569 = vld [vmem:[#allocation2 + $0x8] sm:$0xf]
    %v570 = vld [vmem:[#allocation2 + $0xc] sm:$0xf]
    %572 = vrot.lane.b32.xlu0 %v347, 96
    %v573 = vpop.permute.xlu0 %572
    %575 = vrot.lane.b32.xlu0 %v349, 96
    %v576 = vpop.permute.xlu0 %575
    %v578 = vsel %vm353, %v573, 0
    %v581 = vsel %vm353, %v576, 0
    %583 = vmatprep.subr.bf16.mxu0 0
    %584 = vmatpush1.bf16.xpose.msra.mxu0 %v581
    %585 = vmatprep.subr.bf16.mxu0 0
    %586 = vmatpush1.bf16.xpose.msra.mxu0 0
    %587 = vmatprep.subr.bf16.mxu0 0
    %588 = vmatpush1.bf16.xpose.msra.mxu0 0
    %589 = vmatprep.subr.bf16.mxu0 0
    %590 = vmatpush1.bf16.xpose.msra.mxu0 0
    %591 = vmatprep.subr.bf16.mxu0 0
    %592 = vmatpush1.bf16.xpose.msra.mxu0 0
    %593 = vmatprep.subr.bf16.mxu0 0
    %594 = vmatpush1.bf16.xpose.msra.mxu0 0
    %595 = vmatprep.subr.bf16.mxu0 0
    %596 = vmatpush1.bf16.xpose.msra.mxu0 0
    %597 = vmatprep.subr.bf16.mxu0 0
    %598 = vmatpush1.bf16.xpose.msra.mxu0 0
    %599 = vmatprep.subr.bf16.mxu0 0
    %600 = vmatpush1.bf16.xpose.msra.mxu0 0
    %601 = vmatprep.subr.bf16.mxu0 0
    %602 = vmatpush1.bf16.xpose.msra.mxu0 0
    %603 = vmatprep.subr.bf16.mxu0 0
    %604 = vmatpush1.bf16.xpose.msra.mxu0 0
    %605 = vmatprep.subr.bf16.mxu0 0
    %606 = vmatpush1.bf16.xpose.msra.mxu0 0
    %607 = vmatprep.subr.bf16.mxu0 0
    %608 = vmatpush1.bf16.xpose.msra.mxu0 0
    %609 = vmatprep.subr.bf16.mxu0 0
    %610 = vmatpush1.bf16.xpose.msra.mxu0 0
    %611 = vmatprep.subr.bf16.mxu0 0
    %612 = vmatpush1.bf16.xpose.msra.mxu0 0
    %613 = vmatprep.subr.bf16.mxu0 0
    %614 = vmatpush1.bf16.xpose.msra.mxu0 0
    %615 = vmatprep.mubr.bf16.mxu0 0
    %616 = vmatmul.mubr.bf16.gmra.mrb[0].mxu0 %v578
    %v617 = vpop.f32.mrb[0].mxu0
    %v618 = vadd.f32 0.0, %v617
    %v619 = vpop.f32.mrb[0].mxu0
    %v620 = vpop.f32.mrb[0].mxu0
    %v621 = vpop.f32.mrb[0].mxu0
    %622 = vdwg.mxu0
    %624 = vrot.lane.b32.xlu0 %v348, 96
    %v625 = vpop.permute.xlu0 %624
    %627 = vrot.lane.b32.xlu0 %v350, 96
    %v628 = vpop.permute.xlu0 %627
    %v630 = vsel %vm353, %v625, 0
    %v633 = vsel %vm353, %v628, 0
    %635 = vmatprep.subr.bf16.mxu0 0
    %636 = vmatpush1.bf16.xpose.msra.mxu0 %v633
    %637 = vmatprep.subr.bf16.mxu0 0
    %638 = vmatpush1.bf16.xpose.msra.mxu0 0
    %639 = vmatprep.subr.bf16.mxu0 0
    %640 = vmatpush1.bf16.xpose.msra.mxu0 0
    %641 = vmatprep.subr.bf16.mxu0 0
    %642 = vmatpush1.bf16.xpose.msra.mxu0 0
    %643 = vmatprep.subr.bf16.mxu0 0
    %644 = vmatpush1.bf16.xpose.msra.mxu0 0
    %645 = vmatprep.subr.bf16.mxu0 0
    %646 = vmatpush1.bf16.xpose.msra.mxu0 0
    %647 = vmatprep.subr.bf16.mxu0 0
    %648 = vmatpush1.bf16.xpose.msra.mxu0 0
    %649 = vmatprep.subr.bf16.mxu0 0
    %650 = vmatpush1.bf16.xpose.msra.mxu0 0
    %651 = vmatprep.subr.bf16.mxu0 0
    %652 = vmatpush1.bf16.xpose.msra.mxu0 0
    %653 = vmatprep.subr.bf16.mxu0 0
    %654 = vmatpush1.bf16.xpose.msra.mxu0 0
    %655 = vmatprep.subr.bf16.mxu0 0
    %656 = vmatpush1.bf16.xpose.msra.mxu0 0
    %657 = vmatprep.subr.bf16.mxu0 0
    %658 = vmatpush1.bf16.xpose.msra.mxu0 0
    %659 = vmatprep.subr.bf16.mxu0 0
    %660 = vmatpush1.bf16.xpose.msra.mxu0 0
    %661 = vmatprep.subr.bf16.mxu0 0
    %662 = vmatpush1.bf16.xpose.msra.mxu0 0
    %663 = vmatprep.subr.bf16.mxu0 0
    %664 = vmatpush1.bf16.xpose.msra.mxu0 0
    %665 = vmatprep.subr.bf16.mxu0 0
    %666 = vmatpush1.bf16.xpose.msra.mxu0 0
    %667 = vmatprep.mubr.bf16.mxu0 0
    %668 = vmatmul.mubr.bf16.gmra.mrb[0].mxu0 %v630
    %v669 = vpop.f32.mrb[0].mxu0
    %v670 = vadd.f32 0.0, %v669
    %v671 = vpop.f32.mrb[0].mxu0
    %v672 = vpop.f32.mrb[0].mxu0
    %v673 = vpop.f32.mrb[0].mxu0
    %674 = vdwg.mxu0
    %v675 = vmul.f32 %v618, 0.17677669
    %v676 = vmul.f32 %v670, 0.17677669
    %v677 = vsel %vm448, %v675, -inf
    %678 = vmax.xlane.f32.xlu0 %v677
    %v679 = vpop.xlane.xlu0 %678
    %v680 = vsel %vm448, %v676, -inf
    %681 = vmax.xlane.f32.xlu0 %v680
    %v682 = vpop.xlane.xlu0 %681
    %v683 = vsub.f32 %v675, %v679
    %v684 = vsub.f32 %v676, %v682
    %v685 = vmul.f32 %v683, 1.442695
    %v686 = vpow.pop %v685
    %v687 = vmul.f32 %v684, 1.442695
    %v688 = vpow.pop %v687
    %v689 = vsel %vm448, %v686, 0.0
    %690 = vadd.xlane.f32.xlu0 %v689
    %v691 = vpop.xlane.xlu0 %690
    %v692 = vsel %vm448, %v688, 0.0
    %693 = vadd.xlane.f32.xlu0 %v692
    %v694 = vpop.xlane.xlu0 %693
    %v695 = vrcp.pop %v691
    %v696 = vrcp.pop %v694
    %v697 = vmul.f32 %v686, %v695
    %v698 = vmul.f32 %v688, %v696
    %v699 = vpack.c.bf16 %v697, %v697
    %v700 = vpack.c.bf16 %v698, %v698
    %702 = vrot.lane.b32.xlu0 %v351, 96
    %v703 = vpop.permute.xlu0 %702
    %v705 = vsel %vm448, %v699, 0
    %v708 = vsel %vm476, %v703, 0
    %710 = vmatprep.subr.bf16.mxu0 0
    %711 = vmatpush1.bf16.msra.mxu0 %v708
    %712 = vmatprep.subr.bf16.mxu0 0
    %713 = vmatpush1.bf16.msra.mxu0 0
    %714 = vmatprep.subr.bf16.mxu0 0
    %715 = vmatpush1.bf16.msra.mxu0 0
    %716 = vmatprep.subr.bf16.mxu0 0
    %717 = vmatpush1.bf16.msra.mxu0 0
    %718 = vmatprep.subr.bf16.mxu0 0
    %719 = vmatpush1.bf16.msra.mxu0 0
    %720 = vmatprep.subr.bf16.mxu0 0
    %721 = vmatpush1.bf16.msra.mxu0 0
    %722 = vmatprep.subr.bf16.mxu0 0
    %723 = vmatpush1.bf16.msra.mxu0 0
    %724 = vmatprep.subr.bf16.mxu0 0
    %725 = vmatpush1.bf16.msra.mxu0 0
    %726 = vmatprep.subr.bf16.mxu0 0
    %727 = vmatpush1.bf16.msra.mxu0 0
    %728 = vmatprep.subr.bf16.mxu0 0
    %729 = vmatpush1.bf16.msra.mxu0 0
    %730 = vmatprep.subr.bf16.mxu0 0
    %731 = vmatpush1.bf16.msra.mxu0 0
    %732 = vmatprep.subr.bf16.mxu0 0
    %733 = vmatpush1.bf16.msra.mxu0 0
    %734 = vmatprep.subr.bf16.mxu0 0
    %735 = vmatpush1.bf16.msra.mxu0 0
    %736 = vmatprep.subr.bf16.mxu0 0
    %737 = vmatpush1.bf16.msra.mxu0 0
    %738 = vmatprep.subr.bf16.mxu0 0
    %739 = vmatpush1.bf16.msra.mxu0 0
    %740 = vmatprep.subr.bf16.mxu0 0
    %741 = vmatpush1.bf16.msra.mxu0 0
    %742 = vmatprep.mubr.bf16.mxu0 0
    %743 = vmatmul.mubr.bf16.gmra.mrb[0].mxu0 %v705
    %v744 = vpop.f32.mrb[0].mxu0
    %v745 = vadd.f32 0.0, %v744
    %v746 = vpop.f32.mrb[0].mxu0
    %v747 = vpop.f32.mrb[0].mxu0
    %v748 = vpop.f32.mrb[0].mxu0
    %749 = vdwg.mxu0
    %751 = vrot.lane.b32.xlu0 %v352, 96
    %v752 = vpop.permute.xlu0 %751
    %v754 = vsel %vm448, %v700, 0
    %v757 = vsel %vm476, %v752, 0
    %759 = vmatprep.subr.bf16.mxu0 0
    %760 = vmatpush1.bf16.msra.mxu0 %v757
    %761 = vmatprep.subr.bf16.mxu0 0
    %762 = vmatpush1.bf16.msra.mxu0 0
    %763 = vmatprep.subr.bf16.mxu0 0
    %764 = vmatpush1.bf16.msra.mxu0 0
    %765 = vmatprep.subr.bf16.mxu0 0
    %766 = vmatpush1.bf16.msra.mxu0 0
    %767 = vmatprep.subr.bf16.mxu0 0
    %768 = vmatpush1.bf16.msra.mxu0 0
    %769 = vmatprep.subr.bf16.mxu0 0
    %770 = vmatpush1.bf16.msra.mxu0 0
    %771 = vmatprep.subr.bf16.mxu0 0
    %772 = vmatpush1.bf16.msra.mxu0 0
    %773 = vmatprep.subr.bf16.mxu0 0
    %774 = vmatpush1.bf16.msra.mxu0 0
    %775 = vmatprep.subr.bf16.mxu0 0
    %776 = vmatpush1.bf16.msra.mxu0 0
    %777 = vmatprep.subr.bf16.mxu0 0
    %778 = vmatpush1.bf16.msra.mxu0 0
    %779 = vmatprep.subr.bf16.mxu0 0
    %780 = vmatpush1.bf16.msra.mxu0 0
    %781 = vmatprep.subr.bf16.mxu0 0
    %782 = vmatpush1.bf16.msra.mxu0 0
    %783 = vmatprep.subr.bf16.mxu0 0
    %784 = vmatpush1.bf16.msra.mxu0 0
    %785 = vmatprep.subr.bf16.mxu0 0
    %786 = vmatpush1.bf16.msra.mxu0 0
    %787 = vmatprep.subr.bf16.mxu0 0
    %788 = vmatpush1.bf16.msra.mxu0 0
    %789 = vmatprep.subr.bf16.mxu0 0
    %790 = vmatpush1.bf16.msra.mxu0 0
    %791 = vmatprep.mubr.bf16.mxu0 0
    %792 = vmatmul.mubr.bf16.gmra.mrb[0].mxu0 %v754
    %v793 = vpop.f32.mrb[0].mxu0
    %v794 = vadd.f32 0.0, %v793
    %v795 = vpop.f32.mrb[0].mxu0
    %v796 = vpop.f32.mrb[0].mxu0
    %v797 = vpop.f32.mrb[0].mxu0
    %798 = vdwg.mxu0
    %v799 = vpack.c.bf16 %v794, %v745
    %v800 = vld [vmem:[#allocation2 + $0x10] sm:$0xf]
    %v801 = vld [vmem:[#allocation2 + $0x14] sm:$0xf]
    %v802 = vld [vmem:[#allocation2 + $0x18] sm:$0xf]
    %v803 = vld [vmem:[#allocation2 + $0x1c] sm:$0xf]
    %v808 = vunpack.c.l.b16 %v800
    %v809 = vunpack.c.l.b16 %v801
    %v810 = vunpack.c.l.b16 %v802
    %v811 = vunpack.c.l.b16 %v803
    %v812 = vpack.c.b16 %v809, %v808
    %v813 = vpack.c.b16 %v811, %v810
    %v817 = vsel %vm353, %v799, 0
    %819 = vmatprep.subr.bf16.mxu0 0
    %820 = vmatpush1.bf16.msra.mxu0 %v812
    %821 = vmatprep.subr.bf16.mxu0 0
    %822 = vmatpush1.bf16.msra.mxu0 %v813
    %823 = vmatprep.subr.bf16.mxu0 0
    %824 = vmatpush1.bf16.msra.mxu0 0
    %825 = vmatprep.subr.bf16.mxu0 0
    %826 = vmatpush1.bf16.msra.mxu0 0
    %827 = vmatprep.subr.bf16.mxu0 0
    %828 = vmatpush1.bf16.msra.mxu0 0
    %829 = vmatprep.subr.bf16.mxu0 0
    %830 = vmatpush1.bf16.msra.mxu0 0
    %831 = vmatprep.subr.bf16.mxu0 0
    %832 = vmatpush1.bf16.msra.mxu0 0
    %833 = vmatprep.subr.bf16.mxu0 0
    %834 = vmatpush1.bf16.msra.mxu0 0
    %835 = vmatprep.subr.bf16.mxu0 0
    %836 = vmatpush1.bf16.msra.mxu0 0
    %837 = vmatprep.subr.bf16.mxu0 0
    %838 = vmatpush1.bf16.msra.mxu0 0
    %839 = vmatprep.subr.bf16.mxu0 0
    %840 = vmatpush1.bf16.msra.mxu0 0
    %841 = vmatprep.subr.bf16.mxu0 0
    %842 = vmatpush1.bf16.msra.mxu0 0
    %843 = vmatprep.subr.bf16.mxu0 0
    %844 = vmatpush1.bf16.msra.mxu0 0
    %845 = vmatprep.subr.bf16.mxu0 0
    %846 = vmatpush1.bf16.msra.mxu0 0
    %847 = vmatprep.subr.bf16.mxu0 0
    %848 = vmatpush1.bf16.msra.mxu0 0
    %849 = vmatprep.subr.bf16.mxu0 0
    %850 = vmatpush1.bf16.msra.mxu0 0
    %851 = vmatprep.mubr.bf16.mxu0 0
    %852 = vmatmul.mubr.bf16.gmra.mrb[0].mxu0 %v817
    %v853 = vpop.f32.mrb[0].mxu0
    %v854 = vadd.f32 0.0, %v853
    %v855 = vpop.f32.mrb[0].mxu0
    %v856 = vpop.f32.mrb[0].mxu0
    %v857 = vadd.f32 0.0, %v856
    %v858 = vpop.f32.mrb[0].mxu0
    %859 = vdwg.mxu0
    %v864 = vunpack.c.l.b16 %v567
    %v865 = vunpack.c.l.b16 %v568
    %v866 = vunpack.c.l.b16 %v569
    %v867 = vunpack.c.l.b16 %v570
    %v868 = vpack.c.b16 %v865, %v864
    %v869 = vpack.c.b16 %v867, %v866
    %v873 = vsel %vm353, %v566, 0
    %875 = vmatprep.subr.bf16.mxu0 0
    %876 = vmatpush1.bf16.msra.mxu0 %v868
    %877 = vmatprep.subr.bf16.mxu0 0
    %878 = vmatpush1.bf16.msra.mxu0 %v869
    %879 = vmatprep.subr.bf16.mxu0 0
    %880 = vmatpush1.bf16.msra.mxu0 0
    %881 = vmatprep.subr.bf16.mxu0 0
    %882 = vmatpush1.bf16.msra.mxu0 0
    %883 = vmatprep.subr.bf16.mxu0 0
    %884 = vmatpush1.bf16.msra.mxu0 0
    %885 = vmatprep.subr.bf16.mxu0 0
    %886 = vmatpush1.bf16.msra.mxu0 0
    %887 = vmatprep.subr.bf16.mxu0 0
    %888 = vmatpush1.bf16.msra.mxu0 0
    %889 = vmatprep.subr.bf16.mxu0 0
    %890 = vmatpush1.bf16.msra.mxu0 0
    %891 = vmatprep.subr.bf16.mxu0 0
    %892 = vmatpush1.bf16.msra.mxu0 0
    %893 = vmatprep.subr.bf16.mxu0 0
    %894 = vmatpush1.bf16.msra.mxu0 0
    %895 = vmatprep.subr.bf16.mxu0 0
    %896 = vmatpush1.bf16.msra.mxu0 0
    %897 = vmatprep.subr.bf16.mxu0 0
    %898 = vmatpush1.bf16.msra.mxu0 0
    %899 = vmatprep.subr.bf16.mxu0 0
    %900 = vmatpush1.bf16.msra.mxu0 0
    %901 = vmatprep.subr.bf16.mxu0 0
    %902 = vmatpush1.bf16.msra.mxu0 0
    %903 = vmatprep.subr.bf16.mxu0 0
    %904 = vmatpush1.bf16.msra.mxu0 0
    %905 = vmatprep.subr.bf16.mxu0 0
    %906 = vmatpush1.bf16.msra.mxu0 0
    %907 = vmatprep.mubr.bf16.mxu0 0
    %908 = vmatmul.mubr.bf16.gmra.mrb[0].mxu0 %v873
    %v909 = vpop.f32.mrb[0].mxu0
    %v910 = vadd.f32 %v854, %v909
    %v911 = vpop.f32.mrb[0].mxu0
    %v912 = vpop.f32.mrb[0].mxu0
    %v913 = vadd.f32 %v857, %v912
    %v914 = vpop.f32.mrb[0].mxu0
    %915 = vdwg.mxu0
    %916 = vrot.lane.b32.xlu0 %v347, 64
    %v917 = vpop.permute.xlu0 %916
    %918 = vrot.lane.b32.xlu0 %v349, 64
    %v919 = vpop.permute.xlu0 %918
    %v921 = vsel %vm353, %v917, 0
    %v924 = vsel %vm353, %v919, 0
    %926 = vmatprep.subr.bf16.mxu0 0
    %927 = vmatpush1.bf16.xpose.msra.mxu0 %v924
    %928 = vmatprep.subr.bf16.mxu0 0
    %929 = vmatpush1.bf16.xpose.msra.mxu0 0
    %930 = vmatprep.subr.bf16.mxu0 0
    %931 = vmatpush1.bf16.xpose.msra.mxu0 0
    %932 = vmatprep.subr.bf16.mxu0 0
    %933 = vmatpush1.bf16.xpose.msra.mxu0 0
    %934 = vmatprep.subr.bf16.mxu0 0
    %935 = vmatpush1.bf16.xpose.msra.mxu0 0
    %936 = vmatprep.subr.bf16.mxu0 0
    %937 = vmatpush1.bf16.xpose.msra.mxu0 0
    %938 = vmatprep.subr.bf16.mxu0 0
    %939 = vmatpush1.bf16.xpose.msra.mxu0 0
    %940 = vmatprep.subr.bf16.mxu0 0
    %941 = vmatpush1.bf16.xpose.msra.mxu0 0
    %942 = vmatprep.subr.bf16.mxu0 0
    %943 = vmatpush1.bf16.xpose.msra.mxu0 0
    %944 = vmatprep.subr.bf16.mxu0 0
    %945 = vmatpush1.bf16.xpose.msra.mxu0 0
    %946 = vmatprep.subr.bf16.mxu0 0
    %947 = vmatpush1.bf16.xpose.msra.mxu0 0
    %948 = vmatprep.subr.bf16.mxu0 0
    %949 = vmatpush1.bf16.xpose.msra.mxu0 0
    %950 = vmatprep.subr.bf16.mxu0 0
    %951 = vmatpush1.bf16.xpose.msra.mxu0 0
    %952 = vmatprep.subr.bf16.mxu0 0
    %953 = vmatpush1.bf16.xpose.msra.mxu0 0
    %954 = vmatprep.subr.bf16.mxu0 0
    %955 = vmatpush1.bf16.xpose.msra.mxu0 0
    %956 = vmatprep.subr.bf16.mxu0 0
    %957 = vmatpush1.bf16.xpose.msra.mxu0 0
    %958 = vmatprep.mubr.bf16.mxu0 0
    %959 = vmatmul.mubr.bf16.gmra.mrb[0].mxu0 %v921
    %v960 = vpop.f32.mrb[0].mxu0
    %v961 = vadd.f32 0.0, %v960
    %v962 = vpop.f32.mrb[0].mxu0
    %v963 = vpop.f32.mrb[0].mxu0
    %v964 = vpop.f32.mrb[0].mxu0
    %965 = vdwg.mxu0
    %966 = vrot.lane.b32.xlu0 %v348, 64
    %v967 = vpop.permute.xlu0 %966
    %968 = vrot.lane.b32.xlu0 %v350, 64
    %v969 = vpop.permute.xlu0 %968
    %v971 = vsel %vm353, %v967, 0
    %v974 = vsel %vm353, %v969, 0
    %976 = vmatprep.subr.bf16.mxu0 0
    %977 = vmatpush1.bf16.xpose.msra.mxu0 %v974
    %978 = vmatprep.subr.bf16.mxu0 0
    %979 = vmatpush1.bf16.xpose.msra.mxu0 0
    %980 = vmatprep.subr.bf16.mxu0 0
    %981 = vmatpush1.bf16.xpose.msra.mxu0 0
    %982 = vmatprep.subr.bf16.mxu0 0
    %983 = vmatpush1.bf16.xpose.msra.mxu0 0
    %984 = vmatprep.subr.bf16.mxu0 0
    %985 = vmatpush1.bf16.xpose.msra.mxu0 0
    %986 = vmatprep.subr.bf16.mxu0 0
    %987 = vmatpush1.bf16.xpose.msra.mxu0 0
    %988 = vmatprep.subr.bf16.mxu0 0
    %989 = vmatpush1.bf16.xpose.msra.mxu0 0
    %990 = vmatprep.subr.bf16.mxu0 0
    %991 = vmatpush1.bf16.xpose.msra.mxu0 0
    %992 = vmatprep.subr.bf16.mxu0 0
    %993 = vmatpush1.bf16.xpose.msra.mxu0 0
    %994 = vmatprep.subr.bf16.mxu0 0
    %995 = vmatpush1.bf16.xpose.msra.mxu0 0
    %996 = vmatprep.subr.bf16.mxu0 0
    %997 = vmatpush1.bf16.xpose.msra.mxu0 0
    %998 = vmatprep.subr.bf16.mxu0 0
    %999 = vmatpush1.bf16.xpose.msra.mxu0 0
    %1000 = vmatprep.subr.bf16.mxu0 0
    %1001 = vmatpush1.bf16.xpose.msra.mxu0 0
    %1002 = vmatprep.subr.bf16.mxu0 0
    %1003 = vmatpush1.bf16.xpose.msra.mxu0 0
    %1004 = vmatprep.subr.bf16.mxu0 0
    %1005 = vmatpush1.bf16.xpose.msra.mxu0 0
    %1006 = vmatprep.subr.bf16.mxu0 0
    %1007 = vmatpush1.bf16.xpose.msra.mxu0 0
    %1008 = vmatprep.mubr.bf16.mxu0 0
    %1009 = vmatmul.mubr.bf16.gmra.mrb[0].mxu0 %v971
    %v1010 = vpop.f32.mrb[0].mxu0
    %v1011 = vadd.f32 0.0, %v1010
    %v1012 = vpop.f32.mrb[0].mxu0
    %v1013 = vpop.f32.mrb[0].mxu0
    %v1014 = vpop.f32.mrb[0].mxu0
    %1015 = vdwg.mxu0
    %v1016 = vmul.f32 %v961, 0.17677669
    %v1017 = vmul.f32 %v1011, 0.17677669
    %v1018 = vsel %vm448, %v1016, -inf
    %1019 = vmax.xlane.f32.xlu0 %v1018
    %v1020 = vpop.xlane.xlu0 %1019
    %v1021 = vsel %vm448, %v1017, -inf
    %1022 = vmax.xlane.f32.xlu0 %v1021
    %v1023 = vpop.xlane.xlu0 %1022
    %v1024 = vsub.f32 %v1016, %v1020
    %v1025 = vsub.f32 %v1017, %v1023
    %v1026 = vmul.f32 %v1024, 1.442695
    %v1027 = vpow.pop %v1026
    %v1028 = vmul.f32 %v1025, 1.442695
    %v1029 = vpow.pop %v1028
    %v1030 = vsel %vm448, %v1027, 0.0
    %1031 = vadd.xlane.f32.xlu0 %v1030
    %v1032 = vpop.xlane.xlu0 %1031
    %v1033 = vsel %vm448, %v1029, 0.0
    %1034 = vadd.xlane.f32.xlu0 %v1033
    %v1035 = vpop.xlane.xlu0 %1034
    %v1036 = vrcp.pop %v1032
    %v1037 = vrcp.pop %v1035
    %v1038 = vmul.f32 %v1027, %v1036
    %v1039 = vmul.f32 %v1029, %v1037
    %v1040 = vpack.c.bf16 %v1038, %v1038
    %v1041 = vpack.c.bf16 %v1039, %v1039
    %1042 = vrot.lane.b32.xlu0 %v351, 64
    %v1043 = vpop.permute.xlu0 %1042
    %v1045 = vsel %vm448, %v1040, 0
    %v1048 = vsel %vm476, %v1043, 0
    %1050 = vmatprep.subr.bf16.mxu0 0
    %1051 = vmatpush1.bf16.msra.mxu0 %v1048
    %1052 = vmatprep.subr.bf16.mxu0 0
    %1053 = vmatpush1.bf16.msra.mxu0 0
    %1054 = vmatprep.subr.bf16.mxu0 0
    %1055 = vmatpush1.bf16.msra.mxu0 0
    %1056 = vmatprep.subr.bf16.mxu0 0
    %1057 = vmatpush1.bf16.msra.mxu0 0
    %1058 = vmatprep.subr.bf16.mxu0 0
    %1059 = vmatpush1.bf16.msra.mxu0 0
    %1060 = vmatprep.subr.bf16.mxu0 0
    %1061 = vmatpush1.bf16.msra.mxu0 0
    %1062 = vmatprep.subr.bf16.mxu0 0
    %1063 = vmatpush1.bf16.msra.mxu0 0
    %1064 = vmatprep.subr.bf16.mxu0 0
    %1065 = vmatpush1.bf16.msra.mxu0 0
    %1066 = vmatprep.subr.bf16.mxu0 0
    %1067 = vmatpush1.bf16.msra.mxu0 0
    %1068 = vmatprep.subr.bf16.mxu0 0
    %1069 = vmatpush1.bf16.msra.mxu0 0
    %1070 = vmatprep.subr.bf16.mxu0 0
    %1071 = vmatpush1.bf16.msra.mxu0 0
    %1072 = vmatprep.subr.bf16.mxu0 0
    %1073 = vmatpush1.bf16.msra.mxu0 0
    %1074 = vmatprep.subr.bf16.mxu0 0
    %1075 = vmatpush1.bf16.msra.mxu0 0
    %1076 = vmatprep.subr.bf16.mxu0 0
    %1077 = vmatpush1.bf16.msra.mxu0 0
    %1078 = vmatprep.subr.bf16.mxu0 0
    %1079 = vmatpush1.bf16.msra.mxu0 0
    %1080 = vmatprep.subr.bf16.mxu0 0
    %1081 = vmatpush1.bf16.msra.mxu0 0
    %1082 = vmatprep.mubr.bf16.mxu0 0
    %1083 = vmatmul.mubr.bf16.gmra.mrb[0].mxu0 %v1045
    %v1084 = vpop.f32.mrb[0].mxu0
    %v1085 = vadd.f32 0.0, %v1084
    %v1086 = vpop.f32.mrb[0].mxu0
    %v1087 = vpop.f32.mrb[0].mxu0
    %v1088 = vpop.f32.mrb[0].mxu0
    %1089 = vdwg.mxu0
    %1090 = vrot.lane.b32.xlu0 %v352, 64
    %v1091 = vpop.permute.xlu0 %1090
    %v1093 = vsel %vm448, %v1041, 0
    %v1096 = vsel %vm476, %v1091, 0
    %1098 = vmatprep.subr.bf16.mxu0 0
    %1099 = vmatpush1.bf16.msra.mxu0 %v1096
    %1100 = vmatprep.subr.bf16.mxu0 0
    %1101 = vmatpush1.bf16.msra.mxu0 0
    %1102 = vmatprep.subr.bf16.mxu0 0
    %1103 = vmatpush1.bf16.msra.mxu0 0
    %1104 = vmatprep.subr.bf16.mxu0 0
    %1105 = vmatpush1.bf16.msra.mxu0 0
    %1106 = vmatprep.subr.bf16.mxu0 0
    %1107 = vmatpush1.bf16.msra.mxu0 0
    %1108 = vmatprep.subr.bf16.mxu0 0
    %1109 = vmatpush1.bf16.msra.mxu0 0
    %1110 = vmatprep.subr.bf16.mxu0 0
    %1111 = vmatpush1.bf16.msra.mxu0 0
    %1112 = vmatprep.subr.bf16.mxu0 0
    %1113 = vmatpush1.bf16.msra.mxu0 0
    %1114 = vmatprep.subr.bf16.mxu0 0
    %1115 = vmatpush1.bf16.msra.mxu0 0
    %1116 = vmatprep.subr.bf16.mxu0 0
    %1117 = vmatpush1.bf16.msra.mxu0 0
    %1118 = vmatprep.subr.bf16.mxu0 0
    %1119 = vmatpush1.bf16.msra.mxu0 0
    %1120 = vmatprep.subr.bf16.mxu0 0
    %1121 = vmatpush1.bf16.msra.mxu0 0
    %1122 = vmatprep.subr.bf16.mxu0 0
    %1123 = vmatpush1.bf16.msra.mxu0 0
    %1124 = vmatprep.subr.bf16.mxu0 0
    %1125 = vmatpush1.bf16.msra.mxu0 0
    %1126 = vmatprep.subr.bf16.mxu0 0
    %1127 = vmatpush1.bf16.msra.mxu0 0
    %1128 = vmatprep.subr.bf16.mxu0 0
    %1129 = vmatpush1.bf16.msra.mxu0 0
    %1130 = vmatprep.mubr.bf16.mxu0 0
    %1131 = vmatmul.mubr.bf16.gmra.mrb[0].mxu0 %v1093
    %v1132 = vpop.f32.mrb[0].mxu0
    %v1133 = vadd.f32 0.0, %v1132
    %v1134 = vpop.f32.mrb[0].mxu0
    %v1135 = vpop.f32.mrb[0].mxu0
    %v1136 = vpop.f32.mrb[0].mxu0
    %1137 = vdwg.mxu0
    %v1138 = vpack.c.bf16 %v1133, %v1085
    %v1139 = vld [vmem:[#allocation2 + $0x20] sm:$0xf]
    %v1140 = vld [vmem:[#allocation2 + $0x24] sm:$0xf]
    %v1141 = vld [vmem:[#allocation2 + $0x28] sm:$0xf]
    %v1142 = vld [vmem:[#allocation2 + $0x2c] sm:$0xf]
    %v1147 = vunpack.c.l.b16 %v1139
    %v1148 = vunpack.c.l.b16 %v1140
    %v1149 = vunpack.c.l.b16 %v1141
    %v1150 = vunpack.c.l.b16 %v1142
    %v1151 = vpack.c.b16 %v1148, %v1147
    %v1152 = vpack.c.b16 %v1150, %v1149
    %v1156 = vsel %vm353, %v1138, 0
    %1158 = vmatprep.subr.bf16.mxu0 0
    %1159 = vmatpush1.bf16.msra.mxu0 %v1151
    %1160 = vmatprep.subr.bf16.mxu0 0
    %1161 = vmatpush1.bf16.msra.mxu0 %v1152
    %1162 = vmatprep.subr.bf16.mxu0 0
    %1163 = vmatpush1.bf16.msra.mxu0 0
    %1164 = vmatprep.subr.bf16.mxu0 0
    %1165 = vmatpush1.bf16.msra.mxu0 0
    %1166 = vmatprep.subr.bf16.mxu0 0
    %1167 = vmatpush1.bf16.msra.mxu0 0
    %1168 = vmatprep.subr.bf16.mxu0 0
    %1169 = vmatpush1.bf16.msra.mxu0 0
    %1170 = vmatprep.subr.bf16.mxu0 0
    %1171 = vmatpush1.bf16.msra.mxu0 0
    %1172 = vmatprep.subr.bf16.mxu0 0
    %1173 = vmatpush1.bf16.msra.mxu0 0
    %1174 = vmatprep.subr.bf16.mxu0 0
    %1175 = vmatpush1.bf16.msra.mxu0 0
    %1176 = vmatprep.subr.bf16.mxu0 0
    %1177 = vmatpush1.bf16.msra.mxu0 0
    %1178 = vmatprep.subr.bf16.mxu0 0
    %1179 = vmatpush1.bf16.msra.mxu0 0
    %1180 = vmatprep.subr.bf16.mxu0 0
    %1181 = vmatpush1.bf16.msra.mxu0 0
    %1182 = vmatprep.subr.bf16.mxu0 0
    %1183 = vmatpush1.bf16.msra.mxu0 0
    %1184 = vmatprep.subr.bf16.mxu0 0
    %1185 = vmatpush1.bf16.msra.mxu0 0
    %1186 = vmatprep.subr.bf16.mxu0 0
    %1187 = vmatpush1.bf16.msra.mxu0 0
    %1188 = vmatprep.subr.bf16.mxu0 0
    %1189 = vmatpush1.bf16.msra.mxu0 0
    %1190 = vmatprep.mubr.bf16.mxu0 0
    %1191 = vmatmul.mubr.bf16.gmra.mrb[0].mxu0 %v1156
    %v1192 = vpop.f32.mrb[0].mxu0
    %v1193 = vadd.f32 0.0, %v1192
    %v1194 = vpop.f32.mrb[0].mxu0
    %v1195 = vpop.f32.mrb[0].mxu0
    %v1196 = vadd.f32 0.0, %v1195
    %v1197 = vpop.f32.mrb[0].mxu0
    %1198 = vdwg.mxu0
    %v1199 = vadd.f32 %v910, %v1193
    %v1200 = vadd.f32 %v913, %v1196
    %1201 = vrot.lane.b32.xlu0 %v347, 32
    %v1202 = vpop.permute.xlu0 %1201
    %1203 = vrot.lane.b32.xlu0 %v349, 32
    %v1204 = vpop.permute.xlu0 %1203
    %v1206 = vsel %vm353, %v1202, 0
    %v1209 = vsel %vm353, %v1204, 0
    %1211 = vmatprep.subr.bf16.mxu0 0
    %1212 = vmatpush1.bf16.xpose.msra.mxu0 %v1209
    %1213 = vmatprep.subr.bf16.mxu0 0
    %1214 = vmatpush1.bf16.xpose.msra.mxu0 0
    %1215 = vmatprep.subr.bf16.mxu0 0
    %1216 = vmatpush1.bf16.xpose.msra.mxu0 0
    %1217 = vmatprep.subr.bf16.mxu0 0
    %1218 = vmatpush1.bf16.xpose.msra.mxu0 0
    %1219 = vmatprep.subr.bf16.mxu0 0
    %1220 = vmatpush1.bf16.xpose.msra.mxu0 0
    %1221 = vmatprep.subr.bf16.mxu0 0
    %1222 = vmatpush1.bf16.xpose.msra.mxu0 0
    %1223 = vmatprep.subr.bf16.mxu0 0
    %1224 = vmatpush1.bf16.xpose.msra.mxu0 0
    %1225 = vmatprep.subr.bf16.mxu0 0
    %1226 = vmatpush1.bf16.xpose.msra.mxu0 0
    %1227 = vmatprep.subr.bf16.mxu0 0
    %1228 = vmatpush1.bf16.xpose.msra.mxu0 0
    %1229 = vmatprep.subr.bf16.mxu0 0
    %1230 = vmatpush1.bf16.xpose.msra.mxu0 0
    %1231 = vmatprep.subr.bf16.mxu0 0
    %1232 = vmatpush1.bf16.xpose.msra.mxu0 0
    %1233 = vmatprep.subr.bf16.mxu0 0
    %1234 = vmatpush1.bf16.xpose.msra.mxu0 0
    %1235 = vmatprep.subr.bf16.mxu0 0
    %1236 = vmatpush1.bf16.xpose.msra.mxu0 0
    %1237 = vmatprep.subr.bf16.mxu0 0
    %1238 = vmatpush1.bf16.xpose.msra.mxu0 0
    %1239 = vmatprep.subr.bf16.mxu0 0
    %1240 = vmatpush1.bf16.xpose.msra.mxu0 0
    %1241 = vmatprep.subr.bf16.mxu0 0
    %1242 = vmatpush1.bf16.xpose.msra.mxu0 0
    %1243 = vmatprep.mubr.bf16.mxu0 0
    %1244 = vmatmul.mubr.bf16.gmra.mrb[0].mxu0 %v1206
    %v1245 = vpop.f32.mrb[0].mxu0
    %v1246 = vadd.f32 0.0, %v1245
    %v1247 = vpop.f32.mrb[0].mxu0
    %v1248 = vpop.f32.mrb[0].mxu0
    %v1249 = vpop.f32.mrb[0].mxu0
    %1250 = vdwg.mxu0
    %1251 = vrot.lane.b32.xlu0 %v348, 32
    %v1252 = vpop.permute.xlu0 %1251
    %1253 = vrot.lane.b32.xlu0 %v350, 32
    %v1254 = vpop.permute.xlu0 %1253
    %v1256 = vsel %vm353, %v1252, 0
    %v1259 = vsel %vm353, %v1254, 0
    %1261 = vmatprep.subr.bf16.mxu0 0
    %1262 = vmatpush1.bf16.xpose.msra.mxu0 %v1259
    %1263 = vmatprep.subr.bf16.mxu0 0
    %1264 = vmatpush1.bf16.xpose.msra.mxu0 0
    %1265 = vmatprep.subr.bf16.mxu0 0
    %1266 = vmatpush1.bf16.xpose.msra.mxu0 0
    %1267 = vmatprep.subr.bf16.mxu0 0
    %1268 = vmatpush1.bf16.xpose.msra.mxu0 0
    %1269 = vmatprep.subr.bf16.mxu0 0
    %1270 = vmatpush1.bf16.xpose.msra.mxu0 0
    %1271 = vmatprep.subr.bf16.mxu0 0
    %1272 = vmatpush1.bf16.xpose.msra.mxu0 0
    %1273 = vmatprep.subr.bf16.mxu0 0
    %1274 = vmatpush1.bf16.xpose.msra.mxu0 0
    %1275 = vmatprep.subr.bf16.mxu0 0
    %1276 = vmatpush1.bf16.xpose.msra.mxu0 0
    %1277 = vmatprep.subr.bf16.mxu0 0
    %1278 = vmatpush1.bf16.xpose.msra.mxu0 0
    %1279 = vmatprep.subr.bf16.mxu0 0
    %1280 = vmatpush1.bf16.xpose.msra.mxu0 0
    %1281 = vmatprep.subr.bf16.mxu0 0
    %1282 = vmatpush1.bf16.xpose.msra.mxu0 0
    %1283 = vmatprep.subr.bf16.mxu0 0
    %1284 = vmatpush1.bf16.xpose.msra.mxu0 0
    %1285 = vmatprep.subr.bf16.mxu0 0
    %1286 = vmatpush1.bf16.xpose.msra.mxu0 0
    %1287 = vmatprep.subr.bf16.mxu0 0
    %1288 = vmatpush1.bf16.xpose.msra.mxu0 0
    %1289 = vmatprep.subr.bf16.mxu0 0
    %1290 = vmatpush1.bf16.xpose.msra.mxu0 0
    %1291 = vmatprep.subr.bf16.mxu0 0
    %1292 = vmatpush1.bf16.xpose.msra.mxu0 0
    %1293 = vmatprep.mubr.bf16.mxu0 0
    %1294 = vmatmul.mubr.bf16.gmra.mrb[0].mxu0 %v1256
    %v1295 = vpop.f32.mrb[0].mxu0
    %v1296 = vadd.f32 0.0, %v1295
    %v1297 = vpop.f32.mrb[0].mxu0
    %v1298 = vpop.f32.mrb[0].mxu0
    %v1299 = vpop.f32.mrb[0].mxu0
    %1300 = vdwg.mxu0
    %v1301 = vmul.f32 %v1246, 0.17677669
    %v1302 = vmul.f32 %v1296, 0.17677669
    %v1303 = vsel %vm448, %v1301, -inf
    %1304 = vmax.xlane.f32.xlu0 %v1303
    %v1305 = vpop.xlane.xlu0 %1304
    %v1306 = vsel %vm448, %v1302, -inf
    %1307 = vmax.xlane.f32.xlu0 %v1306
    %v1308 = vpop.xlane.xlu0 %1307
    %v1309 = vsub.f32 %v1301, %v1305
    %v1310 = vsub.f32 %v1302, %v1308
    %v1311 = vmul.f32 %v1309, 1.442695
    %v1312 = vpow.pop %v1311
    %v1313 = vmul.f32 %v1310, 1.442695
    %v1314 = vpow.pop %v1313
    %v1315 = vsel %vm448, %v1312, 0.0
    %1316 = vadd.xlane.f32.xlu0 %v1315
    %v1317 = vpop.xlane.xlu0 %1316
    %v1318 = vsel %vm448, %v1314, 0.0
    %1319 = vadd.xlane.f32.xlu0 %v1318
    %v1320 = vpop.xlane.xlu0 %1319
    %v1321 = vrcp.pop %v1317
    %v1322 = vrcp.pop %v1320
    %v1323 = vmul.f32 %v1312, %v1321
    %v1324 = vmul.f32 %v1314, %v1322
    %v1325 = vpack.c.bf16 %v1323, %v1323
    %v1326 = vpack.c.bf16 %v1324, %v1324
    %1327 = vrot.lane.b32.xlu0 %v351, 32
    %v1328 = vpop.permute.xlu0 %1327
    %v1330 = vsel %vm448, %v1325, 0
    %v1333 = vsel %vm476, %v1328, 0
    %1335 = vmatprep.subr.bf16.mxu0 0
    %1336 = vmatpush1.bf16.msra.mxu0 %v1333
    %1337 = vmatprep.subr.bf16.mxu0 0
    %1338 = vmatpush1.bf16.msra.mxu0 0
    %1339 = vmatprep.subr.bf16.mxu0 0
    %1340 = vmatpush1.bf16.msra.mxu0 0
    %1341 = vmatprep.subr.bf16.mxu0 0
    %1342 = vmatpush1.bf16.msra.mxu0 0
    %1343 = vmatprep.subr.bf16.mxu0 0
    %1344 = vmatpush1.bf16.msra.mxu0 0
    %1345 = vmatprep.subr.bf16.mxu0 0
    %1346 = vmatpush1.bf16.msra.mxu0 0
    %1347 = vmatprep.subr.bf16.mxu0 0
    %1348 = vmatpush1.bf16.msra.mxu0 0
    %1349 = vmatprep.subr.bf16.mxu0 0
    %1350 = vmatpush1.bf16.msra.mxu0 0
    %1351 = vmatprep.subr.bf16.mxu0 0
    %1352 = vmatpush1.bf16.msra.mxu0 0
    %1353 = vmatprep.subr.bf16.mxu0 0
    %1354 = vmatpush1.bf16.msra.mxu0 0
    %1355 = vmatprep.subr.bf16.mxu0 0
    %1356 = vmatpush1.bf16.msra.mxu0 0
    %1357 = vmatprep.subr.bf16.mxu0 0
    %1358 = vmatpush1.bf16.msra.mxu0 0
    %1359 = vmatprep.subr.bf16.mxu0 0
    %1360 = vmatpush1.bf16.msra.mxu0 0
    %1361 = vmatprep.subr.bf16.mxu0 0
    %1362 = vmatpush1.bf16.msra.mxu0 0
    %1363 = vmatprep.subr.bf16.mxu0 0
    %1364 = vmatpush1.bf16.msra.mxu0 0
    %1365 = vmatprep.subr.bf16.mxu0 0
    %1366 = vmatpush1.bf16.msra.mxu0 0
    %1367 = vmatprep.mubr.bf16.mxu0 0
    %1368 = vmatmul.mubr.bf16.gmra.mrb[0].mxu0 %v1330
    %v1369 = vpop.f32.mrb[0].mxu0
    %v1370 = vadd.f32 0.0, %v1369
    %v1371 = vpop.f32.mrb[0].mxu0
    %v1372 = vpop.f32.mrb[0].mxu0
    %v1373 = vpop.f32.mrb[0].mxu0
    %1374 = vdwg.mxu0
    %1375 = vrot.lane.b32.xlu0 %v352, 32
    %v1376 = vpop.permute.xlu0 %1375
    %v1378 = vsel %vm448, %v1326, 0
    %v1381 = vsel %vm476, %v1376, 0
    %1383 = vmatprep.subr.bf16.mxu0 0
    %1384 = vmatpush1.bf16.msra.mxu0 %v1381
    %1385 = vmatprep.subr.bf16.mxu0 0
    %1386 = vmatpush1.bf16.msra.mxu0 0
    %1387 = vmatprep.subr.bf16.mxu0 0
    %1388 = vmatpush1.bf16.msra.mxu0 0
    %1389 = vmatprep.subr.bf16.mxu0 0
    %1390 = vmatpush1.bf16.msra.mxu0 0
    %1391 = vmatprep.subr.bf16.mxu0 0
    %1392 = vmatpush1.bf16.msra.mxu0 0
    %1393 = vmatprep.subr.bf16.mxu0 0
    %1394 = vmatpush1.bf16.msra.mxu0 0
    %1395 = vmatprep.subr.bf16.mxu0 0
    %1396 = vmatpush1.bf16.msra.mxu0 0
    %1397 = vmatprep.subr.bf16.mxu0 0
    %1398 = vmatpush1.bf16.msra.mxu0 0
    %1399 = vmatprep.subr.bf16.mxu0 0
    %1400 = vmatpush1.bf16.msra.mxu0 0
    %1401 = vmatprep.subr.bf16.mxu0 0
    %1402 = vmatpush1.bf16.msra.mxu0 0
    %1403 = vmatprep.subr.bf16.mxu0 0
    %1404 = vmatpush1.bf16.msra.mxu0 0
    %1405 = vmatprep.subr.bf16.mxu0 0
    %1406 = vmatpush1.bf16.msra.mxu0 0
    %1407 = vmatprep.subr.bf16.mxu0 0
    %1408 = vmatpush1.bf16.msra.mxu0 0
    %1409 = vmatprep.subr.bf16.mxu0 0
    %1410 = vmatpush1.bf16.msra.mxu0 0
    %1411 = vmatprep.subr.bf16.mxu0 0
    %1412 = vmatpush1.bf16.msra.mxu0 0
    %1413 = vmatprep.subr.bf16.mxu0 0
    %1414 = vmatpush1.bf16.msra.mxu0 0
    %1415 = vmatprep.mubr.bf16.mxu0 0
    %1416 = vmatmul.mubr.bf16.gmra.mrb[0].mxu0 %v1378
    %v1417 = vpop.f32.mrb[0].mxu0
    %v1418 = vadd.f32 0.0, %v1417
    %v1419 = vpop.f32.mrb[0].mxu0
    %v1420 = vpop.f32.mrb[0].mxu0
    %v1421 = vpop.f32.mrb[0].mxu0
    %1422 = vdwg.mxu0
    %v1423 = vpack.c.bf16 %v1418, %v1370
    %v1424 = vld [vmem:[#allocation2 + $0x30] sm:$0xf]
    %v1425 = vld [vmem:[#allocation2 + $0x34] sm:$0xf]
    %v1426 = vld [vmem:[#allocation2 + $0x38] sm:$0xf]
    %v1427 = vld [vmem:[#allocation2 + $0x3c] sm:$0xf]
    %v1432 = vunpack.c.l.b16 %v1424
    %v1433 = vunpack.c.l.b16 %v1425
    %v1434 = vunpack.c.l.b16 %v1426
    %v1435 = vunpack.c.l.b16 %v1427
    %v1436 = vpack.c.b16 %v1433, %v1432
    %v1437 = vpack.c.b16 %v1435, %v1434
    %v1441 = vsel %vm353, %v1423, 0
    %1443 = vmatprep.subr.bf16.mxu0 0
    %1444 = vmatpush1.bf16.msra.mxu0 %v1436
    %1445 = vmatprep.subr.bf16.mxu0 0
    %1446 = vmatpush1.bf16.msra.mxu0 %v1437
    %1447 = vmatprep.subr.bf16.mxu0 0
    %1448 = vmatpush1.bf16.msra.mxu0 0
    %1449 = vmatprep.subr.bf16.mxu0 0
    %1450 = vmatpush1.bf16.msra.mxu0 0
    %1451 = vmatprep.subr.bf16.mxu0 0
    %1452 = vmatpush1.bf16.msra.mxu0 0
    %1453 = vmatprep.subr.bf16.mxu0 0
    %1454 = vmatpush1.bf16.msra.mxu0 0
    %1455 = vmatprep.subr.bf16.mxu0 0
    %1456 = vmatpush1.bf16.msra.mxu0 0
    %1457 = vmatprep.subr.bf16.mxu0 0
    %1458 = vmatpush1.bf16.msra.mxu0 0
    %1459 = vmatprep.subr.bf16.mxu0 0
    %1460 = vmatpush1.bf16.msra.mxu0 0
    %1461 = vmatprep.subr.bf16.mxu0 0
    %1462 = vmatpush1.bf16.msra.mxu0 0
    %1463 = vmatprep.subr.bf16.mxu0 0
    %1464 = vmatpush1.bf16.msra.mxu0 0
    %1465 = vmatprep.subr.bf16.mxu0 0
    %1466 = vmatpush1.bf16.msra.mxu0 0
    %1467 = vmatprep.subr.bf16.mxu0 0
    %1468 = vmatpush1.bf16.msra.mxu0 0
    %1469 = vmatprep.subr.bf16.mxu0 0
    %1470 = vmatpush1.bf16.msra.mxu0 0
    %1471 = vmatprep.subr.bf16.mxu0 0
    %1472 = vmatpush1.bf16.msra.mxu0 0
    %1473 = vmatprep.subr.bf16.mxu0 0
    %1474 = vmatpush1.bf16.msra.mxu0 0
    %1475 = vmatprep.mubr.bf16.mxu0 0
    %1476 = vmatmul.mubr.bf16.gmra.mrb[0].mxu0 %v1441
    %v1477 = vpop.f32.mrb[0].mxu0
    %v1478 = vadd.f32 0.0, %v1477
    %v1479 = vpop.f32.mrb[0].mxu0
    %v1480 = vpop.f32.mrb[0].mxu0
    %v1481 = vadd.f32 0.0, %v1480
    %v1482 = vpop.f32.mrb[0].mxu0
    %1483 = vdwg.mxu0
    %v1484 = vadd.f32 %v1199, %v1478
    %v1485 = vadd.f32 %v1200, %v1481
    %v1486 = vld [vmem:[#allocation4] sm:$0x1]
    %v1488 = vlaneseq
    %v1489 = vshrl.u32 %v1488, 7
    %v1490 = vsub.s32 0, %v1489
    %v1491 = vrot.slane %v1486, %v1490
    %v1493 = vadd.f32 %v1484, %v1491
    %v1494 = vadd.f32 %v1485, %v1491
    %v1495 = vadd.f32 %v78, %v1493
    %v1496 = vadd.f32 %v79, %v1494
    %1497 = vadd.xlane.f32.xlu0 %v1495
    %v1498 = vpop.xlane.xlu0 %1497
    %1499 = vadd.xlane.f32.xlu0 %v1496
    %v1500 = vpop.xlane.xlu0 %1499
    %v1501 = vrcp.pop 128.0
    %v1502 = vmul.f32 %v1498, %v1501
    %v1503 = vmul.f32 %v1500, %v1501
    %v1504 = vsub.f32 %v1495, %v1502
    %v1505 = vsub.f32 %v1496, %v1503
    %v1506 = vmul.f32 %v1504, %v1504
    %v1507 = vmul.f32 %v1505, %v1505
    %1508 = vadd.xlane.f32.xlu0 %v1506
    %v1509 = vpop.xlane.xlu0 %1508
    %1510 = vadd.xlane.f32.xlu0 %v1507
    %v1511 = vpop.xlane.xlu0 %1510
    %v1512 = vmul.f32 %v1509, %v1501
    %v1513 = vmul.f32 %v1511, %v1501
    %v1514 = vadd.f32 %v1512, 1e-05
    %v1515 = vadd.f32 %v1513, 1e-05
    %v1516 = vrsqrt.pop %v1514
    %v1517 = vrsqrt.pop %v1515
    %v1518 = vmul.f32 %v1504, %v1516
    %v1519 = vmul.f32 %v1505, %v1517
    %v1520 = vld [vmem:[#allocation6] sm:$0x1]
    %v1522 = vlaneseq
    %v1523 = vshrl.u32 %v1522, 7
    %v1524 = vsub.s32 0, %v1523
    %v1525 = vrot.slane %v1520, %v1524
    %v1527 = vmul.f32 %v1518, %v1525
    %v1528 = vmul.f32 %v1519, %v1525
    %v1529 = vld [vmem:[#allocation7] sm:$0x1]
    %v1531 = vlaneseq
    %v1532 = vshrl.u32 %v1531, 7
    %v1533 = vsub.s32 0, %v1532
    %v1534 = vrot.slane %v1529, %v1533
    %v1536 = vadd.f32 %v1527, %v1534
    %v1537 = vadd.f32 %v1528, %v1534
    %v1538 = vpack.c.bf16 %v1537, %v1536
    %v1540 = vunpack.c.l.b16 %v1538
    %v1541 = vunpack.c.h.b16 %v1538
    %v1542 = vpack.c.b16 %v1540, %v1540
    %v1543 = vpack.c.b16 %v1541, %v1541
    %1546 = vst [vmem:[%s7] sm:$0xf] %v1542
    %1547 = vst [vmem:[%s7 + $0x4] sm:$0xf] %v1543
    // Predicated region
    $region46: #{forward.9} parent=1 // pred_check
      _
    $region47: #{forward.9} parent=1 // pred_check_branch
      %1549 = sbr.rel (0) target = $region49
    $region48: #{forward.9} parent=1 // pred_region
      _
    $region49: #{forward.9} parent=1 // pred_fallthru
      _
    // Predicated region
    $region50: #{forward.9} parent=1 // pred_check
      _
    $region51: #{forward.9} parent=1 // pred_check_branch
      %1551 = sbr.rel (0) target = $region53
    $region52: #{forward.9} parent=1 // pred_region
      _
    $region53: #{forward.9} parent=1 // pred_fallthru
      _
    %1552 = vsyncpa [#allocation3], 1
    %1553 = vsyncpa [#allocation5], 1
    %1554 = vsyncpa [#allocation8], 1

// kernel: forward.10
$region0: #{forward.10}
  #allocation0 [shape = 'u32[]', space=smem, size = 0x4, offset = 0x4, fixed_abs, tag = 'smem constant byte address 0x4 - core index']
  #allocation1 [shape = 'u32[144,128]{1,0:T(1,128)}', space=vmem, size = 0x12000, scoped, tag = 'internal scratch']
  %s0 = inlined_call_operand.vmem [shape: bf16[16,128], index: 0, kind: input, shape index: {}]
  %s1 = inlined_call_operand.hbm [shape: bf16[128,256], index: 1, kind: input, shape index: {}]
  %s2 = inlined_call_operand.hbm [shape: f32[1,256], index: 2, kind: input, shape index: {}]
  %s3 = inlined_call_operand.hbm [shape: bf16[256,128], index: 3, kind: input, shape index: {}]
  %s4 = inlined_call_operand.hbm [shape: f32[1,128], index: 4, kind: input, shape index: {}]
  %s5 = inlined_call_operand.hbm [shape: f32[1,128], index: 5, kind: input, shape index: {}]
  %s6 = inlined_call_operand.hbm [shape: f32[1,128], index: 6, kind: input, shape index: {}]
  %s7 = inlined_call_operand.vmem [shape: bf16[16,128], index: 7, kind: output, shape index: {}]
  %s8 = sld [smem:[#allocation0]]
  $region62: #{forward.10} parent=0
    _
  %s10 = ssub.s32 1, %s8
  %s11 = scalar_select 0, %s10, %s8
  $region1: #{forward.10} parent=0
    #allocation2 [shape = 'u8[65536]{0}', space=vmem, size = 0x10000, scoped, tag = 'input window, operand 1, single buffered']
    #allocation3 [shape = 's32[1]{0}', space=sflag, size = 0x4, scoped, tag = 'scoped memory for forward.10']
    #allocation4 [shape = 'u8[1024]{0}', space=vmem, size = 0x400, scoped, tag = 'input window, operand 2, single buffered']
    #allocation5 [shape = 's32[1]{0}', space=sflag, size = 0x4, scoped, tag = 'scoped memory for forward.10']
    #allocation6 [shape = 'u8[65536]{0}', space=vmem, size = 0x10000, scoped, tag = 'input window, operand 3, single buffered']
    #allocation7 [shape = 'u8[512]{0}', space=vmem, size = 0x400, scoped, tag = 'input window, operand 4, single buffered']
    #allocation8 [shape = 's32[1]{0}', space=sflag, size = 0x4, scoped, tag = 'scoped memory for forward.10']
    #allocation9 [shape = 'u8[512]{0}', space=vmem, size = 0x400, scoped, tag = 'input window, operand 5, single buffered']
    #allocation10 [shape = 'u8[512]{0}', space=vmem, size = 0x400, scoped, tag = 'input window, operand 6, single buffered']
    #allocation11 [shape = 's32[1]{0}', space=sflag, size = 0x4, scoped, tag = 'scoped memory for forward.10']
    %12 = vsyncpa [#allocation3], 0
    %13 = vsyncpa [#allocation5], 0
    %14 = vsyncpa [#allocation8], 0
    %15 = vsyncpa [#allocation11], 0
    // Predicated region
    $region2: #{forward.10} parent=1 // pred_check
      _
    $region3: #{forward.10} parent=1 // pred_check_branch
      %17 = sbr.rel (0) target = $region5
    $region4: #{forward.10} parent=1 // pred_region
      _
    $region5: #{forward.10} parent=1 // pred_fallthru
      _
    // Predicated region
    $region6: #{forward.10} parent=1 // pred_check
      _
    $region7: #{forward.10} parent=1 // pred_check_branch
      %19 = sbr.rel (0) target = $region9
    $region8: #{forward.10} parent=1 // pred_region
      %s21 = ssub.s32 2048, 2048
      %22 = vsyncadd [#allocation3], %s21
      %s23 = sshll.u32 [#allocation2], 4
      %s24 = int_to_ptr.vmem [resolvable:$true] %s23
      %29 = dma.hbm_to_vmem [thread:$0]  %s1, 2048, %s24, [#allocation3], 128, 128, 8
    $region9: #{forward.10} parent=1 // pred_fallthru
      _
    // Predicated region
    $region10: #{forward.10} parent=1 // pred_check
      _
    $region11: #{forward.10} parent=1 // pred_check_branch
      %31 = sbr.rel (0) target = $region13
    $region12: #{forward.10} parent=1 // pred_region
      %s33 = ssub.s32 32, 32
      %34 = vsyncadd [#allocation5], %s33
      %s36 = sshll.u32 [#allocation4], 4
      %s37 = int_to_ptr.vmem [resolvable:$true] %s36
      %39 = dma.hbm_to_vmem [thread:$0]  %s2, 32, %s37, [#allocation5]
    $region13: #{forward.10} parent=1 // pred_fallthru
      _
    // Predicated region
    $region14: #{forward.10} parent=1 // pred_check
      _
    $region15: #{forward.10} parent=1 // pred_check_branch
      %41 = sbr.rel (0) target = $region17
    $region16: #{forward.10} parent=1 // pred_region
      %s43 = ssub.s32 2048, 2048
      %44 = vsyncadd [#allocation5], %s43
      %s45 = sshll.u32 [#allocation6], 4
      %s46 = int_to_ptr.vmem [resolvable:$true] %s45
      %51 = dma.hbm_to_vmem [thread:$0]  %s3, 2048, %s46, [#allocation5], 64, 64, 4
    $region17: #{forward.10} parent=1 // pred_fallthru
      _
    // Predicated region
    $region18: #{forward.10} parent=1 // pred_check
      _
    $region19: #{forward.10} parent=1 // pred_check_branch
      %53 = sbr.rel (0) target = $region21
    $region20: #{forward.10} parent=1 // pred_region
      %s55 = ssub.s32 16, 16
      %56 = vsyncadd [#allocation8], %s55
      %s58 = sshll.u32 [#allocation7], 4
      %s59 = int_to_ptr.vmem [resolvable:$true] %s58
      %61 = dma.hbm_to_vmem [thread:$0]  %s4, 16, %s59, [#allocation8]
    $region21: #{forward.10} parent=1 // pred_fallthru
      _
    // Predicated region
    $region22: #{forward.10} parent=1 // pred_check
      _
    $region23: #{forward.10} parent=1 // pred_check_branch
      %63 = sbr.rel (0) target = $region25
    $region24: #{forward.10} parent=1 // pred_region
      %s65 = ssub.s32 16, 16
      %66 = vsyncadd [#allocation8], %s65
      %s68 = sshll.u32 [#allocation9], 4
      %s69 = int_to_ptr.vmem [resolvable:$true] %s68
      %71 = dma.hbm_to_vmem [thread:$0]  %s5, 16, %s69, [#allocation8]
    $region25: #{forward.10} parent=1 // pred_fallthru
      _
    // Predicated region
    $region26: #{forward.10} parent=1 // pred_check
      _
    $region27: #{forward.10} parent=1 // pred_check_branch
      %73 = sbr.rel (0) target = $region29
    $region28: #{forward.10} parent=1 // pred_region
      %s75 = ssub.s32 16, 16
      %76 = vsyncadd [#allocation11], %s75
      %s78 = sshll.u32 [#allocation10], 4
      %s79 = int_to_ptr.vmem [resolvable:$true] %s78
      %81 = dma.hbm_to_vmem [thread:$0]  %s6, 16, %s79, [#allocation11]
    $region29: #{forward.10} parent=1 // pred_fallthru
      _
    // Predicated region
    $region30: #{forward.10} parent=1 // pred_check
      _
    $region31: #{forward.10} parent=1 // pred_check_branch
      %83 = sbr.rel (0) target = $region33
    $region32: #{forward.10} parent=1 // pred_region
      %84 = dma.done [#allocation3], 2048
    $region33: #{forward.10} parent=1 // pred_fallthru
      _
    // Predicated region
    $region34: #{forward.10} parent=1 // pred_check
      _
    $region35: #{forward.10} parent=1 // pred_check_branch
      %86 = sbr.rel (0) target = $region37
    $region36: #{forward.10} parent=1 // pred_region
      %87 = dma.done [#allocation5], 32
    $region37: #{forward.10} parent=1 // pred_fallthru
      _
    // Predicated region
    $region38: #{forward.10} parent=1 // pred_check
      _
    $region39: #{forward.10} parent=1 // pred_check_branch
      %89 = sbr.rel (0) target = $region41
    $region40: #{forward.10} parent=1 // pred_region
      %90 = dma.done [#allocation5], 2048
    $region41: #{forward.10} parent=1 // pred_fallthru
      _
    // Predicated region
    $region42: #{forward.10} parent=1 // pred_check
      _
    $region43: #{forward.10} parent=1 // pred_check_branch
      %92 = sbr.rel (0) target = $region45
    $region44: #{forward.10} parent=1 // pred_region
      %93 = dma.done [#allocation8], 16
    $region45: #{forward.10} parent=1 // pred_fallthru
      _
    // Predicated region
    $region46: #{forward.10} parent=1 // pred_check
      _
    $region47: #{forward.10} parent=1 // pred_check_branch
      %95 = sbr.rel (0) target = $region49
    $region48: #{forward.10} parent=1 // pred_region
      %96 = dma.done [#allocation8], 16
    $region49: #{forward.10} parent=1 // pred_fallthru
      _
    // Predicated region
    $region50: #{forward.10} parent=1 // pred_check
      _
    $region51: #{forward.10} parent=1 // pred_check_branch
      %98 = sbr.rel (0) target = $region53
    $region52: #{forward.10} parent=1 // pred_region
      %99 = dma.done [#allocation11], 16
    $region53: #{forward.10} parent=1 // pred_fallthru
      _
    %v101 = vld [vmem:[%s0] sm:$0xf]
    %v102 = vld [vmem:[%s0 + $0x4] sm:$0xf]
    %v103 = vunpack.c.l.bf16 %v101
    %v104 = vunpack.c.l.bf16 %v102
    %v105 = vld [vmem:[#allocation2] sm:$0xff]
    %v106 = vld [vmem:[#allocation2 + $0x8] sm:$0xff]
    %v107 = vld [vmem:[#allocation2 + $0x10] sm:$0xff]
    %v108 = vld [vmem:[#allocation2 + $0x18] sm:$0xff]
    %v109 = vld [vmem:[#allocation2 + $0x20] sm:$0xff]
    %v110 = vld [vmem:[#allocation2 + $0x28] sm:$0xff]
    %v111 = vld [vmem:[#allocation2 + $0x30] sm:$0xff]
    %v112 = vld [vmem:[#allocation2 + $0x38] sm:$0xff]
    %v113 = vld [vmem:[#allocation2 + $0x40] sm:$0xff]
    %v114 = vld [vmem:[#allocation2 + $0x48] sm:$0xff]
    %v115 = vld [vmem:[#allocation2 + $0x50] sm:$0xff]
    %v116 = vld [vmem:[#allocation2 + $0x58] sm:$0xff]
    %v117 = vld [vmem:[#allocation2 + $0x60] sm:$0xff]
    %v118 = vld [vmem:[#allocation2 + $0x68] sm:$0xff]
    %v119 = vld [vmem:[#allocation2 + $0x70] sm:$0xff]
    %v120 = vld [vmem:[#allocation2 + $0x78] sm:$0xff]
    %v121 = vld [vmem:[#allocation4] sm:$0x3]
    %v123 = vlaneseq
    %v124 = vshrl.u32 %v123, 7
    %v125 = vsub.s32 0, %v124
    %v126 = vrot.slane %v121, %v125
    %v127 = vlaneseq
    %v128 = vshrl.u32 %v127, 7
    %v129 = vsub.s32 1, %v128
    %v130 = vrot.slane %v121, %v129
    %v135 = vunpack.c.l.b16 %v101
    %v136 = vunpack.c.l.b16 %v102
    %v137 = vpack.c.b16 %v136, %v135
    %v155 = vunpack.c.l.b16 %v105
    %v156 = vunpack.c.h.b16 %v105
    %v157 = vunpack.c.l.b16 %v106
    %v158 = vunpack.c.h.b16 %v106
    %v159 = vunpack.c.l.b16 %v107
    %v160 = vunpack.c.h.b16 %v107
    %v161 = vunpack.c.l.b16 %v108
    %v162 = vunpack.c.h.b16 %v108
    %v163 = vunpack.c.l.b16 %v109
    %v164 = vunpack.c.h.b16 %v109
    %v165 = vunpack.c.l.b16 %v110
    %v166 = vunpack.c.h.b16 %v110
    %v167 = vunpack.c.l.b16 %v111
    %v168 = vunpack.c.h.b16 %v111
    %v169 = vunpack.c.l.b16 %v112
    %v170 = vunpack.c.h.b16 %v112
    %v171 = vunpack.c.l.b16 %v113
    %v172 = vunpack.c.h.b16 %v113
    %v173 = vunpack.c.l.b16 %v114
    %v174 = vunpack.c.h.b16 %v114
    %v175 = vunpack.c.l.b16 %v115
    %v176 = vunpack.c.h.b16 %v115
    %v177 = vunpack.c.l.b16 %v116
    %v178 = vunpack.c.h.b16 %v116
    %v179 = vunpack.c.l.b16 %v117
    %v180 = vunpack.c.h.b16 %v117
    %v181 = vunpack.c.l.b16 %v118
    %v182 = vunpack.c.h.b16 %v118
    %v183 = vunpack.c.l.b16 %v119
    %v184 = vunpack.c.h.b16 %v119
    %v185 = vunpack.c.l.b16 %v120
    %v186 = vunpack.c.h.b16 %v120
    %v187 = vpack.c.b16 %v157, %v155
    %v188 = vpack.c.b16 %v158, %v156
    %v189 = vpack.c.b16 %v161, %v159
    %v190 = vpack.c.b16 %v162, %v160
    %v191 = vpack.c.b16 %v165, %v163
    %v192 = vpack.c.b16 %v166, %v164
    %v193 = vpack.c.b16 %v169, %v167
    %v194 = vpack.c.b16 %v170, %v168
    %v195 = vpack.c.b16 %v173, %v171
    %v196 = vpack.c.b16 %v174, %v172
    %v197 = vpack.c.b16 %v177, %v175
    %v198 = vpack.c.b16 %v178, %v176
    %v199 = vpack.c.b16 %v181, %v179
    %v200 = vpack.c.b16 %v182, %v180
    %v201 = vpack.c.b16 %v185, %v183
    %v202 = vpack.c.b16 %v186, %v184
    %219 = vmatprep.subr.bf16.mxu0 %v188
    %220 = vmatpush1.bf16.msra.mxu0 %v187
    %221 = vmatprep.subr.bf16.mxu0 %v190
    %222 = vmatpush1.bf16.msra.mxu0 %v189
    %223 = vmatprep.subr.bf16.mxu0 %v192
    %224 = vmatpush1.bf16.msra.mxu0 %v191
    %225 = vmatprep.subr.bf16.mxu0 %v194
    %226 = vmatpush1.bf16.msra.mxu0 %v193
    %227 = vmatprep.subr.bf16.mxu0 %v196
    %228 = vmatpush1.bf16.msra.mxu0 %v195
    %229 = vmatprep.subr.bf16.mxu0 %v198
    %230 = vmatpush1.bf16.msra.mxu0 %v197
    %231 = vmatprep.subr.bf16.mxu0 %v200
    %232 = vmatpush1.bf16.msra.mxu0 %v199
    %233 = vmatprep.subr.bf16.mxu0 %v202
    %234 = vmatpush1.bf16.msra.mxu0 %v201
    %235 = vmatprep.subr.bf16.mxu0 0
    %236 = vmatpush1.bf16.msra.mxu0 0
    %237 = vmatprep.subr.bf16.mxu0 0
    %238 = vmatpush1.bf16.msra.mxu0 0
    %239 = vmatprep.subr.bf16.mxu0 0
    %240 = vmatpush1.bf16.msra.mxu0 0
    %241 = vmatprep.subr.bf16.mxu0 0
    %242 = vmatpush1.bf16.msra.mxu0 0
    %243 = vmatprep.subr.bf16.mxu0 0
    %244 = vmatpush1.bf16.msra.mxu0 0
    %245 = vmatprep.subr.bf16.mxu0 0
    %246 = vmatpush1.bf16.msra.mxu0 0
    %247 = vmatprep.subr.bf16.mxu0 0
    %248 = vmatpush1.bf16.msra.mxu0 0
    %249 = vmatprep.subr.bf16.mxu0 0
    %250 = vmatpush1.bf16.msra.mxu0 0
    %251 = vmatprep.mubr.bf16.mxu0 0
    %252 = vmatmul.mubr.bf16.gmra.mrb[0].mxu0 %v137
    %v253 = vpop.f32.mrb[0].mxu0
    %v254 = vadd.f32 %v126, %v253
    %v255 = vpop.f32.mrb[0].mxu0
    %v256 = vadd.f32 %v130, %v255
    %v257 = vpop.f32.mrb[0].mxu0
    %v258 = vadd.f32 %v126, %v257
    %v259 = vpop.f32.mrb[0].mxu0
    %v260 = vadd.f32 %v130, %v259
    %261 = vdwg.mxu0
    %v262 = vmax.f32 %v254, 0.0
    %v263 = vmax.f32 %v256, 0.0
    %v264 = vmax.f32 %v258, 0.0
    %v265 = vmax.f32 %v260, 0.0
    %v266 = vpack.c.bf16 %v264, %v262
    %v267 = vpack.c.bf16 %v265, %v263
    %v268 = vld [vmem:[#allocation6] sm:$0xf]
    %v269 = vld [vmem:[#allocation6 + $0x4] sm:$0xf]
    %v270 = vld [vmem:[#allocation6 + $0x8] sm:$0xf]
    %v271 = vld [vmem:[#allocation6 + $0xc] sm:$0xf]
    %v272 = vld [vmem:[#allocation6 + $0x10] sm:$0xf]
    %v273 = vld [vmem:[#allocation6 + $0x14] sm:$0xf]
    %v274 = vld [vmem:[#allocation6 + $0x18] sm:$0xf]
    %v275 = vld [vmem:[#allocation6 + $0x1c] sm:$0xf]
    %v276 = vld [vmem:[#allocation6 + $0x20] sm:$0xf]
    %v277 = vld [vmem:[#allocation6 + $0x24] sm:$0xf]
    %v278 = vld [vmem:[#allocation6 + $0x28] sm:$0xf]
    %v279 = vld [vmem:[#allocation6 + $0x2c] sm:$0xf]
    %v280 = vld [vmem:[#allocation6 + $0x30] sm:$0xf]
    %v281 = vld [vmem:[#allocation6 + $0x34] sm:$0xf]
    %v282 = vld [vmem:[#allocation6 + $0x38] sm:$0xf]
    %v283 = vld [vmem:[#allocation6 + $0x3c] sm:$0xf]
    %v284 = vld [vmem:[#allocation6 + $0x40] sm:$0xf]
    %v285 = vld [vmem:[#allocation6 + $0x44] sm:$0xf]
    %v286 = vld [vmem:[#allocation6 + $0x48] sm:$0xf]
    %v287 = vld [vmem:[#allocation6 + $0x4c] sm:$0xf]
    %v288 = vld [vmem:[#allocation6 + $0x50] sm:$0xf]
    %v289 = vld [vmem:[#allocation6 + $0x54] sm:$0xf]
    %v290 = vld [vmem:[#allocation6 + $0x58] sm:$0xf]
    %v291 = vld [vmem:[#allocation6 + $0x5c] sm:$0xf]
    %v292 = vld [vmem:[#allocation6 + $0x60] sm:$0xf]
    %v293 = vld [vmem:[#allocation6 + $0x64] sm:$0xf]
    %v294 = vld [vmem:[#allocation6 + $0x68] sm:$0xf]
    %v295 = vld [vmem:[#allocation6 + $0x6c] sm:$0xf]
    %v296 = vld [vmem:[#allocation6 + $0x70] sm:$0xf]
    %v297 = vld [vmem:[#allocation6 + $0x74] sm:$0xf]
    %v298 = vld [vmem:[#allocation6 + $0x78] sm:$0xf]
    %v299 = vld [vmem:[#allocation6 + $0x7c] sm:$0xf]
    %v300 = vld [vmem:[#allocation7] sm:$0x1]
    %v302 = vlaneseq
    %v303 = vshrl.u32 %v302, 7
    %v304 = vsub.s32 0, %v303
    %v305 = vrot.slane %v300, %v304
    %v339 = vunpack.c.l.b16 %v268
    %v340 = vunpack.c.l.b16 %v269
    %v341 = vunpack.c.l.b16 %v270
    %v342 = vunpack.c.l.b16 %v271
    %v343 = vunpack.c.l.b16 %v272
    %v344 = vunpack.c.l.b16 %v273
    %v345 = vunpack.c.l.b16 %v274
    %v346 = vunpack.c.l.b16 %v275
    %v347 = vunpack.c.l.b16 %v276
    %v348 = vunpack.c.l.b16 %v277
    %v349 = vunpack.c.l.b16 %v278
    %v350 = vunpack.c.l.b16 %v279
    %v351 = vunpack.c.l.b16 %v280
    %v352 = vunpack.c.l.b16 %v281
    %v353 = vunpack.c.l.b16 %v282
    %v354 = vunpack.c.l.b16 %v283
    %v355 = vunpack.c.l.b16 %v284
    %v356 = vunpack.c.l.b16 %v285
    %v357 = vunpack.c.l.b16 %v286
    %v358 = vunpack.c.l.b16 %v287
    %v359 = vunpack.c.l.b16 %v288
    %v360 = vunpack.c.l.b16 %v289
    %v361 = vunpack.c.l.b16 %v290
    %v362 = vunpack.c.l.b16 %v291
    %v363 = vunpack.c.l.b16 %v292
    %v364 = vunpack.c.l.b16 %v293
    %v365 = vunpack.c.l.b16 %v294
    %v366 = vunpack.c.l.b16 %v295
    %v367 = vunpack.c.l.b16 %v296
    %v368 = vunpack.c.l.b16 %v297
    %v369 = vunpack.c.l.b16 %v298
    %v370 = vunpack.c.l.b16 %v299
    %v371 = vpack.c.b16 %v340, %v339
    %v372 = vpack.c.b16 %v342, %v341
    %v373 = vpack.c.b16 %v344, %v343
    %v374 = vpack.c.b16 %v346, %v345
    %v375 = vpack.c.b16 %v348, %v347
    %v376 = vpack.c.b16 %v350, %v349
    %v377 = vpack.c.b16 %v352, %v351
    %v378 = vpack.c.b16 %v354, %v353
    %v379 = vpack.c.b16 %v356, %v355
    %v380 = vpack.c.b16 %v358, %v357
    %v381 = vpack.c.b16 %v360, %v359
    %v382 = vpack.c.b16 %v362, %v361
    %v383 = vpack.c.b16 %v364, %v363
    %v384 = vpack.c.b16 %v366, %v365
    %v385 = vpack.c.b16 %v368, %v367
    %v386 = vpack.c.b16 %v370, %v369
    %403 = vmatprep.subr.bf16.mxu0 0
    %404 = vmatpush1.bf16.msra.mxu0 %v371
    %405 = vmatprep.subr.bf16.mxu0 0
    %406 = vmatpush1.bf16.msra.mxu0 %v372
    %407 = vmatprep.subr.bf16.mxu0 0
    %408 = vmatpush1.bf16.msra.mxu0 %v373
    %409 = vmatprep.subr.bf16.mxu0 0
    %410 = vmatpush1.bf16.msra.mxu0 %v374
    %411 = vmatprep.subr.bf16.mxu0 0
    %412 = vmatpush1.bf16.msra.mxu0 %v375
    %413 = vmatprep.subr.bf16.mxu0 0
    %414 = vmatpush1.bf16.msra.mxu0 %v376
    %415 = vmatprep.subr.bf16.mxu0 0
    %416 = vmatpush1.bf16.msra.mxu0 %v377
    %417 = vmatprep.subr.bf16.mxu0 0
    %418 = vmatpush1.bf16.msra.mxu0 %v378
    %419 = vmatprep.subr.bf16.mxu0 0
    %420 = vmatpush1.bf16.msra.mxu0 %v379
    %421 = vmatprep.subr.bf16.mxu0 0
    %422 = vmatpush1.bf16.msra.mxu0 %v380
    %423 = vmatprep.subr.bf16.mxu0 0
    %424 = vmatpush1.bf16.msra.mxu0 %v381
    %425 = vmatprep.subr.bf16.mxu0 0
    %426 = vmatpush1.bf16.msra.mxu0 %v382
    %427 = vmatprep.subr.bf16.mxu0 0
    %428 = vmatpush1.bf16.msra.mxu0 %v383
    %429 = vmatprep.subr.bf16.mxu0 0
    %430 = vmatpush1.bf16.msra.mxu0 %v384
    %431 = vmatprep.subr.bf16.mxu0 0
    %432 = vmatpush1.bf16.msra.mxu0 %v385
    %433 = vmatprep.subr.bf16.mxu0 0
    %434 = vmatpush1.bf16.msra.mxu0 %v386
    %435 = vmatprep.mubr.bf16.mxu0 %v267
    %436 = vmatmul.mubr.bf16.gmra.mrb[0].mxu0 %v266
    %v437 = vpop.f32.mrb[0].mxu0
    %v438 = vadd.f32 %v305, %v437
    %v439 = vpop.f32.mrb[0].mxu0
    %v440 = vpop.f32.mrb[0].mxu0
    %v441 = vadd.f32 %v305, %v440
    %v442 = vpop.f32.mrb[0].mxu0
    %443 = vdwg.mxu0
    %v444 = vadd.f32 %v103, %v438
    %v445 = vadd.f32 %v104, %v441
    %446 = vadd.xlane.f32.xlu0 %v444
    %v447 = vpop.xlane.xlu0 %446
    %448 = vadd.xlane.f32.xlu0 %v445
    %v449 = vpop.xlane.xlu0 %448
    %v450 = vrcp.pop 128.0
    %v451 = vmul.f32 %v447, %v450
    %v452 = vmul.f32 %v449, %v450
    %v453 = vsub.f32 %v444, %v451
    %v454 = vsub.f32 %v445, %v452
    %v455 = vmul.f32 %v453, %v453
    %v456 = vmul.f32 %v454, %v454
    %457 = vadd.xlane.f32.xlu0 %v455
    %v458 = vpop.xlane.xlu0 %457
    %459 = vadd.xlane.f32.xlu0 %v456
    %v460 = vpop.xlane.xlu0 %459
    %v461 = vmul.f32 %v458, %v450
    %v462 = vmul.f32 %v460, %v450
    %v463 = vadd.f32 %v461, 1e-05
    %v464 = vadd.f32 %v462, 1e-05
    %v465 = vrsqrt.pop %v463
    %v466 = vrsqrt.pop %v464
    %v467 = vmul.f32 %v453, %v465
    %v468 = vmul.f32 %v454, %v466
    %v469 = vld [vmem:[#allocation9] sm:$0x1]
    %v471 = vlaneseq
    %v472 = vshrl.u32 %v471, 7
    %v473 = vsub.s32 0, %v472
    %v474 = vrot.slane %v469, %v473
    %v476 = vmul.f32 %v467, %v474
    %v477 = vmul.f32 %v468, %v474
    %v478 = vld [vmem:[#allocation10] sm:$0x1]
    %v480 = vlaneseq
    %v481 = vshrl.u32 %v480, 7
    %v482 = vsub.s32 0, %v481
    %v483 = vrot.slane %v478, %v482
    %v485 = vadd.f32 %v476, %v483
    %v486 = vadd.f32 %v477, %v483
    %v487 = vpack.c.bf16 %v486, %v485
    %v489 = vunpack.c.l.b16 %v487
    %v490 = vunpack.c.h.b16 %v487
    %v491 = vpack.c.b16 %v489, %v489
    %v492 = vpack.c.b16 %v490, %v490
    %495 = vst [vmem:[%s7] sm:$0xf] %v491
    %496 = vst [vmem:[%s7 + $0x4] sm:$0xf] %v492
    // Predicated region
    $region54: #{forward.10} parent=1 // pred_check
      _
    $region55: #{forward.10} parent=1 // pred_check_branch
      %498 = sbr.rel (0) target = $region57
    $region56: #{forward.10} parent=1 // pred_region
      _
    $region57: #{forward.10} parent=1 // pred_fallthru
      _
    // Predicated region
    $region58: #{forward.10} parent=1 // pred_check
      _
    $region59: #{forward.10} parent=1 // pred_check_branch
      %500 = sbr.rel (0) target = $region61
    $region60: #{forward.10} parent=1 // pred_region
      _
    $region61: #{forward.10} parent=1 // pred_fallthru
      _
    %501 = vsyncpa [#allocation3], 1
    %502 = vsyncpa [#allocation5], 1
    %503 = vsyncpa [#allocation8], 1
    %504 = vsyncpa [#allocation11], 1

// kernel: forward.11
$region0: #{forward.11}
  #allocation0 [shape = 'u32[]', space=smem, size = 0x4, offset = 0x4, fixed_abs, tag = 'smem constant byte address 0x4 - core index']
  #allocation1 [shape = 'u32[144,128]{1,0:T(1,128)}', space=vmem, size = 0x12000, scoped, tag = 'internal scratch']
  %s0 = inlined_call_operand.vmem [shape: bf16[2,128], index: 0, kind: input, shape index: {}]
  %s1 = inlined_call_operand.vmem [shape: bf16[128,256], index: 1, kind: input, shape index: {}]
  %s2 = inlined_call_operand.hbm [shape: f32[1,256], index: 2, kind: input, shape index: {}]
  %s3 = inlined_call_operand.vmem [shape: bf16[256,64], index: 3, kind: input, shape index: {}]
  %s4 = inlined_call_operand.vmem [shape: f32[1,64], index: 4, kind: input, shape index: {}]
  %s5 = inlined_call_operand.vmem [shape: bf16[64,2], index: 5, kind: input, shape index: {}]
  %s6 = inlined_call_operand.hbm [shape: f32[1,2], index: 6, kind: input, shape index: {}]
  %s7 = inlined_call_operand.vmem [shape: bf16[128,512], index: 7, kind: input, shape index: {}]
  %s8 = inlined_call_operand.hbm [shape: f32[1,512], index: 8, kind: input, shape index: {}]
  %s9 = inlined_call_operand.vmem [shape: bf16[512,256], index: 9, kind: input, shape index: {}]
  %s10 = inlined_call_operand.hbm [shape: f32[1,256], index: 10, kind: input, shape index: {}]
  %s11 = inlined_call_operand.vmem [shape: bf16[256,512], index: 11, kind: input, shape index: {}]
  %s12 = inlined_call_operand.hbm [shape: f32[1,512], index: 12, kind: input, shape index: {}]
  %s13 = inlined_call_operand.vmem [shape: bf16[128,512], index: 13, kind: input, shape index: {}]
  %s14 = inlined_call_operand.hbm [shape: f32[1,512], index: 14, kind: input, shape index: {}]
  %s15 = inlined_call_operand.vmem [shape: bf16[512,256], index: 15, kind: input, shape index: {}]
  %s16 = inlined_call_operand.hbm [shape: f32[1,256], index: 16, kind: input, shape index: {}]
  %s17 = inlined_call_operand.vmem [shape: bf16[256,16], index: 17, kind: input, shape index: {}]
  %s18 = inlined_call_operand.hbm [shape: f32[1,16], index: 18, kind: input, shape index: {}]
  %s19 = inlined_call_operand.vmem [shape: bf16[128,256], index: 19, kind: input, shape index: {}]
  %s20 = inlined_call_operand.hbm [shape: f32[1,256], index: 20, kind: input, shape index: {}]
  %s21 = inlined_call_operand.vmem [shape: bf16[256,64], index: 21, kind: input, shape index: {}]
  %s22 = inlined_call_operand.hbm [shape: f32[1,64], index: 22, kind: input, shape index: {}]
  %s23 = inlined_call_operand.vmem [shape: bf16[64,3], index: 23, kind: input, shape index: {}]
  %s24 = inlined_call_operand.hbm [shape: f32[1,3], index: 24, kind: input, shape index: {}]
  %s25 = inlined_call_operand.hbm [shape: f32[2,2], index: 25, kind: output, shape index: {0}]
  %s26 = inlined_call_operand.hbm [shape: f32[2,512], index: 26, kind: output, shape index: {1}]
  %s27 = inlined_call_operand.hbm [shape: f32[2,16], index: 27, kind: output, shape index: {2}]
  %s28 = inlined_call_operand.hbm [shape: f32[2,3], index: 28, kind: output, shape index: {3}]
  %29 = xla_tuple %s25, %s26, %s27, %s28
  %s30 = sld [smem:[#allocation0]]
  $region178: #{forward.11} parent=0
    _
  %s32 = ssub.s32 1, %s30
  %s33 = scalar_select 0, %s32, %s30
  $region1: #{forward.11} parent=0
    #allocation2 [shape = 'u8[1024]{0}', space=vmem, size = 0x400, scoped, tag = 'input window, operand 2, single buffered']
    #allocation3 [shape = 's32[1]{0}', space=sflag, size = 0x4, scoped, tag = 'scoped memory for forward.11']
    #allocation4 [shape = 's32[1]{0}', space=sflag, size = 0x4, scoped, tag = 'scoped memory for forward.11']
    #allocation5 [shape = 'u8[512]{0}', space=vmem, size = 0x400, scoped, tag = 'input window, operand 6, single buffered']
    #allocation6 [shape = 's32[1]{0}', space=sflag, size = 0x4, scoped, tag = 'scoped memory for forward.11']
    #allocation7 [shape = 'u8[2048]{0}', space=vmem, size = 0x800, scoped, tag = 'input window, operand 8, single buffered']
    #allocation8 [shape = 'u8[1024]{0}', space=vmem, size = 0x400, scoped, tag = 'input window, operand 10, single buffered']
    #allocation9 [shape = 's32[1]{0}', space=sflag, size = 0x4, scoped, tag = 'scoped memory for forward.11']
    #allocation10 [shape = 'u8[2048]{0}', space=vmem, size = 0x800, scoped, tag = 'input window, operand 12, single buffered']
    #allocation11 [shape = 'u8[2048]{0}', space=vmem, size = 0x800, scoped, tag = 'input window, operand 14, single buffered']
    #allocation12 [shape = 's32[1]{0}', space=sflag, size = 0x4, scoped, tag = 'scoped memory for forward.11']
    #allocation13 [shape = 'u8[1024]{0}', space=vmem, size = 0x400, scoped, tag = 'input window, operand 16, single buffered']
    #allocation14 [shape = 'u8[512]{0}', space=vmem, size = 0x400, scoped, tag = 'input window, operand 18, single buffered']
    #allocation15 [shape = 's32[1]{0}', space=sflag, size = 0x4, scoped, tag = 'scoped memory for forward.11']
    #allocation16 [shape = 'u8[1024]{0}', space=vmem, size = 0x400, scoped, tag = 'input window, operand 20, single buffered']
    #allocation17 [shape = 'u8[512]{0}', space=vmem, size = 0x400, scoped, tag = 'input window, operand 22, single buffered']
    #allocation18 [shape = 's32[1]{0}', space=sflag, size = 0x4, scoped, tag = 'scoped memory for forward.11']
    #allocation19 [shape = 'u8[512]{0}', space=vmem, size = 0x400, scoped, tag = 'input window, operand 24, single buffered']
    #allocation20 [shape = 'u8[1024]{0}', space=vmem, size = 0x400, scoped, tag = 'output window, operand 0, single buffered']
    #allocation21 [shape = 'u8[4096]{0}', space=vmem, size = 0x1000, scoped, tag = 'output window, operand 1, single buffered']
    #allocation22 [shape = 's32[1]{0}', space=sflag, size = 0x4, scoped, tag = 'scoped memory for forward.11']
    #allocation23 [shape = 'u8[1024]{0}', space=vmem, size = 0x400, scoped, tag = 'output window, operand 2, single buffered']
    #allocation24 [shape = 'u8[1024]{0}', space=vmem, size = 0x400, scoped, tag = 'output window, operand 3, single buffered']
    #allocation25 [shape = 's32[1]{0}', space=sflag, size = 0x4, scoped, tag = 'scoped memory for forward.11']
    %34 = vsyncpa [#allocation3], 0
    %35 = vsyncpa [#allocation6], 0
    %36 = vsyncpa [#allocation9], 0
    %37 = vsyncpa [#allocation12], 0
    %38 = vsyncpa [#allocation15], 0
    %39 = vsyncpa [#allocation18], 0
    %40 = vsyncpa [#allocation4], 0
    %41 = vsyncpa [#allocation22], 0
    %42 = vsyncpa [#allocation25], 0
    // Predicated region
    $region2: #{forward.11} parent=1 // pred_check
      _
    $region3: #{forward.11} parent=1 // pred_check_branch
      %44 = sbr.rel (0) target = $region5
    $region4: #{forward.11} parent=1 // pred_region
      _
    $region5: #{forward.11} parent=1 // pred_fallthru
      _
    // Predicated region
    $region6: #{forward.11} parent=1 // pred_check
      _
    $region7: #{forward.11} parent=1 // pred_check_branch
      %46 = sbr.rel (0) target = $region9
    $region8: #{forward.11} parent=1 // pred_region
      _
    $region9: #{forward.11} parent=1 // pred_fallthru
      _
    // Predicated region
    $region10: #{forward.11} parent=1 // pred_check
      _
    $region11: #{forward.11} parent=1 // pred_check_branch
      %48 = sbr.rel (0) target = $region13
    $region12: #{forward.11} parent=1 // pred_region
      %s50 = ssub.s32 32, 32
      %51 = vsyncadd [#allocation3], %s50
      %s53 = sshll.u32 [#allocation2], 4
      %s54 = int_to_ptr.vmem [resolvable:$true] %s53
      %56 = dma.hbm_to_vmem [thread:$0]  %s2, 32, %s54, [#allocation3]
    $region13: #{forward.11} parent=1 // pred_fallthru
      _
    // Predicated region
    $region14: #{forward.11} parent=1 // pred_check
      _
    $region15: #{forward.11} parent=1 // pred_check_branch
      %58 = sbr.rel (0) target = $region17
    $region16: #{forward.11} parent=1 // pred_region
      _
    $region17: #{forward.11} parent=1 // pred_fallthru
      _
    // Predicated region
    $region18: #{forward.11} parent=1 // pred_check
      _
    $region19: #{forward.11} parent=1 // pred_check_branch
      %60 = sbr.rel (0) target = $region21
    $region20: #{forward.11} parent=1 // pred_region
      _
    $region21: #{forward.11} parent=1 // pred_fallthru
      _
    // Predicated region
    $region22: #{forward.11} parent=1 // pred_check
      _
    $region23: #{forward.11} parent=1 // pred_check_branch
      %62 = sbr.rel (0) target = $region25
    $region24: #{forward.11} parent=1 // pred_region
      _
    $region25: #{forward.11} parent=1 // pred_fallthru
      _
    // Predicated region
    $region26: #{forward.11} parent=1 // pred_check
      _
    $region27: #{forward.11} parent=1 // pred_check_branch
      %64 = sbr.rel (0) target = $region29
    $region28: #{forward.11} parent=1 // pred_region
      %s66 = ssub.s32 16, 16
      %67 = vsyncadd [#allocation6], %s66
      %s69 = sshll.u32 [#allocation5], 4
      %s70 = int_to_ptr.vmem [resolvable:$true] %s69
      %72 = dma.hbm_to_vmem [thread:$0]  %s6, 16, %s70, [#allocation6]
    $region29: #{forward.11} parent=1 // pred_fallthru
      _
    // Predicated region
    $region30: #{forward.11} parent=1 // pred_check
      _
    $region31: #{forward.11} parent=1 // pred_check_branch
      %74 = sbr.rel (0) target = $region33
    $region32: #{forward.11} parent=1 // pred_region
      _
    $region33: #{forward.11} parent=1 // pred_fallthru
      _
    // Predicated region
    $region34: #{forward.11} parent=1 // pred_check
      _
    $region35: #{forward.11} parent=1 // pred_check_branch
      %76 = sbr.rel (0) target = $region37
    $region36: #{forward.11} parent=1 // pred_region
      %s78 = ssub.s32 64, 64
      %79 = vsyncadd [#allocation6], %s78
      %s81 = sshll.u32 [#allocation7], 4
      %s82 = int_to_ptr.vmem [resolvable:$true] %s81
      %84 = dma.hbm_to_vmem [thread:$0]  %s8, 64, %s82, [#allocation6]
    $region37: #{forward.11} parent=1 // pred_fallthru
      _
    // Predicated region
    $region38: #{forward.11} parent=1 // pred_check
      _
    $region39: #{forward.11} parent=1 // pred_check_branch
      %86 = sbr.rel (0) target = $region41
    $region40: #{forward.11} parent=1 // pred_region
      _
    $region41: #{forward.11} parent=1 // pred_fallthru
      _
    // Predicated region
    $region42: #{forward.11} parent=1 // pred_check
      _
    $region43: #{forward.11} parent=1 // pred_check_branch
      %88 = sbr.rel (0) target = $region45
    $region44: #{forward.11} parent=1 // pred_region
      %s90 = ssub.s32 32, 32
      %91 = vsyncadd [#allocation9], %s90
      %s93 = sshll.u32 [#allocation8], 4
      %s94 = int_to_ptr.vmem [resolvable:$true] %s93
      %96 = dma.hbm_to_vmem [thread:$0]  %s10, 32, %s94, [#allocation9]
    $region45: #{forward.11} parent=1 // pred_fallthru
      _
    // Predicated region
    $region46: #{forward.11} parent=1 // pred_check
      _
    $region47: #{forward.11} parent=1 // pred_check_branch
      %98 = sbr.rel (0) target = $region49
    $region48: #{forward.11} parent=1 // pred_region
      _
    $region49: #{forward.11} parent=1 // pred_fallthru
      _
    // Predicated region
    $region50: #{forward.11} parent=1 // pred_check
      _
    $region51: #{forward.11} parent=1 // pred_check_branch
      %100 = sbr.rel (0) target = $region53
    $region52: #{forward.11} parent=1 // pred_region
      %s102 = ssub.s32 64, 64
      %103 = vsyncadd [#allocation9], %s102
      %s105 = sshll.u32 [#allocation10], 4
      %s106 = int_to_ptr.vmem [resolvable:$true] %s105
      %108 = dma.hbm_to_vmem [thread:$0]  %s12, 64, %s106, [#allocation9]
    $region53: #{forward.11} parent=1 // pred_fallthru
      _
    // Predicated region
    $region54: #{forward.11} parent=1 // pred_check
      _
    $region55: #{forward.11} parent=1 // pred_check_branch
      %110 = sbr.rel (0) target = $region57
    $region56: #{forward.11} parent=1 // pred_region
      _
    $region57: #{forward.11} parent=1 // pred_fallthru
      _
    // Predicated region
    $region58: #{forward.11} parent=1 // pred_check
      _
    $region59: #{forward.11} parent=1 // pred_check_branch
      %112 = sbr.rel (0) target = $region61
    $region60: #{forward.11} parent=1 // pred_region
      %s114 = ssub.s32 64, 64
      %115 = vsyncadd [#allocation12], %s114
      %s117 = sshll.u32 [#allocation11], 4
      %s118 = int_to_ptr.vmem [resolvable:$true] %s117
      %120 = dma.hbm_to_vmem [thread:$0]  %s14, 64, %s118, [#allocation12]
    $region61: #{forward.11} parent=1 // pred_fallthru
      _
    // Predicated region
    $region62: #{forward.11} parent=1 // pred_check
      _
    $region63: #{forward.11} parent=1 // pred_check_branch
      %122 = sbr.rel (0) target = $region65
    $region64: #{forward.11} parent=1 // pred_region
      _
    $region65: #{forward.11} parent=1 // pred_fallthru
      _
    // Predicated region
    $region66: #{forward.11} parent=1 // pred_check
      _
    $region67: #{forward.11} parent=1 // pred_check_branch
      %124 = sbr.rel (0) target = $region69
    $region68: #{forward.11} parent=1 // pred_region
      %s126 = ssub.s32 32, 32
      %127 = vsyncadd [#allocation12], %s126
      %s129 = sshll.u32 [#allocation13], 4
      %s130 = int_to_ptr.vmem [resolvable:$true] %s129
      %132 = dma.hbm_to_vmem [thread:$0]  %s16, 32, %s130, [#allocation12]
    $region69: #{forward.11} parent=1 // pred_fallthru
      _
    // Predicated region
    $region70: #{forward.11} parent=1 // pred_check
      _
    $region71: #{forward.11} parent=1 // pred_check_branch
      %134 = sbr.rel (0) target = $region73
    $region72: #{forward.11} parent=1 // pred_region
      _
    $region73: #{forward.11} parent=1 // pred_fallthru
      _
    // Predicated region
    $region74: #{forward.11} parent=1 // pred_check
      _
    $region75: #{forward.11} parent=1 // pred_check_branch
      %136 = sbr.rel (0) target = $region77
    $region76: #{forward.11} parent=1 // pred_region
      %s138 = ssub.s32 16, 16
      %139 = vsyncadd [#allocation15], %s138
      %s141 = sshll.u32 [#allocation14], 4
      %s142 = int_to_ptr.vmem [resolvable:$true] %s141
      %144 = dma.hbm_to_vmem [thread:$0]  %s18, 16, %s142, [#allocation15]
    $region77: #{forward.11} parent=1 // pred_fallthru
      _
    // Predicated region
    $region78: #{forward.11} parent=1 // pred_check
      _
    $region79: #{forward.11} parent=1 // pred_check_branch
      %146 = sbr.rel (0) target = $region81
    $region80: #{forward.11} parent=1 // pred_region
      _
    $region81: #{forward.11} parent=1 // pred_fallthru
      _
    // Predicated region
    $region82: #{forward.11} parent=1 // pred_check
      _
    $region83: #{forward.11} parent=1 // pred_check_branch
      %148 = sbr.rel (0) target = $region85
    $region84: #{forward.11} parent=1 // pred_region
      %s150 = ssub.s32 32, 32
      %151 = vsyncadd [#allocation15], %s150
      %s153 = sshll.u32 [#allocation16], 4
      %s154 = int_to_ptr.vmem [resolvable:$true] %s153
      %156 = dma.hbm_to_vmem [thread:$0]  %s20, 32, %s154, [#allocation15]
    $region85: #{forward.11} parent=1 // pred_fallthru
      _
    // Predicated region
    $region86: #{forward.11} parent=1 // pred_check
      _
    $region87: #{forward.11} parent=1 // pred_check_branch
      %158 = sbr.rel (0) target = $region89
    $region88: #{forward.11} parent=1 // pred_region
      _
    $region89: #{forward.11} parent=1 // pred_fallthru
      _
    // Predicated region
    $region90: #{forward.11} parent=1 // pred_check
      _
    $region91: #{forward.11} parent=1 // pred_check_branch
      %160 = sbr.rel (0) target = $region93
    $region92: #{forward.11} parent=1 // pred_region
      %s162 = ssub.s32 16, 16
      %163 = vsyncadd [#allocation18], %s162
      %s165 = sshll.u32 [#allocation17], 4
      %s166 = int_to_ptr.vmem [resolvable:$true] %s165
      %168 = dma.hbm_to_vmem [thread:$0]  %s22, 16, %s166, [#allocation18]
    $region93: #{forward.11} parent=1 // pred_fallthru
      _
    // Predicated region
    $region94: #{forward.11} parent=1 // pred_check
      _
    $region95: #{forward.11} parent=1 // pred_check_branch
      %170 = sbr.rel (0) target = $region97
    $region96: #{forward.11} parent=1 // pred_region
      _
    $region97: #{forward.11} parent=1 // pred_fallthru
      _
    // Predicated region
    $region98: #{forward.11} parent=1 // pred_check
      _
    $region99: #{forward.11} parent=1 // pred_check_branch
      %172 = sbr.rel (0) target = $region101
    $region100: #{forward.11} parent=1 // pred_region
      %s174 = ssub.s32 16, 16
      %175 = vsyncadd [#allocation18], %s174
      %s177 = sshll.u32 [#allocation19], 4
      %s178 = int_to_ptr.vmem [resolvable:$true] %s177
      %180 = dma.hbm_to_vmem [thread:$0]  %s24, 16, %s178, [#allocation18]
    $region101: #{forward.11} parent=1 // pred_fallthru
      _
    // Predicated region
    $region102: #{forward.11} parent=1 // pred_check
      _
    $region103: #{forward.11} parent=1 // pred_check_branch
      %182 = sbr.rel (0) target = $region105
    $region104: #{forward.11} parent=1 // pred_region
      %183 = dma.done [#allocation3], 32
    $region105: #{forward.11} parent=1 // pred_fallthru
      _
    // Predicated region
    $region106: #{forward.11} parent=1 // pred_check
      _
    $region107: #{forward.11} parent=1 // pred_check_branch
      %185 = sbr.rel (0) target = $region109
    $region108: #{forward.11} parent=1 // pred_region
      %186 = dma.done [#allocation6], 16
    $region109: #{forward.11} parent=1 // pred_fallthru
      _
    // Predicated region
    $region110: #{forward.11} parent=1 // pred_check
      _
    $region111: #{forward.11} parent=1 // pred_check_branch
      %188 = sbr.rel (0) target = $region113
    $region112: #{forward.11} parent=1 // pred_region
      %189 = dma.done [#allocation6], 64
    $region113: #{forward.11} parent=1 // pred_fallthru
      _
    // Predicated region
    $region114: #{forward.11} parent=1 // pred_check
      _
    $region115: #{forward.11} parent=1 // pred_check_branch
      %191 = sbr.rel (0) target = $region117
    $region116: #{forward.11} parent=1 // pred_region
      %192 = dma.done [#allocation9], 32
    $region117: #{forward.11} parent=1 // pred_fallthru
      _
    // Predicated region
    $region118: #{forward.11} parent=1 // pred_check
      _
    $region119: #{forward.11} parent=1 // pred_check_branch
      %194 = sbr.rel (0) target = $region121
    $region120: #{forward.11} parent=1 // pred_region
      %195 = dma.done [#allocation9], 64
    $region121: #{forward.11} parent=1 // pred_fallthru
      _
    // Predicated region
    $region122: #{forward.11} parent=1 // pred_check
      _
    $region123: #{forward.11} parent=1 // pred_check_branch
      %197 = sbr.rel (0) target = $region125
    $region124: #{forward.11} parent=1 // pred_region
      %198 = dma.done [#allocation12], 64
    $region125: #{forward.11} parent=1 // pred_fallthru
      _
    // Predicated region
    $region126: #{forward.11} parent=1 // pred_check
      _
    $region127: #{forward.11} parent=1 // pred_check_branch
      %200 = sbr.rel (0) target = $region129
    $region128: #{forward.11} parent=1 // pred_region
      %201 = dma.done [#allocation12], 32
    $region129: #{forward.11} parent=1 // pred_fallthru
      _
    // Predicated region
    $region130: #{forward.11} parent=1 // pred_check
      _
    $region131: #{forward.11} parent=1 // pred_check_branch
      %203 = sbr.rel (0) target = $region133
    $region132: #{forward.11} parent=1 // pred_region
      %204 = dma.done [#allocation15], 16
    $region133: #{forward.11} parent=1 // pred_fallthru
      _
    // Predicated region
    $region134: #{forward.11} parent=1 // pred_check
      _
    $region135: #{forward.11} parent=1 // pred_check_branch
      %206 = sbr.rel (0) target = $region137
    $region136: #{forward.11} parent=1 // pred_region
      %207 = dma.done [#allocation15], 32
    $region137: #{forward.11} parent=1 // pred_fallthru
      _
    // Predicated region
    $region138: #{forward.11} parent=1 // pred_check
      _
    $region139: #{forward.11} parent=1 // pred_check_branch
      %209 = sbr.rel (0) target = $region141
    $region140: #{forward.11} parent=1 // pred_region
      %210 = dma.done [#allocation18], 16
    $region141: #{forward.11} parent=1 // pred_fallthru
      _
    // Predicated region
    $region142: #{forward.11} parent=1 // pred_check
      _
    $region143: #{forward.11} parent=1 // pred_check_branch
      %212 = sbr.rel (0) target = $region145
    $region144: #{forward.11} parent=1 // pred_region
      %213 = dma.done [#allocation18], 16
    $region145: #{forward.11} parent=1 // pred_fallthru
      _
    %v215 = vld [vmem:[%s0] sm:$0x1]
    %v216 = vld [vmem:[%s1] sm:$0xff]
    %v217 = vld [vmem:[%s1 + $0x8] sm:$0xff]
    %v218 = vld [vmem:[%s1 + $0x10] sm:$0xff]
    %v219 = vld [vmem:[%s1 + $0x18] sm:$0xff]
    %v220 = vld [vmem:[%s1 + $0x20] sm:$0xff]
    %v221 = vld [vmem:[%s1 + $0x28] sm:$0xff]
    %v222 = vld [vmem:[%s1 + $0x30] sm:$0xff]
    %v223 = vld [vmem:[%s1 + $0x38] sm:$0xff]
    %v224 = vld [vmem:[%s1 + $0x40] sm:$0xff]
    %v225 = vld [vmem:[%s1 + $0x48] sm:$0xff]
    %v226 = vld [vmem:[%s1 + $0x50] sm:$0xff]
    %v227 = vld [vmem:[%s1 + $0x58] sm:$0xff]
    %v228 = vld [vmem:[%s1 + $0x60] sm:$0xff]
    %v229 = vld [vmem:[%s1 + $0x68] sm:$0xff]
    %v230 = vld [vmem:[%s1 + $0x70] sm:$0xff]
    %v231 = vld [vmem:[%s1 + $0x78] sm:$0xff]
    %v232 = vld [vmem:[#allocation2] sm:$0x3]
    %v234 = vlaneseq
    %v235 = vshrl.u32 %v234, 7
    %v236 = vsub.s32 0, %v235
    %v237 = vrot.slane %v232, %v236
    %v238 = vlaneseq
    %v239 = vshrl.u32 %v238, 7
    %v240 = vsub.s32 1, %v239
    %v241 = vrot.slane %v232, %v240
    %v260 = vunpack.c.l.b16 %v216
    %v261 = vunpack.c.h.b16 %v216
    %v262 = vunpack.c.l.b16 %v217
    %v263 = vunpack.c.h.b16 %v217
    %v264 = vunpack.c.l.b16 %v218
    %v265 = vunpack.c.h.b16 %v218
    %v266 = vunpack.c.l.b16 %v219
    %v267 = vunpack.c.h.b16 %v219
    %v268 = vunpack.c.l.b16 %v220
    %v269 = vunpack.c.h.b16 %v220
    %v270 = vunpack.c.l.b16 %v221
    %v271 = vunpack.c.h.b16 %v221
    %v272 = vunpack.c.l.b16 %v222
    %v273 = vunpack.c.h.b16 %v222
    %v274 = vunpack.c.l.b16 %v223
    %v275 = vunpack.c.h.b16 %v223
    %v276 = vunpack.c.l.b16 %v224
    %v277 = vunpack.c.h.b16 %v224
    %v278 = vunpack.c.l.b16 %v225
    %v279 = vunpack.c.h.b16 %v225
    %v280 = vunpack.c.l.b16 %v226
    %v281 = vunpack.c.h.b16 %v226
    %v282 = vunpack.c.l.b16 %v227
    %v283 = vunpack.c.h.b16 %v227
    %v284 = vunpack.c.l.b16 %v228
    %v285 = vunpack.c.h.b16 %v228
    %v286 = vunpack.c.l.b16 %v229
    %v287 = vunpack.c.h.b16 %v229
    %v288 = vunpack.c.l.b16 %v230
    %v289 = vunpack.c.h.b16 %v230
    %v290 = vunpack.c.l.b16 %v231
    %v291 = vunpack.c.h.b16 %v231
    %v292 = vpack.c.b16 %v262, %v260
    %v293 = vpack.c.b16 %v263, %v261
    %v294 = vpack.c.b16 %v266, %v264
    %v295 = vpack.c.b16 %v267, %v265
    %v296 = vpack.c.b16 %v270, %v268
    %v297 = vpack.c.b16 %v271, %v269
    %v298 = vpack.c.b16 %v274, %v272
    %v299 = vpack.c.b16 %v275, %v273
    %v300 = vpack.c.b16 %v278, %v276
    %v301 = vpack.c.b16 %v279, %v277
    %v302 = vpack.c.b16 %v282, %v280
    %v303 = vpack.c.b16 %v283, %v281
    %v304 = vpack.c.b16 %v286, %v284
    %v305 = vpack.c.b16 %v287, %v285
    %v306 = vpack.c.b16 %v290, %v288
    %v307 = vpack.c.b16 %v291, %v289
    %324 = vmatprep.subr.bf16.mxu0 %v293
    %325 = vmatpush1.bf16.msra.mxu0 %v292
    %326 = vmatprep.subr.bf16.mxu0 %v295
    %327 = vmatpush1.bf16.msra.mxu0 %v294
    %328 = vmatprep.subr.bf16.mxu0 %v297
    %329 = vmatpush1.bf16.msra.mxu0 %v296
    %330 = vmatprep.subr.bf16.mxu0 %v299
    %331 = vmatpush1.bf16.msra.mxu0 %v298
    %332 = vmatprep.subr.bf16.mxu0 %v301
    %333 = vmatpush1.bf16.msra.mxu0 %v300
    %334 = vmatprep.subr.bf16.mxu0 %v303
    %335 = vmatpush1.bf16.msra.mxu0 %v302
    %336 = vmatprep.subr.bf16.mxu0 %v305
    %337 = vmatpush1.bf16.msra.mxu0 %v304
    %338 = vmatprep.subr.bf16.mxu0 %v307
    %339 = vmatpush1.bf16.msra.mxu0 %v306
    %340 = vmatprep.subr.bf16.mxu0 0
    %341 = vmatpush1.bf16.msra.mxu0 0
    %342 = vmatprep.subr.bf16.mxu0 0
    %343 = vmatpush1.bf16.msra.mxu0 0
    %344 = vmatprep.subr.bf16.mxu0 0
    %345 = vmatpush1.bf16.msra.mxu0 0
    %346 = vmatprep.subr.bf16.mxu0 0
    %347 = vmatpush1.bf16.msra.mxu0 0
    %348 = vmatprep.subr.bf16.mxu0 0
    %349 = vmatpush1.bf16.msra.mxu0 0
    %350 = vmatprep.subr.bf16.mxu0 0
    %351 = vmatpush1.bf16.msra.mxu0 0
    %352 = vmatprep.subr.bf16.mxu0 0
    %353 = vmatpush1.bf16.msra.mxu0 0
    %354 = vmatprep.subr.bf16.mxu0 0
    %355 = vmatpush1.bf16.msra.mxu0 0
    %356 = vmatprep.mubr.bf16.mxu0 0
    %357 = vmatmul.mubr.bf16.gmra.mrb[0].mxu0 %v215
    %v358 = vpop.f32.mrb[0].mxu0
    %v359 = vadd.f32 %v237, %v358
    %v360 = vpop.f32.mrb[0].mxu0
    %v361 = vadd.f32 %v241, %v360
    %v362 = vpop.f32.mrb[0].mxu0
    %v363 = vpop.f32.mrb[0].mxu0
    %364 = vdwg.mxu0
    %v365 = vmax.f32 %v359, 0.0
    %v366 = vmax.f32 %v361, 0.0
    %v367 = vpack.c.bf16 %v365, %v365
    %v368 = vpack.c.bf16 %v366, %v366
    %v369 = vld [vmem:[%s3] sm:$0xf]
    %v370 = vld [vmem:[%s3 + $0x4] sm:$0xf]
    %v371 = vld [vmem:[%s3 + $0x8] sm:$0xf]
    %v372 = vld [vmem:[%s3 + $0xc] sm:$0xf]
    %v373 = vld [vmem:[%s3 + $0x10] sm:$0xf]
    %v374 = vld [vmem:[%s3 + $0x14] sm:$0xf]
    %v375 = vld [vmem:[%s3 + $0x18] sm:$0xf]
    %v376 = vld [vmem:[%s3 + $0x1c] sm:$0xf]
    %v377 = vld [vmem:[%s3 + $0x20] sm:$0xf]
    %v378 = vld [vmem:[%s3 + $0x24] sm:$0xf]
    %v379 = vld [vmem:[%s3 + $0x28] sm:$0xf]
    %v380 = vld [vmem:[%s3 + $0x2c] sm:$0xf]
    %v381 = vld [vmem:[%s3 + $0x30] sm:$0xf]
    %v382 = vld [vmem:[%s3 + $0x34] sm:$0xf]
    %v383 = vld [vmem:[%s3 + $0x38] sm:$0xf]
    %v384 = vld [vmem:[%s3 + $0x3c] sm:$0xf]
    %v385 = vld [vmem:[%s3 + $0x40] sm:$0xf]
    %v386 = vld [vmem:[%s3 + $0x44] sm:$0xf]
    %v387 = vld [vmem:[%s3 + $0x48] sm:$0xf]
    %v388 = vld [vmem:[%s3 + $0x4c] sm:$0xf]
    %v389 = vld [vmem:[%s3 + $0x50] sm:$0xf]
    %v390 = vld [vmem:[%s3 + $0x54] sm:$0xf]
    %v391 = vld [vmem:[%s3 + $0x58] sm:$0xf]
    %v392 = vld [vmem:[%s3 + $0x5c] sm:$0xf]
    %v393 = vld [vmem:[%s3 + $0x60] sm:$0xf]
    %v394 = vld [vmem:[%s3 + $0x64] sm:$0xf]
    %v395 = vld [vmem:[%s3 + $0x68] sm:$0xf]
    %v396 = vld [vmem:[%s3 + $0x6c] sm:$0xf]
    %v397 = vld [vmem:[%s3 + $0x70] sm:$0xf]
    %v398 = vld [vmem:[%s3 + $0x74] sm:$0xf]
    %v399 = vld [vmem:[%s3 + $0x78] sm:$0xf]
    %v400 = vld [vmem:[%s3 + $0x7c] sm:$0xf]
    %v401 = vld [vmem:[%s4] sm:$0x1]
    %v403 = vlaneseq
    %v404 = vshrl.u32 %v403, 7
    %v405 = vsub.s32 0, %v404
    %v406 = vrot.slane %v401, %v405
    %v440 = vunpack.c.l.b16 %v369
    %v441 = vunpack.c.l.b16 %v370
    %v442 = vunpack.c.l.b16 %v371
    %v443 = vunpack.c.l.b16 %v372
    %v444 = vunpack.c.l.b16 %v373
    %v445 = vunpack.c.l.b16 %v374
    %v446 = vunpack.c.l.b16 %v375
    %v447 = vunpack.c.l.b16 %v376
    %v448 = vunpack.c.l.b16 %v377
    %v449 = vunpack.c.l.b16 %v378
    %v450 = vunpack.c.l.b16 %v379
    %v451 = vunpack.c.l.b16 %v380
    %v452 = vunpack.c.l.b16 %v381
    %v453 = vunpack.c.l.b16 %v382
    %v454 = vunpack.c.l.b16 %v383
    %v455 = vunpack.c.l.b16 %v384
    %v456 = vunpack.c.l.b16 %v385
    %v457 = vunpack.c.l.b16 %v386
    %v458 = vunpack.c.l.b16 %v387
    %v459 = vunpack.c.l.b16 %v388
    %v460 = vunpack.c.l.b16 %v389
    %v461 = vunpack.c.l.b16 %v390
    %v462 = vunpack.c.l.b16 %v391
    %v463 = vunpack.c.l.b16 %v392
    %v464 = vunpack.c.l.b16 %v393
    %v465 = vunpack.c.l.b16 %v394
    %v466 = vunpack.c.l.b16 %v395
    %v467 = vunpack.c.l.b16 %v396
    %v468 = vunpack.c.l.b16 %v397
    %v469 = vunpack.c.l.b16 %v398
    %v470 = vunpack.c.l.b16 %v399
    %v471 = vunpack.c.l.b16 %v400
    %v472 = vpack.c.b16 %v441, %v440
    %v473 = vpack.c.b16 %v443, %v442
    %v474 = vpack.c.b16 %v445, %v444
    %v475 = vpack.c.b16 %v447, %v446
    %v476 = vpack.c.b16 %v449, %v448
    %v477 = vpack.c.b16 %v451, %v450
    %v478 = vpack.c.b16 %v453, %v452
    %v479 = vpack.c.b16 %v455, %v454
    %v480 = vpack.c.b16 %v457, %v456
    %v481 = vpack.c.b16 %v459, %v458
    %v482 = vpack.c.b16 %v461, %v460
    %v483 = vpack.c.b16 %v463, %v462
    %v484 = vpack.c.b16 %v465, %v464
    %v485 = vpack.c.b16 %v467, %v466
    %v486 = vpack.c.b16 %v469, %v468
    %v487 = vpack.c.b16 %v471, %v470
    %504 = vmatprep.subr.bf16.mxu0 0
    %505 = vmatpush1.bf16.msra.mxu0 %v472
    %506 = vmatprep.subr.bf16.mxu0 0
    %507 = vmatpush1.bf16.msra.mxu0 %v473
    %508 = vmatprep.subr.bf16.mxu0 0
    %509 = vmatpush1.bf16.msra.mxu0 %v474
    %510 = vmatprep.subr.bf16.mxu0 0
    %511 = vmatpush1.bf16.msra.mxu0 %v475
    %512 = vmatprep.subr.bf16.mxu0 0
    %513 = vmatpush1.bf16.msra.mxu0 %v476
    %514 = vmatprep.subr.bf16.mxu0 0
    %515 = vmatpush1.bf16.msra.mxu0 %v477
    %516 = vmatprep.subr.bf16.mxu0 0
    %517 = vmatpush1.bf16.msra.mxu0 %v478
    %518 = vmatprep.subr.bf16.mxu0 0
    %519 = vmatpush1.bf16.msra.mxu0 %v479
    %520 = vmatprep.subr.bf16.mxu0 0
    %521 = vmatpush1.bf16.msra.mxu0 %v480
    %522 = vmatprep.subr.bf16.mxu0 0
    %523 = vmatpush1.bf16.msra.mxu0 %v481
    %524 = vmatprep.subr.bf16.mxu0 0
    %525 = vmatpush1.bf16.msra.mxu0 %v482
    %526 = vmatprep.subr.bf16.mxu0 0
    %527 = vmatpush1.bf16.msra.mxu0 %v483
    %528 = vmatprep.subr.bf16.mxu0 0
    %529 = vmatpush1.bf16.msra.mxu0 %v484
    %530 = vmatprep.subr.bf16.mxu0 0
    %531 = vmatpush1.bf16.msra.mxu0 %v485
    %532 = vmatprep.subr.bf16.mxu0 0
    %533 = vmatpush1.bf16.msra.mxu0 %v486
    %534 = vmatprep.subr.bf16.mxu0 0
    %535 = vmatpush1.bf16.msra.mxu0 %v487
    %536 = vmatprep.mubr.bf16.mxu0 %v368
    %537 = vmatmul.mubr.bf16.gmra.mrb[0].mxu0 %v367
    %v538 = vpop.f32.mrb[0].mxu0
    %v539 = vadd.f32 %v406, %v538
    %v540 = vpop.f32.mrb[0].mxu0
    %v541 = vpop.f32.mrb[0].mxu0
    %v542 = vpop.f32.mrb[0].mxu0
    %543 = vdwg.mxu0
    %v544 = vmax.f32 %v539, 0.0
    %v545 = vpack.c.bf16 %v544, %v544
    %v546 = vld [vmem:[%s5] sm:$0xf]
    %v547 = vld [vmem:[%s5 + $0x4] sm:$0xf]
    %v548 = vld [vmem:[%s5 + $0x8] sm:$0xf]
    %v549 = vld [vmem:[%s5 + $0xc] sm:$0xf]
    %v550 = vld [vmem:[%s5 + $0x10] sm:$0xf]
    %v551 = vld [vmem:[%s5 + $0x14] sm:$0xf]
    %v552 = vld [vmem:[%s5 + $0x18] sm:$0xf]
    %v553 = vld [vmem:[%s5 + $0x1c] sm:$0xf]
    %v554 = vld [vmem:[#allocation5] sm:$0x1]
    %v556 = vlaneseq
    %v557 = vshrl.u32 %v556, 7
    %v558 = vsub.s32 0, %v557
    %v559 = vrot.slane %v554, %v558
    %v569 = vunpack.c.l.b16 %v546
    %v570 = vunpack.c.l.b16 %v547
    %v571 = vunpack.c.l.b16 %v548
    %v572 = vunpack.c.l.b16 %v549
    %v573 = vunpack.c.l.b16 %v550
    %v574 = vunpack.c.l.b16 %v551
    %v575 = vunpack.c.l.b16 %v552
    %v576 = vunpack.c.l.b16 %v553
    %v577 = vpack.c.b16 %v570, %v569
    %v578 = vpack.c.b16 %v572, %v571
    %v579 = vpack.c.b16 %v574, %v573
    %v580 = vpack.c.b16 %v576, %v575
    %vm585 = vcmask 523264
    %v587 = vsel %vm585, %v545, 0
    %589 = vmatprep.subr.bf16.mxu0 0
    %590 = vmatpush1.bf16.msra.mxu0 %v577
    %591 = vmatprep.subr.bf16.mxu0 0
    %592 = vmatpush1.bf16.msra.mxu0 %v578
    %593 = vmatprep.subr.bf16.mxu0 0
    %594 = vmatpush1.bf16.msra.mxu0 %v579
    %595 = vmatprep.subr.bf16.mxu0 0
    %596 = vmatpush1.bf16.msra.mxu0 %v580
    %597 = vmatprep.subr.bf16.mxu0 0
    %598 = vmatpush1.bf16.msra.mxu0 0
    %599 = vmatprep.subr.bf16.mxu0 0
    %600 = vmatpush1.bf16.msra.mxu0 0
    %601 = vmatprep.subr.bf16.mxu0 0
    %602 = vmatpush1.bf16.msra.mxu0 0
    %603 = vmatprep.subr.bf16.mxu0 0
    %604 = vmatpush1.bf16.msra.mxu0 0
    %605 = vmatprep.subr.bf16.mxu0 0
    %606 = vmatpush1.bf16.msra.mxu0 0
    %607 = vmatprep.subr.bf16.mxu0 0
    %608 = vmatpush1.bf16.msra.mxu0 0
    %609 = vmatprep.subr.bf16.mxu0 0
    %610 = vmatpush1.bf16.msra.mxu0 0
    %611 = vmatprep.subr.bf16.mxu0 0
    %612 = vmatpush1.bf16.msra.mxu0 0
    %613 = vmatprep.subr.bf16.mxu0 0
    %614 = vmatpush1.bf16.msra.mxu0 0
    %615 = vmatprep.subr.bf16.mxu0 0
    %616 = vmatpush1.bf16.msra.mxu0 0
    %617 = vmatprep.subr.bf16.mxu0 0
    %618 = vmatpush1.bf16.msra.mxu0 0
    %619 = vmatprep.subr.bf16.mxu0 0
    %620 = vmatpush1.bf16.msra.mxu0 0
    %621 = vmatprep.mubr.bf16.mxu0 0
    %622 = vmatmul.mubr.bf16.gmra.mrb[0].mxu0 %v587
    %v623 = vpop.f32.mrb[0].mxu0
    %v624 = vadd.f32 %v559, %v623
    %v625 = vpop.f32.mrb[0].mxu0
    %v626 = vpop.f32.mrb[0].mxu0
    %v627 = vpop.f32.mrb[0].mxu0
    %628 = vdwg.mxu0
    %vm629 = vcmask 9216
    %630 = vst.msk [vmem:[#allocation20] sm:$0x3] %vm629, %v624
    %v631 = vld [vmem:[%s7] sm:$0xff]
    %v632 = vld [vmem:[%s7 + $0x8] sm:$0xff]
    %v633 = vld [vmem:[%s7 + $0x10] sm:$0xff]
    %v634 = vld [vmem:[%s7 + $0x18] sm:$0xff]
    %v635 = vld [vmem:[%s7 + $0x20] sm:$0xff]
    %v636 = vld [vmem:[%s7 + $0x28] sm:$0xff]
    %v637 = vld [vmem:[%s7 + $0x30] sm:$0xff]
    %v638 = vld [vmem:[%s7 + $0x38] sm:$0xff]
    %v639 = vld [vmem:[%s7 + $0x40] sm:$0xff]
    %v640 = vld [vmem:[%s7 + $0x48] sm:$0xff]
    %v641 = vld [vmem:[%s7 + $0x50] sm:$0xff]
    %v642 = vld [vmem:[%s7 + $0x58] sm:$0xff]
    %v643 = vld [vmem:[%s7 + $0x60] sm:$0xff]
    %v644 = vld [vmem:[%s7 + $0x68] sm:$0xff]
    %v645 = vld [vmem:[%s7 + $0x70] sm:$0xff]
    %v646 = vld [vmem:[%s7 + $0x78] sm:$0xff]
    %v647 = vld [vmem:[%s7 + $0x80] sm:$0xff]
    %v648 = vld [vmem:[%s7 + $0x88] sm:$0xff]
    %v649 = vld [vmem:[%s7 + $0x90] sm:$0xff]
    %v650 = vld [vmem:[%s7 + $0x98] sm:$0xff]
    %v651 = vld [vmem:[%s7 + $0xa0] sm:$0xff]
    %v652 = vld [vmem:[%s7 + $0xa8] sm:$0xff]
    %v653 = vld [vmem:[%s7 + $0xb0] sm:$0xff]
    %v654 = vld [vmem:[%s7 + $0xb8] sm:$0xff]
    %v655 = vld [vmem:[%s7 + $0xc0] sm:$0xff]
    %v656 = vld [vmem:[%s7 + $0xc8] sm:$0xff]
    %v657 = vld [vmem:[%s7 + $0xd0] sm:$0xff]
    %v658 = vld [vmem:[%s7 + $0xd8] sm:$0xff]
    %v659 = vld [vmem:[%s7 + $0xe0] sm:$0xff]
    %v660 = vld [vmem:[%s7 + $0xe8] sm:$0xff]
    %v661 = vld [vmem:[%s7 + $0xf0] sm:$0xff]
    %v662 = vld [vmem:[%s7 + $0xf8] sm:$0xff]
    %v663 = vld [vmem:[#allocation7] sm:$0xf]
    %v665 = vlaneseq
    %v666 = vshrl.u32 %v665, 7
    %v667 = vsub.s32 0, %v666
    %v668 = vrot.slane %v663, %v667
    %v669 = vlaneseq
    %v670 = vshrl.u32 %v669, 7
    %v671 = vsub.s32 1, %v670
    %v672 = vrot.slane %v663, %v671
    %v673 = vlaneseq
    %v674 = vshrl.u32 %v673, 7
    %v675 = vsub.s32 2, %v674
    %v676 = vrot.slane %v663, %v675
    %v677 = vlaneseq
    %v678 = vshrl.u32 %v677, 7
    %v679 = vsub.s32 3, %v678
    %v680 = vrot.slane %v663, %v679
    %v717 = vunpack.c.l.b16 %v631
    %v718 = vunpack.c.h.b16 %v631
    %v719 = vunpack.c.l.b16 %v632
    %v720 = vunpack.c.h.b16 %v632
    %v721 = vunpack.c.l.b16 %v633
    %v722 = vunpack.c.h.b16 %v633
    %v723 = vunpack.c.l.b16 %v634
    %v724 = vunpack.c.h.b16 %v634
    %v725 = vunpack.c.l.b16 %v635
    %v726 = vunpack.c.h.b16 %v635
    %v727 = vunpack.c.l.b16 %v636
    %v728 = vunpack.c.h.b16 %v636
    %v729 = vunpack.c.l.b16 %v637
    %v730 = vunpack.c.h.b16 %v637
    %v731 = vunpack.c.l.b16 %v638
    %v732 = vunpack.c.h.b16 %v638
    %v733 = vunpack.c.l.b16 %v639
    %v734 = vunpack.c.h.b16 %v639
    %v735 = vunpack.c.l.b16 %v640
    %v736 = vunpack.c.h.b16 %v640
    %v737 = vunpack.c.l.b16 %v641
    %v738 = vunpack.c.h.b16 %v641
    %v739 = vunpack.c.l.b16 %v642
    %v740 = vunpack.c.h.b16 %v642
    %v741 = vunpack.c.l.b16 %v643
    %v742 = vunpack.c.h.b16 %v643
    %v743 = vunpack.c.l.b16 %v644
    %v744 = vunpack.c.h.b16 %v644
    %v745 = vunpack.c.l.b16 %v645
    %v746 = vunpack.c.h.b16 %v645
    %v747 = vunpack.c.l.b16 %v646
    %v748 = vunpack.c.h.b16 %v646
    %v749 = vunpack.c.l.b16 %v647
    %v750 = vunpack.c.h.b16 %v647
    %v751 = vunpack.c.l.b16 %v648
    %v752 = vunpack.c.h.b16 %v648
    %v753 = vunpack.c.l.b16 %v649
    %v754 = vunpack.c.h.b16 %v649
    %v755 = vunpack.c.l.b16 %v650
    %v756 = vunpack.c.h.b16 %v650
    %v757 = vunpack.c.l.b16 %v651
    %v758 = vunpack.c.h.b16 %v651
    %v759 = vunpack.c.l.b16 %v652
    %v760 = vunpack.c.h.b16 %v652
    %v761 = vunpack.c.l.b16 %v653
    %v762 = vunpack.c.h.b16 %v653
    %v763 = vunpack.c.l.b16 %v654
    %v764 = vunpack.c.h.b16 %v654
    %v765 = vunpack.c.l.b16 %v655
    %v766 = vunpack.c.h.b16 %v655
    %v767 = vunpack.c.l.b16 %v656
    %v768 = vunpack.c.h.b16 %v656
    %v769 = vunpack.c.l.b16 %v657
    %v770 = vunpack.c.h.b16 %v657
    %v771 = vunpack.c.l.b16 %v658
    %v772 = vunpack.c.h.b16 %v658
    %v773 = vunpack.c.l.b16 %v659
    %v774 = vunpack.c.h.b16 %v659
    %v775 = vunpack.c.l.b16 %v660
    %v776 = vunpack.c.h.b16 %v660
    %v777 = vunpack.c.l.b16 %v661
    %v778 = vunpack.c.h.b16 %v661
    %v779 = vunpack.c.l.b16 %v662
    %v780 = vunpack.c.h.b16 %v662
    %v781 = vpack.c.b16 %v721, %v717
    %v782 = vpack.c.b16 %v722, %v718
    %v783 = vpack.c.b16 %v723, %v719
    %v784 = vpack.c.b16 %v724, %v720
    %v785 = vpack.c.b16 %v729, %v725
    %v786 = vpack.c.b16 %v730, %v726
    %v787 = vpack.c.b16 %v731, %v727
    %v788 = vpack.c.b16 %v732, %v728
    %v789 = vpack.c.b16 %v737, %v733
    %v790 = vpack.c.b16 %v738, %v734
    %v791 = vpack.c.b16 %v739, %v735
    %v792 = vpack.c.b16 %v740, %v736
    %v793 = vpack.c.b16 %v745, %v741
    %v794 = vpack.c.b16 %v746, %v742
    %v795 = vpack.c.b16 %v747, %v743
    %v796 = vpack.c.b16 %v748, %v744
    %v797 = vpack.c.b16 %v753, %v749
    %v798 = vpack.c.b16 %v754, %v750
    %v799 = vpack.c.b16 %v755, %v751
    %v800 = vpack.c.b16 %v756, %v752
    %v801 = vpack.c.b16 %v761, %v757
    %v802 = vpack.c.b16 %v762, %v758
    %v803 = vpack.c.b16 %v763, %v759
    %v804 = vpack.c.b16 %v764, %v760
    %v805 = vpack.c.b16 %v769, %v765
    %v806 = vpack.c.b16 %v770, %v766
    %v807 = vpack.c.b16 %v771, %v767
    %v808 = vpack.c.b16 %v772, %v768
    %v809 = vpack.c.b16 %v777, %v773
    %v810 = vpack.c.b16 %v778, %v774
    %v811 = vpack.c.b16 %v779, %v775
    %v812 = vpack.c.b16 %v780, %v776
    %845 = vmatprep.subr.bf16.mxu0 %v782
    %846 = vmatpush1.bf16.msra.mxu0 %v781
    %847 = vmatprep.subr.bf16.mxu0 %v786
    %848 = vmatpush1.bf16.msra.mxu0 %v785
    %849 = vmatprep.subr.bf16.mxu0 %v790
    %850 = vmatpush1.bf16.msra.mxu0 %v789
    %851 = vmatprep.subr.bf16.mxu0 %v794
    %852 = vmatpush1.bf16.msra.mxu0 %v793
    %853 = vmatprep.subr.bf16.mxu0 %v798
    %854 = vmatpush1.bf16.msra.mxu0 %v797
    %855 = vmatprep.subr.bf16.mxu0 %v802
    %856 = vmatpush1.bf16.msra.mxu0 %v801
    %857 = vmatprep.subr.bf16.mxu0 %v806
    %858 = vmatpush1.bf16.msra.mxu0 %v805
    %859 = vmatprep.subr.bf16.mxu0 %v810
    %860 = vmatpush1.bf16.msra.mxu0 %v809
    %861 = vmatprep.subr.bf16.mxu0 0
    %862 = vmatpush1.bf16.msra.mxu0 0
    %863 = vmatprep.subr.bf16.mxu0 0
    %864 = vmatpush1.bf16.msra.mxu0 0
    %865 = vmatprep.subr.bf16.mxu0 0
    %866 = vmatpush1.bf16.msra.mxu0 0
    %867 = vmatprep.subr.bf16.mxu0 0
    %868 = vmatpush1.bf16.msra.mxu0 0
    %869 = vmatprep.subr.bf16.mxu0 0
    %870 = vmatpush1.bf16.msra.mxu0 0
    %871 = vmatprep.subr.bf16.mxu0 0
    %872 = vmatpush1.bf16.msra.mxu0 0
    %873 = vmatprep.subr.bf16.mxu0 0
    %874 = vmatpush1.bf16.msra.mxu0 0
    %875 = vmatprep.subr.bf16.mxu0 0
    %876 = vmatpush1.bf16.msra.mxu0 0
    %877 = vmatprep.mubr.bf16.mxu0 0
    %878 = vmatmul.mubr.bf16.gmra.mrb[0].mxu0 %v215
    %v879 = vpop.f32.mrb[0].mxu0
    %v880 = vadd.f32 %v668, %v879
    %v881 = vpop.f32.mrb[0].mxu0
    %v882 = vadd.f32 %v672, %v881
    %v883 = vpop.f32.mrb[0].mxu0
    %v884 = vpop.f32.mrb[0].mxu0
    %885 = vdwg.mxu0
    %886 = vmatprep.subr.bf16.mxu0 %v784
    %887 = vmatpush1.bf16.msra.mxu0 %v783
    %888 = vmatprep.subr.bf16.mxu0 %v788
    %889 = vmatpush1.bf16.msra.mxu0 %v787
    %890 = vmatprep.subr.bf16.mxu0 %v792
    %891 = vmatpush1.bf16.msra.mxu0 %v791
    %892 = vmatprep.subr.bf16.mxu0 %v796
    %893 = vmatpush1.bf16.msra.mxu0 %v795
    %894 = vmatprep.subr.bf16.mxu0 %v800
    %895 = vmatpush1.bf16.msra.mxu0 %v799
    %896 = vmatprep.subr.bf16.mxu0 %v804
    %897 = vmatpush1.bf16.msra.mxu0 %v803
    %898 = vmatprep.subr.bf16.mxu0 %v808
    %899 = vmatpush1.bf16.msra.mxu0 %v807
    %900 = vmatprep.subr.bf16.mxu0 %v812
    %901 = vmatpush1.bf16.msra.mxu0 %v811
    %902 = vmatprep.subr.bf16.mxu0 0
    %903 = vmatpush1.bf16.msra.mxu0 0
    %904 = vmatprep.subr.bf16.mxu0 0
    %905 = vmatpush1.bf16.msra.mxu0 0
    %906 = vmatprep.subr.bf16.mxu0 0
    %907 = vmatpush1.bf16.msra.mxu0 0
    %908 = vmatprep.subr.bf16.mxu0 0
    %909 = vmatpush1.bf16.msra.mxu0 0
    %910 = vmatprep.subr.bf16.mxu0 0
    %911 = vmatpush1.bf16.msra.mxu0 0
    %912 = vmatprep.subr.bf16.mxu0 0
    %913 = vmatpush1.bf16.msra.mxu0 0
    %914 = vmatprep.subr.bf16.mxu0 0
    %915 = vmatpush1.bf16.msra.mxu0 0
    %916 = vmatprep.subr.bf16.mxu0 0
    %917 = vmatpush1.bf16.msra.mxu0 0
    %918 = vmatprep.mubr.bf16.mxu0 0
    %919 = vmatmul.mubr.bf16.gmra.mrb[0].mxu0 %v215
    %v920 = vpop.f32.mrb[0].mxu0
    %v921 = vadd.f32 %v676, %v920
    %v922 = vpop.f32.mrb[0].mxu0
    %v923 = vadd.f32 %v680, %v922
    %v924 = vpop.f32.mrb[0].mxu0
    %v925 = vpop.f32.mrb[0].mxu0
    %926 = vdwg.mxu0
    %v927 = vmax.f32 %v880, 0.0
    %v928 = vmax.f32 %v882, 0.0
    %v929 = vmax.f32 %v921, 0.0
    %v930 = vmax.f32 %v923, 0.0
    %v931 = vpack.c.bf16 %v927, %v927
    %v932 = vpack.c.bf16 %v928, %v928
    %v933 = vpack.c.bf16 %v929, %v929
    %v934 = vpack.c.bf16 %v930, %v930
    %v935 = vld [vmem:[%s9] sm:$0xff]
    %v936 = vld [vmem:[%s9 + $0x8] sm:$0xff]
    %v937 = vld [vmem:[%s9 + $0x10] sm:$0xff]
    %v938 = vld [vmem:[%s9 + $0x18] sm:$0xff]
    %v939 = vld [vmem:[%s9 + $0x20] sm:$0xff]
    %v940 = vld [vmem:[%s9 + $0x28] sm:$0xff]
    %v941 = vld [vmem:[%s9 + $0x30] sm:$0xff]
    %v942 = vld [vmem:[%s9 + $0x38] sm:$0xff]
    %v943 = vld [vmem:[%s9 + $0x40] sm:$0xff]
    %v944 = vld [vmem:[%s9 + $0x48] sm:$0xff]
    %v945 = vld [vmem:[%s9 + $0x50] sm:$0xff]
    %v946 = vld [vmem:[%s9 + $0x58] sm:$0xff]
    %v947 = vld [vmem:[%s9 + $0x60] sm:$0xff]
    %v948 = vld [vmem:[%s9 + $0x68] sm:$0xff]
    %v949 = vld [vmem:[%s9 + $0x70] sm:$0xff]
    %v950 = vld [vmem:[%s9 + $0x78] sm:$0xff]
    %v951 = vld [vmem:[%s9 + $0x80] sm:$0xff]
    %v952 = vld [vmem:[%s9 + $0x88] sm:$0xff]
    %v953 = vld [vmem:[%s9 + $0x90] sm:$0xff]
    %v954 = vld [vmem:[%s9 + $0x98] sm:$0xff]
    %v955 = vld [vmem:[%s9 + $0xa0] sm:$0xff]
    %v956 = vld [vmem:[%s9 + $0xa8] sm:$0xff]
    %v957 = vld [vmem:[%s9 + $0xb0] sm:$0xff]
    %v958 = vld [vmem:[%s9 + $0xb8] sm:$0xff]
    %v959 = vld [vmem:[%s9 + $0xc0] sm:$0xff]
    %v960 = vld [vmem:[%s9 + $0xc8] sm:$0xff]
    %v961 = vld [vmem:[%s9 + $0xd0] sm:$0xff]
    %v962 = vld [vmem:[%s9 + $0xd8] sm:$0xff]
    %v963 = vld [vmem:[%s9 + $0xe0] sm:$0xff]
    %v964 = vld [vmem:[%s9 + $0xe8] sm:$0xff]
    %v965 = vld [vmem:[%s9 + $0xf0] sm:$0xff]
    %v966 = vld [vmem:[%s9 + $0xf8] sm:$0xff]
    %v967 = vld [vmem:[%s9 + $0x100] sm:$0xff]
    %v968 = vld [vmem:[%s9 + $0x108] sm:$0xff]
    %v969 = vld [vmem:[%s9 + $0x110] sm:$0xff]
    %v970 = vld [vmem:[%s9 + $0x118] sm:$0xff]
    %v971 = vld [vmem:[%s9 + $0x120] sm:$0xff]
    %v972 = vld [vmem:[%s9 + $0x128] sm:$0xff]
    %v973 = vld [vmem:[%s9 + $0x130] sm:$0xff]
    %v974 = vld [vmem:[%s9 + $0x138] sm:$0xff]
    %v975 = vld [vmem:[%s9 + $0x140] sm:$0xff]
    %v976 = vld [vmem:[%s9 + $0x148] sm:$0xff]
    %v977 = vld [vmem:[%s9 + $0x150] sm:$0xff]
    %v978 = vld [vmem:[%s9 + $0x158] sm:$0xff]
    %v979 = vld [vmem:[%s9 + $0x160] sm:$0xff]
    %v980 = vld [vmem:[%s9 + $0x168] sm:$0xff]
    %v981 = vld [vmem:[%s9 + $0x170] sm:$0xff]
    %v982 = vld [vmem:[%s9 + $0x178] sm:$0xff]
    %v983 = vld [vmem:[%s9 + $0x180] sm:$0xff]
    %v984 = vld [vmem:[%s9 + $0x188] sm:$0xff]
    %v985 = vld [vmem:[%s9 + $0x190] sm:$0xff]
    %v986 = vld [vmem:[%s9 + $0x198] sm:$0xff]
    %v987 = vld [vmem:[%s9 + $0x1a0] sm:$0xff]
    %v988 = vld [vmem:[%s9 + $0x1a8] sm:$0xff]
    %v989 = vld [vmem:[%s9 + $0x1b0] sm:$0xff]
    %v990 = vld [vmem:[%s9 + $0x1b8] sm:$0xff]
    %v991 = vld [vmem:[%s9 + $0x1c0] sm:$0xff]
    %v992 = vld [vmem:[%s9 + $0x1c8] sm:$0xff]
    %v993 = vld [vmem:[%s9 + $0x1d0] sm:$0xff]
    %v994 = vld [vmem:[%s9 + $0x1d8] sm:$0xff]
    %v995 = vld [vmem:[%s9 + $0x1e0] sm:$0xff]
    %v996 = vld [vmem:[%s9 + $0x1e8] sm:$0xff]
    %v997 = vld [vmem:[%s9 + $0x1f0] sm:$0xff]
    %v998 = vld [vmem:[%s9 + $0x1f8] sm:$0xff]
    %v999 = vld [vmem:[#allocation8] sm:$0x3]
    %v1001 = vlaneseq
    %v1002 = vshrl.u32 %v1001, 7
    %v1003 = vsub.s32 0, %v1002
    %v1004 = vrot.slane %v999, %v1003
    %v1005 = vlaneseq
    %v1006 = vshrl.u32 %v1005, 7
    %v1007 = vsub.s32 1, %v1006
    %v1008 = vrot.slane %v999, %v1007
    %v1075 = vunpack.c.l.b16 %v935
    %v1076 = vunpack.c.h.b16 %v935
    %v1077 = vunpack.c.l.b16 %v936
    %v1078 = vunpack.c.h.b16 %v936
    %v1079 = vunpack.c.l.b16 %v937
    %v1080 = vunpack.c.h.b16 %v937
    %v1081 = vunpack.c.l.b16 %v938
    %v1082 = vunpack.c.h.b16 %v938
    %v1083 = vunpack.c.l.b16 %v939
    %v1084 = vunpack.c.h.b16 %v939
    %v1085 = vunpack.c.l.b16 %v940
    %v1086 = vunpack.c.h.b16 %v940
    %v1087 = vunpack.c.l.b16 %v941
    %v1088 = vunpack.c.h.b16 %v941
    %v1089 = vunpack.c.l.b16 %v942
    %v1090 = vunpack.c.h.b16 %v942
    %v1091 = vunpack.c.l.b16 %v943
    %v1092 = vunpack.c.h.b16 %v943
    %v1093 = vunpack.c.l.b16 %v944
    %v1094 = vunpack.c.h.b16 %v944
    %v1095 = vunpack.c.l.b16 %v945
    %v1096 = vunpack.c.h.b16 %v945
    %v1097 = vunpack.c.l.b16 %v946
    %v1098 = vunpack.c.h.b16 %v946
    %v1099 = vunpack.c.l.b16 %v947
    %v1100 = vunpack.c.h.b16 %v947
    %v1101 = vunpack.c.l.b16 %v948
    %v1102 = vunpack.c.h.b16 %v948
    %v1103 = vunpack.c.l.b16 %v949
    %v1104 = vunpack.c.h.b16 %v949
    %v1105 = vunpack.c.l.b16 %v950
    %v1106 = vunpack.c.h.b16 %v950
    %v1107 = vunpack.c.l.b16 %v951
    %v1108 = vunpack.c.h.b16 %v951
    %v1109 = vunpack.c.l.b16 %v952
    %v1110 = vunpack.c.h.b16 %v952
    %v1111 = vunpack.c.l.b16 %v953
    %v1112 = vunpack.c.h.b16 %v953
    %v1113 = vunpack.c.l.b16 %v954
    %v1114 = vunpack.c.h.b16 %v954
    %v1115 = vunpack.c.l.b16 %v955
    %v1116 = vunpack.c.h.b16 %v955
    %v1117 = vunpack.c.l.b16 %v956
    %v1118 = vunpack.c.h.b16 %v956
    %v1119 = vunpack.c.l.b16 %v957
    %v1120 = vunpack.c.h.b16 %v957
    %v1121 = vunpack.c.l.b16 %v958
    %v1122 = vunpack.c.h.b16 %v958
    %v1123 = vunpack.c.l.b16 %v959
    %v1124 = vunpack.c.h.b16 %v959
    %v1125 = vunpack.c.l.b16 %v960
    %v1126 = vunpack.c.h.b16 %v960
    %v1127 = vunpack.c.l.b16 %v961
    %v1128 = vunpack.c.h.b16 %v961
    %v1129 = vunpack.c.l.b16 %v962
    %v1130 = vunpack.c.h.b16 %v962
    %v1131 = vunpack.c.l.b16 %v963
    %v1132 = vunpack.c.h.b16 %v963
    %v1133 = vunpack.c.l.b16 %v964
    %v1134 = vunpack.c.h.b16 %v964
    %v1135 = vunpack.c.l.b16 %v965
    %v1136 = vunpack.c.h.b16 %v965
    %v1137 = vunpack.c.l.b16 %v966
    %v1138 = vunpack.c.h.b16 %v966
    %v1139 = vunpack.c.l.b16 %v967
    %v1140 = vunpack.c.h.b16 %v967
    %v1141 = vunpack.c.l.b16 %v968
    %v1142 = vunpack.c.h.b16 %v968
    %v1143 = vunpack.c.l.b16 %v969
    %v1144 = vunpack.c.h.b16 %v969
    %v1145 = vunpack.c.l.b16 %v970
    %v1146 = vunpack.c.h.b16 %v970
    %v1147 = vunpack.c.l.b16 %v971
    %v1148 = vunpack.c.h.b16 %v971
    %v1149 = vunpack.c.l.b16 %v972
    %v1150 = vunpack.c.h.b16 %v972
    %v1151 = vunpack.c.l.b16 %v973
    %v1152 = vunpack.c.h.b16 %v973
    %v1153 = vunpack.c.l.b16 %v974
    %v1154 = vunpack.c.h.b16 %v974
    %v1155 = vunpack.c.l.b16 %v975
    %v1156 = vunpack.c.h.b16 %v975
    %v1157 = vunpack.c.l.b16 %v976
    %v1158 = vunpack.c.h.b16 %v976
    %v1159 = vunpack.c.l.b16 %v977
    %v1160 = vunpack.c.h.b16 %v977
    %v1161 = vunpack.c.l.b16 %v978
    %v1162 = vunpack.c.h.b16 %v978
    %v1163 = vunpack.c.l.b16 %v979
    %v1164 = vunpack.c.h.b16 %v979
    %v1165 = vunpack.c.l.b16 %v980
    %v1166 = vunpack.c.h.b16 %v980
    %v1167 = vunpack.c.l.b16 %v981
    %v1168 = vunpack.c.h.b16 %v981
    %v1169 = vunpack.c.l.b16 %v982
    %v1170 = vunpack.c.h.b16 %v982
    %v1171 = vunpack.c.l.b16 %v983
    %v1172 = vunpack.c.h.b16 %v983
    %v1173 = vunpack.c.l.b16 %v984
    %v1174 = vunpack.c.h.b16 %v984
    %v1175 = vunpack.c.l.b16 %v985
    %v1176 = vunpack.c.h.b16 %v985
    %v1177 = vunpack.c.l.b16 %v986
    %v1178 = vunpack.c.h.b16 %v986
    %v1179 = vunpack.c.l.b16 %v987
    %v1180 = vunpack.c.h.b16 %v987
    %v1181 = vunpack.c.l.b16 %v988
    %v1182 = vunpack.c.h.b16 %v988
    %v1183 = vunpack.c.l.b16 %v989
    %v1184 = vunpack.c.h.b16 %v989
    %v1185 = vunpack.c.l.b16 %v990
    %v1186 = vunpack.c.h.b16 %v990
    %v1187 = vunpack.c.l.b16 %v991
    %v1188 = vunpack.c.h.b16 %v991
    %v1189 = vunpack.c.l.b16 %v992
    %v1190 = vunpack.c.h.b16 %v992
    %v1191 = vunpack.c.l.b16 %v993
    %v1192 = vunpack.c.h.b16 %v993
    %v1193 = vunpack.c.l.b16 %v994
    %v1194 = vunpack.c.h.b16 %v994
    %v1195 = vunpack.c.l.b16 %v995
    %v1196 = vunpack.c.h.b16 %v995
    %v1197 = vunpack.c.l.b16 %v996
    %v1198 = vunpack.c.h.b16 %v996
    %v1199 = vunpack.c.l.b16 %v997
    %v1200 = vunpack.c.h.b16 %v997
    %v1201 = vunpack.c.l.b16 %v998
    %v1202 = vunpack.c.h.b16 %v998
    %v1203 = vpack.c.b16 %v1077, %v1075
    %v1204 = vpack.c.b16 %v1078, %v1076
    %v1205 = vpack.c.b16 %v1081, %v1079
    %v1206 = vpack.c.b16 %v1082, %v1080
    %v1207 = vpack.c.b16 %v1085, %v1083
    %v1208 = vpack.c.b16 %v1086, %v1084
    %v1209 = vpack.c.b16 %v1089, %v1087
    %v1210 = vpack.c.b16 %v1090, %v1088
    %v1211 = vpack.c.b16 %v1093, %v1091
    %v1212 = vpack.c.b16 %v1094, %v1092
    %v1213 = vpack.c.b16 %v1097, %v1095
    %v1214 = vpack.c.b16 %v1098, %v1096
    %v1215 = vpack.c.b16 %v1101, %v1099
    %v1216 = vpack.c.b16 %v1102, %v1100
    %v1217 = vpack.c.b16 %v1105, %v1103
    %v1218 = vpack.c.b16 %v1106, %v1104
    %v1219 = vpack.c.b16 %v1109, %v1107
    %v1220 = vpack.c.b16 %v1110, %v1108
    %v1221 = vpack.c.b16 %v1113, %v1111
    %v1222 = vpack.c.b16 %v1114, %v1112
    %v1223 = vpack.c.b16 %v1117, %v1115
    %v1224 = vpack.c.b16 %v1118, %v1116
    %v1225 = vpack.c.b16 %v1121, %v1119
    %v1226 = vpack.c.b16 %v1122, %v1120
    %v1227 = vpack.c.b16 %v1125, %v1123
    %v1228 = vpack.c.b16 %v1126, %v1124
    %v1229 = vpack.c.b16 %v1129, %v1127
    %v1230 = vpack.c.b16 %v1130, %v1128
    %v1231 = vpack.c.b16 %v1133, %v1131
    %v1232 = vpack.c.b16 %v1134, %v1132
    %v1233 = vpack.c.b16 %v1137, %v1135
    %v1234 = vpack.c.b16 %v1138, %v1136
    %v1235 = vpack.c.b16 %v1141, %v1139
    %v1236 = vpack.c.b16 %v1142, %v1140
    %v1237 = vpack.c.b16 %v1145, %v1143
    %v1238 = vpack.c.b16 %v1146, %v1144
    %v1239 = vpack.c.b16 %v1149, %v1147
    %v1240 = vpack.c.b16 %v1150, %v1148
    %v1241 = vpack.c.b16 %v1153, %v1151
    %v1242 = vpack.c.b16 %v1154, %v1152
    %v1243 = vpack.c.b16 %v1157, %v1155
    %v1244 = vpack.c.b16 %v1158, %v1156
    %v1245 = vpack.c.b16 %v1161, %v1159
    %v1246 = vpack.c.b16 %v1162, %v1160
    %v1247 = vpack.c.b16 %v1165, %v1163
    %v1248 = vpack.c.b16 %v1166, %v1164
    %v1249 = vpack.c.b16 %v1169, %v1167
    %v1250 = vpack.c.b16 %v1170, %v1168
    %v1251 = vpack.c.b16 %v1173, %v1171
    %v1252 = vpack.c.b16 %v1174, %v1172
    %v1253 = vpack.c.b16 %v1177, %v1175
    %v1254 = vpack.c.b16 %v1178, %v1176
    %v1255 = vpack.c.b16 %v1181, %v1179
    %v1256 = vpack.c.b16 %v1182, %v1180
    %v1257 = vpack.c.b16 %v1185, %v1183
    %v1258 = vpack.c.b16 %v1186, %v1184
    %v1259 = vpack.c.b16 %v1189, %v1187
    %v1260 = vpack.c.b16 %v1190, %v1188
    %v1261 = vpack.c.b16 %v1193, %v1191
    %v1262 = vpack.c.b16 %v1194, %v1192
    %v1263 = vpack.c.b16 %v1197, %v1195
    %v1264 = vpack.c.b16 %v1198, %v1196
    %v1265 = vpack.c.b16 %v1201, %v1199
    %v1266 = vpack.c.b16 %v1202, %v1200
    %1331 = vmatprep.subr.bf16.mxu0 %v1204
    %1332 = vmatpush1.bf16.msra.mxu0 %v1203
    %1333 = vmatprep.subr.bf16.mxu0 %v1206
    %1334 = vmatpush1.bf16.msra.mxu0 %v1205
    %1335 = vmatprep.subr.bf16.mxu0 %v1208
    %1336 = vmatpush1.bf16.msra.mxu0 %v1207
    %1337 = vmatprep.subr.bf16.mxu0 %v1210
    %1338 = vmatpush1.bf16.msra.mxu0 %v1209
    %1339 = vmatprep.subr.bf16.mxu0 %v1212
    %1340 = vmatpush1.bf16.msra.mxu0 %v1211
    %1341 = vmatprep.subr.bf16.mxu0 %v1214
    %1342 = vmatpush1.bf16.msra.mxu0 %v1213
    %1343 = vmatprep.subr.bf16.mxu0 %v1216
    %1344 = vmatpush1.bf16.msra.mxu0 %v1215
    %1345 = vmatprep.subr.bf16.mxu0 %v1218
    %1346 = vmatpush1.bf16.msra.mxu0 %v1217
    %1347 = vmatprep.subr.bf16.mxu0 %v1220
    %1348 = vmatpush1.bf16.msra.mxu0 %v1219
    %1349 = vmatprep.subr.bf16.mxu0 %v1222
    %1350 = vmatpush1.bf16.msra.mxu0 %v1221
    %1351 = vmatprep.subr.bf16.mxu0 %v1224
    %1352 = vmatpush1.bf16.msra.mxu0 %v1223
    %1353 = vmatprep.subr.bf16.mxu0 %v1226
    %1354 = vmatpush1.bf16.msra.mxu0 %v1225
    %1355 = vmatprep.subr.bf16.mxu0 %v1228
    %1356 = vmatpush1.bf16.msra.mxu0 %v1227
    %1357 = vmatprep.subr.bf16.mxu0 %v1230
    %1358 = vmatpush1.bf16.msra.mxu0 %v1229
    %1359 = vmatprep.subr.bf16.mxu0 %v1232
    %1360 = vmatpush1.bf16.msra.mxu0 %v1231
    %1361 = vmatprep.subr.bf16.mxu0 %v1234
    %1362 = vmatpush1.bf16.msra.mxu0 %v1233
    %1363 = vmatprep.mubr.bf16.mxu0 %v932
    %1364 = vmatmul.mubr.bf16.gmra.mrb[0].mxu0 %v931
    %v1365 = vpop.f32.mrb[0].mxu0
    %v1366 = vadd.f32 %v1004, %v1365
    %v1367 = vpop.f32.mrb[0].mxu0
    %v1368 = vadd.f32 %v1008, %v1367
    %v1369 = vpop.f32.mrb[0].mxu0
    %v1370 = vpop.f32.mrb[0].mxu0
    %1371 = vdwg.mxu0
    %1372 = vmatprep.subr.bf16.mxu0 %v1236
    %1373 = vmatpush1.bf16.msra.mxu0 %v1235
    %1374 = vmatprep.subr.bf16.mxu0 %v1238
    %1375 = vmatpush1.bf16.msra.mxu0 %v1237
    %1376 = vmatprep.subr.bf16.mxu0 %v1240
    %1377 = vmatpush1.bf16.msra.mxu0 %v1239
    %1378 = vmatprep.subr.bf16.mxu0 %v1242
    %1379 = vmatpush1.bf16.msra.mxu0 %v1241
    %1380 = vmatprep.subr.bf16.mxu0 %v1244
    %1381 = vmatpush1.bf16.msra.mxu0 %v1243
    %1382 = vmatprep.subr.bf16.mxu0 %v1246
    %1383 = vmatpush1.bf16.msra.mxu0 %v1245
    %1384 = vmatprep.subr.bf16.mxu0 %v1248
    %1385 = vmatpush1.bf16.msra.mxu0 %v1247
    %1386 = vmatprep.subr.bf16.mxu0 %v1250
    %1387 = vmatpush1.bf16.msra.mxu0 %v1249
    %1388 = vmatprep.subr.bf16.mxu0 %v1252
    %1389 = vmatpush1.bf16.msra.mxu0 %v1251
    %1390 = vmatprep.subr.bf16.mxu0 %v1254
    %1391 = vmatpush1.bf16.msra.mxu0 %v1253
    %1392 = vmatprep.subr.bf16.mxu0 %v1256
    %1393 = vmatpush1.bf16.msra.mxu0 %v1255
    %1394 = vmatprep.subr.bf16.mxu0 %v1258
    %1395 = vmatpush1.bf16.msra.mxu0 %v1257
    %1396 = vmatprep.subr.bf16.mxu0 %v1260
    %1397 = vmatpush1.bf16.msra.mxu0 %v1259
    %1398 = vmatprep.subr.bf16.mxu0 %v1262
    %1399 = vmatpush1.bf16.msra.mxu0 %v1261
    %1400 = vmatprep.subr.bf16.mxu0 %v1264
    %1401 = vmatpush1.bf16.msra.mxu0 %v1263
    %1402 = vmatprep.subr.bf16.mxu0 %v1266
    %1403 = vmatpush1.bf16.msra.mxu0 %v1265
    %1404 = vmatprep.mubr.bf16.mxu0 %v934
    %1405 = vmatmul.mubr.bf16.gmra.mrb[0].mxu0 %v933
    %v1406 = vpop.f32.mrb[0].mxu0
    %v1407 = vadd.f32 %v1366, %v1406
    %v1408 = vpop.f32.mrb[0].mxu0
    %v1409 = vadd.f32 %v1368, %v1408
    %v1410 = vpop.f32.mrb[0].mxu0
    %v1411 = vpop.f32.mrb[0].mxu0
    %1412 = vdwg.mxu0
    %v1413 = vmax.f32 %v1407, 0.0
    %v1414 = vmax.f32 %v1409, 0.0
    %v1415 = vpack.c.bf16 %v1413, %v1413
    %v1416 = vpack.c.bf16 %v1414, %v1414
    %v1417 = vld [vmem:[%s11] sm:$0xff]
    %v1418 = vld [vmem:[%s11 + $0x8] sm:$0xff]
    %v1419 = vld [vmem:[%s11 + $0x10] sm:$0xff]
    %v1420 = vld [vmem:[%s11 + $0x18] sm:$0xff]
    %v1421 = vld [vmem:[%s11 + $0x20] sm:$0xff]
    %v1422 = vld [vmem:[%s11 + $0x28] sm:$0xff]
    %v1423 = vld [vmem:[%s11 + $0x30] sm:$0xff]
    %v1424 = vld [vmem:[%s11 + $0x38] sm:$0xff]
    %v1425 = vld [vmem:[%s11 + $0x40] sm:$0xff]
    %v1426 = vld [vmem:[%s11 + $0x48] sm:$0xff]
    %v1427 = vld [vmem:[%s11 + $0x50] sm:$0xff]
    %v1428 = vld [vmem:[%s11 + $0x58] sm:$0xff]
    %v1429 = vld [vmem:[%s11 + $0x60] sm:$0xff]
    %v1430 = vld [vmem:[%s11 + $0x68] sm:$0xff]
    %v1431 = vld [vmem:[%s11 + $0x70] sm:$0xff]
    %v1432 = vld [vmem:[%s11 + $0x78] sm:$0xff]
    %v1433 = vld [vmem:[%s11 + $0x80] sm:$0xff]
    %v1434 = vld [vmem:[%s11 + $0x88] sm:$0xff]
    %v1435 = vld [vmem:[%s11 + $0x90] sm:$0xff]
    %v1436 = vld [vmem:[%s11 + $0x98] sm:$0xff]
    %v1437 = vld [vmem:[%s11 + $0xa0] sm:$0xff]
    %v1438 = vld [vmem:[%s11 + $0xa8] sm:$0xff]
    %v1439 = vld [vmem:[%s11 + $0xb0] sm:$0xff]
    %v1440 = vld [vmem:[%s11 + $0xb8] sm:$0xff]
    %v1441 = vld [vmem:[%s11 + $0xc0] sm:$0xff]
    %v1442 = vld [vmem:[%s11 + $0xc8] sm:$0xff]
    %v1443 = vld [vmem:[%s11 + $0xd0] sm:$0xff]
    %v1444 = vld [vmem:[%s11 + $0xd8] sm:$0xff]
    %v1445 = vld [vmem:[%s11 + $0xe0] sm:$0xff]
    %v1446 = vld [vmem:[%s11 + $0xe8] sm:$0xff]
    %v1447 = vld [vmem:[%s11 + $0xf0] sm:$0xff]
    %v1448 = vld [vmem:[%s11 + $0xf8] sm:$0xff]
    %v1449 = vld [vmem:[%s11 + $0x100] sm:$0xff]
    %v1450 = vld [vmem:[%s11 + $0x108] sm:$0xff]
    %v1451 = vld [vmem:[%s11 + $0x110] sm:$0xff]
    %v1452 = vld [vmem:[%s11 + $0x118] sm:$0xff]
    %v1453 = vld [vmem:[%s11 + $0x120] sm:$0xff]
    %v1454 = vld [vmem:[%s11 + $0x128] sm:$0xff]
    %v1455 = vld [vmem:[%s11 + $0x130] sm:$0xff]
    %v1456 = vld [vmem:[%s11 + $0x138] sm:$0xff]
    %v1457 = vld [vmem:[%s11 + $0x140] sm:$0xff]
    %v1458 = vld [vmem:[%s11 + $0x148] sm:$0xff]
    %v1459 = vld [vmem:[%s11 + $0x150] sm:$0xff]
    %v1460 = vld [vmem:[%s11 + $0x158] sm:$0xff]
    %v1461 = vld [vmem:[%s11 + $0x160] sm:$0xff]
    %v1462 = vld [vmem:[%s11 + $0x168] sm:$0xff]
    %v1463 = vld [vmem:[%s11 + $0x170] sm:$0xff]
    %v1464 = vld [vmem:[%s11 + $0x178] sm:$0xff]
    %v1465 = vld [vmem:[%s11 + $0x180] sm:$0xff]
    %v1466 = vld [vmem:[%s11 + $0x188] sm:$0xff]
    %v1467 = vld [vmem:[%s11 + $0x190] sm:$0xff]
    %v1468 = vld [vmem:[%s11 + $0x198] sm:$0xff]
    %v1469 = vld [vmem:[%s11 + $0x1a0] sm:$0xff]
    %v1470 = vld [vmem:[%s11 + $0x1a8] sm:$0xff]
    %v1471 = vld [vmem:[%s11 + $0x1b0] sm:$0xff]
    %v1472 = vld [vmem:[%s11 + $0x1b8] sm:$0xff]
    %v1473 = vld [vmem:[%s11 + $0x1c0] sm:$0xff]
    %v1474 = vld [vmem:[%s11 + $0x1c8] sm:$0xff]
    %v1475 = vld [vmem:[%s11 + $0x1d0] sm:$0xff]
    %v1476 = vld [vmem:[%s11 + $0x1d8] sm:$0xff]
    %v1477 = vld [vmem:[%s11 + $0x1e0] sm:$0xff]
    %v1478 = vld [vmem:[%s11 + $0x1e8] sm:$0xff]
    %v1479 = vld [vmem:[%s11 + $0x1f0] sm:$0xff]
    %v1480 = vld [vmem:[%s11 + $0x1f8] sm:$0xff]
    %v1481 = vld [vmem:[#allocation10] sm:$0xf]
    %v1483 = vlaneseq
    %v1484 = vshrl.u32 %v1483, 7
    %v1485 = vsub.s32 0, %v1484
    %v1486 = vrot.slane %v1481, %v1485
    %v1487 = vlaneseq
    %v1488 = vshrl.u32 %v1487, 7
    %v1489 = vsub.s32 1, %v1488
    %v1490 = vrot.slane %v1481, %v1489
    %v1491 = vlaneseq
    %v1492 = vshrl.u32 %v1491, 7
    %v1493 = vsub.s32 2, %v1492
    %v1494 = vrot.slane %v1481, %v1493
    %v1495 = vlaneseq
    %v1496 = vshrl.u32 %v1495, 7
    %v1497 = vsub.s32 3, %v1496
    %v1498 = vrot.slane %v1481, %v1497
    %v1567 = vunpack.c.l.b16 %v1417
    %v1568 = vunpack.c.h.b16 %v1417
    %v1569 = vunpack.c.l.b16 %v1418
    %v1570 = vunpack.c.h.b16 %v1418
    %v1571 = vunpack.c.l.b16 %v1419
    %v1572 = vunpack.c.h.b16 %v1419
    %v1573 = vunpack.c.l.b16 %v1420
    %v1574 = vunpack.c.h.b16 %v1420
    %v1575 = vunpack.c.l.b16 %v1421
    %v1576 = vunpack.c.h.b16 %v1421
    %v1577 = vunpack.c.l.b16 %v1422
    %v1578 = vunpack.c.h.b16 %v1422
    %v1579 = vunpack.c.l.b16 %v1423
    %v1580 = vunpack.c.h.b16 %v1423
    %v1581 = vunpack.c.l.b16 %v1424
    %v1582 = vunpack.c.h.b16 %v1424
    %v1583 = vunpack.c.l.b16 %v1425
    %v1584 = vunpack.c.h.b16 %v1425
    %v1585 = vunpack.c.l.b16 %v1426
    %v1586 = vunpack.c.h.b16 %v1426
    %v1587 = vunpack.c.l.b16 %v1427
    %v1588 = vunpack.c.h.b16 %v1427
    %v1589 = vunpack.c.l.b16 %v1428
    %v1590 = vunpack.c.h.b16 %v1428
    %v1591 = vunpack.c.l.b16 %v1429
    %v1592 = vunpack.c.h.b16 %v1429
    %v1593 = vunpack.c.l.b16 %v1430
    %v1594 = vunpack.c.h.b16 %v1430
    %v1595 = vunpack.c.l.b16 %v1431
    %v1596 = vunpack.c.h.b16 %v1431
    %v1597 = vunpack.c.l.b16 %v1432
    %v1598 = vunpack.c.h.b16 %v1432
    %v1599 = vunpack.c.l.b16 %v1433
    %v1600 = vunpack.c.h.b16 %v1433
    %v1601 = vunpack.c.l.b16 %v1434
    %v1602 = vunpack.c.h.b16 %v1434
    %v1603 = vunpack.c.l.b16 %v1435
    %v1604 = vunpack.c.h.b16 %v1435
    %v1605 = vunpack.c.l.b16 %v1436
    %v1606 = vunpack.c.h.b16 %v1436
    %v1607 = vunpack.c.l.b16 %v1437
    %v1608 = vunpack.c.h.b16 %v1437
    %v1609 = vunpack.c.l.b16 %v1438
    %v1610 = vunpack.c.h.b16 %v1438
    %v1611 = vunpack.c.l.b16 %v1439
    %v1612 = vunpack.c.h.b16 %v1439
    %v1613 = vunpack.c.l.b16 %v1440
    %v1614 = vunpack.c.h.b16 %v1440
    %v1615 = vunpack.c.l.b16 %v1441
    %v1616 = vunpack.c.h.b16 %v1441
    %v1617 = vunpack.c.l.b16 %v1442
    %v1618 = vunpack.c.h.b16 %v1442
    %v1619 = vunpack.c.l.b16 %v1443
    %v1620 = vunpack.c.h.b16 %v1443
    %v1621 = vunpack.c.l.b16 %v1444
    %v1622 = vunpack.c.h.b16 %v1444
    %v1623 = vunpack.c.l.b16 %v1445
    %v1624 = vunpack.c.h.b16 %v1445
    %v1625 = vunpack.c.l.b16 %v1446
    %v1626 = vunpack.c.h.b16 %v1446
    %v1627 = vunpack.c.l.b16 %v1447
    %v1628 = vunpack.c.h.b16 %v1447
    %v1629 = vunpack.c.l.b16 %v1448
    %v1630 = vunpack.c.h.b16 %v1448
    %v1631 = vunpack.c.l.b16 %v1449
    %v1632 = vunpack.c.h.b16 %v1449
    %v1633 = vunpack.c.l.b16 %v1450
    %v1634 = vunpack.c.h.b16 %v1450
    %v1635 = vunpack.c.l.b16 %v1451
    %v1636 = vunpack.c.h.b16 %v1451
    %v1637 = vunpack.c.l.b16 %v1452
    %v1638 = vunpack.c.h.b16 %v1452
    %v1639 = vunpack.c.l.b16 %v1453
    %v1640 = vunpack.c.h.b16 %v1453
    %v1641 = vunpack.c.l.b16 %v1454
    %v1642 = vunpack.c.h.b16 %v1454
    %v1643 = vunpack.c.l.b16 %v1455
    %v1644 = vunpack.c.h.b16 %v1455
    %v1645 = vunpack.c.l.b16 %v1456
    %v1646 = vunpack.c.h.b16 %v1456
    %v1647 = vunpack.c.l.b16 %v1457
    %v1648 = vunpack.c.h.b16 %v1457
    %v1649 = vunpack.c.l.b16 %v1458
    %v1650 = vunpack.c.h.b16 %v1458
    %v1651 = vunpack.c.l.b16 %v1459
    %v1652 = vunpack.c.h.b16 %v1459
    %v1653 = vunpack.c.l.b16 %v1460
    %v1654 = vunpack.c.h.b16 %v1460
    %v1655 = vunpack.c.l.b16 %v1461
    %v1656 = vunpack.c.h.b16 %v1461
    %v1657 = vunpack.c.l.b16 %v1462
    %v1658 = vunpack.c.h.b16 %v1462
    %v1659 = vunpack.c.l.b16 %v1463
    %v1660 = vunpack.c.h.b16 %v1463
    %v1661 = vunpack.c.l.b16 %v1464
    %v1662 = vunpack.c.h.b16 %v1464
    %v1663 = vunpack.c.l.b16 %v1465
    %v1664 = vunpack.c.h.b16 %v1465
    %v1665 = vunpack.c.l.b16 %v1466
    %v1666 = vunpack.c.h.b16 %v1466
    %v1667 = vunpack.c.l.b16 %v1467
    %v1668 = vunpack.c.h.b16 %v1467
    %v1669 = vunpack.c.l.b16 %v1468
    %v1670 = vunpack.c.h.b16 %v1468
    %v1671 = vunpack.c.l.b16 %v1469
    %v1672 = vunpack.c.h.b16 %v1469
    %v1673 = vunpack.c.l.b16 %v1470
    %v1674 = vunpack.c.h.b16 %v1470
    %v1675 = vunpack.c.l.b16 %v1471
    %v1676 = vunpack.c.h.b16 %v1471
    %v1677 = vunpack.c.l.b16 %v1472
    %v1678 = vunpack.c.h.b16 %v1472
    %v1679 = vunpack.c.l.b16 %v1473
    %v1680 = vunpack.c.h.b16 %v1473
    %v1681 = vunpack.c.l.b16 %v1474
    %v1682 = vunpack.c.h.b16 %v1474
    %v1683 = vunpack.c.l.b16 %v1475
    %v1684 = vunpack.c.h.b16 %v1475
    %v1685 = vunpack.c.l.b16 %v1476
    %v1686 = vunpack.c.h.b16 %v1476
    %v1687 = vunpack.c.l.b16 %v1477
    %v1688 = vunpack.c.h.b16 %v1477
    %v1689 = vunpack.c.l.b16 %v1478
    %v1690 = vunpack.c.h.b16 %v1478
    %v1691 = vunpack.c.l.b16 %v1479
    %v1692 = vunpack.c.h.b16 %v1479
    %v1693 = vunpack.c.l.b16 %v1480
    %v1694 = vunpack.c.h.b16 %v1480
    %v1695 = vpack.c.b16 %v1571, %v1567
    %v1696 = vpack.c.b16 %v1572, %v1568
    %v1697 = vpack.c.b16 %v1573, %v1569
    %v1698 = vpack.c.b16 %v1574, %v1570
    %v1699 = vpack.c.b16 %v1579, %v1575
    %v1700 = vpack.c.b16 %v1580, %v1576
    %v1701 = vpack.c.b16 %v1581, %v1577
    %v1702 = vpack.c.b16 %v1582, %v1578
    %v1703 = vpack.c.b16 %v1587, %v1583
    %v1704 = vpack.c.b16 %v1588, %v1584
    %v1705 = vpack.c.b16 %v1589, %v1585
    %v1706 = vpack.c.b16 %v1590, %v1586
    %v1707 = vpack.c.b16 %v1595, %v1591
    %v1708 = vpack.c.b16 %v1596, %v1592
    %v1709 = vpack.c.b16 %v1597, %v1593
    %v1710 = vpack.c.b16 %v1598, %v1594
    %v1711 = vpack.c.b16 %v1603, %v1599
    %v1712 = vpack.c.b16 %v1604, %v1600
    %v1713 = vpack.c.b16 %v1605, %v1601
    %v1714 = vpack.c.b16 %v1606, %v1602
    %v1715 = vpack.c.b16 %v1611, %v1607
    %v1716 = vpack.c.b16 %v1612, %v1608
    %v1717 = vpack.c.b16 %v1613, %v1609
    %v1718 = vpack.c.b16 %v1614, %v1610
    %v1719 = vpack.c.b16 %v1619, %v1615
    %v1720 = vpack.c.b16 %v1620, %v1616
    %v1721 = vpack.c.b16 %v1621, %v1617
    %v1722 = vpack.c.b16 %v1622, %v1618
    %v1723 = vpack.c.b16 %v1627, %v1623
    %v1724 = vpack.c.b16 %v1628, %v1624
    %v1725 = vpack.c.b16 %v1629, %v1625
    %v1726 = vpack.c.b16 %v1630, %v1626
    %v1727 = vpack.c.b16 %v1635, %v1631
    %v1728 = vpack.c.b16 %v1636, %v1632
    %v1729 = vpack.c.b16 %v1637, %v1633
    %v1730 = vpack.c.b16 %v1638, %v1634
    %v1731 = vpack.c.b16 %v1643, %v1639
    %v1732 = vpack.c.b16 %v1644, %v1640
    %v1733 = vpack.c.b16 %v1645, %v1641
    %v1734 = vpack.c.b16 %v1646, %v1642
    %v1735 = vpack.c.b16 %v1651, %v1647
    %v1736 = vpack.c.b16 %v1652, %v1648
    %v1737 = vpack.c.b16 %v1653, %v1649
    %v1738 = vpack.c.b16 %v1654, %v1650
    %v1739 = vpack.c.b16 %v1659, %v1655
    %v1740 = vpack.c.b16 %v1660, %v1656
    %v1741 = vpack.c.b16 %v1661, %v1657
    %v1742 = vpack.c.b16 %v1662, %v1658
    %v1743 = vpack.c.b16 %v1667, %v1663
    %v1744 = vpack.c.b16 %v1668, %v1664
    %v1745 = vpack.c.b16 %v1669, %v1665
    %v1746 = vpack.c.b16 %v1670, %v1666
    %v1747 = vpack.c.b16 %v1675, %v1671
    %v1748 = vpack.c.b16 %v1676, %v1672
    %v1749 = vpack.c.b16 %v1677, %v1673
    %v1750 = vpack.c.b16 %v1678, %v1674
    %v1751 = vpack.c.b16 %v1683, %v1679
    %v1752 = vpack.c.b16 %v1684, %v1680
    %v1753 = vpack.c.b16 %v1685, %v1681
    %v1754 = vpack.c.b16 %v1686, %v1682
    %v1755 = vpack.c.b16 %v1691, %v1687
    %v1756 = vpack.c.b16 %v1692, %v1688
    %v1757 = vpack.c.b16 %v1693, %v1689
    %v1758 = vpack.c.b16 %v1694, %v1690
    %1823 = vmatprep.subr.bf16.mxu0 %v1696
    %1824 = vmatpush1.bf16.msra.mxu0 %v1695
    %1825 = vmatprep.subr.bf16.mxu0 %v1700
    %1826 = vmatpush1.bf16.msra.mxu0 %v1699
    %1827 = vmatprep.subr.bf16.mxu0 %v1704
    %1828 = vmatpush1.bf16.msra.mxu0 %v1703
    %1829 = vmatprep.subr.bf16.mxu0 %v1708
    %1830 = vmatpush1.bf16.msra.mxu0 %v1707
    %1831 = vmatprep.subr.bf16.mxu0 %v1712
    %1832 = vmatpush1.bf16.msra.mxu0 %v1711
    %1833 = vmatprep.subr.bf16.mxu0 %v1716
    %1834 = vmatpush1.bf16.msra.mxu0 %v1715
    %1835 = vmatprep.subr.bf16.mxu0 %v1720
    %1836 = vmatpush1.bf16.msra.mxu0 %v1719
    %1837 = vmatprep.subr.bf16.mxu0 %v1724
    %1838 = vmatpush1.bf16.msra.mxu0 %v1723
    %1839 = vmatprep.subr.bf16.mxu0 %v1728
    %1840 = vmatpush1.bf16.msra.mxu0 %v1727
    %1841 = vmatprep.subr.bf16.mxu0 %v1732
    %1842 = vmatpush1.bf16.msra.mxu0 %v1731
    %1843 = vmatprep.subr.bf16.mxu0 %v1736
    %1844 = vmatpush1.bf16.msra.mxu0 %v1735
    %1845 = vmatprep.subr.bf16.mxu0 %v1740
    %1846 = vmatpush1.bf16.msra.mxu0 %v1739
    %1847 = vmatprep.subr.bf16.mxu0 %v1744
    %1848 = vmatpush1.bf16.msra.mxu0 %v1743
    %1849 = vmatprep.subr.bf16.mxu0 %v1748
    %1850 = vmatpush1.bf16.msra.mxu0 %v1747
    %1851 = vmatprep.subr.bf16.mxu0 %v1752
    %1852 = vmatpush1.bf16.msra.mxu0 %v1751
    %1853 = vmatprep.subr.bf16.mxu0 %v1756
    %1854 = vmatpush1.bf16.msra.mxu0 %v1755
    %1855 = vmatprep.mubr.bf16.mxu0 %v1416
    %1856 = vmatmul.mubr.bf16.gmra.mrb[0].mxu0 %v1415
    %v1857 = vpop.f32.mrb[0].mxu0
    %v1858 = vadd.f32 %v1486, %v1857
    %v1859 = vpop.f32.mrb[0].mxu0
    %v1860 = vadd.f32 %v1490, %v1859
    %v1861 = vpop.f32.mrb[0].mxu0
    %v1862 = vpop.f32.mrb[0].mxu0
    %1863 = vdwg.mxu0
    %1864 = vmatprep.subr.bf16.mxu0 %v1698
    %1865 = vmatpush1.bf16.msra.mxu0 %v1697
    %1866 = vmatprep.subr.bf16.mxu0 %v1702
    %1867 = vmatpush1.bf16.msra.mxu0 %v1701
    %1868 = vmatprep.subr.bf16.mxu0 %v1706
    %1869 = vmatpush1.bf16.msra.mxu0 %v1705
    %1870 = vmatprep.subr.bf16.mxu0 %v1710
    %1871 = vmatpush1.bf16.msra.mxu0 %v1709
    %1872 = vmatprep.subr.bf16.mxu0 %v1714
    %1873 = vmatpush1.bf16.msra.mxu0 %v1713
    %1874 = vmatprep.subr.bf16.mxu0 %v1718
    %1875 = vmatpush1.bf16.msra.mxu0 %v1717
    %1876 = vmatprep.subr.bf16.mxu0 %v1722
    %1877 = vmatpush1.bf16.msra.mxu0 %v1721
    %1878 = vmatprep.subr.bf16.mxu0 %v1726
    %1879 = vmatpush1.bf16.msra.mxu0 %v1725
    %1880 = vmatprep.subr.bf16.mxu0 %v1730
    %1881 = vmatpush1.bf16.msra.mxu0 %v1729
    %1882 = vmatprep.subr.bf16.mxu0 %v1734
    %1883 = vmatpush1.bf16.msra.mxu0 %v1733
    %1884 = vmatprep.subr.bf16.mxu0 %v1738
    %1885 = vmatpush1.bf16.msra.mxu0 %v1737
    %1886 = vmatprep.subr.bf16.mxu0 %v1742
    %1887 = vmatpush1.bf16.msra.mxu0 %v1741
    %1888 = vmatprep.subr.bf16.mxu0 %v1746
    %1889 = vmatpush1.bf16.msra.mxu0 %v1745
    %1890 = vmatprep.subr.bf16.mxu0 %v1750
    %1891 = vmatpush1.bf16.msra.mxu0 %v1749
    %1892 = vmatprep.subr.bf16.mxu0 %v1754
    %1893 = vmatpush1.bf16.msra.mxu0 %v1753
    %1894 = vmatprep.subr.bf16.mxu0 %v1758
    %1895 = vmatpush1.bf16.msra.mxu0 %v1757
    %1896 = vmatprep.mubr.bf16.mxu0 %v1416
    %1897 = vmatmul.mubr.bf16.gmra.mrb[0].mxu0 %v1415
    %v1898 = vpop.f32.mrb[0].mxu0
    %v1899 = vadd.f32 %v1494, %v1898
    %v1900 = vpop.f32.mrb[0].mxu0
    %v1901 = vadd.f32 %v1498, %v1900
    %v1902 = vpop.f32.mrb[0].mxu0
    %v1903 = vpop.f32.mrb[0].mxu0
    %1904 = vdwg.mxu0
    %v1909 = vcombine.low %v1858, %v1860
    %v1910 = vcombine.low %v1899, %v1901
    %v1912 = vunpack.c.l.s4 1983009808
    %v1913 = vunpack.c.0.s8 %v1912
    %v1914 = vlaneseq
    %v1915 = vshrl.u32 %v1914, 7
    %v1916 = vsub.s32 %v1913, %v1915
    %v1917 = vrot.slane %v1909, %v1916
    %v1919 = vunpack.c.l.s4 1983009808
    %v1920 = vunpack.c.0.s8 %v1919
    %v1921 = vlaneseq
    %v1922 = vshrl.u32 %v1921, 7
    %v1923 = vsub.s32 %v1920, %v1922
    %v1924 = vrot.slane %v1910, %v1923
    %v1925 = vcombine.low %v1917, %v1924
    %1927 = vst [vmem:[#allocation21] sm:$0xff] %v1925
    %v1928 = vld [vmem:[%s13] sm:$0xff]
    %v1929 = vld [vmem:[%s13 + $0x8] sm:$0xff]
    %v1930 = vld [vmem:[%s13 + $0x10] sm:$0xff]
    %v1931 = vld [vmem:[%s13 + $0x18] sm:$0xff]
    %v1932 = vld [vmem:[%s13 + $0x20] sm:$0xff]
    %v1933 = vld [vmem:[%s13 + $0x28] sm:$0xff]
    %v1934 = vld [vmem:[%s13 + $0x30] sm:$0xff]
    %v1935 = vld [vmem:[%s13 + $0x38] sm:$0xff]
    %v1936 = vld [vmem:[%s13 + $0x40] sm:$0xff]
    %v1937 = vld [vmem:[%s13 + $0x48] sm:$0xff]
    %v1938 = vld [vmem:[%s13 + $0x50] sm:$0xff]
    %v1939 = vld [vmem:[%s13 + $0x58] sm:$0xff]
    %v1940 = vld [vmem:[%s13 + $0x60] sm:$0xff]
    %v1941 = vld [vmem:[%s13 + $0x68] sm:$0xff]
    %v1942 = vld [vmem:[%s13 + $0x70] sm:$0xff]
    %v1943 = vld [vmem:[%s13 + $0x78] sm:$0xff]
    %v1944 = vld [vmem:[%s13 + $0x80] sm:$0xff]
    %v1945 = vld [vmem:[%s13 + $0x88] sm:$0xff]
    %v1946 = vld [vmem:[%s13 + $0x90] sm:$0xff]
    %v1947 = vld [vmem:[%s13 + $0x98] sm:$0xff]
    %v1948 = vld [vmem:[%s13 + $0xa0] sm:$0xff]
    %v1949 = vld [vmem:[%s13 + $0xa8] sm:$0xff]
    %v1950 = vld [vmem:[%s13 + $0xb0] sm:$0xff]
    %v1951 = vld [vmem:[%s13 + $0xb8] sm:$0xff]
    %v1952 = vld [vmem:[%s13 + $0xc0] sm:$0xff]
    %v1953 = vld [vmem:[%s13 + $0xc8] sm:$0xff]
    %v1954 = vld [vmem:[%s13 + $0xd0] sm:$0xff]
    %v1955 = vld [vmem:[%s13 + $0xd8] sm:$0xff]
    %v1956 = vld [vmem:[%s13 + $0xe0] sm:$0xff]
    %v1957 = vld [vmem:[%s13 + $0xe8] sm:$0xff]
    %v1958 = vld [vmem:[%s13 + $0xf0] sm:$0xff]
    %v1959 = vld [vmem:[%s13 + $0xf8] sm:$0xff]
    %v1960 = vld [vmem:[#allocation11] sm:$0xf]
    %v1962 = vlaneseq
    %v1963 = vshrl.u32 %v1962, 7
    %v1964 = vsub.s32 0, %v1963
    %v1965 = vrot.slane %v1960, %v1964
    %v1966 = vlaneseq
    %v1967 = vshrl.u32 %v1966, 7
    %v1968 = vsub.s32 1, %v1967
    %v1969 = vrot.slane %v1960, %v1968
    %v1970 = vlaneseq
    %v1971 = vshrl.u32 %v1970, 7
    %v1972 = vsub.s32 2, %v1971
    %v1973 = vrot.slane %v1960, %v1972
    %v1974 = vlaneseq
    %v1975 = vshrl.u32 %v1974, 7
    %v1976 = vsub.s32 3, %v1975
    %v1977 = vrot.slane %v1960, %v1976
    %v2014 = vunpack.c.l.b16 %v1928
    %v2015 = vunpack.c.h.b16 %v1928
    %v2016 = vunpack.c.l.b16 %v1929
    %v2017 = vunpack.c.h.b16 %v1929
    %v2018 = vunpack.c.l.b16 %v1930
    %v2019 = vunpack.c.h.b16 %v1930
    %v2020 = vunpack.c.l.b16 %v1931
    %v2021 = vunpack.c.h.b16 %v1931
    %v2022 = vunpack.c.l.b16 %v1932
    %v2023 = vunpack.c.h.b16 %v1932
    %v2024 = vunpack.c.l.b16 %v1933
    %v2025 = vunpack.c.h.b16 %v1933
    %v2026 = vunpack.c.l.b16 %v1934
    %v2027 = vunpack.c.h.b16 %v1934
    %v2028 = vunpack.c.l.b16 %v1935
    %v2029 = vunpack.c.h.b16 %v1935
    %v2030 = vunpack.c.l.b16 %v1936
    %v2031 = vunpack.c.h.b16 %v1936
    %v2032 = vunpack.c.l.b16 %v1937
    %v2033 = vunpack.c.h.b16 %v1937
    %v2034 = vunpack.c.l.b16 %v1938
    %v2035 = vunpack.c.h.b16 %v1938
    %v2036 = vunpack.c.l.b16 %v1939
    %v2037 = vunpack.c.h.b16 %v1939
    %v2038 = vunpack.c.l.b16 %v1940
    %v2039 = vunpack.c.h.b16 %v1940
    %v2040 = vunpack.c.l.b16 %v1941
    %v2041 = vunpack.c.h.b16 %v1941
    %v2042 = vunpack.c.l.b16 %v1942
    %v2043 = vunpack.c.h.b16 %v1942
    %v2044 = vunpack.c.l.b16 %v1943
    %v2045 = vunpack.c.h.b16 %v1943
    %v2046 = vunpack.c.l.b16 %v1944
    %v2047 = vunpack.c.h.b16 %v1944
    %v2048 = vunpack.c.l.b16 %v1945
    %v2049 = vunpack.c.h.b16 %v1945
    %v2050 = vunpack.c.l.b16 %v1946
    %v2051 = vunpack.c.h.b16 %v1946
    %v2052 = vunpack.c.l.b16 %v1947
    %v2053 = vunpack.c.h.b16 %v1947
    %v2054 = vunpack.c.l.b16 %v1948
    %v2055 = vunpack.c.h.b16 %v1948
    %v2056 = vunpack.c.l.b16 %v1949
    %v2057 = vunpack.c.h.b16 %v1949
    %v2058 = vunpack.c.l.b16 %v1950
    %v2059 = vunpack.c.h.b16 %v1950
    %v2060 = vunpack.c.l.b16 %v1951
    %v2061 = vunpack.c.h.b16 %v1951
    %v2062 = vunpack.c.l.b16 %v1952
    %v2063 = vunpack.c.h.b16 %v1952
    %v2064 = vunpack.c.l.b16 %v1953
    %v2065 = vunpack.c.h.b16 %v1953
    %v2066 = vunpack.c.l.b16 %v1954
    %v2067 = vunpack.c.h.b16 %v1954
    %v2068 = vunpack.c.l.b16 %v1955
    %v2069 = vunpack.c.h.b16 %v1955
    %v2070 = vunpack.c.l.b16 %v1956
    %v2071 = vunpack.c.h.b16 %v1956
    %v2072 = vunpack.c.l.b16 %v1957
    %v2073 = vunpack.c.h.b16 %v1957
    %v2074 = vunpack.c.l.b16 %v1958
    %v2075 = vunpack.c.h.b16 %v1958
    %v2076 = vunpack.c.l.b16 %v1959
    %v2077 = vunpack.c.h.b16 %v1959
    %v2078 = vpack.c.b16 %v2018, %v2014
    %v2079 = vpack.c.b16 %v2019, %v2015
    %v2080 = vpack.c.b16 %v2020, %v2016
    %v2081 = vpack.c.b16 %v2021, %v2017
    %v2082 = vpack.c.b16 %v2026, %v2022
    %v2083 = vpack.c.b16 %v2027, %v2023
    %v2084 = vpack.c.b16 %v2028, %v2024
    %v2085 = vpack.c.b16 %v2029, %v2025
    %v2086 = vpack.c.b16 %v2034, %v2030
    %v2087 = vpack.c.b16 %v2035, %v2031
    %v2088 = vpack.c.b16 %v2036, %v2032
    %v2089 = vpack.c.b16 %v2037, %v2033
    %v2090 = vpack.c.b16 %v2042, %v2038
    %v2091 = vpack.c.b16 %v2043, %v2039
    %v2092 = vpack.c.b16 %v2044, %v2040
    %v2093 = vpack.c.b16 %v2045, %v2041
    %v2094 = vpack.c.b16 %v2050, %v2046
    %v2095 = vpack.c.b16 %v2051, %v2047
    %v2096 = vpack.c.b16 %v2052, %v2048
    %v2097 = vpack.c.b16 %v2053, %v2049
    %v2098 = vpack.c.b16 %v2058, %v2054
    %v2099 = vpack.c.b16 %v2059, %v2055
    %v2100 = vpack.c.b16 %v2060, %v2056
    %v2101 = vpack.c.b16 %v2061, %v2057
    %v2102 = vpack.c.b16 %v2066, %v2062
    %v2103 = vpack.c.b16 %v2067, %v2063
    %v2104 = vpack.c.b16 %v2068, %v2064
    %v2105 = vpack.c.b16 %v2069, %v2065
    %v2106 = vpack.c.b16 %v2074, %v2070
    %v2107 = vpack.c.b16 %v2075, %v2071
    %v2108 = vpack.c.b16 %v2076, %v2072
    %v2109 = vpack.c.b16 %v2077, %v2073
    %2142 = vmatprep.subr.bf16.mxu0 %v2079
    %2143 = vmatpush1.bf16.msra.mxu0 %v2078
    %2144 = vmatprep.subr.bf16.mxu0 %v2083
    %2145 = vmatpush1.bf16.msra.mxu0 %v2082
    %2146 = vmatprep.subr.bf16.mxu0 %v2087
    %2147 = vmatpush1.bf16.msra.mxu0 %v2086
    %2148 = vmatprep.subr.bf16.mxu0 %v2091
    %2149 = vmatpush1.bf16.msra.mxu0 %v2090
    %2150 = vmatprep.subr.bf16.mxu0 %v2095
    %2151 = vmatpush1.bf16.msra.mxu0 %v2094
    %2152 = vmatprep.subr.bf16.mxu0 %v2099
    %2153 = vmatpush1.bf16.msra.mxu0 %v2098
    %2154 = vmatprep.subr.bf16.mxu0 %v2103
    %2155 = vmatpush1.bf16.msra.mxu0 %v2102
    %2156 = vmatprep.subr.bf16.mxu0 %v2107
    %2157 = vmatpush1.bf16.msra.mxu0 %v2106
    %2158 = vmatprep.subr.bf16.mxu0 0
    %2159 = vmatpush1.bf16.msra.mxu0 0
    %2160 = vmatprep.subr.bf16.mxu0 0
    %2161 = vmatpush1.bf16.msra.mxu0 0
    %2162 = vmatprep.subr.bf16.mxu0 0
    %2163 = vmatpush1.bf16.msra.mxu0 0
    %2164 = vmatprep.subr.bf16.mxu0 0
    %2165 = vmatpush1.bf16.msra.mxu0 0
    %2166 = vmatprep.subr.bf16.mxu0 0
    %2167 = vmatpush1.bf16.msra.mxu0 0
    %2168 = vmatprep.subr.bf16.mxu0 0
    %2169 = vmatpush1.bf16.msra.mxu0 0
    %2170 = vmatprep.subr.bf16.mxu0 0
    %2171 = vmatpush1.bf16.msra.mxu0 0
    %2172 = vmatprep.subr.bf16.mxu0 0
    %2173 = vmatpush1.bf16.msra.mxu0 0
    %2174 = vmatprep.mubr.bf16.mxu0 0
    %2175 = vmatmul.mubr.bf16.gmra.mrb[0].mxu0 %v215
    %v2176 = vpop.f32.mrb[0].mxu0
    %v2177 = vadd.f32 %v1965, %v2176
    %v2178 = vpop.f32.mrb[0].mxu0
    %v2179 = vadd.f32 %v1969, %v2178
    %v2180 = vpop.f32.mrb[0].mxu0
    %v2181 = vpop.f32.mrb[0].mxu0
    %2182 = vdwg.mxu0
    %2183 = vmatprep.subr.bf16.mxu0 %v2081
    %2184 = vmatpush1.bf16.msra.mxu0 %v2080
    %2185 = vmatprep.subr.bf16.mxu0 %v2085
    %2186 = vmatpush1.bf16.msra.mxu0 %v2084
    %2187 = vmatprep.subr.bf16.mxu0 %v2089
    %2188 = vmatpush1.bf16.msra.mxu0 %v2088
    %2189 = vmatprep.subr.bf16.mxu0 %v2093
    %2190 = vmatpush1.bf16.msra.mxu0 %v2092
    %2191 = vmatprep.subr.bf16.mxu0 %v2097
    %2192 = vmatpush1.bf16.msra.mxu0 %v2096
    %2193 = vmatprep.subr.bf16.mxu0 %v2101
    %2194 = vmatpush1.bf16.msra.mxu0 %v2100
    %2195 = vmatprep.subr.bf16.mxu0 %v2105
    %2196 = vmatpush1.bf16.msra.mxu0 %v2104
    %2197 = vmatprep.subr.bf16.mxu0 %v2109
    %2198 = vmatpush1.bf16.msra.mxu0 %v2108
    %2199 = vmatprep.subr.bf16.mxu0 0
    %2200 = vmatpush1.bf16.msra.mxu0 0
    %2201 = vmatprep.subr.bf16.mxu0 0
    %2202 = vmatpush1.bf16.msra.mxu0 0
    %2203 = vmatprep.subr.bf16.mxu0 0
    %2204 = vmatpush1.bf16.msra.mxu0 0
    %2205 = vmatprep.subr.bf16.mxu0 0
    %2206 = vmatpush1.bf16.msra.mxu0 0
    %2207 = vmatprep.subr.bf16.mxu0 0
    %2208 = vmatpush1.bf16.msra.mxu0 0
    %2209 = vmatprep.subr.bf16.mxu0 0
    %2210 = vmatpush1.bf16.msra.mxu0 0
    %2211 = vmatprep.subr.bf16.mxu0 0
    %2212 = vmatpush1.bf16.msra.mxu0 0
    %2213 = vmatprep.subr.bf16.mxu0 0
    %2214 = vmatpush1.bf16.msra.mxu0 0
    %2215 = vmatprep.mubr.bf16.mxu0 0
    %2216 = vmatmul.mubr.bf16.gmra.mrb[0].mxu0 %v215
    %v2217 = vpop.f32.mrb[0].mxu0
    %v2218 = vadd.f32 %v1973, %v2217
    %v2219 = vpop.f32.mrb[0].mxu0
    %v2220 = vadd.f32 %v1977, %v2219
    %v2221 = vpop.f32.mrb[0].mxu0
    %v2222 = vpop.f32.mrb[0].mxu0
    %2223 = vdwg.mxu0
    %v2224 = vmax.f32 %v2177, 0.0
    %v2225 = vmax.f32 %v2179, 0.0
    %v2226 = vmax.f32 %v2218, 0.0
    %v2227 = vmax.f32 %v2220, 0.0
    %v2228 = vpack.c.bf16 %v2224, %v2224
    %v2229 = vpack.c.bf16 %v2225, %v2225
    %v2230 = vpack.c.bf16 %v2226, %v2226
    %v2231 = vpack.c.bf16 %v2227, %v2227
    %v2232 = vld [vmem:[%s15] sm:$0xff]
    %v2233 = vld [vmem:[%s15 + $0x8] sm:$0xff]
    %v2234 = vld [vmem:[%s15 + $0x10] sm:$0xff]
    %v2235 = vld [vmem:[%s15 + $0x18] sm:$0xff]
    %v2236 = vld [vmem:[%s15 + $0x20] sm:$0xff]
    %v2237 = vld [vmem:[%s15 + $0x28] sm:$0xff]
    %v2238 = vld [vmem:[%s15 + $0x30] sm:$0xff]
    %v2239 = vld [vmem:[%s15 + $0x38] sm:$0xff]
    %v2240 = vld [vmem:[%s15 + $0x40] sm:$0xff]
    %v2241 = vld [vmem:[%s15 + $0x48] sm:$0xff]
    %v2242 = vld [vmem:[%s15 + $0x50] sm:$0xff]
    %v2243 = vld [vmem:[%s15 + $0x58] sm:$0xff]
    %v2244 = vld [vmem:[%s15 + $0x60] sm:$0xff]
    %v2245 = vld [vmem:[%s15 + $0x68] sm:$0xff]
    %v2246 = vld [vmem:[%s15 + $0x70] sm:$0xff]
    %v2247 = vld [vmem:[%s15 + $0x78] sm:$0xff]
    %v2248 = vld [vmem:[%s15 + $0x80] sm:$0xff]
    %v2249 = vld [vmem:[%s15 + $0x88] sm:$0xff]
    %v2250 = vld [vmem:[%s15 + $0x90] sm:$0xff]
    %v2251 = vld [vmem:[%s15 + $0x98] sm:$0xff]
    %v2252 = vld [vmem:[%s15 + $0xa0] sm:$0xff]
    %v2253 = vld [vmem:[%s15 + $0xa8] sm:$0xff]
    %v2254 = vld [vmem:[%s15 + $0xb0] sm:$0xff]
    %v2255 = vld [vmem:[%s15 + $0xb8] sm:$0xff]
    %v2256 = vld [vmem:[%s15 + $0xc0] sm:$0xff]
    %v2257 = vld [vmem:[%s15 + $0xc8] sm:$0xff]
    %v2258 = vld [vmem:[%s15 + $0xd0] sm:$0xff]
    %v2259 = vld [vmem:[%s15 + $0xd8] sm:$0xff]
    %v2260 = vld [vmem:[%s15 + $0xe0] sm:$0xff]
    %v2261 = vld [vmem:[%s15 + $0xe8] sm:$0xff]
    %v2262 = vld [vmem:[%s15 + $0xf0] sm:$0xff]
    %v2263 = vld [vmem:[%s15 + $0xf8] sm:$0xff]
    %v2264 = vld [vmem:[%s15 + $0x100] sm:$0xff]
    %v2265 = vld [vmem:[%s15 + $0x108] sm:$0xff]
    %v2266 = vld [vmem:[%s15 + $0x110] sm:$0xff]
    %v2267 = vld [vmem:[%s15 + $0x118] sm:$0xff]
    %v2268 = vld [vmem:[%s15 + $0x120] sm:$0xff]
    %v2269 = vld [vmem:[%s15 + $0x128] sm:$0xff]
    %v2270 = vld [vmem:[%s15 + $0x130] sm:$0xff]
    %v2271 = vld [vmem:[%s15 + $0x138] sm:$0xff]
    %v2272 = vld [vmem:[%s15 + $0x140] sm:$0xff]
    %v2273 = vld [vmem:[%s15 + $0x148] sm:$0xff]
    %v2274 = vld [vmem:[%s15 + $0x150] sm:$0xff]
    %v2275 = vld [vmem:[%s15 + $0x158] sm:$0xff]
    %v2276 = vld [vmem:[%s15 + $0x160] sm:$0xff]
    %v2277 = vld [vmem:[%s15 + $0x168] sm:$0xff]
    %v2278 = vld [vmem:[%s15 + $0x170] sm:$0xff]
    %v2279 = vld [vmem:[%s15 + $0x178] sm:$0xff]
    %v2280 = vld [vmem:[%s15 + $0x180] sm:$0xff]
    %v2281 = vld [vmem:[%s15 + $0x188] sm:$0xff]
    %v2282 = vld [vmem:[%s15 + $0x190] sm:$0xff]
    %v2283 = vld [vmem:[%s15 + $0x198] sm:$0xff]
    %v2284 = vld [vmem:[%s15 + $0x1a0] sm:$0xff]
    %v2285 = vld [vmem:[%s15 + $0x1a8] sm:$0xff]
    %v2286 = vld [vmem:[%s15 + $0x1b0] sm:$0xff]
    %v2287 = vld [vmem:[%s15 + $0x1b8] sm:$0xff]
    %v2288 = vld [vmem:[%s15 + $0x1c0] sm:$0xff]
    %v2289 = vld [vmem:[%s15 + $0x1c8] sm:$0xff]
    %v2290 = vld [vmem:[%s15 + $0x1d0] sm:$0xff]
    %v2291 = vld [vmem:[%s15 + $0x1d8] sm:$0xff]
    %v2292 = vld [vmem:[%s15 + $0x1e0] sm:$0xff]
    %v2293 = vld [vmem:[%s15 + $0x1e8] sm:$0xff]
    %v2294 = vld [vmem:[%s15 + $0x1f0] sm:$0xff]
    %v2295 = vld [vmem:[%s15 + $0x1f8] sm:$0xff]
    %v2296 = vld [vmem:[#allocation13] sm:$0x3]
    %v2298 = vlaneseq
    %v2299 = vshrl.u32 %v2298, 7
    %v2300 = vsub.s32 0, %v2299
    %v2301 = vrot.slane %v2296, %v2300
    %v2302 = vlaneseq
    %v2303 = vshrl.u32 %v2302, 7
    %v2304 = vsub.s32 1, %v2303
    %v2305 = vrot.slane %v2296, %v2304
    %v2372 = vunpack.c.l.b16 %v2232
    %v2373 = vunpack.c.h.b16 %v2232
    %v2374 = vunpack.c.l.b16 %v2233
    %v2375 = vunpack.c.h.b16 %v2233
    %v2376 = vunpack.c.l.b16 %v2234
    %v2377 = vunpack.c.h.b16 %v2234
    %v2378 = vunpack.c.l.b16 %v2235
    %v2379 = vunpack.c.h.b16 %v2235
    %v2380 = vunpack.c.l.b16 %v2236
    %v2381 = vunpack.c.h.b16 %v2236
    %v2382 = vunpack.c.l.b16 %v2237
    %v2383 = vunpack.c.h.b16 %v2237
    %v2384 = vunpack.c.l.b16 %v2238
    %v2385 = vunpack.c.h.b16 %v2238
    %v2386 = vunpack.c.l.b16 %v2239
    %v2387 = vunpack.c.h.b16 %v2239
    %v2388 = vunpack.c.l.b16 %v2240
    %v2389 = vunpack.c.h.b16 %v2240
    %v2390 = vunpack.c.l.b16 %v2241
    %v2391 = vunpack.c.h.b16 %v2241
    %v2392 = vunpack.c.l.b16 %v2242
    %v2393 = vunpack.c.h.b16 %v2242
    %v2394 = vunpack.c.l.b16 %v2243
    %v2395 = vunpack.c.h.b16 %v2243
    %v2396 = vunpack.c.l.b16 %v2244
    %v2397 = vunpack.c.h.b16 %v2244
    %v2398 = vunpack.c.l.b16 %v2245
    %v2399 = vunpack.c.h.b16 %v2245
    %v2400 = vunpack.c.l.b16 %v2246
    %v2401 = vunpack.c.h.b16 %v2246
    %v2402 = vunpack.c.l.b16 %v2247
    %v2403 = vunpack.c.h.b16 %v2247
    %v2404 = vunpack.c.l.b16 %v2248
    %v2405 = vunpack.c.h.b16 %v2248
    %v2406 = vunpack.c.l.b16 %v2249
    %v2407 = vunpack.c.h.b16 %v2249
    %v2408 = vunpack.c.l.b16 %v2250
    %v2409 = vunpack.c.h.b16 %v2250
    %v2410 = vunpack.c.l.b16 %v2251
    %v2411 = vunpack.c.h.b16 %v2251
    %v2412 = vunpack.c.l.b16 %v2252
    %v2413 = vunpack.c.h.b16 %v2252
    %v2414 = vunpack.c.l.b16 %v2253
    %v2415 = vunpack.c.h.b16 %v2253
    %v2416 = vunpack.c.l.b16 %v2254
    %v2417 = vunpack.c.h.b16 %v2254
    %v2418 = vunpack.c.l.b16 %v2255
    %v2419 = vunpack.c.h.b16 %v2255
    %v2420 = vunpack.c.l.b16 %v2256
    %v2421 = vunpack.c.h.b16 %v2256
    %v2422 = vunpack.c.l.b16 %v2257
    %v2423 = vunpack.c.h.b16 %v2257
    %v2424 = vunpack.c.l.b16 %v2258
    %v2425 = vunpack.c.h.b16 %v2258
    %v2426 = vunpack.c.l.b16 %v2259
    %v2427 = vunpack.c.h.b16 %v2259
    %v2428 = vunpack.c.l.b16 %v2260
    %v2429 = vunpack.c.h.b16 %v2260
    %v2430 = vunpack.c.l.b16 %v2261
    %v2431 = vunpack.c.h.b16 %v2261
    %v2432 = vunpack.c.l.b16 %v2262
    %v2433 = vunpack.c.h.b16 %v2262
    %v2434 = vunpack.c.l.b16 %v2263
    %v2435 = vunpack.c.h.b16 %v2263
    %v2436 = vunpack.c.l.b16 %v2264
    %v2437 = vunpack.c.h.b16 %v2264
    %v2438 = vunpack.c.l.b16 %v2265
    %v2439 = vunpack.c.h.b16 %v2265
    %v2440 = vunpack.c.l.b16 %v2266
    %v2441 = vunpack.c.h.b16 %v2266
    %v2442 = vunpack.c.l.b16 %v2267
    %v2443 = vunpack.c.h.b16 %v2267
    %v2444 = vunpack.c.l.b16 %v2268
    %v2445 = vunpack.c.h.b16 %v2268
    %v2446 = vunpack.c.l.b16 %v2269
    %v2447 = vunpack.c.h.b16 %v2269
    %v2448 = vunpack.c.l.b16 %v2270
    %v2449 = vunpack.c.h.b16 %v2270
    %v2450 = vunpack.c.l.b16 %v2271
    %v2451 = vunpack.c.h.b16 %v2271
    %v2452 = vunpack.c.l.b16 %v2272
    %v2453 = vunpack.c.h.b16 %v2272
    %v2454 = vunpack.c.l.b16 %v2273
    %v2455 = vunpack.c.h.b16 %v2273
    %v2456 = vunpack.c.l.b16 %v2274
    %v2457 = vunpack.c.h.b16 %v2274
    %v2458 = vunpack.c.l.b16 %v2275
    %v2459 = vunpack.c.h.b16 %v2275
    %v2460 = vunpack.c.l.b16 %v2276
    %v2461 = vunpack.c.h.b16 %v2276
    %v2462 = vunpack.c.l.b16 %v2277
    %v2463 = vunpack.c.h.b16 %v2277
    %v2464 = vunpack.c.l.b16 %v2278
    %v2465 = vunpack.c.h.b16 %v2278
    %v2466 = vunpack.c.l.b16 %v2279
    %v2467 = vunpack.c.h.b16 %v2279
    %v2468 = vunpack.c.l.b16 %v2280
    %v2469 = vunpack.c.h.b16 %v2280
    %v2470 = vunpack.c.l.b16 %v2281
    %v2471 = vunpack.c.h.b16 %v2281
    %v2472 = vunpack.c.l.b16 %v2282
    %v2473 = vunpack.c.h.b16 %v2282
    %v2474 = vunpack.c.l.b16 %v2283
    %v2475 = vunpack.c.h.b16 %v2283
    %v2476 = vunpack.c.l.b16 %v2284
    %v2477 = vunpack.c.h.b16 %v2284
    %v2478 = vunpack.c.l.b16 %v2285
    %v2479 = vunpack.c.h.b16 %v2285
    %v2480 = vunpack.c.l.b16 %v2286
    %v2481 = vunpack.c.h.b16 %v2286
    %v2482 = vunpack.c.l.b16 %v2287
    %v2483 = vunpack.c.h.b16 %v2287
    %v2484 = vunpack.c.l.b16 %v2288
    %v2485 = vunpack.c.h.b16 %v2288
    %v2486 = vunpack.c.l.b16 %v2289
    %v2487 = vunpack.c.h.b16 %v2289
    %v2488 = vunpack.c.l.b16 %v2290
    %v2489 = vunpack.c.h.b16 %v2290
    %v2490 = vunpack.c.l.b16 %v2291
    %v2491 = vunpack.c.h.b16 %v2291
    %v2492 = vunpack.c.l.b16 %v2292
    %v2493 = vunpack.c.h.b16 %v2292
    %v2494 = vunpack.c.l.b16 %v2293
    %v2495 = vunpack.c.h.b16 %v2293
    %v2496 = vunpack.c.l.b16 %v2294
    %v2497 = vunpack.c.h.b16 %v2294
    %v2498 = vunpack.c.l.b16 %v2295
    %v2499 = vunpack.c.h.b16 %v2295
    %v2500 = vpack.c.b16 %v2374, %v2372
    %v2501 = vpack.c.b16 %v2375, %v2373
    %v2502 = vpack.c.b16 %v2378, %v2376
    %v2503 = vpack.c.b16 %v2379, %v2377
    %v2504 = vpack.c.b16 %v2382, %v2380
    %v2505 = vpack.c.b16 %v2383, %v2381
    %v2506 = vpack.c.b16 %v2386, %v2384
    %v2507 = vpack.c.b16 %v2387, %v2385
    %v2508 = vpack.c.b16 %v2390, %v2388
    %v2509 = vpack.c.b16 %v2391, %v2389
    %v2510 = vpack.c.b16 %v2394, %v2392
    %v2511 = vpack.c.b16 %v2395, %v2393
    %v2512 = vpack.c.b16 %v2398, %v2396
    %v2513 = vpack.c.b16 %v2399, %v2397
    %v2514 = vpack.c.b16 %v2402, %v2400
    %v2515 = vpack.c.b16 %v2403, %v2401
    %v2516 = vpack.c.b16 %v2406, %v2404
    %v2517 = vpack.c.b16 %v2407, %v2405
    %v2518 = vpack.c.b16 %v2410, %v2408
    %v2519 = vpack.c.b16 %v2411, %v2409
    %v2520 = vpack.c.b16 %v2414, %v2412
    %v2521 = vpack.c.b16 %v2415, %v2413
    %v2522 = vpack.c.b16 %v2418, %v2416
    %v2523 = vpack.c.b16 %v2419, %v2417
    %v2524 = vpack.c.b16 %v2422, %v2420
    %v2525 = vpack.c.b16 %v2423, %v2421
    %v2526 = vpack.c.b16 %v2426, %v2424
    %v2527 = vpack.c.b16 %v2427, %v2425
    %v2528 = vpack.c.b16 %v2430, %v2428
    %v2529 = vpack.c.b16 %v2431, %v2429
    %v2530 = vpack.c.b16 %v2434, %v2432
    %v2531 = vpack.c.b16 %v2435, %v2433
    %v2532 = vpack.c.b16 %v2438, %v2436
    %v2533 = vpack.c.b16 %v2439, %v2437
    %v2534 = vpack.c.b16 %v2442, %v2440
    %v2535 = vpack.c.b16 %v2443, %v2441
    %v2536 = vpack.c.b16 %v2446, %v2444
    %v2537 = vpack.c.b16 %v2447, %v2445
    %v2538 = vpack.c.b16 %v2450, %v2448
    %v2539 = vpack.c.b16 %v2451, %v2449
    %v2540 = vpack.c.b16 %v2454, %v2452
    %v2541 = vpack.c.b16 %v2455, %v2453
    %v2542 = vpack.c.b16 %v2458, %v2456
    %v2543 = vpack.c.b16 %v2459, %v2457
    %v2544 = vpack.c.b16 %v2462, %v2460
    %v2545 = vpack.c.b16 %v2463, %v2461
    %v2546 = vpack.c.b16 %v2466, %v2464
    %v2547 = vpack.c.b16 %v2467, %v2465
    %v2548 = vpack.c.b16 %v2470, %v2468
    %v2549 = vpack.c.b16 %v2471, %v2469
    %v2550 = vpack.c.b16 %v2474, %v2472
    %v2551 = vpack.c.b16 %v2475, %v2473
    %v2552 = vpack.c.b16 %v2478, %v2476
    %v2553 = vpack.c.b16 %v2479, %v2477
    %v2554 = vpack.c.b16 %v2482, %v2480
    %v2555 = vpack.c.b16 %v2483, %v2481
    %v2556 = vpack.c.b16 %v2486, %v2484
    %v2557 = vpack.c.b16 %v2487, %v2485
    %v2558 = vpack.c.b16 %v2490, %v2488
    %v2559 = vpack.c.b16 %v2491, %v2489
    %v2560 = vpack.c.b16 %v2494, %v2492
    %v2561 = vpack.c.b16 %v2495, %v2493
    %v2562 = vpack.c.b16 %v2498, %v2496
    %v2563 = vpack.c.b16 %v2499, %v2497
    %2628 = vmatprep.subr.bf16.mxu0 %v2501
    %2629 = vmatpush1.bf16.msra.mxu0 %v2500
    %2630 = vmatprep.subr.bf16.mxu0 %v2503
    %2631 = vmatpush1.bf16.msra.mxu0 %v2502
    %2632 = vmatprep.subr.bf16.mxu0 %v2505
    %2633 = vmatpush1.bf16.msra.mxu0 %v2504
    %2634 = vmatprep.subr.bf16.mxu0 %v2507
    %2635 = vmatpush1.bf16.msra.mxu0 %v2506
    %2636 = vmatprep.subr.bf16.mxu0 %v2509
    %2637 = vmatpush1.bf16.msra.mxu0 %v2508
    %2638 = vmatprep.subr.bf16.mxu0 %v2511
    %2639 = vmatpush1.bf16.msra.mxu0 %v2510
    %2640 = vmatprep.subr.bf16.mxu0 %v2513
    %2641 = vmatpush1.bf16.msra.mxu0 %v2512
    %2642 = vmatprep.subr.bf16.mxu0 %v2515
    %2643 = vmatpush1.bf16.msra.mxu0 %v2514
    %2644 = vmatprep.subr.bf16.mxu0 %v2517
    %2645 = vmatpush1.bf16.msra.mxu0 %v2516
    %2646 = vmatprep.subr.bf16.mxu0 %v2519
    %2647 = vmatpush1.bf16.msra.mxu0 %v2518
    %2648 = vmatprep.subr.bf16.mxu0 %v2521
    %2649 = vmatpush1.bf16.msra.mxu0 %v2520
    %2650 = vmatprep.subr.bf16.mxu0 %v2523
    %2651 = vmatpush1.bf16.msra.mxu0 %v2522
    %2652 = vmatprep.subr.bf16.mxu0 %v2525
    %2653 = vmatpush1.bf16.msra.mxu0 %v2524
    %2654 = vmatprep.subr.bf16.mxu0 %v2527
    %2655 = vmatpush1.bf16.msra.mxu0 %v2526
    %2656 = vmatprep.subr.bf16.mxu0 %v2529
    %2657 = vmatpush1.bf16.msra.mxu0 %v2528
    %2658 = vmatprep.subr.bf16.mxu0 %v2531
    %2659 = vmatpush1.bf16.msra.mxu0 %v2530
    %2660 = vmatprep.mubr.bf16.mxu0 %v2229
    %2661 = vmatmul.mubr.bf16.gmra.mrb[0].mxu0 %v2228
    %v2662 = vpop.f32.mrb[0].mxu0
    %v2663 = vadd.f32 %v2301, %v2662
    %v2664 = vpop.f32.mrb[0].mxu0
    %v2665 = vadd.f32 %v2305, %v2664
    %v2666 = vpop.f32.mrb[0].mxu0
    %v2667 = vpop.f32.mrb[0].mxu0
    %2668 = vdwg.mxu0
    %2669 = vmatprep.subr.bf16.mxu0 %v2533
    %2670 = vmatpush1.bf16.msra.mxu0 %v2532
    %2671 = vmatprep.subr.bf16.mxu0 %v2535
    %2672 = vmatpush1.bf16.msra.mxu0 %v2534
    %2673 = vmatprep.subr.bf16.mxu0 %v2537
    %2674 = vmatpush1.bf16.msra.mxu0 %v2536
    %2675 = vmatprep.subr.bf16.mxu0 %v2539
    %2676 = vmatpush1.bf16.msra.mxu0 %v2538
    %2677 = vmatprep.subr.bf16.mxu0 %v2541
    %2678 = vmatpush1.bf16.msra.mxu0 %v2540
    %2679 = vmatprep.subr.bf16.mxu0 %v2543
    %2680 = vmatpush1.bf16.msra.mxu0 %v2542
    %2681 = vmatprep.subr.bf16.mxu0 %v2545
    %2682 = vmatpush1.bf16.msra.mxu0 %v2544
    %2683 = vmatprep.subr.bf16.mxu0 %v2547
    %2684 = vmatpush1.bf16.msra.mxu0 %v2546
    %2685 = vmatprep.subr.bf16.mxu0 %v2549
    %2686 = vmatpush1.bf16.msra.mxu0 %v2548
    %2687 = vmatprep.subr.bf16.mxu0 %v2551
    %2688 = vmatpush1.bf16.msra.mxu0 %v2550
    %2689 = vmatprep.subr.bf16.mxu0 %v2553
    %2690 = vmatpush1.bf16.msra.mxu0 %v2552
    %2691 = vmatprep.subr.bf16.mxu0 %v2555
    %2692 = vmatpush1.bf16.msra.mxu0 %v2554
    %2693 = vmatprep.subr.bf16.mxu0 %v2557
    %2694 = vmatpush1.bf16.msra.mxu0 %v2556
    %2695 = vmatprep.subr.bf16.mxu0 %v2559
    %2696 = vmatpush1.bf16.msra.mxu0 %v2558
    %2697 = vmatprep.subr.bf16.mxu0 %v2561
    %2698 = vmatpush1.bf16.msra.mxu0 %v2560
    %2699 = vmatprep.subr.bf16.mxu0 %v2563
    %2700 = vmatpush1.bf16.msra.mxu0 %v2562
    %2701 = vmatprep.mubr.bf16.mxu0 %v2231
    %2702 = vmatmul.mubr.bf16.gmra.mrb[0].mxu0 %v2230
    %v2703 = vpop.f32.mrb[0].mxu0
    %v2704 = vadd.f32 %v2663, %v2703
    %v2705 = vpop.f32.mrb[0].mxu0
    %v2706 = vadd.f32 %v2665, %v2705
    %v2707 = vpop.f32.mrb[0].mxu0
    %v2708 = vpop.f32.mrb[0].mxu0
    %2709 = vdwg.mxu0
    %v2710 = vmax.f32 %v2704, 0.0
    %v2711 = vmax.f32 %v2706, 0.0
    %v2712 = vpack.c.bf16 %v2710, %v2710
    %v2713 = vpack.c.bf16 %v2711, %v2711
    %v2714 = vld [vmem:[%s17] sm:$0xf]
    %v2715 = vld [vmem:[%s17 + $0x4] sm:$0xf]
    %v2716 = vld [vmem:[%s17 + $0x8] sm:$0xf]
    %v2717 = vld [vmem:[%s17 + $0xc] sm:$0xf]
    %v2718 = vld [vmem:[%s17 + $0x10] sm:$0xf]
    %v2719 = vld [vmem:[%s17 + $0x14] sm:$0xf]
    %v2720 = vld [vmem:[%s17 + $0x18] sm:$0xf]
    %v2721 = vld [vmem:[%s17 + $0x1c] sm:$0xf]
    %v2722 = vld [vmem:[%s17 + $0x20] sm:$0xf]
    %v2723 = vld [vmem:[%s17 + $0x24] sm:$0xf]
    %v2724 = vld [vmem:[%s17 + $0x28] sm:$0xf]
    %v2725 = vld [vmem:[%s17 + $0x2c] sm:$0xf]
    %v2726 = vld [vmem:[%s17 + $0x30] sm:$0xf]
    %v2727 = vld [vmem:[%s17 + $0x34] sm:$0xf]
    %v2728 = vld [vmem:[%s17 + $0x38] sm:$0xf]
    %v2729 = vld [vmem:[%s17 + $0x3c] sm:$0xf]
    %v2730 = vld [vmem:[%s17 + $0x40] sm:$0xf]
    %v2731 = vld [vmem:[%s17 + $0x44] sm:$0xf]
    %v2732 = vld [vmem:[%s17 + $0x48] sm:$0xf]
    %v2733 = vld [vmem:[%s17 + $0x4c] sm:$0xf]
    %v2734 = vld [vmem:[%s17 + $0x50] sm:$0xf]
    %v2735 = vld [vmem:[%s17 + $0x54] sm:$0xf]
    %v2736 = vld [vmem:[%s17 + $0x58] sm:$0xf]
    %v2737 = vld [vmem:[%s17 + $0x5c] sm:$0xf]
    %v2738 = vld [vmem:[%s17 + $0x60] sm:$0xf]
    %v2739 = vld [vmem:[%s17 + $0x64] sm:$0xf]
    %v2740 = vld [vmem:[%s17 + $0x68] sm:$0xf]
    %v2741 = vld [vmem:[%s17 + $0x6c] sm:$0xf]
    %v2742 = vld [vmem:[%s17 + $0x70] sm:$0xf]
    %v2743 = vld [vmem:[%s17 + $0x74] sm:$0xf]
    %v2744 = vld [vmem:[%s17 + $0x78] sm:$0xf]
    %v2745 = vld [vmem:[%s17 + $0x7c] sm:$0xf]
    %v2746 = vld [vmem:[#allocation14] sm:$0x1]
    %v2748 = vlaneseq
    %v2749 = vshrl.u32 %v2748, 7
    %v2750 = vsub.s32 0, %v2749
    %v2751 = vrot.slane %v2746, %v2750
    %v2785 = vunpack.c.l.b16 %v2714
    %v2786 = vunpack.c.l.b16 %v2715
    %v2787 = vunpack.c.l.b16 %v2716
    %v2788 = vunpack.c.l.b16 %v2717
    %v2789 = vunpack.c.l.b16 %v2718
    %v2790 = vunpack.c.l.b16 %v2719
    %v2791 = vunpack.c.l.b16 %v2720
    %v2792 = vunpack.c.l.b16 %v2721
    %v2793 = vunpack.c.l.b16 %v2722
    %v2794 = vunpack.c.l.b16 %v2723
    %v2795 = vunpack.c.l.b16 %v2724
    %v2796 = vunpack.c.l.b16 %v2725
    %v2797 = vunpack.c.l.b16 %v2726
    %v2798 = vunpack.c.l.b16 %v2727
    %v2799 = vunpack.c.l.b16 %v2728
    %v2800 = vunpack.c.l.b16 %v2729
    %v2801 = vunpack.c.l.b16 %v2730
    %v2802 = vunpack.c.l.b16 %v2731
    %v2803 = vunpack.c.l.b16 %v2732
    %v2804 = vunpack.c.l.b16 %v2733
    %v2805 = vunpack.c.l.b16 %v2734
    %v2806 = vunpack.c.l.b16 %v2735
    %v2807 = vunpack.c.l.b16 %v2736
    %v2808 = vunpack.c.l.b16 %v2737
    %v2809 = vunpack.c.l.b16 %v2738
    %v2810 = vunpack.c.l.b16 %v2739
    %v2811 = vunpack.c.l.b16 %v2740
    %v2812 = vunpack.c.l.b16 %v2741
    %v2813 = vunpack.c.l.b16 %v2742
    %v2814 = vunpack.c.l.b16 %v2743
    %v2815 = vunpack.c.l.b16 %v2744
    %v2816 = vunpack.c.l.b16 %v2745
    %v2817 = vpack.c.b16 %v2786, %v2785
    %v2818 = vpack.c.b16 %v2788, %v2787
    %v2819 = vpack.c.b16 %v2790, %v2789
    %v2820 = vpack.c.b16 %v2792, %v2791
    %v2821 = vpack.c.b16 %v2794, %v2793
    %v2822 = vpack.c.b16 %v2796, %v2795
    %v2823 = vpack.c.b16 %v2798, %v2797
    %v2824 = vpack.c.b16 %v2800, %v2799
    %v2825 = vpack.c.b16 %v2802, %v2801
    %v2826 = vpack.c.b16 %v2804, %v2803
    %v2827 = vpack.c.b16 %v2806, %v2805
    %v2828 = vpack.c.b16 %v2808, %v2807
    %v2829 = vpack.c.b16 %v2810, %v2809
    %v2830 = vpack.c.b16 %v2812, %v2811
    %v2831 = vpack.c.b16 %v2814, %v2813
    %v2832 = vpack.c.b16 %v2816, %v2815
    %2849 = vmatprep.subr.bf16.mxu0 0
    %2850 = vmatpush1.bf16.msra.mxu0 %v2817
    %2851 = vmatprep.subr.bf16.mxu0 0
    %2852 = vmatpush1.bf16.msra.mxu0 %v2818
    %2853 = vmatprep.subr.bf16.mxu0 0
    %2854 = vmatpush1.bf16.msra.mxu0 %v2819
    %2855 = vmatprep.subr.bf16.mxu0 0
    %2856 = vmatpush1.bf16.msra.mxu0 %v2820
    %2857 = vmatprep.subr.bf16.mxu0 0
    %2858 = vmatpush1.bf16.msra.mxu0 %v2821
    %2859 = vmatprep.subr.bf16.mxu0 0
    %2860 = vmatpush1.bf16.msra.mxu0 %v2822
    %2861 = vmatprep.subr.bf16.mxu0 0
    %2862 = vmatpush1.bf16.msra.mxu0 %v2823
    %2863 = vmatprep.subr.bf16.mxu0 0
    %2864 = vmatpush1.bf16.msra.mxu0 %v2824
    %2865 = vmatprep.subr.bf16.mxu0 0
    %2866 = vmatpush1.bf16.msra.mxu0 %v2825
    %2867 = vmatprep.subr.bf16.mxu0 0
    %2868 = vmatpush1.bf16.msra.mxu0 %v2826
    %2869 = vmatprep.subr.bf16.mxu0 0
    %2870 = vmatpush1.bf16.msra.mxu0 %v2827
    %2871 = vmatprep.subr.bf16.mxu0 0
    %2872 = vmatpush1.bf16.msra.mxu0 %v2828
    %2873 = vmatprep.subr.bf16.mxu0 0
    %2874 = vmatpush1.bf16.msra.mxu0 %v2829
    %2875 = vmatprep.subr.bf16.mxu0 0
    %2876 = vmatpush1.bf16.msra.mxu0 %v2830
    %2877 = vmatprep.subr.bf16.mxu0 0
    %2878 = vmatpush1.bf16.msra.mxu0 %v2831
    %2879 = vmatprep.subr.bf16.mxu0 0
    %2880 = vmatpush1.bf16.msra.mxu0 %v2832
    %2881 = vmatprep.mubr.bf16.mxu0 %v2713
    %2882 = vmatmul.mubr.bf16.gmra.mrb[0].mxu0 %v2712
    %v2883 = vpop.f32.mrb[0].mxu0
    %v2884 = vadd.f32 %v2751, %v2883
    %v2885 = vpop.f32.mrb[0].mxu0
    %v2886 = vpop.f32.mrb[0].mxu0
    %v2887 = vpop.f32.mrb[0].mxu0
    %2888 = vdwg.mxu0
    %vm2889 = vcmask 123904
    %2890 = vst.msk [vmem:[#allocation23] sm:$0x3] %vm2889, %v2884
    %v2891 = vld [vmem:[%s19] sm:$0xff]
    %v2892 = vld [vmem:[%s19 + $0x8] sm:$0xff]
    %v2893 = vld [vmem:[%s19 + $0x10] sm:$0xff]
    %v2894 = vld [vmem:[%s19 + $0x18] sm:$0xff]
    %v2895 = vld [vmem:[%s19 + $0x20] sm:$0xff]
    %v2896 = vld [vmem:[%s19 + $0x28] sm:$0xff]
    %v2897 = vld [vmem:[%s19 + $0x30] sm:$0xff]
    %v2898 = vld [vmem:[%s19 + $0x38] sm:$0xff]
    %v2899 = vld [vmem:[%s19 + $0x40] sm:$0xff]
    %v2900 = vld [vmem:[%s19 + $0x48] sm:$0xff]
    %v2901 = vld [vmem:[%s19 + $0x50] sm:$0xff]
    %v2902 = vld [vmem:[%s19 + $0x58] sm:$0xff]
    %v2903 = vld [vmem:[%s19 + $0x60] sm:$0xff]
    %v2904 = vld [vmem:[%s19 + $0x68] sm:$0xff]
    %v2905 = vld [vmem:[%s19 + $0x70] sm:$0xff]
    %v2906 = vld [vmem:[%s19 + $0x78] sm:$0xff]
    %v2907 = vld [vmem:[#allocation16] sm:$0x3]
    %v2909 = vlaneseq
    %v2910 = vshrl.u32 %v2909, 7
    %v2911 = vsub.s32 0, %v2910
    %v2912 = vrot.slane %v2907, %v2911
    %v2913 = vlaneseq
    %v2914 = vshrl.u32 %v2913, 7
    %v2915 = vsub.s32 1, %v2914
    %v2916 = vrot.slane %v2907, %v2915
    %v2935 = vunpack.c.l.b16 %v2891
    %v2936 = vunpack.c.h.b16 %v2891
    %v2937 = vunpack.c.l.b16 %v2892
    %v2938 = vunpack.c.h.b16 %v2892
    %v2939 = vunpack.c.l.b16 %v2893
    %v2940 = vunpack.c.h.b16 %v2893
    %v2941 = vunpack.c.l.b16 %v2894
    %v2942 = vunpack.c.h.b16 %v2894
    %v2943 = vunpack.c.l.b16 %v2895
    %v2944 = vunpack.c.h.b16 %v2895
    %v2945 = vunpack.c.l.b16 %v2896
    %v2946 = vunpack.c.h.b16 %v2896
    %v2947 = vunpack.c.l.b16 %v2897
    %v2948 = vunpack.c.h.b16 %v2897
    %v2949 = vunpack.c.l.b16 %v2898
    %v2950 = vunpack.c.h.b16 %v2898
    %v2951 = vunpack.c.l.b16 %v2899
    %v2952 = vunpack.c.h.b16 %v2899
    %v2953 = vunpack.c.l.b16 %v2900
    %v2954 = vunpack.c.h.b16 %v2900
    %v2955 = vunpack.c.l.b16 %v2901
    %v2956 = vunpack.c.h.b16 %v2901
    %v2957 = vunpack.c.l.b16 %v2902
    %v2958 = vunpack.c.h.b16 %v2902
    %v2959 = vunpack.c.l.b16 %v2903
    %v2960 = vunpack.c.h.b16 %v2903
    %v2961 = vunpack.c.l.b16 %v2904
    %v2962 = vunpack.c.h.b16 %v2904
    %v2963 = vunpack.c.l.b16 %v2905
    %v2964 = vunpack.c.h.b16 %v2905
    %v2965 = vunpack.c.l.b16 %v2906
    %v2966 = vunpack.c.h.b16 %v2906
    %v2967 = vpack.c.b16 %v2937, %v2935
    %v2968 = vpack.c.b16 %v2938, %v2936
    %v2969 = vpack.c.b16 %v2941, %v2939
    %v2970 = vpack.c.b16 %v2942, %v2940
    %v2971 = vpack.c.b16 %v2945, %v2943
    %v2972 = vpack.c.b16 %v2946, %v2944
    %v2973 = vpack.c.b16 %v2949, %v2947
    %v2974 = vpack.c.b16 %v2950, %v2948
    %v2975 = vpack.c.b16 %v2953, %v2951
    %v2976 = vpack.c.b16 %v2954, %v2952
    %v2977 = vpack.c.b16 %v2957, %v2955
    %v2978 = vpack.c.b16 %v2958, %v2956
    %v2979 = vpack.c.b16 %v2961, %v2959
    %v2980 = vpack.c.b16 %v2962, %v2960
    %v2981 = vpack.c.b16 %v2965, %v2963
    %v2982 = vpack.c.b16 %v2966, %v2964
    %2999 = vmatprep.subr.bf16.mxu0 %v2968
    %3000 = vmatpush1.bf16.msra.mxu0 %v2967
    %3001 = vmatprep.subr.bf16.mxu0 %v2970
    %3002 = vmatpush1.bf16.msra.mxu0 %v2969
    %3003 = vmatprep.subr.bf16.mxu0 %v2972
    %3004 = vmatpush1.bf16.msra.mxu0 %v2971
    %3005 = vmatprep.subr.bf16.mxu0 %v2974
    %3006 = vmatpush1.bf16.msra.mxu0 %v2973
    %3007 = vmatprep.subr.bf16.mxu0 %v2976
    %3008 = vmatpush1.bf16.msra.mxu0 %v2975
    %3009 = vmatprep.subr.bf16.mxu0 %v2978
    %3010 = vmatpush1.bf16.msra.mxu0 %v2977
    %3011 = vmatprep.subr.bf16.mxu0 %v2980
    %3012 = vmatpush1.bf16.msra.mxu0 %v2979
    %3013 = vmatprep.subr.bf16.mxu0 %v2982
    %3014 = vmatpush1.bf16.msra.mxu0 %v2981
    %3015 = vmatprep.subr.bf16.mxu0 0
    %3016 = vmatpush1.bf16.msra.mxu0 0
    %3017 = vmatprep.subr.bf16.mxu0 0
    %3018 = vmatpush1.bf16.msra.mxu0 0
    %3019 = vmatprep.subr.bf16.mxu0 0
    %3020 = vmatpush1.bf16.msra.mxu0 0
    %3021 = vmatprep.subr.bf16.mxu0 0
    %3022 = vmatpush1.bf16.msra.mxu0 0
    %3023 = vmatprep.subr.bf16.mxu0 0
    %3024 = vmatpush1.bf16.msra.mxu0 0
    %3025 = vmatprep.subr.bf16.mxu0 0
    %3026 = vmatpush1.bf16.msra.mxu0 0
    %3027 = vmatprep.subr.bf16.mxu0 0
    %3028 = vmatpush1.bf16.msra.mxu0 0
    %3029 = vmatprep.subr.bf16.mxu0 0
    %3030 = vmatpush1.bf16.msra.mxu0 0
    %3031 = vmatprep.mubr.bf16.mxu0 0
    %3032 = vmatmul.mubr.bf16.gmra.mrb[0].mxu0 %v215
    %v3033 = vpop.f32.mrb[0].mxu0
    %v3034 = vadd.f32 %v2912, %v3033
    %v3035 = vpop.f32.mrb[0].mxu0
    %v3036 = vadd.f32 %v2916, %v3035
    %v3037 = vpop.f32.mrb[0].mxu0
    %v3038 = vpop.f32.mrb[0].mxu0
    %3039 = vdwg.mxu0
    %v3040 = vmax.f32 %v3034, 0.0
    %v3041 = vmax.f32 %v3036, 0.0
    %v3042 = vpack.c.bf16 %v3040, %v3040
    %v3043 = vpack.c.bf16 %v3041, %v3041
    %v3044 = vld [vmem:[%s21] sm:$0xf]
    %v3045 = vld [vmem:[%s21 + $0x4] sm:$0xf]
    %v3046 = vld [vmem:[%s21 + $0x8] sm:$0xf]
    %v3047 = vld [vmem:[%s21 + $0xc] sm:$0xf]
    %v3048 = vld [vmem:[%s21 + $0x10] sm:$0xf]
    %v3049 = vld [vmem:[%s21 + $0x14] sm:$0xf]
    %v3050 = vld [vmem:[%s21 + $0x18] sm:$0xf]
    %v3051 = vld [vmem:[%s21 + $0x1c] sm:$0xf]
    %v3052 = vld [vmem:[%s21 + $0x20] sm:$0xf]
    %v3053 = vld [vmem:[%s21 + $0x24] sm:$0xf]
    %v3054 = vld [vmem:[%s21 + $0x28] sm:$0xf]
    %v3055 = vld [vmem:[%s21 + $0x2c] sm:$0xf]
    %v3056 = vld [vmem:[%s21 + $0x30] sm:$0xf]
    %v3057 = vld [vmem:[%s21 + $0x34] sm:$0xf]
    %v3058 = vld [vmem:[%s21 + $0x38] sm:$0xf]
    %v3059 = vld [vmem:[%s21 + $0x3c] sm:$0xf]
    %v3060 = vld [vmem:[%s21 + $0x40] sm:$0xf]
    %v3061 = vld [vmem:[%s21 + $0x44] sm:$0xf]
    %v3062 = vld [vmem:[%s21 + $0x48] sm:$0xf]
    %v3063 = vld [vmem:[%s21 + $0x4c] sm:$0xf]
    %v3064 = vld [vmem:[%s21 + $0x50] sm:$0xf]
    %v3065 = vld [vmem:[%s21 + $0x54] sm:$0xf]
    %v3066 = vld [vmem:[%s21 + $0x58] sm:$0xf]
    %v3067 = vld [vmem:[%s21 + $0x5c] sm:$0xf]
    %v3068 = vld [vmem:[%s21 + $0x60] sm:$0xf]
    %v3069 = vld [vmem:[%s21 + $0x64] sm:$0xf]
    %v3070 = vld [vmem:[%s21 + $0x68] sm:$0xf]
    %v3071 = vld [vmem:[%s21 + $0x6c] sm:$0xf]
    %v3072 = vld [vmem:[%s21 + $0x70] sm:$0xf]
    %v3073 = vld [vmem:[%s21 + $0x74] sm:$0xf]
    %v3074 = vld [vmem:[%s21 + $0x78] sm:$0xf]
    %v3075 = vld [vmem:[%s21 + $0x7c] sm:$0xf]
    %v3076 = vld [vmem:[#allocation17] sm:$0x1]
    %v3078 = vlaneseq
    %v3079 = vshrl.u32 %v3078, 7
    %v3080 = vsub.s32 0, %v3079
    %v3081 = vrot.slane %v3076, %v3080
    %v3115 = vunpack.c.l.b16 %v3044
    %v3116 = vunpack.c.l.b16 %v3045
    %v3117 = vunpack.c.l.b16 %v3046
    %v3118 = vunpack.c.l.b16 %v3047
    %v3119 = vunpack.c.l.b16 %v3048
    %v3120 = vunpack.c.l.b16 %v3049
    %v3121 = vunpack.c.l.b16 %v3050
    %v3122 = vunpack.c.l.b16 %v3051
    %v3123 = vunpack.c.l.b16 %v3052
    %v3124 = vunpack.c.l.b16 %v3053
    %v3125 = vunpack.c.l.b16 %v3054
    %v3126 = vunpack.c.l.b16 %v3055
    %v3127 = vunpack.c.l.b16 %v3056
    %v3128 = vunpack.c.l.b16 %v3057
    %v3129 = vunpack.c.l.b16 %v3058
    %v3130 = vunpack.c.l.b16 %v3059
    %v3131 = vunpack.c.l.b16 %v3060
    %v3132 = vunpack.c.l.b16 %v3061
    %v3133 = vunpack.c.l.b16 %v3062
    %v3134 = vunpack.c.l.b16 %v3063
    %v3135 = vunpack.c.l.b16 %v3064
    %v3136 = vunpack.c.l.b16 %v3065
    %v3137 = vunpack.c.l.b16 %v3066
    %v3138 = vunpack.c.l.b16 %v3067
    %v3139 = vunpack.c.l.b16 %v3068
    %v3140 = vunpack.c.l.b16 %v3069
    %v3141 = vunpack.c.l.b16 %v3070
    %v3142 = vunpack.c.l.b16 %v3071
    %v3143 = vunpack.c.l.b16 %v3072
    %v3144 = vunpack.c.l.b16 %v3073
    %v3145 = vunpack.c.l.b16 %v3074
    %v3146 = vunpack.c.l.b16 %v3075
    %v3147 = vpack.c.b16 %v3116, %v3115
    %v3148 = vpack.c.b16 %v3118, %v3117
    %v3149 = vpack.c.b16 %v3120, %v3119
    %v3150 = vpack.c.b16 %v3122, %v3121
    %v3151 = vpack.c.b16 %v3124, %v3123
    %v3152 = vpack.c.b16 %v3126, %v3125
    %v3153 = vpack.c.b16 %v3128, %v3127
    %v3154 = vpack.c.b16 %v3130, %v3129
    %v3155 = vpack.c.b16 %v3132, %v3131
    %v3156 = vpack.c.b16 %v3134, %v3133
    %v3157 = vpack.c.b16 %v3136, %v3135
    %v3158 = vpack.c.b16 %v3138, %v3137
    %v3159 = vpack.c.b16 %v3140, %v3139
    %v3160 = vpack.c.b16 %v3142, %v3141
    %v3161 = vpack.c.b16 %v3144, %v3143
    %v3162 = vpack.c.b16 %v3146, %v3145
    %3179 = vmatprep.subr.bf16.mxu0 0
    %3180 = vmatpush1.bf16.msra.mxu0 %v3147
    %3181 = vmatprep.subr.bf16.mxu0 0
    %3182 = vmatpush1.bf16.msra.mxu0 %v3148
    %3183 = vmatprep.subr.bf16.mxu0 0
    %3184 = vmatpush1.bf16.msra.mxu0 %v3149
    %3185 = vmatprep.subr.bf16.mxu0 0
    %3186 = vmatpush1.bf16.msra.mxu0 %v3150
    %3187 = vmatprep.subr.bf16.mxu0 0
    %3188 = vmatpush1.bf16.msra.mxu0 %v3151
    %3189 = vmatprep.subr.bf16.mxu0 0
    %3190 = vmatpush1.bf16.msra.mxu0 %v3152
    %3191 = vmatprep.subr.bf16.mxu0 0
    %3192 = vmatpush1.bf16.msra.mxu0 %v3153
    %3193 = vmatprep.subr.bf16.mxu0 0
    %3194 = vmatpush1.bf16.msra.mxu0 %v3154
    %3195 = vmatprep.subr.bf16.mxu0 0
    %3196 = vmatpush1.bf16.msra.mxu0 %v3155
    %3197 = vmatprep.subr.bf16.mxu0 0
    %3198 = vmatpush1.bf16.msra.mxu0 %v3156
    %3199 = vmatprep.subr.bf16.mxu0 0
    %3200 = vmatpush1.bf16.msra.mxu0 %v3157
    %3201 = vmatprep.subr.bf16.mxu0 0
    %3202 = vmatpush1.bf16.msra.mxu0 %v3158
    %3203 = vmatprep.subr.bf16.mxu0 0
    %3204 = vmatpush1.bf16.msra.mxu0 %v3159
    %3205 = vmatprep.subr.bf16.mxu0 0
    %3206 = vmatpush1.bf16.msra.mxu0 %v3160
    %3207 = vmatprep.subr.bf16.mxu0 0
    %3208 = vmatpush1.bf16.msra.mxu0 %v3161
    %3209 = vmatprep.subr.bf16.mxu0 0
    %3210 = vmatpush1.bf16.msra.mxu0 %v3162
    %3211 = vmatprep.mubr.bf16.mxu0 %v3043
    %3212 = vmatmul.mubr.bf16.gmra.mrb[0].mxu0 %v3042
    %v3213 = vpop.f32.mrb[0].mxu0
    %v3214 = vadd.f32 %v3081, %v3213
    %v3215 = vpop.f32.mrb[0].mxu0
    %v3216 = vpop.f32.mrb[0].mxu0
    %v3217 = vpop.f32.mrb[0].mxu0
    %3218 = vdwg.mxu0
    %v3219 = vmax.f32 %v3214, 0.0
    %v3220 = vpack.c.bf16 %v3219, %v3219
    %v3221 = vld [vmem:[%s23] sm:$0xf]
    %v3222 = vld [vmem:[%s23 + $0x4] sm:$0xf]
    %v3223 = vld [vmem:[%s23 + $0x8] sm:$0xf]
    %v3224 = vld [vmem:[%s23 + $0xc] sm:$0xf]
    %v3225 = vld [vmem:[%s23 + $0x10] sm:$0xf]
    %v3226 = vld [vmem:[%s23 + $0x14] sm:$0xf]
    %v3227 = vld [vmem:[%s23 + $0x18] sm:$0xf]
    %v3228 = vld [vmem:[%s23 + $0x1c] sm:$0xf]
    %v3229 = vld [vmem:[#allocation19] sm:$0x1]
    %v3231 = vlaneseq
    %v3232 = vshrl.u32 %v3231, 7
    %v3233 = vsub.s32 0, %v3232
    %v3234 = vrot.slane %v3229, %v3233
    %v3244 = vunpack.c.l.b16 %v3221
    %v3245 = vunpack.c.l.b16 %v3222
    %v3246 = vunpack.c.l.b16 %v3223
    %v3247 = vunpack.c.l.b16 %v3224
    %v3248 = vunpack.c.l.b16 %v3225
    %v3249 = vunpack.c.l.b16 %v3226
    %v3250 = vunpack.c.l.b16 %v3227
    %v3251 = vunpack.c.l.b16 %v3228
    %v3252 = vpack.c.b16 %v3245, %v3244
    %v3253 = vpack.c.b16 %v3247, %v3246
    %v3254 = vpack.c.b16 %v3249, %v3248
    %v3255 = vpack.c.b16 %v3251, %v3250
    %v3261 = vsel %vm585, %v3220, 0
    %3263 = vmatprep.subr.bf16.mxu0 0
    %3264 = vmatpush1.bf16.msra.mxu0 %v3252
    %3265 = vmatprep.subr.bf16.mxu0 0
    %3266 = vmatpush1.bf16.msra.mxu0 %v3253
    %3267 = vmatprep.subr.bf16.mxu0 0
    %3268 = vmatpush1.bf16.msra.mxu0 %v3254
    %3269 = vmatprep.subr.bf16.mxu0 0
    %3270 = vmatpush1.bf16.msra.mxu0 %v3255
    %3271 = vmatprep.subr.bf16.mxu0 0
    %3272 = vmatpush1.bf16.msra.mxu0 0
    %3273 = vmatprep.subr.bf16.mxu0 0
    %3274 = vmatpush1.bf16.msra.mxu0 0
    %3275 = vmatprep.subr.bf16.mxu0 0
    %3276 = vmatpush1.bf16.msra.mxu0 0
    %3277 = vmatprep.subr.bf16.mxu0 0
    %3278 = vmatpush1.bf16.msra.mxu0 0
    %3279 = vmatprep.subr.bf16.mxu0 0
    %3280 = vmatpush1.bf16.msra.mxu0 0
    %3281 = vmatprep.subr.bf16.mxu0 0
    %3282 = vmatpush1.bf16.msra.mxu0 0
    %3283 = vmatprep.subr.bf16.mxu0 0
    %3284 = vmatpush1.bf16.msra.mxu0 0
    %3285 = vmatprep.subr.bf16.mxu0 0
    %3286 = vmatpush1.bf16.msra.mxu0 0
    %3287 = vmatprep.subr.bf16.mxu0 0
    %3288 = vmatpush1.bf16.msra.mxu0 0
    %3289 = vmatprep.subr.bf16.mxu0 0
    %3290 = vmatpush1.bf16.msra.mxu0 0
    %3291 = vmatprep.subr.bf16.mxu0 0
    %3292 = vmatpush1.bf16.msra.mxu0 0
    %3293 = vmatprep.subr.bf16.mxu0 0
    %3294 = vmatpush1.bf16.msra.mxu0 0
    %3295 = vmatprep.mubr.bf16.mxu0 0
    %3296 = vmatmul.mubr.bf16.gmra.mrb[0].mxu0 %v3261
    %v3297 = vpop.f32.mrb[0].mxu0
    %v3298 = vadd.f32 %v3234, %v3297
    %v3299 = vpop.f32.mrb[0].mxu0
    %v3300 = vpop.f32.mrb[0].mxu0
    %v3301 = vpop.f32.mrb[0].mxu0
    %3302 = vdwg.mxu0
    %vm3303 = vcmask 17408
    %3304 = vst.msk [vmem:[#allocation24] sm:$0x3] %vm3303, %v3298
    // Predicated region
    $region146: #{forward.11} parent=1 // pred_check
      _
    $region147: #{forward.11} parent=1 // pred_check_branch
      %3306 = sbr.rel (0) target = $region149
    $region148: #{forward.11} parent=1 // pred_region
      %s3308 = ssub.s32 32, 32
      %3309 = vsyncadd [#allocation4], %s3308
      %s3311 = sshll.u32 [#allocation20], 4
      %s3312 = int_to_ptr.vmem [resolvable:$true] %s3311
      %3314 = dma.vmem_to_hbm [thread:$0]  %s3312, 32, %s25, [#allocation4]
    $region149: #{forward.11} parent=1 // pred_fallthru
      _
    // Predicated region
    $region150: #{forward.11} parent=1 // pred_check
      _
    $region151: #{forward.11} parent=1 // pred_check_branch
      %3316 = sbr.rel (0) target = $region153
    $region152: #{forward.11} parent=1 // pred_region
      %s3318 = ssub.s32 128, 128
      %3319 = vsyncadd [#allocation22], %s3318
      %s3321 = sshll.u32 [#allocation21], 4
      %s3322 = int_to_ptr.vmem [resolvable:$true] %s3321
      %3324 = dma.vmem_to_hbm [thread:$0]  %s3322, 128, %s26, [#allocation22]
    $region153: #{forward.11} parent=1 // pred_fallthru
      _
    // Predicated region
    $region154: #{forward.11} parent=1 // pred_check
      _
    $region155: #{forward.11} parent=1 // pred_check_branch
      %3326 = sbr.rel (0) target = $region157
    $region156: #{forward.11} parent=1 // pred_region
      %s3328 = ssub.s32 32, 32
      %3329 = vsyncadd [#allocation22], %s3328
      %s3331 = sshll.u32 [#allocation23], 4
      %s3332 = int_to_ptr.vmem [resolvable:$true] %s3331
      %3334 = dma.vmem_to_hbm [thread:$0]  %s3332, 32, %s27, [#allocation22]
    $region157: #{forward.11} parent=1 // pred_fallthru
      _
    // Predicated region
    $region158: #{forward.11} parent=1 // pred_check
      _
    $region159: #{forward.11} parent=1 // pred_check_branch
      %3336 = sbr.rel (0) target = $region161
    $region160: #{forward.11} parent=1 // pred_region
      %s3338 = ssub.s32 32, 32
      %3339 = vsyncadd [#allocation25], %s3338
      %s3341 = sshll.u32 [#allocation24], 4
      %s3342 = int_to_ptr.vmem [resolvable:$true] %s3341
      %3344 = dma.vmem_to_hbm [thread:$0]  %s3342, 32, %s28, [#allocation25]
    $region161: #{forward.11} parent=1 // pred_fallthru
      _
    // Predicated region
    $region162: #{forward.11} parent=1 // pred_check
      _
    $region163: #{forward.11} parent=1 // pred_check_branch
      %3346 = sbr.rel (0) target = $region165
    $region164: #{forward.11} parent=1 // pred_region
      %3347 = dma.done [#allocation4], 32
    $region165: #{forward.11} parent=1 // pred_fallthru
      _
    // Predicated region
    $region166: #{forward.11} parent=1 // pred_check
      _
    $region167: #{forward.11} parent=1 // pred_check_branch
      %3349 = sbr.rel (0) target = $region169
    $region168: #{forward.11} parent=1 // pred_region
      %3350 = dma.done [#allocation22], 128
    $region169: #{forward.11} parent=1 // pred_fallthru
      _
    // Predicated region
    $region170: #{forward.11} parent=1 // pred_check
      _
    $region171: #{forward.11} parent=1 // pred_check_branch
      %3352 = sbr.rel (0) target = $region173
    $region172: #{forward.11} parent=1 // pred_region
      %3353 = dma.done [#allocation22], 32
    $region173: #{forward.11} parent=1 // pred_fallthru
      _
    // Predicated region
    $region174: #{forward.11} parent=1 // pred_check
      _
    $region175: #{forward.11} parent=1 // pred_check_branch
      %3355 = sbr.rel (0) target = $region177
    $region176: #{forward.11} parent=1 // pred_region
      %3356 = dma.done [#allocation25], 32
    $region177: #{forward.11} parent=1 // pred_fallthru
      _
    %3357 = vsyncpa [#allocation3], 1
    %3358 = vsyncpa [#allocation6], 1
    %3359 = vsyncpa [#allocation9], 1
    %3360 = vsyncpa [#allocation12], 1
    %3361 = vsyncpa [#allocation15], 1
    %3362 = vsyncpa [#allocation18], 1
    %3363 = vsyncpa [#allocation4], 1
    %3364 = vsyncpa [#allocation22], 1
    %3365 = vsyncpa [#allocation25], 1

</llo_original>
